<compile_context>
chip_gen: v7x
topology: tpu7x:2x2x1
jax: 0.10.0
libtpu: 0.0.40
codegen_flags: <defaults>
</compile_context>

<pallas_src>
import functools

import numpy as np

import jax
import jax.numpy as jnp
from jax import lax
from jax.experimental import pallas as pl
from jax.experimental.pallas import tpu as pltpu

NEG_SLOPE = 0.1


def _leaky_relu(v):
    return jnp.where(v >= 0, v, NEG_SLOPE * v)


# ----------------------------------------------------------------------------- helpers

def _vmem_limit_bytes():
    """Derive the scoped-VMEM cap from the actual chip (don't hard-code v6e numbers)."""
    try:
        cap = int(pltpu.get_tpu_info().vmem_capacity_bytes)
        return min(cap * 3 // 4, 96 * 1024 * 1024)
    except Exception:
        return 32 * 1024 * 1024


@functools.lru_cache(maxsize=1)
def _roll_matches_jnp():
    """One-time hardware probe: does pltpu.roll follow jnp.roll's shift convention?

    The fused kernel encodes the 27 conv taps as lane rotations; this tiny probe makes the
    shift sign robust across Mosaic toolchains instead of assuming it.
    """
    try:
        def _k(x_ref, o_ref):
            o_ref[...] = pltpu.roll(x_ref[...], 1, axis=1)

        x = lax.broadcasted_iota(jnp.float32, (8, 128), 1)
        y = pl.pallas_call(_k, out_shape=jax.ShapeDtypeStruct((8, 128), jnp.float32))(x)
        return bool(jnp.all(y == jnp.roll(x, 1, axis=1)))
    except Exception:
        return True


def _tap_masks(D, H, W):
    """(27, D*H*W) 0/1 masks: which flattened positions have an in-bounds neighbour for
    each of the 27 taps.  This replaces zero-padding / halo copies entirely."""
    d = np.arange(D)[:, None, None]
    h = np.arange(H)[None, :, None]
    w = np.arange(W)[None, None, :]
    rows = []
    for kd in range(3):
        for kh in range(3):
            for kw in range(3):
                v = ((d + kd - 1 >= 0) & (d + kd - 1 < D)
                     & (h + kh - 1 >= 0) & (h + kh - 1 < H)
                     & (w + kw - 1 >= 0) & (w + kw - 1 < W))
                rows.append(np.broadcast_to(v, (D, H, W)).reshape(-1))
    return jnp.asarray(np.stack(rows).astype(np.float32))


def _roll_shifts(D, H, W, matches_jnp):
    """Static lane-rotation amount per tap so that rolled[:, m] == act[:, m + off]."""
    M = D * H * W
    shifts = []
    for kd in range(3):
        for kh in range(3):
            for kw in range(3):
                off = (kd - 1) * H * W + (kh - 1) * W + (kw - 1)
                shifts.append(int((-off) % M) if matches_jnp else int(off % M))
    return tuple(shifts)


# ------------------------------------------------------------------------------ kernel

def _resblock3d_kernel(x_ref, mask_ref, w1_ref, b1_ref, w2_ref, b2_ref, w3_ref, b3_ref,
                       out_ref, *, C, M, shifts, use_im2col, compute_dtype):
    """Fused ResBlock3D for one batch element.

    x_ref    : (1, C, M)   flattened NCDHW input block (M = D*H*W on the lane axis)
    mask_ref : (27, M)     f32 0/1 in-bounds masks, one row per tap
    w*_ref   : (C, 27*C)   weight[co, k*C + ci] in compute dtype (k-major columns)
    b*_ref   : (C, 1)      f32 bias
    out_ref  : (1, C, M)   lane-dense output block
    """
    x = x_ref[0].astype(jnp.float32)                       # (C, M), also the residual

    def conv(a, w_ref, b_ref):
        # a: (C, M) f32 activation; returns Conv3d(k=3, s=1, p=1)(a) + bias, (C, M) f32.
        taps = []
        for k, s in enumerate(shifts):
            t = a if s == 0 else pltpu.roll(a, s, axis=1)   # XLU lane rotation
            taps.append(t * mask_ref[k:k + 1, :])           # zero out-of-bounds neighbours
        if use_im2col:
            # sublane concat (aligned when C % 8 == 0) -> one K = 27*C MXU matmul
            slab = jnp.concatenate(taps, axis=0).astype(compute_dtype)   # (27*C, M)
            acc = lax.dot_general(w_ref[...], slab, (((1,), (0,)), ((), ())),
                                  preferred_element_type=jnp.float32)    # (C, M)
        else:
            # tap-loop fallback: 27 K=C matmuls (lowering insurance; may also win on v7x MRB)
            acc = jnp.zeros((C, M), jnp.float32)
            for k, t in enumerate(taps):
                acc = acc + lax.dot_general(
                    w_ref[:, k * C:(k + 1) * C], t.astype(compute_dtype),
                    (((1,), (0,)), ((), ())), preferred_element_type=jnp.float32)
        return acc + b_ref[...]

    a1 = _leaky_relu(conv(x, w1_ref, b1_ref))
    a2 = _leaky_relu(conv(a1, w2_ref, b2_ref))
    y = conv(a2, w3_ref, b3_ref) + x                        # residual before the final LReLU
    out_ref[0] = _leaky_relu(y).astype(out_ref.dtype)


# ----------------------------------------------------------------------------- wrapper

def resblock3d_forward(x_ncdhw, params, *, compute_dtype=jnp.bfloat16, use_im2col=True):
    """leaky_relu(x + conv3(lrelu(conv2(lrelu(conv1(x))))), 0.1) as one pallas_call.

    x_ncdhw : (N, C, D, H, W) float32 (PyTorch layout).
    params  : w1/w2/w3 as (3, 3, 3, C_in, C_out) (= torch weight.permute(2,3,4,1,0)),
              b1/b2/b3 as (C,).
    """
    N, C, D, H, W = x_ncdhw.shape
    M = D * H * W

    limit = _vmem_limit_bytes()
    per_step = 27 * C * M * 6 + 4 * C * M * 4 + 27 * M * 4     # slabs + blocks + masks
    if per_step > limit // 2:
        # TODO(synk): tile D/M (cumulative 3-voxel halo masks) for large volumes.
        raise NotImplementedError("volume too large for the single-block fused kernel")

    x_flat = x_ncdhw.reshape(N, C, M)                   # contiguous => free, no HBM pass

    def _w(p):                                          # (3,3,3,Ci,Co) -> (Co, 27*Ci)
        return p.reshape(27 * C, C).T.astype(compute_dtype)

    w1, w2, w3 = _w(params["w1"]), _w(params["w2"]), _w(params["w3"])
    b1 = params["b1"].reshape(C, 1).astype(jnp.float32)
    b2 = params["b2"].reshape(C, 1).astype(jnp.float32)
    b3 = params["b3"].reshape(C, 1).astype(jnp.float32)
    mask = _tap_masks(D, H, W)                                   # (27, M) f32
    shifts = _roll_shifts(D, H, W, _roll_matches_jnp())

    kernel = functools.partial(_resblock3d_kernel, C=C, M=M, shifts=shifts,
                               use_im2col=use_im2col, compute_dtype=compute_dtype)

    flops = 2 * N * M * 27 * C * C * 3
    bytes_accessed = 4 * (2 * N * C * M + 27 * M) + 3 * (27 * C * C + C) * 4

    out = pl.pallas_call(
        kernel,
        out_shape=jax.ShapeDtypeStruct((N, C, M), x_ncdhw.dtype),
        grid=(N,),
        in_specs=[
            pl.BlockSpec((1, C, M), lambda n: (n, 0, 0)),        # x (and residual)
            pl.BlockSpec((27, M), lambda n: (0, 0)),             # tap masks
            pl.BlockSpec((C, 27 * C), lambda n: (0, 0)),         # w1
            pl.BlockSpec((C, 1), lambda n: (0, 0)),              # b1
            pl.BlockSpec((C, 27 * C), lambda n: (0, 0)),         # w2
            pl.BlockSpec((C, 1), lambda n: (0, 0)),              # b2
            pl.BlockSpec((C, 27 * C), lambda n: (0, 0)),         # w3
            pl.BlockSpec((C, 1), lambda n: (0, 0)),              # b3
        ],
        out_specs=pl.BlockSpec((1, C, M), lambda n: (n, 0, 0)),
        compiler_params=pltpu.CompilerParams(
            dimension_semantics=("parallel",),        # >= 2 steps feeds both v7x TCs
            vmem_limit_bytes=limit),
        cost_estimate=pl.CostEstimate(flops=int(flops), transcendentals=0,
                                      bytes_accessed=int(bytes_accessed)),
    )(x_flat, mask, w1, b1, w2, b2, w3, b3)

    return out.reshape(N, C, D, H, W)                   # contiguous => free


# ---------------- pure-JAX reference (correctness check) ----------------

def _ref_conv(x_ndhwc, w, b):
    y = lax.conv_general_dilated(
        x_ndhwc, w, window_strides=(1, 1, 1),
        padding=((1, 1), (1, 1), (1, 1)),
        dimension_numbers=("NDHWC", "DHWIO", "NDHWC"),
        precision=lax.Precision.HIGHEST)
    return y + b.reshape(1, 1, 1, 1, -1)


def resblock3d_reference(x_ncdhw, params):
    x = jnp.transpose(x_ncdhw, (0, 2, 3, 4, 1)).astype(jnp.float32)
    a1 = _leaky_relu(_ref_conv(x, params["w1"], params["b1"]))
    a2 = _leaky_relu(_ref_conv(a1, params["w2"], params["b2"]))
    y3 = _ref_conv(a2, params["w3"], params["b3"])
    out = _leaky_relu(x + y3)
    return jnp.transpose(out, (0, 4, 1, 2, 3))


if __name__ == "__main__":
    key = jax.random.PRNGKey(0)
    N, C, D, H, W = 2, 8, 4, 8, 8            # NCDHW, like the PyTorch module
    kx, kw1, kw2, kw3, kb1, kb2, kb3 = jax.random.split(key, 7)

    x = jax.random.normal(kx, (N, C, D, H, W), dtype=jnp.float32)

    fan_in = C * 27
    scale = 1.0 / (fan_in ** 0.5)
    params = {
        "w1": jax.random.normal(kw1, (3, 3, 3, C, C), jnp.float32) * scale,
        "b1": jax.random.normal(kb1, (C,), jnp.float32) * 0.05,
        "w2": jax.random.normal(kw2, (3, 3, 3, C, C), jnp.float32) * scale,
        "b2": jax.random.normal(kb2, (C,), jnp.float32) * 0.05,
        "w3": jax.random.normal(kw3, (3, 3, 3, C, C), jnp.float32) * scale,
        "b3": jax.random.normal(kb3, (C,), jnp.float32) * 0.05,
    }

    def run(compute_dtype, use_im2col):
        fwd = jax.jit(functools.partial(resblock3d_forward,
                                        compute_dtype=compute_dtype,
                                        use_im2col=use_im2col))
        return jax.block_until_ready(fwd(x, params))

    ref = resblock3d_reference(x, params)

    # f32-compute path first (tight correctness check); fall back to the tap-loop variant
    # if the toolchain rejects the sublane-concat im2col form.
    try:
        out_f32 = run(jnp.float32, True)
        im2col_ok = True
    except Exception:
        out_f32 = run(jnp.float32, False)
        im2col_ok = False
    assert out_f32.shape == (N, C, D, H, W)
    assert jnp.allclose(out_f32, ref, atol=3e-3, rtol=3e-3), "f32 mismatch vs reference"

    # default bf16 MXU-compute path (f32 accumulation) -> looser tolerance.
    out_bf16 = run(jnp.bfloat16, im2col_ok)
    assert jnp.allclose(out_bf16, ref, atol=1e-1, rtol=1e-1), "bf16 mismatch vs reference"

    print("KERNEL_OK")
</pallas_src>

<mosaic_0001>
module attributes {stable_mosaic.version = 11 : i64} {
  func.func @_resblock3d_kernel(%arg0: i32, %arg1: memref<1x8x256xf32, #tpu.memory_space<vmem>>, %arg2: memref<27x256xf32, #tpu.memory_space<vmem>>, %arg3: memref<8x216xf32, #tpu.memory_space<vmem>>, %arg4: memref<8x1xf32, #tpu.memory_space<vmem>>, %arg5: memref<8x216xf32, #tpu.memory_space<vmem>>, %arg6: memref<8x1xf32, #tpu.memory_space<vmem>>, %arg7: memref<8x216xf32, #tpu.memory_space<vmem>>, %arg8: memref<8x1xf32, #tpu.memory_space<vmem>>, %arg9: memref<1x8x256xf32, #tpu.memory_space<vmem>>) attributes {dimension_semantics = [#tpu.dimension_semantics<parallel>], iteration_bounds = array<i64: 2>, scalar_prefetch = 0 : i64, scratch_operands = 0 : i64, tpu.core_type = #tpu.core_type<tc>, window_params = [{transform_indices = @transform_0, window_bounds = array<i64: 1, 8, 256>}, {pipeline_mode = #tpu.pipeline_mode<synchronous>, transform_indices = @transform_1, window_bounds = array<i64: 27, 256>}, {pipeline_mode = #tpu.pipeline_mode<synchronous>, transform_indices = @transform_2, window_bounds = array<i64: 8, 216>}, {pipeline_mode = #tpu.pipeline_mode<synchronous>, transform_indices = @transform_3, window_bounds = array<i64: 8, 1>}, {pipeline_mode = #tpu.pipeline_mode<synchronous>, transform_indices = @transform_4, window_bounds = array<i64: 8, 216>}, {pipeline_mode = #tpu.pipeline_mode<synchronous>, transform_indices = @transform_5, window_bounds = array<i64: 8, 1>}, {pipeline_mode = #tpu.pipeline_mode<synchronous>, transform_indices = @transform_6, window_bounds = array<i64: 8, 216>}, {pipeline_mode = #tpu.pipeline_mode<synchronous>, transform_indices = @transform_7, window_bounds = array<i64: 8, 1>}, {transform_indices = @transform_8, window_bounds = array<i64: 1, 8, 256>}]} {
    %c0 = arith.constant 0 : index
    %c0_0 = arith.constant 0 : index
    %c0_1 = arith.constant 0 : index
    %0 = vector.load %arg1[%c0, %c0_0, %c0_1] : memref<1x8x256xf32, #tpu.memory_space<vmem>>, vector<1x8x256xf32>
    %1 = vector.shape_cast %0 : vector<1x8x256xf32> to vector<8x256xf32>
    %c73_i32 = arith.constant 73 : i32
    %2 = tpu.dynamic_rotate %1 by %c73_i32 dim 1 : vector<8x256xf32>, i32 -> vector<8x256xf32>
    %c0_2 = arith.constant 0 : index
    %c0_3 = arith.constant 0 : index
    %3 = vector.load %arg2[%c0_2, %c0_3] : memref<27x256xf32, #tpu.memory_space<vmem>>, vector<1x256xf32>
    %4 = vector.broadcast %3 : vector<1x256xf32> to vector<8x256xf32>
    %5 = arith.mulf %2, %4 : vector<8x256xf32>
    %c72_i32 = arith.constant 72 : i32
    %6 = tpu.dynamic_rotate %1 by %c72_i32 dim 1 : vector<8x256xf32>, i32 -> vector<8x256xf32>
    %c1 = arith.constant 1 : index
    %c0_4 = arith.constant 0 : index
    %7 = vector.load %arg2[%c1, %c0_4] : memref<27x256xf32, #tpu.memory_space<vmem>>, vector<1x256xf32>
    %8 = vector.broadcast %7 : vector<1x256xf32> to vector<8x256xf32>
    %9 = arith.mulf %6, %8 : vector<8x256xf32>
    %c71_i32 = arith.constant 71 : i32
    %10 = tpu.dynamic_rotate %1 by %c71_i32 dim 1 : vector<8x256xf32>, i32 -> vector<8x256xf32>
    %c2 = arith.constant 2 : index
    %c0_5 = arith.constant 0 : index
    %11 = vector.load %arg2[%c2, %c0_5] : memref<27x256xf32, #tpu.memory_space<vmem>>, vector<1x256xf32>
    %12 = vector.broadcast %11 : vector<1x256xf32> to vector<8x256xf32>
    %13 = arith.mulf %10, %12 : vector<8x256xf32>
    %c65_i32 = arith.constant 65 : i32
    %14 = tpu.dynamic_rotate %1 by %c65_i32 dim 1 : vector<8x256xf32>, i32 -> vector<8x256xf32>
    %c3 = arith.constant 3 : index
    %c0_6 = arith.constant 0 : index
    %15 = vector.load %arg2[%c3, %c0_6] : memref<27x256xf32, #tpu.memory_space<vmem>>, vector<1x256xf32>
    %16 = vector.broadcast %15 : vector<1x256xf32> to vector<8x256xf32>
    %17 = arith.mulf %14, %16 : vector<8x256xf32>
    %c64_i32 = arith.constant 64 : i32
    %18 = tpu.dynamic_rotate %1 by %c64_i32 dim 1 : vector<8x256xf32>, i32 -> vector<8x256xf32>
    %c4 = arith.constant 4 : index
    %c0_7 = arith.constant 0 : index
    %19 = vector.load %arg2[%c4, %c0_7] : memref<27x256xf32, #tpu.memory_space<vmem>>, vector<1x256xf32>
    %20 = vector.broadcast %19 : vector<1x256xf32> to vector<8x256xf32>
    %21 = arith.mulf %18, %20 : vector<8x256xf32>
    %c63_i32 = arith.constant 63 : i32
    %22 = tpu.dynamic_rotate %1 by %c63_i32 dim 1 : vector<8x256xf32>, i32 -> vector<8x256xf32>
    %c5 = arith.constant 5 : index
    %c0_8 = arith.constant 0 : index
    %23 = vector.load %arg2[%c5, %c0_8] : memref<27x256xf32, #tpu.memory_space<vmem>>, vector<1x256xf32>
    %24 = vector.broadcast %23 : vector<1x256xf32> to vector<8x256xf32>
    %25 = arith.mulf %22, %24 : vector<8x256xf32>
    %c57_i32 = arith.constant 57 : i32
    %26 = tpu.dynamic_rotate %1 by %c57_i32 dim 1 : vector<8x256xf32>, i32 -> vector<8x256xf32>
    %c6 = arith.constant 6 : index
    %c0_9 = arith.constant 0 : index
    %27 = vector.load %arg2[%c6, %c0_9] : memref<27x256xf32, #tpu.memory_space<vmem>>, vector<1x256xf32>
    %28 = vector.broadcast %27 : vector<1x256xf32> to vector<8x256xf32>
    %29 = arith.mulf %26, %28 : vector<8x256xf32>
    %c56_i32 = arith.constant 56 : i32
    %30 = tpu.dynamic_rotate %1 by %c56_i32 dim 1 : vector<8x256xf32>, i32 -> vector<8x256xf32>
    %c7 = arith.constant 7 : index
    %c0_10 = arith.constant 0 : index
    %31 = vector.load %arg2[%c7, %c0_10] : memref<27x256xf32, #tpu.memory_space<vmem>>, vector<1x256xf32>
    %32 = vector.broadcast %31 : vector<1x256xf32> to vector<8x256xf32>
    %33 = arith.mulf %30, %32 : vector<8x256xf32>
    %c55_i32 = arith.constant 55 : i32
    %34 = tpu.dynamic_rotate %1 by %c55_i32 dim 1 : vector<8x256xf32>, i32 -> vector<8x256xf32>
    %c8 = arith.constant 8 : index
    %c0_11 = arith.constant 0 : index
    %35 = vector.load %arg2[%c8, %c0_11] : memref<27x256xf32, #tpu.memory_space<vmem>>, vector<1x256xf32>
    %36 = vector.broadcast %35 : vector<1x256xf32> to vector<8x256xf32>
    %37 = arith.mulf %34, %36 : vector<8x256xf32>
    %c9_i32 = arith.constant 9 : i32
    %38 = tpu.dynamic_rotate %1 by %c9_i32 dim 1 : vector<8x256xf32>, i32 -> vector<8x256xf32>
    %c9 = arith.constant 9 : index
    %c0_12 = arith.constant 0 : index
    %39 = vector.load %arg2[%c9, %c0_12] : memref<27x256xf32, #tpu.memory_space<vmem>>, vector<1x256xf32>
    %40 = vector.broadcast %39 : vector<1x256xf32> to vector<8x256xf32>
    %41 = arith.mulf %38, %40 : vector<8x256xf32>
    %c8_i32 = arith.constant 8 : i32
    %42 = tpu.dynamic_rotate %1 by %c8_i32 dim 1 : vector<8x256xf32>, i32 -> vector<8x256xf32>
    %c10 = arith.constant 10 : index
    %c0_13 = arith.constant 0 : index
    %43 = vector.load %arg2[%c10, %c0_13] : memref<27x256xf32, #tpu.memory_space<vmem>>, vector<1x256xf32>
    %44 = vector.broadcast %43 : vector<1x256xf32> to vector<8x256xf32>
    %45 = arith.mulf %42, %44 : vector<8x256xf32>
    %c7_i32 = arith.constant 7 : i32
    %46 = tpu.dynamic_rotate %1 by %c7_i32 dim 1 : vector<8x256xf32>, i32 -> vector<8x256xf32>
    %c11 = arith.constant 11 : index
    %c0_14 = arith.constant 0 : index
    %47 = vector.load %arg2[%c11, %c0_14] : memref<27x256xf32, #tpu.memory_space<vmem>>, vector<1x256xf32>
    %48 = vector.broadcast %47 : vector<1x256xf32> to vector<8x256xf32>
    %49 = arith.mulf %46, %48 : vector<8x256xf32>
    %c1_i32 = arith.constant 1 : i32
    %50 = tpu.dynamic_rotate %1 by %c1_i32 dim 1 : vector<8x256xf32>, i32 -> vector<8x256xf32>
    %c12 = arith.constant 12 : index
    %c0_15 = arith.constant 0 : index
    %51 = vector.load %arg2[%c12, %c0_15] : memref<27x256xf32, #tpu.memory_space<vmem>>, vector<1x256xf32>
    %52 = vector.broadcast %51 : vector<1x256xf32> to vector<8x256xf32>
    %53 = arith.mulf %50, %52 : vector<8x256xf32>
    %c13 = arith.constant 13 : index
    %c0_16 = arith.constant 0 : index
    %54 = vector.load %arg2[%c13, %c0_16] : memref<27x256xf32, #tpu.memory_space<vmem>>, vector<1x256xf32>
    %55 = vector.broadcast %54 : vector<1x256xf32> to vector<8x256xf32>
    %56 = arith.mulf %1, %55 : vector<8x256xf32>
    %c255_i32 = arith.constant 255 : i32
    %57 = tpu.dynamic_rotate %1 by %c255_i32 dim 1 : vector<8x256xf32>, i32 -> vector<8x256xf32>
    %c14 = arith.constant 14 : index
    %c0_17 = arith.constant 0 : index
    %58 = vector.load %arg2[%c14, %c0_17] : memref<27x256xf32, #tpu.memory_space<vmem>>, vector<1x256xf32>
    %59 = vector.broadcast %58 : vector<1x256xf32> to vector<8x256xf32>
    %60 = arith.mulf %57, %59 : vector<8x256xf32>
    %c249_i32 = arith.constant 249 : i32
    %61 = tpu.dynamic_rotate %1 by %c249_i32 dim 1 : vector<8x256xf32>, i32 -> vector<8x256xf32>
    %c15 = arith.constant 15 : index
    %c0_18 = arith.constant 0 : index
    %62 = vector.load %arg2[%c15, %c0_18] : memref<27x256xf32, #tpu.memory_space<vmem>>, vector<1x256xf32>
    %63 = vector.broadcast %62 : vector<1x256xf32> to vector<8x256xf32>
    %64 = arith.mulf %61, %63 : vector<8x256xf32>
    %c248_i32 = arith.constant 248 : i32
    %65 = tpu.dynamic_rotate %1 by %c248_i32 dim 1 : vector<8x256xf32>, i32 -> vector<8x256xf32>
    %c16 = arith.constant 16 : index
    %c0_19 = arith.constant 0 : index
    %66 = vector.load %arg2[%c16, %c0_19] : memref<27x256xf32, #tpu.memory_space<vmem>>, vector<1x256xf32>
    %67 = vector.broadcast %66 : vector<1x256xf32> to vector<8x256xf32>
    %68 = arith.mulf %65, %67 : vector<8x256xf32>
    %c247_i32 = arith.constant 247 : i32
    %69 = tpu.dynamic_rotate %1 by %c247_i32 dim 1 : vector<8x256xf32>, i32 -> vector<8x256xf32>
    %c17 = arith.constant 17 : index
    %c0_20 = arith.constant 0 : index
    %70 = vector.load %arg2[%c17, %c0_20] : memref<27x256xf32, #tpu.memory_space<vmem>>, vector<1x256xf32>
    %71 = vector.broadcast %70 : vector<1x256xf32> to vector<8x256xf32>
    %72 = arith.mulf %69, %71 : vector<8x256xf32>
    %c201_i32 = arith.constant 201 : i32
    %73 = tpu.dynamic_rotate %1 by %c201_i32 dim 1 : vector<8x256xf32>, i32 -> vector<8x256xf32>
    %c18 = arith.constant 18 : index
    %c0_21 = arith.constant 0 : index
    %74 = vector.load %arg2[%c18, %c0_21] : memref<27x256xf32, #tpu.memory_space<vmem>>, vector<1x256xf32>
    %75 = vector.broadcast %74 : vector<1x256xf32> to vector<8x256xf32>
    %76 = arith.mulf %73, %75 : vector<8x256xf32>
    %c200_i32 = arith.constant 200 : i32
    %77 = tpu.dynamic_rotate %1 by %c200_i32 dim 1 : vector<8x256xf32>, i32 -> vector<8x256xf32>
    %c19 = arith.constant 19 : index
    %c0_22 = arith.constant 0 : index
    %78 = vector.load %arg2[%c19, %c0_22] : memref<27x256xf32, #tpu.memory_space<vmem>>, vector<1x256xf32>
    %79 = vector.broadcast %78 : vector<1x256xf32> to vector<8x256xf32>
    %80 = arith.mulf %77, %79 : vector<8x256xf32>
    %c199_i32 = arith.constant 199 : i32
    %81 = tpu.dynamic_rotate %1 by %c199_i32 dim 1 : vector<8x256xf32>, i32 -> vector<8x256xf32>
    %c20 = arith.constant 20 : index
    %c0_23 = arith.constant 0 : index
    %82 = vector.load %arg2[%c20, %c0_23] : memref<27x256xf32, #tpu.memory_space<vmem>>, vector<1x256xf32>
    %83 = vector.broadcast %82 : vector<1x256xf32> to vector<8x256xf32>
    %84 = arith.mulf %81, %83 : vector<8x256xf32>
    %c193_i32 = arith.constant 193 : i32
    %85 = tpu.dynamic_rotate %1 by %c193_i32 dim 1 : vector<8x256xf32>, i32 -> vector<8x256xf32>
    %c21 = arith.constant 21 : index
    %c0_24 = arith.constant 0 : index
    %86 = vector.load %arg2[%c21, %c0_24] : memref<27x256xf32, #tpu.memory_space<vmem>>, vector<1x256xf32>
    %87 = vector.broadcast %86 : vector<1x256xf32> to vector<8x256xf32>
    %88 = arith.mulf %85, %87 : vector<8x256xf32>
    %c192_i32 = arith.constant 192 : i32
    %89 = tpu.dynamic_rotate %1 by %c192_i32 dim 1 : vector<8x256xf32>, i32 -> vector<8x256xf32>
    %c22 = arith.constant 22 : index
    %c0_25 = arith.constant 0 : index
    %90 = vector.load %arg2[%c22, %c0_25] : memref<27x256xf32, #tpu.memory_space<vmem>>, vector<1x256xf32>
    %91 = vector.broadcast %90 : vector<1x256xf32> to vector<8x256xf32>
    %92 = arith.mulf %89, %91 : vector<8x256xf32>
    %c191_i32 = arith.constant 191 : i32
    %93 = tpu.dynamic_rotate %1 by %c191_i32 dim 1 : vector<8x256xf32>, i32 -> vector<8x256xf32>
    %c23 = arith.constant 23 : index
    %c0_26 = arith.constant 0 : index
    %94 = vector.load %arg2[%c23, %c0_26] : memref<27x256xf32, #tpu.memory_space<vmem>>, vector<1x256xf32>
    %95 = vector.broadcast %94 : vector<1x256xf32> to vector<8x256xf32>
    %96 = arith.mulf %93, %95 : vector<8x256xf32>
    %c185_i32 = arith.constant 185 : i32
    %97 = tpu.dynamic_rotate %1 by %c185_i32 dim 1 : vector<8x256xf32>, i32 -> vector<8x256xf32>
    %c24 = arith.constant 24 : index
    %c0_27 = arith.constant 0 : index
    %98 = vector.load %arg2[%c24, %c0_27] : memref<27x256xf32, #tpu.memory_space<vmem>>, vector<1x256xf32>
    %99 = vector.broadcast %98 : vector<1x256xf32> to vector<8x256xf32>
    %100 = arith.mulf %97, %99 : vector<8x256xf32>
    %c184_i32 = arith.constant 184 : i32
    %101 = tpu.dynamic_rotate %1 by %c184_i32 dim 1 : vector<8x256xf32>, i32 -> vector<8x256xf32>
    %c25 = arith.constant 25 : index
    %c0_28 = arith.constant 0 : index
    %102 = vector.load %arg2[%c25, %c0_28] : memref<27x256xf32, #tpu.memory_space<vmem>>, vector<1x256xf32>
    %103 = vector.broadcast %102 : vector<1x256xf32> to vector<8x256xf32>
    %104 = arith.mulf %101, %103 : vector<8x256xf32>
    %c183_i32 = arith.constant 183 : i32
    %105 = tpu.dynamic_rotate %1 by %c183_i32 dim 1 : vector<8x256xf32>, i32 -> vector<8x256xf32>
    %c26 = arith.constant 26 : index
    %c0_29 = arith.constant 0 : index
    %106 = vector.load %arg2[%c26, %c0_29] : memref<27x256xf32, #tpu.memory_space<vmem>>, vector<1x256xf32>
    %107 = vector.broadcast %106 : vector<1x256xf32> to vector<8x256xf32>
    %108 = arith.mulf %105, %107 : vector<8x256xf32>
    %109 = tpu.concatenate %5, %9, %13, %17, %21, %25, %29, %33, %37, %41, %45, %49, %53, %56, %60, %64 in 0 : vector<8x256xf32>, vector<8x256xf32>, vector<8x256xf32>, vector<8x256xf32>, vector<8x256xf32>, vector<8x256xf32>, vector<8x256xf32>, vector<8x256xf32>, vector<8x256xf32>, vector<8x256xf32>, vector<8x256xf32>, vector<8x256xf32>, vector<8x256xf32>, vector<8x256xf32>, vector<8x256xf32>, vector<8x256xf32> -> vector<128x256xf32>
    %110 = tpu.concatenate %68, %72, %76, %80, %84, %88, %92, %96, %100, %104, %108 in 0 : vector<8x256xf32>, vector<8x256xf32>, vector<8x256xf32>, vector<8x256xf32>, vector<8x256xf32>, vector<8x256xf32>, vector<8x256xf32>, vector<8x256xf32>, vector<8x256xf32>, vector<8x256xf32>, vector<8x256xf32> -> vector<88x256xf32>
    %111 = tpu.concatenate %109, %110 in 0 : vector<128x256xf32>, vector<88x256xf32> -> vector<216x256xf32>
    %c0_30 = arith.constant 0 : index
    %c0_31 = arith.constant 0 : index
    %112 = vector.load %arg3[%c0_30, %c0_31] : memref<8x216xf32, #tpu.memory_space<vmem>>, vector<8x216xf32>
    %cst = arith.constant dense<0.000000e+00> : vector<8x256xf32>
    %113 = tpu.matmul %112, %111, %cst {dimension_numbers = #tpu.dot_dimension_numbers<[1], [0], [0], [1], [0, 0, 1, 1], [], []>} : vector<8x216xf32>, vector<216x256xf32>, vector<8x256xf32> -> vector<8x256xf32>
    %c0_32 = arith.constant 0 : index
    %c0_33 = arith.constant 0 : index
    %114 = vector.load %arg4[%c0_32, %c0_33] : memref<8x1xf32, #tpu.memory_space<vmem>>, vector<8x1xf32>
    %115 = vector.broadcast %114 : vector<8x1xf32> to vector<8x256xf32>
    %116 = arith.addf %113, %115 : vector<8x256xf32>
    %cst_34 = arith.constant 0.000000e+00 : f32
    %117 = vector.broadcast %cst_34 : f32 to vector<8x256xf32>
    %118 = arith.cmpf oge, %116, %117 : vector<8x256xf32>
    %cst_35 = arith.constant 1.000000e-01 : f32
    %119 = vector.broadcast %cst_35 : f32 to vector<8x256xf32>
    %120 = arith.mulf %119, %116 : vector<8x256xf32>
    %121 = arith.select %118, %116, %120 : vector<8x256xi1>, vector<8x256xf32>
    %c73_i32_36 = arith.constant 73 : i32
    %122 = tpu.dynamic_rotate %121 by %c73_i32_36 dim 1 : vector<8x256xf32>, i32 -> vector<8x256xf32>
    %c0_37 = arith.constant 0 : index
    %c0_38 = arith.constant 0 : index
    %123 = vector.load %arg2[%c0_37, %c0_38] : memref<27x256xf32, #tpu.memory_space<vmem>>, vector<1x256xf32>
    %124 = vector.broadcast %123 : vector<1x256xf32> to vector<8x256xf32>
    %125 = arith.mulf %122, %124 : vector<8x256xf32>
    %c72_i32_39 = arith.constant 72 : i32
    %126 = tpu.dynamic_rotate %121 by %c72_i32_39 dim 1 : vector<8x256xf32>, i32 -> vector<8x256xf32>
    %c1_40 = arith.constant 1 : index
    %c0_41 = arith.constant 0 : index
    %127 = vector.load %arg2[%c1_40, %c0_41] : memref<27x256xf32, #tpu.memory_space<vmem>>, vector<1x256xf32>
    %128 = vector.broadcast %127 : vector<1x256xf32> to vector<8x256xf32>
    %129 = arith.mulf %126, %128 : vector<8x256xf32>
    %c71_i32_42 = arith.constant 71 : i32
    %130 = tpu.dynamic_rotate %121 by %c71_i32_42 dim 1 : vector<8x256xf32>, i32 -> vector<8x256xf32>
    %c2_43 = arith.constant 2 : index
    %c0_44 = arith.constant 0 : index
    %131 = vector.load %arg2[%c2_43, %c0_44] : memref<27x256xf32, #tpu.memory_space<vmem>>, vector<1x256xf32>
    %132 = vector.broadcast %131 : vector<1x256xf32> to vector<8x256xf32>
    %133 = arith.mulf %130, %132 : vector<8x256xf32>
    %c65_i32_45 = arith.constant 65 : i32
    %134 = tpu.dynamic_rotate %121 by %c65_i32_45 dim 1 : vector<8x256xf32>, i32 -> vector<8x256xf32>
    %c3_46 = arith.constant 3 : index
    %c0_47 = arith.constant 0 : index
    %135 = vector.load %arg2[%c3_46, %c0_47] : memref<27x256xf32, #tpu.memory_space<vmem>>, vector<1x256xf32>
    %136 = vector.broadcast %135 : vector<1x256xf32> to vector<8x256xf32>
    %137 = arith.mulf %134, %136 : vector<8x256xf32>
    %c64_i32_48 = arith.constant 64 : i32
    %138 = tpu.dynamic_rotate %121 by %c64_i32_48 dim 1 : vector<8x256xf32>, i32 -> vector<8x256xf32>
    %c4_49 = arith.constant 4 : index
    %c0_50 = arith.constant 0 : index
    %139 = vector.load %arg2[%c4_49, %c0_50] : memref<27x256xf32, #tpu.memory_space<vmem>>, vector<1x256xf32>
    %140 = vector.broadcast %139 : vector<1x256xf32> to vector<8x256xf32>
    %141 = arith.mulf %138, %140 : vector<8x256xf32>
    %c63_i32_51 = arith.constant 63 : i32
    %142 = tpu.dynamic_rotate %121 by %c63_i32_51 dim 1 : vector<8x256xf32>, i32 -> vector<8x256xf32>
    %c5_52 = arith.constant 5 : index
    %c0_53 = arith.constant 0 : index
    %143 = vector.load %arg2[%c5_52, %c0_53] : memref<27x256xf32, #tpu.memory_space<vmem>>, vector<1x256xf32>
    %144 = vector.broadcast %143 : vector<1x256xf32> to vector<8x256xf32>
    %145 = arith.mulf %142, %144 : vector<8x256xf32>
    %c57_i32_54 = arith.constant 57 : i32
    %146 = tpu.dynamic_rotate %121 by %c57_i32_54 dim 1 : vector<8x256xf32>, i32 -> vector<8x256xf32>
    %c6_55 = arith.constant 6 : index
    %c0_56 = arith.constant 0 : index
    %147 = vector.load %arg2[%c6_55, %c0_56] : memref<27x256xf32, #tpu.memory_space<vmem>>, vector<1x256xf32>
    %148 = vector.broadcast %147 : vector<1x256xf32> to vector<8x256xf32>
    %149 = arith.mulf %146, %148 : vector<8x256xf32>
    %c56_i32_57 = arith.constant 56 : i32
    %150 = tpu.dynamic_rotate %121 by %c56_i32_57 dim 1 : vector<8x256xf32>, i32 -> vector<8x256xf32>
    %c7_58 = arith.constant 7 : index
    %c0_59 = arith.constant 0 : index
    %151 = vector.load %arg2[%c7_58, %c0_59] : memref<27x256xf32, #tpu.memory_space<vmem>>, vector<1x256xf32>
    %152 = vector.broadcast %151 : vector<1x256xf32> to vector<8x256xf32>
    %153 = arith.mulf %150, %152 : vector<8x256xf32>
    %c55_i32_60 = arith.constant 55 : i32
    %154 = tpu.dynamic_rotate %121 by %c55_i32_60 dim 1 : vector<8x256xf32>, i32 -> vector<8x256xf32>
    %c8_61 = arith.constant 8 : index
    %c0_62 = arith.constant 0 : index
    %155 = vector.load %arg2[%c8_61, %c0_62] : memref<27x256xf32, #tpu.memory_space<vmem>>, vector<1x256xf32>
    %156 = vector.broadcast %155 : vector<1x256xf32> to vector<8x256xf32>
    %157 = arith.mulf %154, %156 : vector<8x256xf32>
    %c9_i32_63 = arith.constant 9 : i32
    %158 = tpu.dynamic_rotate %121 by %c9_i32_63 dim 1 : vector<8x256xf32>, i32 -> vector<8x256xf32>
    %c9_64 = arith.constant 9 : index
    %c0_65 = arith.constant 0 : index
    %159 = vector.load %arg2[%c9_64, %c0_65] : memref<27x256xf32, #tpu.memory_space<vmem>>, vector<1x256xf32>
    %160 = vector.broadcast %159 : vector<1x256xf32> to vector<8x256xf32>
    %161 = arith.mulf %158, %160 : vector<8x256xf32>
    %c8_i32_66 = arith.constant 8 : i32
    %162 = tpu.dynamic_rotate %121 by %c8_i32_66 dim 1 : vector<8x256xf32>, i32 -> vector<8x256xf32>
    %c10_67 = arith.constant 10 : index
    %c0_68 = arith.constant 0 : index
    %163 = vector.load %arg2[%c10_67, %c0_68] : memref<27x256xf32, #tpu.memory_space<vmem>>, vector<1x256xf32>
    %164 = vector.broadcast %163 : vector<1x256xf32> to vector<8x256xf32>
    %165 = arith.mulf %162, %164 : vector<8x256xf32>
    %c7_i32_69 = arith.constant 7 : i32
    %166 = tpu.dynamic_rotate %121 by %c7_i32_69 dim 1 : vector<8x256xf32>, i32 -> vector<8x256xf32>
    %c11_70 = arith.constant 11 : index
    %c0_71 = arith.constant 0 : index
    %167 = vector.load %arg2[%c11_70, %c0_71] : memref<27x256xf32, #tpu.memory_space<vmem>>, vector<1x256xf32>
    %168 = vector.broadcast %167 : vector<1x256xf32> to vector<8x256xf32>
    %169 = arith.mulf %166, %168 : vector<8x256xf32>
    %c1_i32_72 = arith.constant 1 : i32
    %170 = tpu.dynamic_rotate %121 by %c1_i32_72 dim 1 : vector<8x256xf32>, i32 -> vector<8x256xf32>
    %c12_73 = arith.constant 12 : index
    %c0_74 = arith.constant 0 : index
    %171 = vector.load %arg2[%c12_73, %c0_74] : memref<27x256xf32, #tpu.memory_space<vmem>>, vector<1x256xf32>
    %172 = vector.broadcast %171 : vector<1x256xf32> to vector<8x256xf32>
    %173 = arith.mulf %170, %172 : vector<8x256xf32>
    %c13_75 = arith.constant 13 : index
    %c0_76 = arith.constant 0 : index
    %174 = vector.load %arg2[%c13_75, %c0_76] : memref<27x256xf32, #tpu.memory_space<vmem>>, vector<1x256xf32>
    %175 = vector.broadcast %174 : vector<1x256xf32> to vector<8x256xf32>
    %176 = arith.mulf %121, %175 : vector<8x256xf32>
    %c255_i32_77 = arith.constant 255 : i32
    %177 = tpu.dynamic_rotate %121 by %c255_i32_77 dim 1 : vector<8x256xf32>, i32 -> vector<8x256xf32>
    %c14_78 = arith.constant 14 : index
    %c0_79 = arith.constant 0 : index
    %178 = vector.load %arg2[%c14_78, %c0_79] : memref<27x256xf32, #tpu.memory_space<vmem>>, vector<1x256xf32>
    %179 = vector.broadcast %178 : vector<1x256xf32> to vector<8x256xf32>
    %180 = arith.mulf %177, %179 : vector<8x256xf32>
    %c249_i32_80 = arith.constant 249 : i32
    %181 = tpu.dynamic_rotate %121 by %c249_i32_80 dim 1 : vector<8x256xf32>, i32 -> vector<8x256xf32>
    %c15_81 = arith.constant 15 : index
    %c0_82 = arith.constant 0 : index
    %182 = vector.load %arg2[%c15_81, %c0_82] : memref<27x256xf32, #tpu.memory_space<vmem>>, vector<1x256xf32>
    %183 = vector.broadcast %182 : vector<1x256xf32> to vector<8x256xf32>
    %184 = arith.mulf %181, %183 : vector<8x256xf32>
    %c248_i32_83 = arith.constant 248 : i32
    %185 = tpu.dynamic_rotate %121 by %c248_i32_83 dim 1 : vector<8x256xf32>, i32 -> vector<8x256xf32>
    %c16_84 = arith.constant 16 : index
    %c0_85 = arith.constant 0 : index
    %186 = vector.load %arg2[%c16_84, %c0_85] : memref<27x256xf32, #tpu.memory_space<vmem>>, vector<1x256xf32>
    %187 = vector.broadcast %186 : vector<1x256xf32> to vector<8x256xf32>
    %188 = arith.mulf %185, %187 : vector<8x256xf32>
    %c247_i32_86 = arith.constant 247 : i32
    %189 = tpu.dynamic_rotate %121 by %c247_i32_86 dim 1 : vector<8x256xf32>, i32 -> vector<8x256xf32>
    %c17_87 = arith.constant 17 : index
    %c0_88 = arith.constant 0 : index
    %190 = vector.load %arg2[%c17_87, %c0_88] : memref<27x256xf32, #tpu.memory_space<vmem>>, vector<1x256xf32>
    %191 = vector.broadcast %190 : vector<1x256xf32> to vector<8x256xf32>
    %192 = arith.mulf %189, %191 : vector<8x256xf32>
    %c201_i32_89 = arith.constant 201 : i32
    %193 = tpu.dynamic_rotate %121 by %c201_i32_89 dim 1 : vector<8x256xf32>, i32 -> vector<8x256xf32>
    %c18_90 = arith.constant 18 : index
    %c0_91 = arith.constant 0 : index
    %194 = vector.load %arg2[%c18_90, %c0_91] : memref<27x256xf32, #tpu.memory_space<vmem>>, vector<1x256xf32>
    %195 = vector.broadcast %194 : vector<1x256xf32> to vector<8x256xf32>
    %196 = arith.mulf %193, %195 : vector<8x256xf32>
    %c200_i32_92 = arith.constant 200 : i32
    %197 = tpu.dynamic_rotate %121 by %c200_i32_92 dim 1 : vector<8x256xf32>, i32 -> vector<8x256xf32>
    %c19_93 = arith.constant 19 : index
    %c0_94 = arith.constant 0 : index
    %198 = vector.load %arg2[%c19_93, %c0_94] : memref<27x256xf32, #tpu.memory_space<vmem>>, vector<1x256xf32>
    %199 = vector.broadcast %198 : vector<1x256xf32> to vector<8x256xf32>
    %200 = arith.mulf %197, %199 : vector<8x256xf32>
    %c199_i32_95 = arith.constant 199 : i32
    %201 = tpu.dynamic_rotate %121 by %c199_i32_95 dim 1 : vector<8x256xf32>, i32 -> vector<8x256xf32>
    %c20_96 = arith.constant 20 : index
    %c0_97 = arith.constant 0 : index
    %202 = vector.load %arg2[%c20_96, %c0_97] : memref<27x256xf32, #tpu.memory_space<vmem>>, vector<1x256xf32>
    %203 = vector.broadcast %202 : vector<1x256xf32> to vector<8x256xf32>
    %204 = arith.mulf %201, %203 : vector<8x256xf32>
    %c193_i32_98 = arith.constant 193 : i32
    %205 = tpu.dynamic_rotate %121 by %c193_i32_98 dim 1 : vector<8x256xf32>, i32 -> vector<8x256xf32>
    %c21_99 = arith.constant 21 : index
    %c0_100 = arith.constant 0 : index
    %206 = vector.load %arg2[%c21_99, %c0_100] : memref<27x256xf32, #tpu.memory_space<vmem>>, vector<1x256xf32>
    %207 = vector.broadcast %206 : vector<1x256xf32> to vector<8x256xf32>
    %208 = arith.mulf %205, %207 : vector<8x256xf32>
    %c192_i32_101 = arith.constant 192 : i32
    %209 = tpu.dynamic_rotate %121 by %c192_i32_101 dim 1 : vector<8x256xf32>, i32 -> vector<8x256xf32>
    %c22_102 = arith.constant 22 : index
    %c0_103 = arith.constant 0 : index
    %210 = vector.load %arg2[%c22_102, %c0_103] : memref<27x256xf32, #tpu.memory_space<vmem>>, vector<1x256xf32>
    %211 = vector.broadcast %210 : vector<1x256xf32> to vector<8x256xf32>
    %212 = arith.mulf %209, %211 : vector<8x256xf32>
    %c191_i32_104 = arith.constant 191 : i32
    %213 = tpu.dynamic_rotate %121 by %c191_i32_104 dim 1 : vector<8x256xf32>, i32 -> vector<8x256xf32>
    %c23_105 = arith.constant 23 : index
    %c0_106 = arith.constant 0 : index
    %214 = vector.load %arg2[%c23_105, %c0_106] : memref<27x256xf32, #tpu.memory_space<vmem>>, vector<1x256xf32>
    %215 = vector.broadcast %214 : vector<1x256xf32> to vector<8x256xf32>
    %216 = arith.mulf %213, %215 : vector<8x256xf32>
    %c185_i32_107 = arith.constant 185 : i32
    %217 = tpu.dynamic_rotate %121 by %c185_i32_107 dim 1 : vector<8x256xf32>, i32 -> vector<8x256xf32>
    %c24_108 = arith.constant 24 : index
    %c0_109 = arith.constant 0 : index
    %218 = vector.load %arg2[%c24_108, %c0_109] : memref<27x256xf32, #tpu.memory_space<vmem>>, vector<1x256xf32>
    %219 = vector.broadcast %218 : vector<1x256xf32> to vector<8x256xf32>
    %220 = arith.mulf %217, %219 : vector<8x256xf32>
    %c184_i32_110 = arith.constant 184 : i32
    %221 = tpu.dynamic_rotate %121 by %c184_i32_110 dim 1 : vector<8x256xf32>, i32 -> vector<8x256xf32>
    %c25_111 = arith.constant 25 : index
    %c0_112 = arith.constant 0 : index
    %222 = vector.load %arg2[%c25_111, %c0_112] : memref<27x256xf32, #tpu.memory_space<vmem>>, vector<1x256xf32>
    %223 = vector.broadcast %222 : vector<1x256xf32> to vector<8x256xf32>
    %224 = arith.mulf %221, %223 : vector<8x256xf32>
    %c183_i32_113 = arith.constant 183 : i32
    %225 = tpu.dynamic_rotate %121 by %c183_i32_113 dim 1 : vector<8x256xf32>, i32 -> vector<8x256xf32>
    %c26_114 = arith.constant 26 : index
    %c0_115 = arith.constant 0 : index
    %226 = vector.load %arg2[%c26_114, %c0_115] : memref<27x256xf32, #tpu.memory_space<vmem>>, vector<1x256xf32>
    %227 = vector.broadcast %226 : vector<1x256xf32> to vector<8x256xf32>
    %228 = arith.mulf %225, %227 : vector<8x256xf32>
    %229 = tpu.concatenate %125, %129, %133, %137, %141, %145, %149, %153, %157, %161, %165, %169, %173, %176, %180, %184 in 0 : vector<8x256xf32>, vector<8x256xf32>, vector<8x256xf32>, vector<8x256xf32>, vector<8x256xf32>, vector<8x256xf32>, vector<8x256xf32>, vector<8x256xf32>, vector<8x256xf32>, vector<8x256xf32>, vector<8x256xf32>, vector<8x256xf32>, vector<8x256xf32>, vector<8x256xf32>, vector<8x256xf32>, vector<8x256xf32> -> vector<128x256xf32>
    %230 = tpu.concatenate %188, %192, %196, %200, %204, %208, %212, %216, %220, %224, %228 in 0 : vector<8x256xf32>, vector<8x256xf32>, vector<8x256xf32>, vector<8x256xf32>, vector<8x256xf32>, vector<8x256xf32>, vector<8x256xf32>, vector<8x256xf32>, vector<8x256xf32>, vector<8x256xf32>, vector<8x256xf32> -> vector<88x256xf32>
    %231 = tpu.concatenate %229, %230 in 0 : vector<128x256xf32>, vector<88x256xf32> -> vector<216x256xf32>
    %c0_116 = arith.constant 0 : index
    %c0_117 = arith.constant 0 : index
    %232 = vector.load %arg5[%c0_116, %c0_117] : memref<8x216xf32, #tpu.memory_space<vmem>>, vector<8x216xf32>
    %cst_118 = arith.constant dense<0.000000e+00> : vector<8x256xf32>
    %233 = tpu.matmul %232, %231, %cst_118 {dimension_numbers = #tpu.dot_dimension_numbers<[1], [0], [0], [1], [0, 0, 1, 1], [], []>} : vector<8x216xf32>, vector<216x256xf32>, vector<8x256xf32> -> vector<8x256xf32>
    %c0_119 = arith.constant 0 : index
    %c0_120 = arith.constant 0 : index
    %234 = vector.load %arg6[%c0_119, %c0_120] : memref<8x1xf32, #tpu.memory_space<vmem>>, vector<8x1xf32>
    %235 = vector.broadcast %234 : vector<8x1xf32> to vector<8x256xf32>
    %236 = arith.addf %233, %235 : vector<8x256xf32>
    %cst_121 = arith.constant 0.000000e+00 : f32
    %237 = vector.broadcast %cst_121 : f32 to vector<8x256xf32>
    %238 = arith.cmpf oge, %236, %237 : vector<8x256xf32>
    %cst_122 = arith.constant 1.000000e-01 : f32
    %239 = vector.broadcast %cst_122 : f32 to vector<8x256xf32>
    %240 = arith.mulf %239, %236 : vector<8x256xf32>
    %241 = arith.select %238, %236, %240 : vector<8x256xi1>, vector<8x256xf32>
    %c73_i32_123 = arith.constant 73 : i32
    %242 = tpu.dynamic_rotate %241 by %c73_i32_123 dim 1 : vector<8x256xf32>, i32 -> vector<8x256xf32>
    %c0_124 = arith.constant 0 : index
    %c0_125 = arith.constant 0 : index
    %243 = vector.load %arg2[%c0_124, %c0_125] : memref<27x256xf32, #tpu.memory_space<vmem>>, vector<1x256xf32>
    %244 = vector.broadcast %243 : vector<1x256xf32> to vector<8x256xf32>
    %245 = arith.mulf %242, %244 : vector<8x256xf32>
    %c72_i32_126 = arith.constant 72 : i32
    %246 = tpu.dynamic_rotate %241 by %c72_i32_126 dim 1 : vector<8x256xf32>, i32 -> vector<8x256xf32>
    %c1_127 = arith.constant 1 : index
    %c0_128 = arith.constant 0 : index
    %247 = vector.load %arg2[%c1_127, %c0_128] : memref<27x256xf32, #tpu.memory_space<vmem>>, vector<1x256xf32>
    %248 = vector.broadcast %247 : vector<1x256xf32> to vector<8x256xf32>
    %249 = arith.mulf %246, %248 : vector<8x256xf32>
    %c71_i32_129 = arith.constant 71 : i32
    %250 = tpu.dynamic_rotate %241 by %c71_i32_129 dim 1 : vector<8x256xf32>, i32 -> vector<8x256xf32>
    %c2_130 = arith.constant 2 : index
    %c0_131 = arith.constant 0 : index
    %251 = vector.load %arg2[%c2_130, %c0_131] : memref<27x256xf32, #tpu.memory_space<vmem>>, vector<1x256xf32>
    %252 = vector.broadcast %251 : vector<1x256xf32> to vector<8x256xf32>
    %253 = arith.mulf %250, %252 : vector<8x256xf32>
    %c65_i32_132 = arith.constant 65 : i32
    %254 = tpu.dynamic_rotate %241 by %c65_i32_132 dim 1 : vector<8x256xf32>, i32 -> vector<8x256xf32>
    %c3_133 = arith.constant 3 : index
    %c0_134 = arith.constant 0 : index
    %255 = vector.load %arg2[%c3_133, %c0_134] : memref<27x256xf32, #tpu.memory_space<vmem>>, vector<1x256xf32>
    %256 = vector.broadcast %255 : vector<1x256xf32> to vector<8x256xf32>
    %257 = arith.mulf %254, %256 : vector<8x256xf32>
    %c64_i32_135 = arith.constant 64 : i32
    %258 = tpu.dynamic_rotate %241 by %c64_i32_135 dim 1 : vector<8x256xf32>, i32 -> vector<8x256xf32>
    %c4_136 = arith.constant 4 : index
    %c0_137 = arith.constant 0 : index
    %259 = vector.load %arg2[%c4_136, %c0_137] : memref<27x256xf32, #tpu.memory_space<vmem>>, vector<1x256xf32>
    %260 = vector.broadcast %259 : vector<1x256xf32> to vector<8x256xf32>
    %261 = arith.mulf %258, %260 : vector<8x256xf32>
    %c63_i32_138 = arith.constant 63 : i32
    %262 = tpu.dynamic_rotate %241 by %c63_i32_138 dim 1 : vector<8x256xf32>, i32 -> vector<8x256xf32>
    %c5_139 = arith.constant 5 : index
    %c0_140 = arith.constant 0 : index
    %263 = vector.load %arg2[%c5_139, %c0_140] : memref<27x256xf32, #tpu.memory_space<vmem>>, vector<1x256xf32>
    %264 = vector.broadcast %263 : vector<1x256xf32> to vector<8x256xf32>
    %265 = arith.mulf %262, %264 : vector<8x256xf32>
    %c57_i32_141 = arith.constant 57 : i32
    %266 = tpu.dynamic_rotate %241 by %c57_i32_141 dim 1 : vector<8x256xf32>, i32 -> vector<8x256xf32>
    %c6_142 = arith.constant 6 : index
    %c0_143 = arith.constant 0 : index
    %267 = vector.load %arg2[%c6_142, %c0_143] : memref<27x256xf32, #tpu.memory_space<vmem>>, vector<1x256xf32>
    %268 = vector.broadcast %267 : vector<1x256xf32> to vector<8x256xf32>
    %269 = arith.mulf %266, %268 : vector<8x256xf32>
    %c56_i32_144 = arith.constant 56 : i32
    %270 = tpu.dynamic_rotate %241 by %c56_i32_144 dim 1 : vector<8x256xf32>, i32 -> vector<8x256xf32>
    %c7_145 = arith.constant 7 : index
    %c0_146 = arith.constant 0 : index
    %271 = vector.load %arg2[%c7_145, %c0_146] : memref<27x256xf32, #tpu.memory_space<vmem>>, vector<1x256xf32>
    %272 = vector.broadcast %271 : vector<1x256xf32> to vector<8x256xf32>
    %273 = arith.mulf %270, %272 : vector<8x256xf32>
    %c55_i32_147 = arith.constant 55 : i32
    %274 = tpu.dynamic_rotate %241 by %c55_i32_147 dim 1 : vector<8x256xf32>, i32 -> vector<8x256xf32>
    %c8_148 = arith.constant 8 : index
    %c0_149 = arith.constant 0 : index
    %275 = vector.load %arg2[%c8_148, %c0_149] : memref<27x256xf32, #tpu.memory_space<vmem>>, vector<1x256xf32>
    %276 = vector.broadcast %275 : vector<1x256xf32> to vector<8x256xf32>
    %277 = arith.mulf %274, %276 : vector<8x256xf32>
    %c9_i32_150 = arith.constant 9 : i32
    %278 = tpu.dynamic_rotate %241 by %c9_i32_150 dim 1 : vector<8x256xf32>, i32 -> vector<8x256xf32>
    %c9_151 = arith.constant 9 : index
    %c0_152 = arith.constant 0 : index
    %279 = vector.load %arg2[%c9_151, %c0_152] : memref<27x256xf32, #tpu.memory_space<vmem>>, vector<1x256xf32>
    %280 = vector.broadcast %279 : vector<1x256xf32> to vector<8x256xf32>
    %281 = arith.mulf %278, %280 : vector<8x256xf32>
    %c8_i32_153 = arith.constant 8 : i32
    %282 = tpu.dynamic_rotate %241 by %c8_i32_153 dim 1 : vector<8x256xf32>, i32 -> vector<8x256xf32>
    %c10_154 = arith.constant 10 : index
    %c0_155 = arith.constant 0 : index
    %283 = vector.load %arg2[%c10_154, %c0_155] : memref<27x256xf32, #tpu.memory_space<vmem>>, vector<1x256xf32>
    %284 = vector.broadcast %283 : vector<1x256xf32> to vector<8x256xf32>
    %285 = arith.mulf %282, %284 : vector<8x256xf32>
    %c7_i32_156 = arith.constant 7 : i32
    %286 = tpu.dynamic_rotate %241 by %c7_i32_156 dim 1 : vector<8x256xf32>, i32 -> vector<8x256xf32>
    %c11_157 = arith.constant 11 : index
    %c0_158 = arith.constant 0 : index
    %287 = vector.load %arg2[%c11_157, %c0_158] : memref<27x256xf32, #tpu.memory_space<vmem>>, vector<1x256xf32>
    %288 = vector.broadcast %287 : vector<1x256xf32> to vector<8x256xf32>
    %289 = arith.mulf %286, %288 : vector<8x256xf32>
    %c1_i32_159 = arith.constant 1 : i32
    %290 = tpu.dynamic_rotate %241 by %c1_i32_159 dim 1 : vector<8x256xf32>, i32 -> vector<8x256xf32>
    %c12_160 = arith.constant 12 : index
    %c0_161 = arith.constant 0 : index
    %291 = vector.load %arg2[%c12_160, %c0_161] : memref<27x256xf32, #tpu.memory_space<vmem>>, vector<1x256xf32>
    %292 = vector.broadcast %291 : vector<1x256xf32> to vector<8x256xf32>
    %293 = arith.mulf %290, %292 : vector<8x256xf32>
    %c13_162 = arith.constant 13 : index
    %c0_163 = arith.constant 0 : index
    %294 = vector.load %arg2[%c13_162, %c0_163] : memref<27x256xf32, #tpu.memory_space<vmem>>, vector<1x256xf32>
    %295 = vector.broadcast %294 : vector<1x256xf32> to vector<8x256xf32>
    %296 = arith.mulf %241, %295 : vector<8x256xf32>
    %c255_i32_164 = arith.constant 255 : i32
    %297 = tpu.dynamic_rotate %241 by %c255_i32_164 dim 1 : vector<8x256xf32>, i32 -> vector<8x256xf32>
    %c14_165 = arith.constant 14 : index
    %c0_166 = arith.constant 0 : index
    %298 = vector.load %arg2[%c14_165, %c0_166] : memref<27x256xf32, #tpu.memory_space<vmem>>, vector<1x256xf32>
    %299 = vector.broadcast %298 : vector<1x256xf32> to vector<8x256xf32>
    %300 = arith.mulf %297, %299 : vector<8x256xf32>
    %c249_i32_167 = arith.constant 249 : i32
    %301 = tpu.dynamic_rotate %241 by %c249_i32_167 dim 1 : vector<8x256xf32>, i32 -> vector<8x256xf32>
    %c15_168 = arith.constant 15 : index
    %c0_169 = arith.constant 0 : index
    %302 = vector.load %arg2[%c15_168, %c0_169] : memref<27x256xf32, #tpu.memory_space<vmem>>, vector<1x256xf32>
    %303 = vector.broadcast %302 : vector<1x256xf32> to vector<8x256xf32>
    %304 = arith.mulf %301, %303 : vector<8x256xf32>
    %c248_i32_170 = arith.constant 248 : i32
    %305 = tpu.dynamic_rotate %241 by %c248_i32_170 dim 1 : vector<8x256xf32>, i32 -> vector<8x256xf32>
    %c16_171 = arith.constant 16 : index
    %c0_172 = arith.constant 0 : index
    %306 = vector.load %arg2[%c16_171, %c0_172] : memref<27x256xf32, #tpu.memory_space<vmem>>, vector<1x256xf32>
    %307 = vector.broadcast %306 : vector<1x256xf32> to vector<8x256xf32>
    %308 = arith.mulf %305, %307 : vector<8x256xf32>
    %c247_i32_173 = arith.constant 247 : i32
    %309 = tpu.dynamic_rotate %241 by %c247_i32_173 dim 1 : vector<8x256xf32>, i32 -> vector<8x256xf32>
    %c17_174 = arith.constant 17 : index
    %c0_175 = arith.constant 0 : index
    %310 = vector.load %arg2[%c17_174, %c0_175] : memref<27x256xf32, #tpu.memory_space<vmem>>, vector<1x256xf32>
    %311 = vector.broadcast %310 : vector<1x256xf32> to vector<8x256xf32>
    %312 = arith.mulf %309, %311 : vector<8x256xf32>
    %c201_i32_176 = arith.constant 201 : i32
    %313 = tpu.dynamic_rotate %241 by %c201_i32_176 dim 1 : vector<8x256xf32>, i32 -> vector<8x256xf32>
    %c18_177 = arith.constant 18 : index
    %c0_178 = arith.constant 0 : index
    %314 = vector.load %arg2[%c18_177, %c0_178] : memref<27x256xf32, #tpu.memory_space<vmem>>, vector<1x256xf32>
    %315 = vector.broadcast %314 : vector<1x256xf32> to vector<8x256xf32>
    %316 = arith.mulf %313, %315 : vector<8x256xf32>
    %c200_i32_179 = arith.constant 200 : i32
    %317 = tpu.dynamic_rotate %241 by %c200_i32_179 dim 1 : vector<8x256xf32>, i32 -> vector<8x256xf32>
    %c19_180 = arith.constant 19 : index
    %c0_181 = arith.constant 0 : index
    %318 = vector.load %arg2[%c19_180, %c0_181] : memref<27x256xf32, #tpu.memory_space<vmem>>, vector<1x256xf32>
    %319 = vector.broadcast %318 : vector<1x256xf32> to vector<8x256xf32>
    %320 = arith.mulf %317, %319 : vector<8x256xf32>
    %c199_i32_182 = arith.constant 199 : i32
    %321 = tpu.dynamic_rotate %241 by %c199_i32_182 dim 1 : vector<8x256xf32>, i32 -> vector<8x256xf32>
    %c20_183 = arith.constant 20 : index
    %c0_184 = arith.constant 0 : index
    %322 = vector.load %arg2[%c20_183, %c0_184] : memref<27x256xf32, #tpu.memory_space<vmem>>, vector<1x256xf32>
    %323 = vector.broadcast %322 : vector<1x256xf32> to vector<8x256xf32>
    %324 = arith.mulf %321, %323 : vector<8x256xf32>
    %c193_i32_185 = arith.constant 193 : i32
    %325 = tpu.dynamic_rotate %241 by %c193_i32_185 dim 1 : vector<8x256xf32>, i32 -> vector<8x256xf32>
    %c21_186 = arith.constant 21 : index
    %c0_187 = arith.constant 0 : index
    %326 = vector.load %arg2[%c21_186, %c0_187] : memref<27x256xf32, #tpu.memory_space<vmem>>, vector<1x256xf32>
    %327 = vector.broadcast %326 : vector<1x256xf32> to vector<8x256xf32>
    %328 = arith.mulf %325, %327 : vector<8x256xf32>
    %c192_i32_188 = arith.constant 192 : i32
    %329 = tpu.dynamic_rotate %241 by %c192_i32_188 dim 1 : vector<8x256xf32>, i32 -> vector<8x256xf32>
    %c22_189 = arith.constant 22 : index
    %c0_190 = arith.constant 0 : index
    %330 = vector.load %arg2[%c22_189, %c0_190] : memref<27x256xf32, #tpu.memory_space<vmem>>, vector<1x256xf32>
    %331 = vector.broadcast %330 : vector<1x256xf32> to vector<8x256xf32>
    %332 = arith.mulf %329, %331 : vector<8x256xf32>
    %c191_i32_191 = arith.constant 191 : i32
    %333 = tpu.dynamic_rotate %241 by %c191_i32_191 dim 1 : vector<8x256xf32>, i32 -> vector<8x256xf32>
    %c23_192 = arith.constant 23 : index
    %c0_193 = arith.constant 0 : index
    %334 = vector.load %arg2[%c23_192, %c0_193] : memref<27x256xf32, #tpu.memory_space<vmem>>, vector<1x256xf32>
    %335 = vector.broadcast %334 : vector<1x256xf32> to vector<8x256xf32>
    %336 = arith.mulf %333, %335 : vector<8x256xf32>
    %c185_i32_194 = arith.constant 185 : i32
    %337 = tpu.dynamic_rotate %241 by %c185_i32_194 dim 1 : vector<8x256xf32>, i32 -> vector<8x256xf32>
    %c24_195 = arith.constant 24 : index
    %c0_196 = arith.constant 0 : index
    %338 = vector.load %arg2[%c24_195, %c0_196] : memref<27x256xf32, #tpu.memory_space<vmem>>, vector<1x256xf32>
    %339 = vector.broadcast %338 : vector<1x256xf32> to vector<8x256xf32>
    %340 = arith.mulf %337, %339 : vector<8x256xf32>
    %c184_i32_197 = arith.constant 184 : i32
    %341 = tpu.dynamic_rotate %241 by %c184_i32_197 dim 1 : vector<8x256xf32>, i32 -> vector<8x256xf32>
    %c25_198 = arith.constant 25 : index
    %c0_199 = arith.constant 0 : index
    %342 = vector.load %arg2[%c25_198, %c0_199] : memref<27x256xf32, #tpu.memory_space<vmem>>, vector<1x256xf32>
    %343 = vector.broadcast %342 : vector<1x256xf32> to vector<8x256xf32>
    %344 = arith.mulf %341, %343 : vector<8x256xf32>
    %c183_i32_200 = arith.constant 183 : i32
    %345 = tpu.dynamic_rotate %241 by %c183_i32_200 dim 1 : vector<8x256xf32>, i32 -> vector<8x256xf32>
    %c26_201 = arith.constant 26 : index
    %c0_202 = arith.constant 0 : index
    %346 = vector.load %arg2[%c26_201, %c0_202] : memref<27x256xf32, #tpu.memory_space<vmem>>, vector<1x256xf32>
    %347 = vector.broadcast %346 : vector<1x256xf32> to vector<8x256xf32>
    %348 = arith.mulf %345, %347 : vector<8x256xf32>
    %349 = tpu.concatenate %245, %249, %253, %257, %261, %265, %269, %273, %277, %281, %285, %289, %293, %296, %300, %304 in 0 : vector<8x256xf32>, vector<8x256xf32>, vector<8x256xf32>, vector<8x256xf32>, vector<8x256xf32>, vector<8x256xf32>, vector<8x256xf32>, vector<8x256xf32>, vector<8x256xf32>, vector<8x256xf32>, vector<8x256xf32>, vector<8x256xf32>, vector<8x256xf32>, vector<8x256xf32>, vector<8x256xf32>, vector<8x256xf32> -> vector<128x256xf32>
    %350 = tpu.concatenate %308, %312, %316, %320, %324, %328, %332, %336, %340, %344, %348 in 0 : vector<8x256xf32>, vector<8x256xf32>, vector<8x256xf32>, vector<8x256xf32>, vector<8x256xf32>, vector<8x256xf32>, vector<8x256xf32>, vector<8x256xf32>, vector<8x256xf32>, vector<8x256xf32>, vector<8x256xf32> -> vector<88x256xf32>
    %351 = tpu.concatenate %349, %350 in 0 : vector<128x256xf32>, vector<88x256xf32> -> vector<216x256xf32>
    %c0_203 = arith.constant 0 : index
    %c0_204 = arith.constant 0 : index
    %352 = vector.load %arg7[%c0_203, %c0_204] : memref<8x216xf32, #tpu.memory_space<vmem>>, vector<8x216xf32>
    %cst_205 = arith.constant dense<0.000000e+00> : vector<8x256xf32>
    %353 = tpu.matmul %352, %351, %cst_205 {dimension_numbers = #tpu.dot_dimension_numbers<[1], [0], [0], [1], [0, 0, 1, 1], [], []>} : vector<8x216xf32>, vector<216x256xf32>, vector<8x256xf32> -> vector<8x256xf32>
    %c0_206 = arith.constant 0 : index
    %c0_207 = arith.constant 0 : index
    %354 = vector.load %arg8[%c0_206, %c0_207] : memref<8x1xf32, #tpu.memory_space<vmem>>, vector<8x1xf32>
    %355 = vector.broadcast %354 : vector<8x1xf32> to vector<8x256xf32>
    %356 = arith.addf %353, %355 : vector<8x256xf32>
    %357 = arith.addf %356, %1 : vector<8x256xf32>
    %cst_208 = arith.constant 0.000000e+00 : f32
    %358 = vector.broadcast %cst_208 : f32 to vector<8x256xf32>
    %359 = arith.cmpf oge, %357, %358 : vector<8x256xf32>
    %cst_209 = arith.constant 1.000000e-01 : f32
    %360 = vector.broadcast %cst_209 : f32 to vector<8x256xf32>
    %361 = arith.mulf %360, %357 : vector<8x256xf32>
    %362 = arith.select %359, %357, %361 : vector<8x256xi1>, vector<8x256xf32>
    %c0_210 = arith.constant 0 : index
    %c0_211 = arith.constant 0 : index
    %c0_212 = arith.constant 0 : index
    %363 = vector.load %arg9[%c0_210, %c0_211, %c0_212] : memref<1x8x256xf32, #tpu.memory_space<vmem>>, vector<1x8x256xf32>
    %364 = vector.shape_cast %363 : vector<1x8x256xf32> to vector<8x256xf32>
    %365 = vector.shape_cast %362 : vector<8x256xf32> to vector<1x8x256xf32>
    tpu.vector_store %arg9[%c0_210, %c0_211, %c0_212], %365 {strides = array<i32>} : memref<1x8x256xf32, #tpu.memory_space<vmem>>, vector<1x8x256xf32>,
    return
  }
  func.func @transform_0(%arg0: i32) -> (i32, i32, i32) {
    %c0_i32 = arith.constant 0 : i32
    %c0_i32_0 = arith.constant 0 : i32
    %c0_i32_1 = arith.constant 0 : i32
    return %arg0, %c0_i32, %c0_i32_0 : i32, i32, i32
  }
  func.func @transform_1(%arg0: i32) -> (i32, i32) {
    %c0_i32 = arith.constant 0 : i32
    %c0_i32_0 = arith.constant 0 : i32
    %c0_i32_1 = arith.constant 0 : i32
    return %c0_i32, %c0_i32_0 : i32, i32
  }
  func.func @transform_2(%arg0: i32) -> (i32, i32) {
    %c0_i32 = arith.constant 0 : i32
    %c0_i32_0 = arith.constant 0 : i32
    %c0_i32_1 = arith.constant 0 : i32
    return %c0_i32, %c0_i32_0 : i32, i32
  }
  func.func @transform_3(%arg0: i32) -> (i32, i32) {
    %c0_i32 = arith.constant 0 : i32
    %c0_i32_0 = arith.constant 0 : i32
    %c0_i32_1 = arith.constant 0 : i32
    return %c0_i32, %c0_i32_0 : i32, i32
  }
  func.func @transform_4(%arg0: i32) -> (i32, i32) {
    %c0_i32 = arith.constant 0 : i32
    %c0_i32_0 = arith.constant 0 : i32
    %c0_i32_1 = arith.constant 0 : i32
    return %c0_i32, %c0_i32_0 : i32, i32
  }
  func.func @transform_5(%arg0: i32) -> (i32, i32) {
    %c0_i32 = arith.constant 0 : i32
    %c0_i32_0 = arith.constant 0 : i32
    %c0_i32_1 = arith.constant 0 : i32
    return %c0_i32, %c0_i32_0 : i32, i32
  }
  func.func @transform_6(%arg0: i32) -> (i32, i32) {
    %c0_i32 = arith.constant 0 : i32
    %c0_i32_0 = arith.constant 0 : i32
    %c0_i32_1 = arith.constant 0 : i32
    return %c0_i32, %c0_i32_0 : i32, i32
  }
  func.func @transform_7(%arg0: i32) -> (i32, i32) {
    %c0_i32 = arith.constant 0 : i32
    %c0_i32_0 = arith.constant 0 : i32
    %c0_i32_1 = arith.constant 0 : i32
    return %c0_i32, %c0_i32_0 : i32, i32
  }
  func.func @transform_8(%arg0: i32) -> (i32, i32, i32) {
    %c0_i32 = arith.constant 0 : i32
    %c0_i32_0 = arith.constant 0 : i32
    %c0_i32_1 = arith.constant 0 : i32
    return %arg0, %c0_i32, %c0_i32_0 : i32, i32, i32
  }
}

module attributes {stable_mosaic.version = 11 : i64} {
  func.func @_resblock3d_kernel(%arg0: i32, %arg1: memref<1x8x256xf32, #tpu.memory_space<vmem>>, %arg2: memref<27x256xf32, #tpu.memory_space<vmem>>, %arg3: memref<8x216xf32, #tpu.memory_space<vmem>>, %arg4: memref<8x1xf32, #tpu.memory_space<vmem>>, %arg5: memref<8x216xf32, #tpu.memory_space<vmem>>, %arg6: memref<8x1xf32, #tpu.memory_space<vmem>>, %arg7: memref<8x216xf32, #tpu.memory_space<vmem>>, %arg8: memref<8x1xf32, #tpu.memory_space<vmem>>, %arg9: memref<1x8x256xf32, #tpu.memory_space<vmem>>) attributes {dimension_semantics = [#tpu.dimension_semantics<parallel>], iteration_bounds = array<i64: 2>, scalar_prefetch = 0 : i64, scratch_operands = 0 : i64, tpu.core_type = #tpu.core_type<tc>, window_params = [{transform_indices = @transform_0, window_bounds = array<i64: 1, 8, 256>}, {pipeline_mode = #tpu.pipeline_mode<synchronous>, transform_indices = @transform_1, window_bounds = array<i64: 27, 256>}, {pipeline_mode = #tpu.pipeline_mode<synchronous>, transform_indices = @transform_2, window_bounds = array<i64: 8, 216>}, {pipeline_mode = #tpu.pipeline_mode<synchronous>, transform_indices = @transform_3, window_bounds = array<i64: 8, 1>}, {pipeline_mode = #tpu.pipeline_mode<synchronous>, transform_indices = @transform_4, window_bounds = array<i64: 8, 216>}, {pipeline_mode = #tpu.pipeline_mode<synchronous>, transform_indices = @transform_5, window_bounds = array<i64: 8, 1>}, {pipeline_mode = #tpu.pipeline_mode<synchronous>, transform_indices = @transform_6, window_bounds = array<i64: 8, 216>}, {pipeline_mode = #tpu.pipeline_mode<synchronous>, transform_indices = @transform_7, window_bounds = array<i64: 8, 1>}, {transform_indices = @transform_8, window_bounds = array<i64: 1, 8, 256>}]} {
    %c0 = arith.constant 0 : index
    %c0_0 = arith.constant 0 : index
    %c0_1 = arith.constant 0 : index
    %0 = vector.load %arg1[%c0, %c0_0, %c0_1] : memref<1x8x256xf32, #tpu.memory_space<vmem>>, vector<1x8x256xf32>
    %1 = vector.shape_cast %0 : vector<1x8x256xf32> to vector<8x256xf32>
    %c73_i32 = arith.constant 73 : i32
    %2 = tpu.dynamic_rotate %1 by %c73_i32 dim 1 : vector<8x256xf32>, i32 -> vector<8x256xf32>
    %c0_2 = arith.constant 0 : index
    %c0_3 = arith.constant 0 : index
    %3 = vector.load %arg2[%c0_2, %c0_3] : memref<27x256xf32, #tpu.memory_space<vmem>>, vector<1x256xf32>
    %4 = vector.broadcast %3 : vector<1x256xf32> to vector<8x256xf32>
    %5 = arith.mulf %2, %4 : vector<8x256xf32>
    %c72_i32 = arith.constant 72 : i32
    %6 = tpu.dynamic_rotate %1 by %c72_i32 dim 1 : vector<8x256xf32>, i32 -> vector<8x256xf32>
    %c1 = arith.constant 1 : index
    %c0_4 = arith.constant 0 : index
    %7 = vector.load %arg2[%c1, %c0_4] : memref<27x256xf32, #tpu.memory_space<vmem>>, vector<1x256xf32>
    %8 = vector.broadcast %7 : vector<1x256xf32> to vector<8x256xf32>
    %9 = arith.mulf %6, %8 : vector<8x256xf32>
    %c71_i32 = arith.constant 71 : i32
    %10 = tpu.dynamic_rotate %1 by %c71_i32 dim 1 : vector<8x256xf32>, i32 -> vector<8x256xf32>
    %c2 = arith.constant 2 : index
    %c0_5 = arith.constant 0 : index
    %11 = vector.load %arg2[%c2, %c0_5] : memref<27x256xf32, #tpu.memory_space<vmem>>, vector<1x256xf32>
    %12 = vector.broadcast %11 : vector<1x256xf32> to vector<8x256xf32>
    %13 = arith.mulf %10, %12 : vector<8x256xf32>
    %c65_i32 = arith.constant 65 : i32
    %14 = tpu.dynamic_rotate %1 by %c65_i32 dim 1 : vector<8x256xf32>, i32 -> vector<8x256xf32>
    %c3 = arith.constant 3 : index
    %c0_6 = arith.constant 0 : index
    %15 = vector.load %arg2[%c3, %c0_6] : memref<27x256xf32, #tpu.memory_space<vmem>>, vector<1x256xf32>
    %16 = vector.broadcast %15 : vector<1x256xf32> to vector<8x256xf32>
    %17 = arith.mulf %14, %16 : vector<8x256xf32>
    %c64_i32 = arith.constant 64 : i32
    %18 = tpu.dynamic_rotate %1 by %c64_i32 dim 1 : vector<8x256xf32>, i32 -> vector<8x256xf32>
    %c4 = arith.constant 4 : index
    %c0_7 = arith.constant 0 : index
    %19 = vector.load %arg2[%c4, %c0_7] : memref<27x256xf32, #tpu.memory_space<vmem>>, vector<1x256xf32>
    %20 = vector.broadcast %19 : vector<1x256xf32> to vector<8x256xf32>
    %21 = arith.mulf %18, %20 : vector<8x256xf32>
    %c63_i32 = arith.constant 63 : i32
    %22 = tpu.dynamic_rotate %1 by %c63_i32 dim 1 : vector<8x256xf32>, i32 -> vector<8x256xf32>
    %c5 = arith.constant 5 : index
    %c0_8 = arith.constant 0 : index
    %23 = vector.load %arg2[%c5, %c0_8] : memref<27x256xf32, #tpu.memory_space<vmem>>, vector<1x256xf32>
    %24 = vector.broadcast %23 : vector<1x256xf32> to vector<8x256xf32>
    %25 = arith.mulf %22, %24 : vector<8x256xf32>
    %c57_i32 = arith.constant 57 : i32
    %26 = tpu.dynamic_rotate %1 by %c57_i32 dim 1 : vector<8x256xf32>, i32 -> vector<8x256xf32>
    %c6 = arith.constant 6 : index
    %c0_9 = arith.constant 0 : index
    %27 = vector.load %arg2[%c6, %c0_9] : memref<27x256xf32, #tpu.memory_space<vmem>>, vector<1x256xf32>
    %28 = vector.broadcast %27 : vector<1x256xf32> to vector<8x256xf32>
    %29 = arith.mulf %26, %28 : vector<8x256xf32>
    %c56_i32 = arith.constant 56 : i32
    %30 = tpu.dynamic_rotate %1 by %c56_i32 dim 1 : vector<8x256xf32>, i32 -> vector<8x256xf32>
    %c7 = arith.constant 7 : index
    %c0_10 = arith.constant 0 : index
    %31 = vector.load %arg2[%c7, %c0_10] : memref<27x256xf32, #tpu.memory_space<vmem>>, vector<1x256xf32>
    %32 = vector.broadcast %31 : vector<1x256xf32> to vector<8x256xf32>
    %33 = arith.mulf %30, %32 : vector<8x256xf32>
    %c55_i32 = arith.constant 55 : i32
    %34 = tpu.dynamic_rotate %1 by %c55_i32 dim 1 : vector<8x256xf32>, i32 -> vector<8x256xf32>
    %c8 = arith.constant 8 : index
    %c0_11 = arith.constant 0 : index
    %35 = vector.load %arg2[%c8, %c0_11] : memref<27x256xf32, #tpu.memory_space<vmem>>, vector<1x256xf32>
    %36 = vector.broadcast %35 : vector<1x256xf32> to vector<8x256xf32>
    %37 = arith.mulf %34, %36 : vector<8x256xf32>
    %c9_i32 = arith.constant 9 : i32
    %38 = tpu.dynamic_rotate %1 by %c9_i32 dim 1 : vector<8x256xf32>, i32 -> vector<8x256xf32>
    %c9 = arith.constant 9 : index
    %c0_12 = arith.constant 0 : index
    %39 = vector.load %arg2[%c9, %c0_12] : memref<27x256xf32, #tpu.memory_space<vmem>>, vector<1x256xf32>
    %40 = vector.broadcast %39 : vector<1x256xf32> to vector<8x256xf32>
    %41 = arith.mulf %38, %40 : vector<8x256xf32>
    %c8_i32 = arith.constant 8 : i32
    %42 = tpu.dynamic_rotate %1 by %c8_i32 dim 1 : vector<8x256xf32>, i32 -> vector<8x256xf32>
    %c10 = arith.constant 10 : index
    %c0_13 = arith.constant 0 : index
    %43 = vector.load %arg2[%c10, %c0_13] : memref<27x256xf32, #tpu.memory_space<vmem>>, vector<1x256xf32>
    %44 = vector.broadcast %43 : vector<1x256xf32> to vector<8x256xf32>
    %45 = arith.mulf %42, %44 : vector<8x256xf32>
    %c7_i32 = arith.constant 7 : i32
    %46 = tpu.dynamic_rotate %1 by %c7_i32 dim 1 : vector<8x256xf32>, i32 -> vector<8x256xf32>
    %c11 = arith.constant 11 : index
    %c0_14 = arith.constant 0 : index
    %47 = vector.load %arg2[%c11, %c0_14] : memref<27x256xf32, #tpu.memory_space<vmem>>, vector<1x256xf32>
    %48 = vector.broadcast %47 : vector<1x256xf32> to vector<8x256xf32>
    %49 = arith.mulf %46, %48 : vector<8x256xf32>
    %c1_i32 = arith.constant 1 : i32
    %50 = tpu.dynamic_rotate %1 by %c1_i32 dim 1 : vector<8x256xf32>, i32 -> vector<8x256xf32>
    %c12 = arith.constant 12 : index
    %c0_15 = arith.constant 0 : index
    %51 = vector.load %arg2[%c12, %c0_15] : memref<27x256xf32, #tpu.memory_space<vmem>>, vector<1x256xf32>
    %52 = vector.broadcast %51 : vector<1x256xf32> to vector<8x256xf32>
    %53 = arith.mulf %50, %52 : vector<8x256xf32>
    %c13 = arith.constant 13 : index
    %c0_16 = arith.constant 0 : index
    %54 = vector.load %arg2[%c13, %c0_16] : memref<27x256xf32, #tpu.memory_space<vmem>>, vector<1x256xf32>
    %55 = vector.broadcast %54 : vector<1x256xf32> to vector<8x256xf32>
    %56 = arith.mulf %1, %55 : vector<8x256xf32>
    %c255_i32 = arith.constant 255 : i32
    %57 = tpu.dynamic_rotate %1 by %c255_i32 dim 1 : vector<8x256xf32>, i32 -> vector<8x256xf32>
    %c14 = arith.constant 14 : index
    %c0_17 = arith.constant 0 : index
    %58 = vector.load %arg2[%c14, %c0_17] : memref<27x256xf32, #tpu.memory_space<vmem>>, vector<1x256xf32>
    %59 = vector.broadcast %58 : vector<1x256xf32> to vector<8x256xf32>
    %60 = arith.mulf %57, %59 : vector<8x256xf32>
    %c249_i32 = arith.constant 249 : i32
    %61 = tpu.dynamic_rotate %1 by %c249_i32 dim 1 : vector<8x256xf32>, i32 -> vector<8x256xf32>
    %c15 = arith.constant 15 : index
    %c0_18 = arith.constant 0 : index
    %62 = vector.load %arg2[%c15, %c0_18] : memref<27x256xf32, #tpu.memory_space<vmem>>, vector<1x256xf32>
    %63 = vector.broadcast %62 : vector<1x256xf32> to vector<8x256xf32>
    %64 = arith.mulf %61, %63 : vector<8x256xf32>
    %c248_i32 = arith.constant 248 : i32
    %65 = tpu.dynamic_rotate %1 by %c248_i32 dim 1 : vector<8x256xf32>, i32 -> vector<8x256xf32>
    %c16 = arith.constant 16 : index
    %c0_19 = arith.constant 0 : index
    %66 = vector.load %arg2[%c16, %c0_19] : memref<27x256xf32, #tpu.memory_space<vmem>>, vector<1x256xf32>
    %67 = vector.broadcast %66 : vector<1x256xf32> to vector<8x256xf32>
    %68 = arith.mulf %65, %67 : vector<8x256xf32>
    %c247_i32 = arith.constant 247 : i32
    %69 = tpu.dynamic_rotate %1 by %c247_i32 dim 1 : vector<8x256xf32>, i32 -> vector<8x256xf32>
    %c17 = arith.constant 17 : index
    %c0_20 = arith.constant 0 : index
    %70 = vector.load %arg2[%c17, %c0_20] : memref<27x256xf32, #tpu.memory_space<vmem>>, vector<1x256xf32>
    %71 = vector.broadcast %70 : vector<1x256xf32> to vector<8x256xf32>
    %72 = arith.mulf %69, %71 : vector<8x256xf32>
    %c201_i32 = arith.constant 201 : i32
    %73 = tpu.dynamic_rotate %1 by %c201_i32 dim 1 : vector<8x256xf32>, i32 -> vector<8x256xf32>
    %c18 = arith.constant 18 : index
    %c0_21 = arith.constant 0 : index
    %74 = vector.load %arg2[%c18, %c0_21] : memref<27x256xf32, #tpu.memory_space<vmem>>, vector<1x256xf32>
    %75 = vector.broadcast %74 : vector<1x256xf32> to vector<8x256xf32>
    %76 = arith.mulf %73, %75 : vector<8x256xf32>
    %c200_i32 = arith.constant 200 : i32
    %77 = tpu.dynamic_rotate %1 by %c200_i32 dim 1 : vector<8x256xf32>, i32 -> vector<8x256xf32>
    %c19 = arith.constant 19 : index
    %c0_22 = arith.constant 0 : index
    %78 = vector.load %arg2[%c19, %c0_22] : memref<27x256xf32, #tpu.memory_space<vmem>>, vector<1x256xf32>
    %79 = vector.broadcast %78 : vector<1x256xf32> to vector<8x256xf32>
    %80 = arith.mulf %77, %79 : vector<8x256xf32>
    %c199_i32 = arith.constant 199 : i32
    %81 = tpu.dynamic_rotate %1 by %c199_i32 dim 1 : vector<8x256xf32>, i32 -> vector<8x256xf32>
    %c20 = arith.constant 20 : index
    %c0_23 = arith.constant 0 : index
    %82 = vector.load %arg2[%c20, %c0_23] : memref<27x256xf32, #tpu.memory_space<vmem>>, vector<1x256xf32>
    %83 = vector.broadcast %82 : vector<1x256xf32> to vector<8x256xf32>
    %84 = arith.mulf %81, %83 : vector<8x256xf32>
    %c193_i32 = arith.constant 193 : i32
    %85 = tpu.dynamic_rotate %1 by %c193_i32 dim 1 : vector<8x256xf32>, i32 -> vector<8x256xf32>
    %c21 = arith.constant 21 : index
    %c0_24 = arith.constant 0 : index
    %86 = vector.load %arg2[%c21, %c0_24] : memref<27x256xf32, #tpu.memory_space<vmem>>, vector<1x256xf32>
    %87 = vector.broadcast %86 : vector<1x256xf32> to vector<8x256xf32>
    %88 = arith.mulf %85, %87 : vector<8x256xf32>
    %c192_i32 = arith.constant 192 : i32
    %89 = tpu.dynamic_rotate %1 by %c192_i32 dim 1 : vector<8x256xf32>, i32 -> vector<8x256xf32>
    %c22 = arith.constant 22 : index
    %c0_25 = arith.constant 0 : index
    %90 = vector.load %arg2[%c22, %c0_25] : memref<27x256xf32, #tpu.memory_space<vmem>>, vector<1x256xf32>
    %91 = vector.broadcast %90 : vector<1x256xf32> to vector<8x256xf32>
    %92 = arith.mulf %89, %91 : vector<8x256xf32>
    %c191_i32 = arith.constant 191 : i32
    %93 = tpu.dynamic_rotate %1 by %c191_i32 dim 1 : vector<8x256xf32>, i32 -> vector<8x256xf32>
    %c23 = arith.constant 23 : index
    %c0_26 = arith.constant 0 : index
    %94 = vector.load %arg2[%c23, %c0_26] : memref<27x256xf32, #tpu.memory_space<vmem>>, vector<1x256xf32>
    %95 = vector.broadcast %94 : vector<1x256xf32> to vector<8x256xf32>
    %96 = arith.mulf %93, %95 : vector<8x256xf32>
    %c185_i32 = arith.constant 185 : i32
    %97 = tpu.dynamic_rotate %1 by %c185_i32 dim 1 : vector<8x256xf32>, i32 -> vector<8x256xf32>
    %c24 = arith.constant 24 : index
    %c0_27 = arith.constant 0 : index
    %98 = vector.load %arg2[%c24, %c0_27] : memref<27x256xf32, #tpu.memory_space<vmem>>, vector<1x256xf32>
    %99 = vector.broadcast %98 : vector<1x256xf32> to vector<8x256xf32>
    %100 = arith.mulf %97, %99 : vector<8x256xf32>
    %c184_i32 = arith.constant 184 : i32
    %101 = tpu.dynamic_rotate %1 by %c184_i32 dim 1 : vector<8x256xf32>, i32 -> vector<8x256xf32>
    %c25 = arith.constant 25 : index
    %c0_28 = arith.constant 0 : index
    %102 = vector.load %arg2[%c25, %c0_28] : memref<27x256xf32, #tpu.memory_space<vmem>>, vector<1x256xf32>
    %103 = vector.broadcast %102 : vector<1x256xf32> to vector<8x256xf32>
    %104 = arith.mulf %101, %103 : vector<8x256xf32>
    %c183_i32 = arith.constant 183 : i32
    %105 = tpu.dynamic_rotate %1 by %c183_i32 dim 1 : vector<8x256xf32>, i32 -> vector<8x256xf32>
    %c26 = arith.constant 26 : index
    %c0_29 = arith.constant 0 : index
    %106 = vector.load %arg2[%c26, %c0_29] : memref<27x256xf32, #tpu.memory_space<vmem>>, vector<1x256xf32>
    %107 = vector.broadcast %106 : vector<1x256xf32> to vector<8x256xf32>
    %108 = arith.mulf %105, %107 : vector<8x256xf32>
    %cst = arith.constant 0.000000e+00 : f32
    %109 = vector.broadcast %cst : f32 to vector<8x256xf32>
    %c0_30 = arith.constant 0 : index
    %c0_31 = arith.constant 0 : index
    %110 = vector.load %arg3[%c0_30, %c0_31] : memref<8x216xf32, #tpu.memory_space<vmem>>, vector<8x8xf32>
    %cst_32 = arith.constant dense<0.000000e+00> : vector<8x256xf32>
    %111 = tpu.matmul %110, %5, %cst_32 {dimension_numbers = #tpu.dot_dimension_numbers<[1], [0], [0], [1], [0, 0, 1, 1], [], []>} : vector<8x8xf32>, vector<8x256xf32>, vector<8x256xf32> -> vector<8x256xf32>
    %112 = arith.addf %109, %111 : vector<8x256xf32>
    %c0_33 = arith.constant 0 : index
    %c8_34 = arith.constant 8 : index
    %113 = vector.load %arg3[%c0_33, %c8_34] : memref<8x216xf32, #tpu.memory_space<vmem>>, vector<8x8xf32>
    %cst_35 = arith.constant dense<0.000000e+00> : vector<8x256xf32>
    %114 = tpu.matmul %113, %9, %cst_35 {dimension_numbers = #tpu.dot_dimension_numbers<[1], [0], [0], [1], [0, 0, 1, 1], [], []>} : vector<8x8xf32>, vector<8x256xf32>, vector<8x256xf32> -> vector<8x256xf32>
    %115 = arith.addf %112, %114 : vector<8x256xf32>
    %c0_36 = arith.constant 0 : index
    %c16_37 = arith.constant 16 : index
    %116 = vector.load %arg3[%c0_36, %c16_37] : memref<8x216xf32, #tpu.memory_space<vmem>>, vector<8x8xf32>
    %cst_38 = arith.constant dense<0.000000e+00> : vector<8x256xf32>
    %117 = tpu.matmul %116, %13, %cst_38 {dimension_numbers = #tpu.dot_dimension_numbers<[1], [0], [0], [1], [0, 0, 1, 1], [], []>} : vector<8x8xf32>, vector<8x256xf32>, vector<8x256xf32> -> vector<8x256xf32>
    %118 = arith.addf %115, %117 : vector<8x256xf32>
    %c0_39 = arith.constant 0 : index
    %c24_40 = arith.constant 24 : index
    %119 = vector.load %arg3[%c0_39, %c24_40] : memref<8x216xf32, #tpu.memory_space<vmem>>, vector<8x8xf32>
    %cst_41 = arith.constant dense<0.000000e+00> : vector<8x256xf32>
    %120 = tpu.matmul %119, %17, %cst_41 {dimension_numbers = #tpu.dot_dimension_numbers<[1], [0], [0], [1], [0, 0, 1, 1], [], []>} : vector<8x8xf32>, vector<8x256xf32>, vector<8x256xf32> -> vector<8x256xf32>
    %121 = arith.addf %118, %120 : vector<8x256xf32>
    %c0_42 = arith.constant 0 : index
    %c32 = arith.constant 32 : index
    %122 = vector.load %arg3[%c0_42, %c32] : memref<8x216xf32, #tpu.memory_space<vmem>>, vector<8x8xf32>
    %cst_43 = arith.constant dense<0.000000e+00> : vector<8x256xf32>
    %123 = tpu.matmul %122, %21, %cst_43 {dimension_numbers = #tpu.dot_dimension_numbers<[1], [0], [0], [1], [0, 0, 1, 1], [], []>} : vector<8x8xf32>, vector<8x256xf32>, vector<8x256xf32> -> vector<8x256xf32>
    %124 = arith.addf %121, %123 : vector<8x256xf32>
    %c0_44 = arith.constant 0 : index
    %c40 = arith.constant 40 : index
    %125 = vector.load %arg3[%c0_44, %c40] : memref<8x216xf32, #tpu.memory_space<vmem>>, vector<8x8xf32>
    %cst_45 = arith.constant dense<0.000000e+00> : vector<8x256xf32>
    %126 = tpu.matmul %125, %25, %cst_45 {dimension_numbers = #tpu.dot_dimension_numbers<[1], [0], [0], [1], [0, 0, 1, 1], [], []>} : vector<8x8xf32>, vector<8x256xf32>, vector<8x256xf32> -> vector<8x256xf32>
    %127 = arith.addf %124, %126 : vector<8x256xf32>
    %c0_46 = arith.constant 0 : index
    %c48 = arith.constant 48 : index
    %128 = vector.load %arg3[%c0_46, %c48] : memref<8x216xf32, #tpu.memory_space<vmem>>, vector<8x8xf32>
    %cst_47 = arith.constant dense<0.000000e+00> : vector<8x256xf32>
    %129 = tpu.matmul %128, %29, %cst_47 {dimension_numbers = #tpu.dot_dimension_numbers<[1], [0], [0], [1], [0, 0, 1, 1], [], []>} : vector<8x8xf32>, vector<8x256xf32>, vector<8x256xf32> -> vector<8x256xf32>
    %130 = arith.addf %127, %129 : vector<8x256xf32>
    %c0_48 = arith.constant 0 : index
    %c56 = arith.constant 56 : index
    %131 = vector.load %arg3[%c0_48, %c56] : memref<8x216xf32, #tpu.memory_space<vmem>>, vector<8x8xf32>
    %cst_49 = arith.constant dense<0.000000e+00> : vector<8x256xf32>
    %132 = tpu.matmul %131, %33, %cst_49 {dimension_numbers = #tpu.dot_dimension_numbers<[1], [0], [0], [1], [0, 0, 1, 1], [], []>} : vector<8x8xf32>, vector<8x256xf32>, vector<8x256xf32> -> vector<8x256xf32>
    %133 = arith.addf %130, %132 : vector<8x256xf32>
    %c0_50 = arith.constant 0 : index
    %c64 = arith.constant 64 : index
    %134 = vector.load %arg3[%c0_50, %c64] : memref<8x216xf32, #tpu.memory_space<vmem>>, vector<8x8xf32>
    %cst_51 = arith.constant dense<0.000000e+00> : vector<8x256xf32>
    %135 = tpu.matmul %134, %37, %cst_51 {dimension_numbers = #tpu.dot_dimension_numbers<[1], [0], [0], [1], [0, 0, 1, 1], [], []>} : vector<8x8xf32>, vector<8x256xf32>, vector<8x256xf32> -> vector<8x256xf32>
    %136 = arith.addf %133, %135 : vector<8x256xf32>
    %c0_52 = arith.constant 0 : index
    %c72 = arith.constant 72 : index
    %137 = vector.load %arg3[%c0_52, %c72] : memref<8x216xf32, #tpu.memory_space<vmem>>, vector<8x8xf32>
    %cst_53 = arith.constant dense<0.000000e+00> : vector<8x256xf32>
    %138 = tpu.matmul %137, %41, %cst_53 {dimension_numbers = #tpu.dot_dimension_numbers<[1], [0], [0], [1], [0, 0, 1, 1], [], []>} : vector<8x8xf32>, vector<8x256xf32>, vector<8x256xf32> -> vector<8x256xf32>
    %139 = arith.addf %136, %138 : vector<8x256xf32>
    %c0_54 = arith.constant 0 : index
    %c80 = arith.constant 80 : index
    %140 = vector.load %arg3[%c0_54, %c80] : memref<8x216xf32, #tpu.memory_space<vmem>>, vector<8x8xf32>
    %cst_55 = arith.constant dense<0.000000e+00> : vector<8x256xf32>
    %141 = tpu.matmul %140, %45, %cst_55 {dimension_numbers = #tpu.dot_dimension_numbers<[1], [0], [0], [1], [0, 0, 1, 1], [], []>} : vector<8x8xf32>, vector<8x256xf32>, vector<8x256xf32> -> vector<8x256xf32>
    %142 = arith.addf %139, %141 : vector<8x256xf32>
    %c0_56 = arith.constant 0 : index
    %c88 = arith.constant 88 : index
    %143 = vector.load %arg3[%c0_56, %c88] : memref<8x216xf32, #tpu.memory_space<vmem>>, vector<8x8xf32>
    %cst_57 = arith.constant dense<0.000000e+00> : vector<8x256xf32>
    %144 = tpu.matmul %143, %49, %cst_57 {dimension_numbers = #tpu.dot_dimension_numbers<[1], [0], [0], [1], [0, 0, 1, 1], [], []>} : vector<8x8xf32>, vector<8x256xf32>, vector<8x256xf32> -> vector<8x256xf32>
    %145 = arith.addf %142, %144 : vector<8x256xf32>
    %c0_58 = arith.constant 0 : index
    %c96 = arith.constant 96 : index
    %146 = vector.load %arg3[%c0_58, %c96] : memref<8x216xf32, #tpu.memory_space<vmem>>, vector<8x8xf32>
    %cst_59 = arith.constant dense<0.000000e+00> : vector<8x256xf32>
    %147 = tpu.matmul %146, %53, %cst_59 {dimension_numbers = #tpu.dot_dimension_numbers<[1], [0], [0], [1], [0, 0, 1, 1], [], []>} : vector<8x8xf32>, vector<8x256xf32>, vector<8x256xf32> -> vector<8x256xf32>
    %148 = arith.addf %145, %147 : vector<8x256xf32>
    %c0_60 = arith.constant 0 : index
    %c104 = arith.constant 104 : index
    %149 = vector.load %arg3[%c0_60, %c104] : memref<8x216xf32, #tpu.memory_space<vmem>>, vector<8x8xf32>
    %cst_61 = arith.constant dense<0.000000e+00> : vector<8x256xf32>
    %150 = tpu.matmul %149, %56, %cst_61 {dimension_numbers = #tpu.dot_dimension_numbers<[1], [0], [0], [1], [0, 0, 1, 1], [], []>} : vector<8x8xf32>, vector<8x256xf32>, vector<8x256xf32> -> vector<8x256xf32>
    %151 = arith.addf %148, %150 : vector<8x256xf32>
    %c0_62 = arith.constant 0 : index
    %c112 = arith.constant 112 : index
    %152 = vector.load %arg3[%c0_62, %c112] : memref<8x216xf32, #tpu.memory_space<vmem>>, vector<8x8xf32>
    %cst_63 = arith.constant dense<0.000000e+00> : vector<8x256xf32>
    %153 = tpu.matmul %152, %60, %cst_63 {dimension_numbers = #tpu.dot_dimension_numbers<[1], [0], [0], [1], [0, 0, 1, 1], [], []>} : vector<8x8xf32>, vector<8x256xf32>, vector<8x256xf32> -> vector<8x256xf32>
    %154 = arith.addf %151, %153 : vector<8x256xf32>
    %c0_64 = arith.constant 0 : index
    %c120 = arith.constant 120 : index
    %155 = vector.load %arg3[%c0_64, %c120] : memref<8x216xf32, #tpu.memory_space<vmem>>, vector<8x8xf32>
    %cst_65 = arith.constant dense<0.000000e+00> : vector<8x256xf32>
    %156 = tpu.matmul %155, %64, %cst_65 {dimension_numbers = #tpu.dot_dimension_numbers<[1], [0], [0], [1], [0, 0, 1, 1], [], []>} : vector<8x8xf32>, vector<8x256xf32>, vector<8x256xf32> -> vector<8x256xf32>
    %157 = arith.addf %154, %156 : vector<8x256xf32>
    %c0_66 = arith.constant 0 : index
    %c128 = arith.constant 128 : index
    %158 = vector.load %arg3[%c0_66, %c128] : memref<8x216xf32, #tpu.memory_space<vmem>>, vector<8x8xf32>
    %cst_67 = arith.constant dense<0.000000e+00> : vector<8x256xf32>
    %159 = tpu.matmul %158, %68, %cst_67 {dimension_numbers = #tpu.dot_dimension_numbers<[1], [0], [0], [1], [0, 0, 1, 1], [], []>} : vector<8x8xf32>, vector<8x256xf32>, vector<8x256xf32> -> vector<8x256xf32>
    %160 = arith.addf %157, %159 : vector<8x256xf32>
    %c0_68 = arith.constant 0 : index
    %c136 = arith.constant 136 : index
    %161 = vector.load %arg3[%c0_68, %c136] : memref<8x216xf32, #tpu.memory_space<vmem>>, vector<8x8xf32>
    %cst_69 = arith.constant dense<0.000000e+00> : vector<8x256xf32>
    %162 = tpu.matmul %161, %72, %cst_69 {dimension_numbers = #tpu.dot_dimension_numbers<[1], [0], [0], [1], [0, 0, 1, 1], [], []>} : vector<8x8xf32>, vector<8x256xf32>, vector<8x256xf32> -> vector<8x256xf32>
    %163 = arith.addf %160, %162 : vector<8x256xf32>
    %c0_70 = arith.constant 0 : index
    %c144 = arith.constant 144 : index
    %164 = vector.load %arg3[%c0_70, %c144] : memref<8x216xf32, #tpu.memory_space<vmem>>, vector<8x8xf32>
    %cst_71 = arith.constant dense<0.000000e+00> : vector<8x256xf32>
    %165 = tpu.matmul %164, %76, %cst_71 {dimension_numbers = #tpu.dot_dimension_numbers<[1], [0], [0], [1], [0, 0, 1, 1], [], []>} : vector<8x8xf32>, vector<8x256xf32>, vector<8x256xf32> -> vector<8x256xf32>
    %166 = arith.addf %163, %165 : vector<8x256xf32>
    %c0_72 = arith.constant 0 : index
    %c152 = arith.constant 152 : index
    %167 = vector.load %arg3[%c0_72, %c152] : memref<8x216xf32, #tpu.memory_space<vmem>>, vector<8x8xf32>
    %cst_73 = arith.constant dense<0.000000e+00> : vector<8x256xf32>
    %168 = tpu.matmul %167, %80, %cst_73 {dimension_numbers = #tpu.dot_dimension_numbers<[1], [0], [0], [1], [0, 0, 1, 1], [], []>} : vector<8x8xf32>, vector<8x256xf32>, vector<8x256xf32> -> vector<8x256xf32>
    %169 = arith.addf %166, %168 : vector<8x256xf32>
    %c0_74 = arith.constant 0 : index
    %c160 = arith.constant 160 : index
    %170 = vector.load %arg3[%c0_74, %c160] : memref<8x216xf32, #tpu.memory_space<vmem>>, vector<8x8xf32>
    %cst_75 = arith.constant dense<0.000000e+00> : vector<8x256xf32>
    %171 = tpu.matmul %170, %84, %cst_75 {dimension_numbers = #tpu.dot_dimension_numbers<[1], [0], [0], [1], [0, 0, 1, 1], [], []>} : vector<8x8xf32>, vector<8x256xf32>, vector<8x256xf32> -> vector<8x256xf32>
    %172 = arith.addf %169, %171 : vector<8x256xf32>
    %c0_76 = arith.constant 0 : index
    %c168 = arith.constant 168 : index
    %173 = vector.load %arg3[%c0_76, %c168] : memref<8x216xf32, #tpu.memory_space<vmem>>, vector<8x8xf32>
    %cst_77 = arith.constant dense<0.000000e+00> : vector<8x256xf32>
    %174 = tpu.matmul %173, %88, %cst_77 {dimension_numbers = #tpu.dot_dimension_numbers<[1], [0], [0], [1], [0, 0, 1, 1], [], []>} : vector<8x8xf32>, vector<8x256xf32>, vector<8x256xf32> -> vector<8x256xf32>
    %175 = arith.addf %172, %174 : vector<8x256xf32>
    %c0_78 = arith.constant 0 : index
    %c176 = arith.constant 176 : index
    %176 = vector.load %arg3[%c0_78, %c176] : memref<8x216xf32, #tpu.memory_space<vmem>>, vector<8x8xf32>
    %cst_79 = arith.constant dense<0.000000e+00> : vector<8x256xf32>
    %177 = tpu.matmul %176, %92, %cst_79 {dimension_numbers = #tpu.dot_dimension_numbers<[1], [0], [0], [1], [0, 0, 1, 1], [], []>} : vector<8x8xf32>, vector<8x256xf32>, vector<8x256xf32> -> vector<8x256xf32>
    %178 = arith.addf %175, %177 : vector<8x256xf32>
    %c0_80 = arith.constant 0 : index
    %c184 = arith.constant 184 : index
    %179 = vector.load %arg3[%c0_80, %c184] : memref<8x216xf32, #tpu.memory_space<vmem>>, vector<8x8xf32>
    %cst_81 = arith.constant dense<0.000000e+00> : vector<8x256xf32>
    %180 = tpu.matmul %179, %96, %cst_81 {dimension_numbers = #tpu.dot_dimension_numbers<[1], [0], [0], [1], [0, 0, 1, 1], [], []>} : vector<8x8xf32>, vector<8x256xf32>, vector<8x256xf32> -> vector<8x256xf32>
    %181 = arith.addf %178, %180 : vector<8x256xf32>
    %c0_82 = arith.constant 0 : index
    %c192 = arith.constant 192 : index
    %182 = vector.load %arg3[%c0_82, %c192] : memref<8x216xf32, #tpu.memory_space<vmem>>, vector<8x8xf32>
    %cst_83 = arith.constant dense<0.000000e+00> : vector<8x256xf32>
    %183 = tpu.matmul %182, %100, %cst_83 {dimension_numbers = #tpu.dot_dimension_numbers<[1], [0], [0], [1], [0, 0, 1, 1], [], []>} : vector<8x8xf32>, vector<8x256xf32>, vector<8x256xf32> -> vector<8x256xf32>
    %184 = arith.addf %181, %183 : vector<8x256xf32>
    %c0_84 = arith.constant 0 : index
    %c200 = arith.constant 200 : index
    %185 = vector.load %arg3[%c0_84, %c200] : memref<8x216xf32, #tpu.memory_space<vmem>>, vector<8x8xf32>
    %cst_85 = arith.constant dense<0.000000e+00> : vector<8x256xf32>
    %186 = tpu.matmul %185, %104, %cst_85 {dimension_numbers = #tpu.dot_dimension_numbers<[1], [0], [0], [1], [0, 0, 1, 1], [], []>} : vector<8x8xf32>, vector<8x256xf32>, vector<8x256xf32> -> vector<8x256xf32>
    %187 = arith.addf %184, %186 : vector<8x256xf32>
    %c0_86 = arith.constant 0 : index
    %c208 = arith.constant 208 : index
    %188 = vector.load %arg3[%c0_86, %c208] : memref<8x216xf32, #tpu.memory_space<vmem>>, vector<8x8xf32>
    %cst_87 = arith.constant dense<0.000000e+00> : vector<8x256xf32>
    %189 = tpu.matmul %188, %108, %cst_87 {dimension_numbers = #tpu.dot_dimension_numbers<[1], [0], [0], [1], [0, 0, 1, 1], [], []>} : vector<8x8xf32>, vector<8x256xf32>, vector<8x256xf32> -> vector<8x256xf32>
    %190 = arith.addf %187, %189 : vector<8x256xf32>
    %c0_88 = arith.constant 0 : index
    %c0_89 = arith.constant 0 : index
    %191 = vector.load %arg4[%c0_88, %c0_89] : memref<8x1xf32, #tpu.memory_space<vmem>>, vector<8x1xf32>
    %192 = vector.broadcast %191 : vector<8x1xf32> to vector<8x256xf32>
    %193 = arith.addf %190, %192 : vector<8x256xf32>
    %cst_90 = arith.constant 0.000000e+00 : f32
    %194 = vector.broadcast %cst_90 : f32 to vector<8x256xf32>
    %195 = arith.cmpf oge, %193, %194 : vector<8x256xf32>
    %cst_91 = arith.constant 1.000000e-01 : f32
    %196 = vector.broadcast %cst_91 : f32 to vector<8x256xf32>
    %197 = arith.mulf %196, %193 : vector<8x256xf32>
    %198 = arith.select %195, %193, %197 : vector<8x256xi1>, vector<8x256xf32>
    %c73_i32_92 = arith.constant 73 : i32
    %199 = tpu.dynamic_rotate %198 by %c73_i32_92 dim 1 : vector<8x256xf32>, i32 -> vector<8x256xf32>
    %c0_93 = arith.constant 0 : index
    %c0_94 = arith.constant 0 : index
    %200 = vector.load %arg2[%c0_93, %c0_94] : memref<27x256xf32, #tpu.memory_space<vmem>>, vector<1x256xf32>
    %201 = vector.broadcast %200 : vector<1x256xf32> to vector<8x256xf32>
    %202 = arith.mulf %199, %201 : vector<8x256xf32>
    %c72_i32_95 = arith.constant 72 : i32
    %203 = tpu.dynamic_rotate %198 by %c72_i32_95 dim 1 : vector<8x256xf32>, i32 -> vector<8x256xf32>
    %c1_96 = arith.constant 1 : index
    %c0_97 = arith.constant 0 : index
    %204 = vector.load %arg2[%c1_96, %c0_97] : memref<27x256xf32, #tpu.memory_space<vmem>>, vector<1x256xf32>
    %205 = vector.broadcast %204 : vector<1x256xf32> to vector<8x256xf32>
    %206 = arith.mulf %203, %205 : vector<8x256xf32>
    %c71_i32_98 = arith.constant 71 : i32
    %207 = tpu.dynamic_rotate %198 by %c71_i32_98 dim 1 : vector<8x256xf32>, i32 -> vector<8x256xf32>
    %c2_99 = arith.constant 2 : index
    %c0_100 = arith.constant 0 : index
    %208 = vector.load %arg2[%c2_99, %c0_100] : memref<27x256xf32, #tpu.memory_space<vmem>>, vector<1x256xf32>
    %209 = vector.broadcast %208 : vector<1x256xf32> to vector<8x256xf32>
    %210 = arith.mulf %207, %209 : vector<8x256xf32>
    %c65_i32_101 = arith.constant 65 : i32
    %211 = tpu.dynamic_rotate %198 by %c65_i32_101 dim 1 : vector<8x256xf32>, i32 -> vector<8x256xf32>
    %c3_102 = arith.constant 3 : index
    %c0_103 = arith.constant 0 : index
    %212 = vector.load %arg2[%c3_102, %c0_103] : memref<27x256xf32, #tpu.memory_space<vmem>>, vector<1x256xf32>
    %213 = vector.broadcast %212 : vector<1x256xf32> to vector<8x256xf32>
    %214 = arith.mulf %211, %213 : vector<8x256xf32>
    %c64_i32_104 = arith.constant 64 : i32
    %215 = tpu.dynamic_rotate %198 by %c64_i32_104 dim 1 : vector<8x256xf32>, i32 -> vector<8x256xf32>
    %c4_105 = arith.constant 4 : index
    %c0_106 = arith.constant 0 : index
    %216 = vector.load %arg2[%c4_105, %c0_106] : memref<27x256xf32, #tpu.memory_space<vmem>>, vector<1x256xf32>
    %217 = vector.broadcast %216 : vector<1x256xf32> to vector<8x256xf32>
    %218 = arith.mulf %215, %217 : vector<8x256xf32>
    %c63_i32_107 = arith.constant 63 : i32
    %219 = tpu.dynamic_rotate %198 by %c63_i32_107 dim 1 : vector<8x256xf32>, i32 -> vector<8x256xf32>
    %c5_108 = arith.constant 5 : index
    %c0_109 = arith.constant 0 : index
    %220 = vector.load %arg2[%c5_108, %c0_109] : memref<27x256xf32, #tpu.memory_space<vmem>>, vector<1x256xf32>
    %221 = vector.broadcast %220 : vector<1x256xf32> to vector<8x256xf32>
    %222 = arith.mulf %219, %221 : vector<8x256xf32>
    %c57_i32_110 = arith.constant 57 : i32
    %223 = tpu.dynamic_rotate %198 by %c57_i32_110 dim 1 : vector<8x256xf32>, i32 -> vector<8x256xf32>
    %c6_111 = arith.constant 6 : index
    %c0_112 = arith.constant 0 : index
    %224 = vector.load %arg2[%c6_111, %c0_112] : memref<27x256xf32, #tpu.memory_space<vmem>>, vector<1x256xf32>
    %225 = vector.broadcast %224 : vector<1x256xf32> to vector<8x256xf32>
    %226 = arith.mulf %223, %225 : vector<8x256xf32>
    %c56_i32_113 = arith.constant 56 : i32
    %227 = tpu.dynamic_rotate %198 by %c56_i32_113 dim 1 : vector<8x256xf32>, i32 -> vector<8x256xf32>
    %c7_114 = arith.constant 7 : index
    %c0_115 = arith.constant 0 : index
    %228 = vector.load %arg2[%c7_114, %c0_115] : memref<27x256xf32, #tpu.memory_space<vmem>>, vector<1x256xf32>
    %229 = vector.broadcast %228 : vector<1x256xf32> to vector<8x256xf32>
    %230 = arith.mulf %227, %229 : vector<8x256xf32>
    %c55_i32_116 = arith.constant 55 : i32
    %231 = tpu.dynamic_rotate %198 by %c55_i32_116 dim 1 : vector<8x256xf32>, i32 -> vector<8x256xf32>
    %c8_117 = arith.constant 8 : index
    %c0_118 = arith.constant 0 : index
    %232 = vector.load %arg2[%c8_117, %c0_118] : memref<27x256xf32, #tpu.memory_space<vmem>>, vector<1x256xf32>
    %233 = vector.broadcast %232 : vector<1x256xf32> to vector<8x256xf32>
    %234 = arith.mulf %231, %233 : vector<8x256xf32>
    %c9_i32_119 = arith.constant 9 : i32
    %235 = tpu.dynamic_rotate %198 by %c9_i32_119 dim 1 : vector<8x256xf32>, i32 -> vector<8x256xf32>
    %c9_120 = arith.constant 9 : index
    %c0_121 = arith.constant 0 : index
    %236 = vector.load %arg2[%c9_120, %c0_121] : memref<27x256xf32, #tpu.memory_space<vmem>>, vector<1x256xf32>
    %237 = vector.broadcast %236 : vector<1x256xf32> to vector<8x256xf32>
    %238 = arith.mulf %235, %237 : vector<8x256xf32>
    %c8_i32_122 = arith.constant 8 : i32
    %239 = tpu.dynamic_rotate %198 by %c8_i32_122 dim 1 : vector<8x256xf32>, i32 -> vector<8x256xf32>
    %c10_123 = arith.constant 10 : index
    %c0_124 = arith.constant 0 : index
    %240 = vector.load %arg2[%c10_123, %c0_124] : memref<27x256xf32, #tpu.memory_space<vmem>>, vector<1x256xf32>
    %241 = vector.broadcast %240 : vector<1x256xf32> to vector<8x256xf32>
    %242 = arith.mulf %239, %241 : vector<8x256xf32>
    %c7_i32_125 = arith.constant 7 : i32
    %243 = tpu.dynamic_rotate %198 by %c7_i32_125 dim 1 : vector<8x256xf32>, i32 -> vector<8x256xf32>
    %c11_126 = arith.constant 11 : index
    %c0_127 = arith.constant 0 : index
    %244 = vector.load %arg2[%c11_126, %c0_127] : memref<27x256xf32, #tpu.memory_space<vmem>>, vector<1x256xf32>
    %245 = vector.broadcast %244 : vector<1x256xf32> to vector<8x256xf32>
    %246 = arith.mulf %243, %245 : vector<8x256xf32>
    %c1_i32_128 = arith.constant 1 : i32
    %247 = tpu.dynamic_rotate %198 by %c1_i32_128 dim 1 : vector<8x256xf32>, i32 -> vector<8x256xf32>
    %c12_129 = arith.constant 12 : index
    %c0_130 = arith.constant 0 : index
    %248 = vector.load %arg2[%c12_129, %c0_130] : memref<27x256xf32, #tpu.memory_space<vmem>>, vector<1x256xf32>
    %249 = vector.broadcast %248 : vector<1x256xf32> to vector<8x256xf32>
    %250 = arith.mulf %247, %249 : vector<8x256xf32>
    %c13_131 = arith.constant 13 : index
    %c0_132 = arith.constant 0 : index
    %251 = vector.load %arg2[%c13_131, %c0_132] : memref<27x256xf32, #tpu.memory_space<vmem>>, vector<1x256xf32>
    %252 = vector.broadcast %251 : vector<1x256xf32> to vector<8x256xf32>
    %253 = arith.mulf %198, %252 : vector<8x256xf32>
    %c255_i32_133 = arith.constant 255 : i32
    %254 = tpu.dynamic_rotate %198 by %c255_i32_133 dim 1 : vector<8x256xf32>, i32 -> vector<8x256xf32>
    %c14_134 = arith.constant 14 : index
    %c0_135 = arith.constant 0 : index
    %255 = vector.load %arg2[%c14_134, %c0_135] : memref<27x256xf32, #tpu.memory_space<vmem>>, vector<1x256xf32>
    %256 = vector.broadcast %255 : vector<1x256xf32> to vector<8x256xf32>
    %257 = arith.mulf %254, %256 : vector<8x256xf32>
    %c249_i32_136 = arith.constant 249 : i32
    %258 = tpu.dynamic_rotate %198 by %c249_i32_136 dim 1 : vector<8x256xf32>, i32 -> vector<8x256xf32>
    %c15_137 = arith.constant 15 : index
    %c0_138 = arith.constant 0 : index
    %259 = vector.load %arg2[%c15_137, %c0_138] : memref<27x256xf32, #tpu.memory_space<vmem>>, vector<1x256xf32>
    %260 = vector.broadcast %259 : vector<1x256xf32> to vector<8x256xf32>
    %261 = arith.mulf %258, %260 : vector<8x256xf32>
    %c248_i32_139 = arith.constant 248 : i32
    %262 = tpu.dynamic_rotate %198 by %c248_i32_139 dim 1 : vector<8x256xf32>, i32 -> vector<8x256xf32>
    %c16_140 = arith.constant 16 : index
    %c0_141 = arith.constant 0 : index
    %263 = vector.load %arg2[%c16_140, %c0_141] : memref<27x256xf32, #tpu.memory_space<vmem>>, vector<1x256xf32>
    %264 = vector.broadcast %263 : vector<1x256xf32> to vector<8x256xf32>
    %265 = arith.mulf %262, %264 : vector<8x256xf32>
    %c247_i32_142 = arith.constant 247 : i32
    %266 = tpu.dynamic_rotate %198 by %c247_i32_142 dim 1 : vector<8x256xf32>, i32 -> vector<8x256xf32>
    %c17_143 = arith.constant 17 : index
    %c0_144 = arith.constant 0 : index
    %267 = vector.load %arg2[%c17_143, %c0_144] : memref<27x256xf32, #tpu.memory_space<vmem>>, vector<1x256xf32>
    %268 = vector.broadcast %267 : vector<1x256xf32> to vector<8x256xf32>
    %269 = arith.mulf %266, %268 : vector<8x256xf32>
    %c201_i32_145 = arith.constant 201 : i32
    %270 = tpu.dynamic_rotate %198 by %c201_i32_145 dim 1 : vector<8x256xf32>, i32 -> vector<8x256xf32>
    %c18_146 = arith.constant 18 : index
    %c0_147 = arith.constant 0 : index
    %271 = vector.load %arg2[%c18_146, %c0_147] : memref<27x256xf32, #tpu.memory_space<vmem>>, vector<1x256xf32>
    %272 = vector.broadcast %271 : vector<1x256xf32> to vector<8x256xf32>
    %273 = arith.mulf %270, %272 : vector<8x256xf32>
    %c200_i32_148 = arith.constant 200 : i32
    %274 = tpu.dynamic_rotate %198 by %c200_i32_148 dim 1 : vector<8x256xf32>, i32 -> vector<8x256xf32>
    %c19_149 = arith.constant 19 : index
    %c0_150 = arith.constant 0 : index
    %275 = vector.load %arg2[%c19_149, %c0_150] : memref<27x256xf32, #tpu.memory_space<vmem>>, vector<1x256xf32>
    %276 = vector.broadcast %275 : vector<1x256xf32> to vector<8x256xf32>
    %277 = arith.mulf %274, %276 : vector<8x256xf32>
    %c199_i32_151 = arith.constant 199 : i32
    %278 = tpu.dynamic_rotate %198 by %c199_i32_151 dim 1 : vector<8x256xf32>, i32 -> vector<8x256xf32>
    %c20_152 = arith.constant 20 : index
    %c0_153 = arith.constant 0 : index
    %279 = vector.load %arg2[%c20_152, %c0_153] : memref<27x256xf32, #tpu.memory_space<vmem>>, vector<1x256xf32>
    %280 = vector.broadcast %279 : vector<1x256xf32> to vector<8x256xf32>
    %281 = arith.mulf %278, %280 : vector<8x256xf32>
    %c193_i32_154 = arith.constant 193 : i32
    %282 = tpu.dynamic_rotate %198 by %c193_i32_154 dim 1 : vector<8x256xf32>, i32 -> vector<8x256xf32>
    %c21_155 = arith.constant 21 : index
    %c0_156 = arith.constant 0 : index
    %283 = vector.load %arg2[%c21_155, %c0_156] : memref<27x256xf32, #tpu.memory_space<vmem>>, vector<1x256xf32>
    %284 = vector.broadcast %283 : vector<1x256xf32> to vector<8x256xf32>
    %285 = arith.mulf %282, %284 : vector<8x256xf32>
    %c192_i32_157 = arith.constant 192 : i32
    %286 = tpu.dynamic_rotate %198 by %c192_i32_157 dim 1 : vector<8x256xf32>, i32 -> vector<8x256xf32>
    %c22_158 = arith.constant 22 : index
    %c0_159 = arith.constant 0 : index
    %287 = vector.load %arg2[%c22_158, %c0_159] : memref<27x256xf32, #tpu.memory_space<vmem>>, vector<1x256xf32>
    %288 = vector.broadcast %287 : vector<1x256xf32> to vector<8x256xf32>
    %289 = arith.mulf %286, %288 : vector<8x256xf32>
    %c191_i32_160 = arith.constant 191 : i32
    %290 = tpu.dynamic_rotate %198 by %c191_i32_160 dim 1 : vector<8x256xf32>, i32 -> vector<8x256xf32>
    %c23_161 = arith.constant 23 : index
    %c0_162 = arith.constant 0 : index
    %291 = vector.load %arg2[%c23_161, %c0_162] : memref<27x256xf32, #tpu.memory_space<vmem>>, vector<1x256xf32>
    %292 = vector.broadcast %291 : vector<1x256xf32> to vector<8x256xf32>
    %293 = arith.mulf %290, %292 : vector<8x256xf32>
    %c185_i32_163 = arith.constant 185 : i32
    %294 = tpu.dynamic_rotate %198 by %c185_i32_163 dim 1 : vector<8x256xf32>, i32 -> vector<8x256xf32>
    %c24_164 = arith.constant 24 : index
    %c0_165 = arith.constant 0 : index
    %295 = vector.load %arg2[%c24_164, %c0_165] : memref<27x256xf32, #tpu.memory_space<vmem>>, vector<1x256xf32>
    %296 = vector.broadcast %295 : vector<1x256xf32> to vector<8x256xf32>
    %297 = arith.mulf %294, %296 : vector<8x256xf32>
    %c184_i32_166 = arith.constant 184 : i32
    %298 = tpu.dynamic_rotate %198 by %c184_i32_166 dim 1 : vector<8x256xf32>, i32 -> vector<8x256xf32>
    %c25_167 = arith.constant 25 : index
    %c0_168 = arith.constant 0 : index
    %299 = vector.load %arg2[%c25_167, %c0_168] : memref<27x256xf32, #tpu.memory_space<vmem>>, vector<1x256xf32>
    %300 = vector.broadcast %299 : vector<1x256xf32> to vector<8x256xf32>
    %301 = arith.mulf %298, %300 : vector<8x256xf32>
    %c183_i32_169 = arith.constant 183 : i32
    %302 = tpu.dynamic_rotate %198 by %c183_i32_169 dim 1 : vector<8x256xf32>, i32 -> vector<8x256xf32>
    %c26_170 = arith.constant 26 : index
    %c0_171 = arith.constant 0 : index
    %303 = vector.load %arg2[%c26_170, %c0_171] : memref<27x256xf32, #tpu.memory_space<vmem>>, vector<1x256xf32>
    %304 = vector.broadcast %303 : vector<1x256xf32> to vector<8x256xf32>
    %305 = arith.mulf %302, %304 : vector<8x256xf32>
    %cst_172 = arith.constant 0.000000e+00 : f32
    %306 = vector.broadcast %cst_172 : f32 to vector<8x256xf32>
    %c0_173 = arith.constant 0 : index
    %c0_174 = arith.constant 0 : index
    %307 = vector.load %arg5[%c0_173, %c0_174] : memref<8x216xf32, #tpu.memory_space<vmem>>, vector<8x8xf32>
    %cst_175 = arith.constant dense<0.000000e+00> : vector<8x256xf32>
    %308 = tpu.matmul %307, %202, %cst_175 {dimension_numbers = #tpu.dot_dimension_numbers<[1], [0], [0], [1], [0, 0, 1, 1], [], []>} : vector<8x8xf32>, vector<8x256xf32>, vector<8x256xf32> -> vector<8x256xf32>
    %309 = arith.addf %306, %308 : vector<8x256xf32>
    %c0_176 = arith.constant 0 : index
    %c8_177 = arith.constant 8 : index
    %310 = vector.load %arg5[%c0_176, %c8_177] : memref<8x216xf32, #tpu.memory_space<vmem>>, vector<8x8xf32>
    %cst_178 = arith.constant dense<0.000000e+00> : vector<8x256xf32>
    %311 = tpu.matmul %310, %206, %cst_178 {dimension_numbers = #tpu.dot_dimension_numbers<[1], [0], [0], [1], [0, 0, 1, 1], [], []>} : vector<8x8xf32>, vector<8x256xf32>, vector<8x256xf32> -> vector<8x256xf32>
    %312 = arith.addf %309, %311 : vector<8x256xf32>
    %c0_179 = arith.constant 0 : index
    %c16_180 = arith.constant 16 : index
    %313 = vector.load %arg5[%c0_179, %c16_180] : memref<8x216xf32, #tpu.memory_space<vmem>>, vector<8x8xf32>
    %cst_181 = arith.constant dense<0.000000e+00> : vector<8x256xf32>
    %314 = tpu.matmul %313, %210, %cst_181 {dimension_numbers = #tpu.dot_dimension_numbers<[1], [0], [0], [1], [0, 0, 1, 1], [], []>} : vector<8x8xf32>, vector<8x256xf32>, vector<8x256xf32> -> vector<8x256xf32>
    %315 = arith.addf %312, %314 : vector<8x256xf32>
    %c0_182 = arith.constant 0 : index
    %c24_183 = arith.constant 24 : index
    %316 = vector.load %arg5[%c0_182, %c24_183] : memref<8x216xf32, #tpu.memory_space<vmem>>, vector<8x8xf32>
    %cst_184 = arith.constant dense<0.000000e+00> : vector<8x256xf32>
    %317 = tpu.matmul %316, %214, %cst_184 {dimension_numbers = #tpu.dot_dimension_numbers<[1], [0], [0], [1], [0, 0, 1, 1], [], []>} : vector<8x8xf32>, vector<8x256xf32>, vector<8x256xf32> -> vector<8x256xf32>
    %318 = arith.addf %315, %317 : vector<8x256xf32>
    %c0_185 = arith.constant 0 : index
    %c32_186 = arith.constant 32 : index
    %319 = vector.load %arg5[%c0_185, %c32_186] : memref<8x216xf32, #tpu.memory_space<vmem>>, vector<8x8xf32>
    %cst_187 = arith.constant dense<0.000000e+00> : vector<8x256xf32>
    %320 = tpu.matmul %319, %218, %cst_187 {dimension_numbers = #tpu.dot_dimension_numbers<[1], [0], [0], [1], [0, 0, 1, 1], [], []>} : vector<8x8xf32>, vector<8x256xf32>, vector<8x256xf32> -> vector<8x256xf32>
    %321 = arith.addf %318, %320 : vector<8x256xf32>
    %c0_188 = arith.constant 0 : index
    %c40_189 = arith.constant 40 : index
    %322 = vector.load %arg5[%c0_188, %c40_189] : memref<8x216xf32, #tpu.memory_space<vmem>>, vector<8x8xf32>
    %cst_190 = arith.constant dense<0.000000e+00> : vector<8x256xf32>
    %323 = tpu.matmul %322, %222, %cst_190 {dimension_numbers = #tpu.dot_dimension_numbers<[1], [0], [0], [1], [0, 0, 1, 1], [], []>} : vector<8x8xf32>, vector<8x256xf32>, vector<8x256xf32> -> vector<8x256xf32>
    %324 = arith.addf %321, %323 : vector<8x256xf32>
    %c0_191 = arith.constant 0 : index
    %c48_192 = arith.constant 48 : index
    %325 = vector.load %arg5[%c0_191, %c48_192] : memref<8x216xf32, #tpu.memory_space<vmem>>, vector<8x8xf32>
    %cst_193 = arith.constant dense<0.000000e+00> : vector<8x256xf32>
    %326 = tpu.matmul %325, %226, %cst_193 {dimension_numbers = #tpu.dot_dimension_numbers<[1], [0], [0], [1], [0, 0, 1, 1], [], []>} : vector<8x8xf32>, vector<8x256xf32>, vector<8x256xf32> -> vector<8x256xf32>
    %327 = arith.addf %324, %326 : vector<8x256xf32>
    %c0_194 = arith.constant 0 : index
    %c56_195 = arith.constant 56 : index
    %328 = vector.load %arg5[%c0_194, %c56_195] : memref<8x216xf32, #tpu.memory_space<vmem>>, vector<8x8xf32>
    %cst_196 = arith.constant dense<0.000000e+00> : vector<8x256xf32>
    %329 = tpu.matmul %328, %230, %cst_196 {dimension_numbers = #tpu.dot_dimension_numbers<[1], [0], [0], [1], [0, 0, 1, 1], [], []>} : vector<8x8xf32>, vector<8x256xf32>, vector<8x256xf32> -> vector<8x256xf32>
    %330 = arith.addf %327, %329 : vector<8x256xf32>
    %c0_197 = arith.constant 0 : index
    %c64_198 = arith.constant 64 : index
    %331 = vector.load %arg5[%c0_197, %c64_198] : memref<8x216xf32, #tpu.memory_space<vmem>>, vector<8x8xf32>
    %cst_199 = arith.constant dense<0.000000e+00> : vector<8x256xf32>
    %332 = tpu.matmul %331, %234, %cst_199 {dimension_numbers = #tpu.dot_dimension_numbers<[1], [0], [0], [1], [0, 0, 1, 1], [], []>} : vector<8x8xf32>, vector<8x256xf32>, vector<8x256xf32> -> vector<8x256xf32>
    %333 = arith.addf %330, %332 : vector<8x256xf32>
    %c0_200 = arith.constant 0 : index
    %c72_201 = arith.constant 72 : index
    %334 = vector.load %arg5[%c0_200, %c72_201] : memref<8x216xf32, #tpu.memory_space<vmem>>, vector<8x8xf32>
    %cst_202 = arith.constant dense<0.000000e+00> : vector<8x256xf32>
    %335 = tpu.matmul %334, %238, %cst_202 {dimension_numbers = #tpu.dot_dimension_numbers<[1], [0], [0], [1], [0, 0, 1, 1], [], []>} : vector<8x8xf32>, vector<8x256xf32>, vector<8x256xf32> -> vector<8x256xf32>
    %336 = arith.addf %333, %335 : vector<8x256xf32>
    %c0_203 = arith.constant 0 : index
    %c80_204 = arith.constant 80 : index
    %337 = vector.load %arg5[%c0_203, %c80_204] : memref<8x216xf32, #tpu.memory_space<vmem>>, vector<8x8xf32>
    %cst_205 = arith.constant dense<0.000000e+00> : vector<8x256xf32>
    %338 = tpu.matmul %337, %242, %cst_205 {dimension_numbers = #tpu.dot_dimension_numbers<[1], [0], [0], [1], [0, 0, 1, 1], [], []>} : vector<8x8xf32>, vector<8x256xf32>, vector<8x256xf32> -> vector<8x256xf32>
    %339 = arith.addf %336, %338 : vector<8x256xf32>
    %c0_206 = arith.constant 0 : index
    %c88_207 = arith.constant 88 : index
    %340 = vector.load %arg5[%c0_206, %c88_207] : memref<8x216xf32, #tpu.memory_space<vmem>>, vector<8x8xf32>
    %cst_208 = arith.constant dense<0.000000e+00> : vector<8x256xf32>
    %341 = tpu.matmul %340, %246, %cst_208 {dimension_numbers = #tpu.dot_dimension_numbers<[1], [0], [0], [1], [0, 0, 1, 1], [], []>} : vector<8x8xf32>, vector<8x256xf32>, vector<8x256xf32> -> vector<8x256xf32>
    %342 = arith.addf %339, %341 : vector<8x256xf32>
    %c0_209 = arith.constant 0 : index
    %c96_210 = arith.constant 96 : index
    %343 = vector.load %arg5[%c0_209, %c96_210] : memref<8x216xf32, #tpu.memory_space<vmem>>, vector<8x8xf32>
    %cst_211 = arith.constant dense<0.000000e+00> : vector<8x256xf32>
    %344 = tpu.matmul %343, %250, %cst_211 {dimension_numbers = #tpu.dot_dimension_numbers<[1], [0], [0], [1], [0, 0, 1, 1], [], []>} : vector<8x8xf32>, vector<8x256xf32>, vector<8x256xf32> -> vector<8x256xf32>
    %345 = arith.addf %342, %344 : vector<8x256xf32>
    %c0_212 = arith.constant 0 : index
    %c104_213 = arith.constant 104 : index
    %346 = vector.load %arg5[%c0_212, %c104_213] : memref<8x216xf32, #tpu.memory_space<vmem>>, vector<8x8xf32>
    %cst_214 = arith.constant dense<0.000000e+00> : vector<8x256xf32>
    %347 = tpu.matmul %346, %253, %cst_214 {dimension_numbers = #tpu.dot_dimension_numbers<[1], [0], [0], [1], [0, 0, 1, 1], [], []>} : vector<8x8xf32>, vector<8x256xf32>, vector<8x256xf32> -> vector<8x256xf32>
    %348 = arith.addf %345, %347 : vector<8x256xf32>
    %c0_215 = arith.constant 0 : index
    %c112_216 = arith.constant 112 : index
    %349 = vector.load %arg5[%c0_215, %c112_216] : memref<8x216xf32, #tpu.memory_space<vmem>>, vector<8x8xf32>
    %cst_217 = arith.constant dense<0.000000e+00> : vector<8x256xf32>
    %350 = tpu.matmul %349, %257, %cst_217 {dimension_numbers = #tpu.dot_dimension_numbers<[1], [0], [0], [1], [0, 0, 1, 1], [], []>} : vector<8x8xf32>, vector<8x256xf32>, vector<8x256xf32> -> vector<8x256xf32>
    %351 = arith.addf %348, %350 : vector<8x256xf32>
    %c0_218 = arith.constant 0 : index
    %c120_219 = arith.constant 120 : index
    %352 = vector.load %arg5[%c0_218, %c120_219] : memref<8x216xf32, #tpu.memory_space<vmem>>, vector<8x8xf32>
    %cst_220 = arith.constant dense<0.000000e+00> : vector<8x256xf32>
    %353 = tpu.matmul %352, %261, %cst_220 {dimension_numbers = #tpu.dot_dimension_numbers<[1], [0], [0], [1], [0, 0, 1, 1], [], []>} : vector<8x8xf32>, vector<8x256xf32>, vector<8x256xf32> -> vector<8x256xf32>
    %354 = arith.addf %351, %353 : vector<8x256xf32>
    %c0_221 = arith.constant 0 : index
    %c128_222 = arith.constant 128 : index
    %355 = vector.load %arg5[%c0_221, %c128_222] : memref<8x216xf32, #tpu.memory_space<vmem>>, vector<8x8xf32>
    %cst_223 = arith.constant dense<0.000000e+00> : vector<8x256xf32>
    %356 = tpu.matmul %355, %265, %cst_223 {dimension_numbers = #tpu.dot_dimension_numbers<[1], [0], [0], [1], [0, 0, 1, 1], [], []>} : vector<8x8xf32>, vector<8x256xf32>, vector<8x256xf32> -> vector<8x256xf32>
    %357 = arith.addf %354, %356 : vector<8x256xf32>
    %c0_224 = arith.constant 0 : index
    %c136_225 = arith.constant 136 : index
    %358 = vector.load %arg5[%c0_224, %c136_225] : memref<8x216xf32, #tpu.memory_space<vmem>>, vector<8x8xf32>
    %cst_226 = arith.constant dense<0.000000e+00> : vector<8x256xf32>
    %359 = tpu.matmul %358, %269, %cst_226 {dimension_numbers = #tpu.dot_dimension_numbers<[1], [0], [0], [1], [0, 0, 1, 1], [], []>} : vector<8x8xf32>, vector<8x256xf32>, vector<8x256xf32> -> vector<8x256xf32>
    %360 = arith.addf %357, %359 : vector<8x256xf32>
    %c0_227 = arith.constant 0 : index
    %c144_228 = arith.constant 144 : index
    %361 = vector.load %arg5[%c0_227, %c144_228] : memref<8x216xf32, #tpu.memory_space<vmem>>, vector<8x8xf32>
    %cst_229 = arith.constant dense<0.000000e+00> : vector<8x256xf32>
    %362 = tpu.matmul %361, %273, %cst_229 {dimension_numbers = #tpu.dot_dimension_numbers<[1], [0], [0], [1], [0, 0, 1, 1], [], []>} : vector<8x8xf32>, vector<8x256xf32>, vector<8x256xf32> -> vector<8x256xf32>
    %363 = arith.addf %360, %362 : vector<8x256xf32>
    %c0_230 = arith.constant 0 : index
    %c152_231 = arith.constant 152 : index
    %364 = vector.load %arg5[%c0_230, %c152_231] : memref<8x216xf32, #tpu.memory_space<vmem>>, vector<8x8xf32>
    %cst_232 = arith.constant dense<0.000000e+00> : vector<8x256xf32>
    %365 = tpu.matmul %364, %277, %cst_232 {dimension_numbers = #tpu.dot_dimension_numbers<[1], [0], [0], [1], [0, 0, 1, 1], [], []>} : vector<8x8xf32>, vector<8x256xf32>, vector<8x256xf32> -> vector<8x256xf32>
    %366 = arith.addf %363, %365 : vector<8x256xf32>
    %c0_233 = arith.constant 0 : index
    %c160_234 = arith.constant 160 : index
    %367 = vector.load %arg5[%c0_233, %c160_234] : memref<8x216xf32, #tpu.memory_space<vmem>>, vector<8x8xf32>
    %cst_235 = arith.constant dense<0.000000e+00> : vector<8x256xf32>
    %368 = tpu.matmul %367, %281, %cst_235 {dimension_numbers = #tpu.dot_dimension_numbers<[1], [0], [0], [1], [0, 0, 1, 1], [], []>} : vector<8x8xf32>, vector<8x256xf32>, vector<8x256xf32> -> vector<8x256xf32>
    %369 = arith.addf %366, %368 : vector<8x256xf32>
    %c0_236 = arith.constant 0 : index
    %c168_237 = arith.constant 168 : index
    %370 = vector.load %arg5[%c0_236, %c168_237] : memref<8x216xf32, #tpu.memory_space<vmem>>, vector<8x8xf32>
    %cst_238 = arith.constant dense<0.000000e+00> : vector<8x256xf32>
    %371 = tpu.matmul %370, %285, %cst_238 {dimension_numbers = #tpu.dot_dimension_numbers<[1], [0], [0], [1], [0, 0, 1, 1], [], []>} : vector<8x8xf32>, vector<8x256xf32>, vector<8x256xf32> -> vector<8x256xf32>
    %372 = arith.addf %369, %371 : vector<8x256xf32>
    %c0_239 = arith.constant 0 : index
    %c176_240 = arith.constant 176 : index
    %373 = vector.load %arg5[%c0_239, %c176_240] : memref<8x216xf32, #tpu.memory_space<vmem>>, vector<8x8xf32>
    %cst_241 = arith.constant dense<0.000000e+00> : vector<8x256xf32>
    %374 = tpu.matmul %373, %289, %cst_241 {dimension_numbers = #tpu.dot_dimension_numbers<[1], [0], [0], [1], [0, 0, 1, 1], [], []>} : vector<8x8xf32>, vector<8x256xf32>, vector<8x256xf32> -> vector<8x256xf32>
    %375 = arith.addf %372, %374 : vector<8x256xf32>
    %c0_242 = arith.constant 0 : index
    %c184_243 = arith.constant 184 : index
    %376 = vector.load %arg5[%c0_242, %c184_243] : memref<8x216xf32, #tpu.memory_space<vmem>>, vector<8x8xf32>
    %cst_244 = arith.constant dense<0.000000e+00> : vector<8x256xf32>
    %377 = tpu.matmul %376, %293, %cst_244 {dimension_numbers = #tpu.dot_dimension_numbers<[1], [0], [0], [1], [0, 0, 1, 1], [], []>} : vector<8x8xf32>, vector<8x256xf32>, vector<8x256xf32> -> vector<8x256xf32>
    %378 = arith.addf %375, %377 : vector<8x256xf32>
    %c0_245 = arith.constant 0 : index
    %c192_246 = arith.constant 192 : index
    %379 = vector.load %arg5[%c0_245, %c192_246] : memref<8x216xf32, #tpu.memory_space<vmem>>, vector<8x8xf32>
    %cst_247 = arith.constant dense<0.000000e+00> : vector<8x256xf32>
    %380 = tpu.matmul %379, %297, %cst_247 {dimension_numbers = #tpu.dot_dimension_numbers<[1], [0], [0], [1], [0, 0, 1, 1], [], []>} : vector<8x8xf32>, vector<8x256xf32>, vector<8x256xf32> -> vector<8x256xf32>
    %381 = arith.addf %378, %380 : vector<8x256xf32>
    %c0_248 = arith.constant 0 : index
    %c200_249 = arith.constant 200 : index
    %382 = vector.load %arg5[%c0_248, %c200_249] : memref<8x216xf32, #tpu.memory_space<vmem>>, vector<8x8xf32>
    %cst_250 = arith.constant dense<0.000000e+00> : vector<8x256xf32>
    %383 = tpu.matmul %382, %301, %cst_250 {dimension_numbers = #tpu.dot_dimension_numbers<[1], [0], [0], [1], [0, 0, 1, 1], [], []>} : vector<8x8xf32>, vector<8x256xf32>, vector<8x256xf32> -> vector<8x256xf32>
    %384 = arith.addf %381, %383 : vector<8x256xf32>
    %c0_251 = arith.constant 0 : index
    %c208_252 = arith.constant 208 : index
    %385 = vector.load %arg5[%c0_251, %c208_252] : memref<8x216xf32, #tpu.memory_space<vmem>>, vector<8x8xf32>
    %cst_253 = arith.constant dense<0.000000e+00> : vector<8x256xf32>
    %386 = tpu.matmul %385, %305, %cst_253 {dimension_numbers = #tpu.dot_dimension_numbers<[1], [0], [0], [1], [0, 0, 1, 1], [], []>} : vector<8x8xf32>, vector<8x256xf32>, vector<8x256xf32> -> vector<8x256xf32>
    %387 = arith.addf %384, %386 : vector<8x256xf32>
    %c0_254 = arith.constant 0 : index
    %c0_255 = arith.constant 0 : index
    %388 = vector.load %arg6[%c0_254, %c0_255] : memref<8x1xf32, #tpu.memory_space<vmem>>, vector<8x1xf32>
    %389 = vector.broadcast %388 : vector<8x1xf32> to vector<8x256xf32>
    %390 = arith.addf %387, %389 : vector<8x256xf32>
    %cst_256 = arith.constant 0.000000e+00 : f32
    %391 = vector.broadcast %cst_256 : f32 to vector<8x256xf32>
    %392 = arith.cmpf oge, %390, %391 : vector<8x256xf32>
    %cst_257 = arith.constant 1.000000e-01 : f32
    %393 = vector.broadcast %cst_257 : f32 to vector<8x256xf32>
    %394 = arith.mulf %393, %390 : vector<8x256xf32>
    %395 = arith.select %392, %390, %394 : vector<8x256xi1>, vector<8x256xf32>
    %c73_i32_258 = arith.constant 73 : i32
    %396 = tpu.dynamic_rotate %395 by %c73_i32_258 dim 1 : vector<8x256xf32>, i32 -> vector<8x256xf32>
    %c0_259 = arith.constant 0 : index
    %c0_260 = arith.constant 0 : index
    %397 = vector.load %arg2[%c0_259, %c0_260] : memref<27x256xf32, #tpu.memory_space<vmem>>, vector<1x256xf32>
    %398 = vector.broadcast %397 : vector<1x256xf32> to vector<8x256xf32>
    %399 = arith.mulf %396, %398 : vector<8x256xf32>
    %c72_i32_261 = arith.constant 72 : i32
    %400 = tpu.dynamic_rotate %395 by %c72_i32_261 dim 1 : vector<8x256xf32>, i32 -> vector<8x256xf32>
    %c1_262 = arith.constant 1 : index
    %c0_263 = arith.constant 0 : index
    %401 = vector.load %arg2[%c1_262, %c0_263] : memref<27x256xf32, #tpu.memory_space<vmem>>, vector<1x256xf32>
    %402 = vector.broadcast %401 : vector<1x256xf32> to vector<8x256xf32>
    %403 = arith.mulf %400, %402 : vector<8x256xf32>
    %c71_i32_264 = arith.constant 71 : i32
    %404 = tpu.dynamic_rotate %395 by %c71_i32_264 dim 1 : vector<8x256xf32>, i32 -> vector<8x256xf32>
    %c2_265 = arith.constant 2 : index
    %c0_266 = arith.constant 0 : index
    %405 = vector.load %arg2[%c2_265, %c0_266] : memref<27x256xf32, #tpu.memory_space<vmem>>, vector<1x256xf32>
    %406 = vector.broadcast %405 : vector<1x256xf32> to vector<8x256xf32>
    %407 = arith.mulf %404, %406 : vector<8x256xf32>
    %c65_i32_267 = arith.constant 65 : i32
    %408 = tpu.dynamic_rotate %395 by %c65_i32_267 dim 1 : vector<8x256xf32>, i32 -> vector<8x256xf32>
    %c3_268 = arith.constant 3 : index
    %c0_269 = arith.constant 0 : index
    %409 = vector.load %arg2[%c3_268, %c0_269] : memref<27x256xf32, #tpu.memory_space<vmem>>, vector<1x256xf32>
    %410 = vector.broadcast %409 : vector<1x256xf32> to vector<8x256xf32>
    %411 = arith.mulf %408, %410 : vector<8x256xf32>
    %c64_i32_270 = arith.constant 64 : i32
    %412 = tpu.dynamic_rotate %395 by %c64_i32_270 dim 1 : vector<8x256xf32>, i32 -> vector<8x256xf32>
    %c4_271 = arith.constant 4 : index
    %c0_272 = arith.constant 0 : index
    %413 = vector.load %arg2[%c4_271, %c0_272] : memref<27x256xf32, #tpu.memory_space<vmem>>, vector<1x256xf32>
    %414 = vector.broadcast %413 : vector<1x256xf32> to vector<8x256xf32>
    %415 = arith.mulf %412, %414 : vector<8x256xf32>
    %c63_i32_273 = arith.constant 63 : i32
    %416 = tpu.dynamic_rotate %395 by %c63_i32_273 dim 1 : vector<8x256xf32>, i32 -> vector<8x256xf32>
    %c5_274 = arith.constant 5 : index
    %c0_275 = arith.constant 0 : index
    %417 = vector.load %arg2[%c5_274, %c0_275] : memref<27x256xf32, #tpu.memory_space<vmem>>, vector<1x256xf32>
    %418 = vector.broadcast %417 : vector<1x256xf32> to vector<8x256xf32>
    %419 = arith.mulf %416, %418 : vector<8x256xf32>
    %c57_i32_276 = arith.constant 57 : i32
    %420 = tpu.dynamic_rotate %395 by %c57_i32_276 dim 1 : vector<8x256xf32>, i32 -> vector<8x256xf32>
    %c6_277 = arith.constant 6 : index
    %c0_278 = arith.constant 0 : index
    %421 = vector.load %arg2[%c6_277, %c0_278] : memref<27x256xf32, #tpu.memory_space<vmem>>, vector<1x256xf32>
    %422 = vector.broadcast %421 : vector<1x256xf32> to vector<8x256xf32>
    %423 = arith.mulf %420, %422 : vector<8x256xf32>
    %c56_i32_279 = arith.constant 56 : i32
    %424 = tpu.dynamic_rotate %395 by %c56_i32_279 dim 1 : vector<8x256xf32>, i32 -> vector<8x256xf32>
    %c7_280 = arith.constant 7 : index
    %c0_281 = arith.constant 0 : index
    %425 = vector.load %arg2[%c7_280, %c0_281] : memref<27x256xf32, #tpu.memory_space<vmem>>, vector<1x256xf32>
    %426 = vector.broadcast %425 : vector<1x256xf32> to vector<8x256xf32>
    %427 = arith.mulf %424, %426 : vector<8x256xf32>
    %c55_i32_282 = arith.constant 55 : i32
    %428 = tpu.dynamic_rotate %395 by %c55_i32_282 dim 1 : vector<8x256xf32>, i32 -> vector<8x256xf32>
    %c8_283 = arith.constant 8 : index
    %c0_284 = arith.constant 0 : index
    %429 = vector.load %arg2[%c8_283, %c0_284] : memref<27x256xf32, #tpu.memory_space<vmem>>, vector<1x256xf32>
    %430 = vector.broadcast %429 : vector<1x256xf32> to vector<8x256xf32>
    %431 = arith.mulf %428, %430 : vector<8x256xf32>
    %c9_i32_285 = arith.constant 9 : i32
    %432 = tpu.dynamic_rotate %395 by %c9_i32_285 dim 1 : vector<8x256xf32>, i32 -> vector<8x256xf32>
    %c9_286 = arith.constant 9 : index
    %c0_287 = arith.constant 0 : index
    %433 = vector.load %arg2[%c9_286, %c0_287] : memref<27x256xf32, #tpu.memory_space<vmem>>, vector<1x256xf32>
    %434 = vector.broadcast %433 : vector<1x256xf32> to vector<8x256xf32>
    %435 = arith.mulf %432, %434 : vector<8x256xf32>
    %c8_i32_288 = arith.constant 8 : i32
    %436 = tpu.dynamic_rotate %395 by %c8_i32_288 dim 1 : vector<8x256xf32>, i32 -> vector<8x256xf32>
    %c10_289 = arith.constant 10 : index
    %c0_290 = arith.constant 0 : index
    %437 = vector.load %arg2[%c10_289, %c0_290] : memref<27x256xf32, #tpu.memory_space<vmem>>, vector<1x256xf32>
    %438 = vector.broadcast %437 : vector<1x256xf32> to vector<8x256xf32>
    %439 = arith.mulf %436, %438 : vector<8x256xf32>
    %c7_i32_291 = arith.constant 7 : i32
    %440 = tpu.dynamic_rotate %395 by %c7_i32_291 dim 1 : vector<8x256xf32>, i32 -> vector<8x256xf32>
    %c11_292 = arith.constant 11 : index
    %c0_293 = arith.constant 0 : index
    %441 = vector.load %arg2[%c11_292, %c0_293] : memref<27x256xf32, #tpu.memory_space<vmem>>, vector<1x256xf32>
    %442 = vector.broadcast %441 : vector<1x256xf32> to vector<8x256xf32>
    %443 = arith.mulf %440, %442 : vector<8x256xf32>
    %c1_i32_294 = arith.constant 1 : i32
    %444 = tpu.dynamic_rotate %395 by %c1_i32_294 dim 1 : vector<8x256xf32>, i32 -> vector<8x256xf32>
    %c12_295 = arith.constant 12 : index
    %c0_296 = arith.constant 0 : index
    %445 = vector.load %arg2[%c12_295, %c0_296] : memref<27x256xf32, #tpu.memory_space<vmem>>, vector<1x256xf32>
    %446 = vector.broadcast %445 : vector<1x256xf32> to vector<8x256xf32>
    %447 = arith.mulf %444, %446 : vector<8x256xf32>
    %c13_297 = arith.constant 13 : index
    %c0_298 = arith.constant 0 : index
    %448 = vector.load %arg2[%c13_297, %c0_298] : memref<27x256xf32, #tpu.memory_space<vmem>>, vector<1x256xf32>
    %449 = vector.broadcast %448 : vector<1x256xf32> to vector<8x256xf32>
    %450 = arith.mulf %395, %449 : vector<8x256xf32>
    %c255_i32_299 = arith.constant 255 : i32
    %451 = tpu.dynamic_rotate %395 by %c255_i32_299 dim 1 : vector<8x256xf32>, i32 -> vector<8x256xf32>
    %c14_300 = arith.constant 14 : index
    %c0_301 = arith.constant 0 : index
    %452 = vector.load %arg2[%c14_300, %c0_301] : memref<27x256xf32, #tpu.memory_space<vmem>>, vector<1x256xf32>
    %453 = vector.broadcast %452 : vector<1x256xf32> to vector<8x256xf32>
    %454 = arith.mulf %451, %453 : vector<8x256xf32>
    %c249_i32_302 = arith.constant 249 : i32
    %455 = tpu.dynamic_rotate %395 by %c249_i32_302 dim 1 : vector<8x256xf32>, i32 -> vector<8x256xf32>
    %c15_303 = arith.constant 15 : index
    %c0_304 = arith.constant 0 : index
    %456 = vector.load %arg2[%c15_303, %c0_304] : memref<27x256xf32, #tpu.memory_space<vmem>>, vector<1x256xf32>
    %457 = vector.broadcast %456 : vector<1x256xf32> to vector<8x256xf32>
    %458 = arith.mulf %455, %457 : vector<8x256xf32>
    %c248_i32_305 = arith.constant 248 : i32
    %459 = tpu.dynamic_rotate %395 by %c248_i32_305 dim 1 : vector<8x256xf32>, i32 -> vector<8x256xf32>
    %c16_306 = arith.constant 16 : index
    %c0_307 = arith.constant 0 : index
    %460 = vector.load %arg2[%c16_306, %c0_307] : memref<27x256xf32, #tpu.memory_space<vmem>>, vector<1x256xf32>
    %461 = vector.broadcast %460 : vector<1x256xf32> to vector<8x256xf32>
    %462 = arith.mulf %459, %461 : vector<8x256xf32>
    %c247_i32_308 = arith.constant 247 : i32
    %463 = tpu.dynamic_rotate %395 by %c247_i32_308 dim 1 : vector<8x256xf32>, i32 -> vector<8x256xf32>
    %c17_309 = arith.constant 17 : index
    %c0_310 = arith.constant 0 : index
    %464 = vector.load %arg2[%c17_309, %c0_310] : memref<27x256xf32, #tpu.memory_space<vmem>>, vector<1x256xf32>
    %465 = vector.broadcast %464 : vector<1x256xf32> to vector<8x256xf32>
    %466 = arith.mulf %463, %465 : vector<8x256xf32>
    %c201_i32_311 = arith.constant 201 : i32
    %467 = tpu.dynamic_rotate %395 by %c201_i32_311 dim 1 : vector<8x256xf32>, i32 -> vector<8x256xf32>
    %c18_312 = arith.constant 18 : index
    %c0_313 = arith.constant 0 : index
    %468 = vector.load %arg2[%c18_312, %c0_313] : memref<27x256xf32, #tpu.memory_space<vmem>>, vector<1x256xf32>
    %469 = vector.broadcast %468 : vector<1x256xf32> to vector<8x256xf32>
    %470 = arith.mulf %467, %469 : vector<8x256xf32>
    %c200_i32_314 = arith.constant 200 : i32
    %471 = tpu.dynamic_rotate %395 by %c200_i32_314 dim 1 : vector<8x256xf32>, i32 -> vector<8x256xf32>
    %c19_315 = arith.constant 19 : index
    %c0_316 = arith.constant 0 : index
    %472 = vector.load %arg2[%c19_315, %c0_316] : memref<27x256xf32, #tpu.memory_space<vmem>>, vector<1x256xf32>
    %473 = vector.broadcast %472 : vector<1x256xf32> to vector<8x256xf32>
    %474 = arith.mulf %471, %473 : vector<8x256xf32>
    %c199_i32_317 = arith.constant 199 : i32
    %475 = tpu.dynamic_rotate %395 by %c199_i32_317 dim 1 : vector<8x256xf32>, i32 -> vector<8x256xf32>
    %c20_318 = arith.constant 20 : index
    %c0_319 = arith.constant 0 : index
    %476 = vector.load %arg2[%c20_318, %c0_319] : memref<27x256xf32, #tpu.memory_space<vmem>>, vector<1x256xf32>
    %477 = vector.broadcast %476 : vector<1x256xf32> to vector<8x256xf32>
    %478 = arith.mulf %475, %477 : vector<8x256xf32>
    %c193_i32_320 = arith.constant 193 : i32
    %479 = tpu.dynamic_rotate %395 by %c193_i32_320 dim 1 : vector<8x256xf32>, i32 -> vector<8x256xf32>
    %c21_321 = arith.constant 21 : index
    %c0_322 = arith.constant 0 : index
    %480 = vector.load %arg2[%c21_321, %c0_322] : memref<27x256xf32, #tpu.memory_space<vmem>>, vector<1x256xf32>
    %481 = vector.broadcast %480 : vector<1x256xf32> to vector<8x256xf32>
    %482 = arith.mulf %479, %481 : vector<8x256xf32>
    %c192_i32_323 = arith.constant 192 : i32
    %483 = tpu.dynamic_rotate %395 by %c192_i32_323 dim 1 : vector<8x256xf32>, i32 -> vector<8x256xf32>
    %c22_324 = arith.constant 22 : index
    %c0_325 = arith.constant 0 : index
    %484 = vector.load %arg2[%c22_324, %c0_325] : memref<27x256xf32, #tpu.memory_space<vmem>>, vector<1x256xf32>
    %485 = vector.broadcast %484 : vector<1x256xf32> to vector<8x256xf32>
    %486 = arith.mulf %483, %485 : vector<8x256xf32>
    %c191_i32_326 = arith.constant 191 : i32
    %487 = tpu.dynamic_rotate %395 by %c191_i32_326 dim 1 : vector<8x256xf32>, i32 -> vector<8x256xf32>
    %c23_327 = arith.constant 23 : index
    %c0_328 = arith.constant 0 : index
    %488 = vector.load %arg2[%c23_327, %c0_328] : memref<27x256xf32, #tpu.memory_space<vmem>>, vector<1x256xf32>
    %489 = vector.broadcast %488 : vector<1x256xf32> to vector<8x256xf32>
    %490 = arith.mulf %487, %489 : vector<8x256xf32>
    %c185_i32_329 = arith.constant 185 : i32
    %491 = tpu.dynamic_rotate %395 by %c185_i32_329 dim 1 : vector<8x256xf32>, i32 -> vector<8x256xf32>
    %c24_330 = arith.constant 24 : index
    %c0_331 = arith.constant 0 : index
    %492 = vector.load %arg2[%c24_330, %c0_331] : memref<27x256xf32, #tpu.memory_space<vmem>>, vector<1x256xf32>
    %493 = vector.broadcast %492 : vector<1x256xf32> to vector<8x256xf32>
    %494 = arith.mulf %491, %493 : vector<8x256xf32>
    %c184_i32_332 = arith.constant 184 : i32
    %495 = tpu.dynamic_rotate %395 by %c184_i32_332 dim 1 : vector<8x256xf32>, i32 -> vector<8x256xf32>
    %c25_333 = arith.constant 25 : index
    %c0_334 = arith.constant 0 : index
    %496 = vector.load %arg2[%c25_333, %c0_334] : memref<27x256xf32, #tpu.memory_space<vmem>>, vector<1x256xf32>
    %497 = vector.broadcast %496 : vector<1x256xf32> to vector<8x256xf32>
    %498 = arith.mulf %495, %497 : vector<8x256xf32>
    %c183_i32_335 = arith.constant 183 : i32
    %499 = tpu.dynamic_rotate %395 by %c183_i32_335 dim 1 : vector<8x256xf32>, i32 -> vector<8x256xf32>
    %c26_336 = arith.constant 26 : index
    %c0_337 = arith.constant 0 : index
    %500 = vector.load %arg2[%c26_336, %c0_337] : memref<27x256xf32, #tpu.memory_space<vmem>>, vector<1x256xf32>
    %501 = vector.broadcast %500 : vector<1x256xf32> to vector<8x256xf32>
    %502 = arith.mulf %499, %501 : vector<8x256xf32>
    %cst_338 = arith.constant 0.000000e+00 : f32
    %503 = vector.broadcast %cst_338 : f32 to vector<8x256xf32>
    %c0_339 = arith.constant 0 : index
    %c0_340 = arith.constant 0 : index
    %504 = vector.load %arg7[%c0_339, %c0_340] : memref<8x216xf32, #tpu.memory_space<vmem>>, vector<8x8xf32>
    %cst_341 = arith.constant dense<0.000000e+00> : vector<8x256xf32>
    %505 = tpu.matmul %504, %399, %cst_341 {dimension_numbers = #tpu.dot_dimension_numbers<[1], [0], [0], [1], [0, 0, 1, 1], [], []>} : vector<8x8xf32>, vector<8x256xf32>, vector<8x256xf32> -> vector<8x256xf32>
    %506 = arith.addf %503, %505 : vector<8x256xf32>
    %c0_342 = arith.constant 0 : index
    %c8_343 = arith.constant 8 : index
    %507 = vector.load %arg7[%c0_342, %c8_343] : memref<8x216xf32, #tpu.memory_space<vmem>>, vector<8x8xf32>
    %cst_344 = arith.constant dense<0.000000e+00> : vector<8x256xf32>
    %508 = tpu.matmul %507, %403, %cst_344 {dimension_numbers = #tpu.dot_dimension_numbers<[1], [0], [0], [1], [0, 0, 1, 1], [], []>} : vector<8x8xf32>, vector<8x256xf32>, vector<8x256xf32> -> vector<8x256xf32>
    %509 = arith.addf %506, %508 : vector<8x256xf32>
    %c0_345 = arith.constant 0 : index
    %c16_346 = arith.constant 16 : index
    %510 = vector.load %arg7[%c0_345, %c16_346] : memref<8x216xf32, #tpu.memory_space<vmem>>, vector<8x8xf32>
    %cst_347 = arith.constant dense<0.000000e+00> : vector<8x256xf32>
    %511 = tpu.matmul %510, %407, %cst_347 {dimension_numbers = #tpu.dot_dimension_numbers<[1], [0], [0], [1], [0, 0, 1, 1], [], []>} : vector<8x8xf32>, vector<8x256xf32>, vector<8x256xf32> -> vector<8x256xf32>
    %512 = arith.addf %509, %511 : vector<8x256xf32>
    %c0_348 = arith.constant 0 : index
    %c24_349 = arith.constant 24 : index
    %513 = vector.load %arg7[%c0_348, %c24_349] : memref<8x216xf32, #tpu.memory_space<vmem>>, vector<8x8xf32>
    %cst_350 = arith.constant dense<0.000000e+00> : vector<8x256xf32>
    %514 = tpu.matmul %513, %411, %cst_350 {dimension_numbers = #tpu.dot_dimension_numbers<[1], [0], [0], [1], [0, 0, 1, 1], [], []>} : vector<8x8xf32>, vector<8x256xf32>, vector<8x256xf32> -> vector<8x256xf32>
    %515 = arith.addf %512, %514 : vector<8x256xf32>
    %c0_351 = arith.constant 0 : index
    %c32_352 = arith.constant 32 : index
    %516 = vector.load %arg7[%c0_351, %c32_352] : memref<8x216xf32, #tpu.memory_space<vmem>>, vector<8x8xf32>
    %cst_353 = arith.constant dense<0.000000e+00> : vector<8x256xf32>
    %517 = tpu.matmul %516, %415, %cst_353 {dimension_numbers = #tpu.dot_dimension_numbers<[1], [0], [0], [1], [0, 0, 1, 1], [], []>} : vector<8x8xf32>, vector<8x256xf32>, vector<8x256xf32> -> vector<8x256xf32>
    %518 = arith.addf %515, %517 : vector<8x256xf32>
    %c0_354 = arith.constant 0 : index
    %c40_355 = arith.constant 40 : index
    %519 = vector.load %arg7[%c0_354, %c40_355] : memref<8x216xf32, #tpu.memory_space<vmem>>, vector<8x8xf32>
    %cst_356 = arith.constant dense<0.000000e+00> : vector<8x256xf32>
    %520 = tpu.matmul %519, %419, %cst_356 {dimension_numbers = #tpu.dot_dimension_numbers<[1], [0], [0], [1], [0, 0, 1, 1], [], []>} : vector<8x8xf32>, vector<8x256xf32>, vector<8x256xf32> -> vector<8x256xf32>
    %521 = arith.addf %518, %520 : vector<8x256xf32>
    %c0_357 = arith.constant 0 : index
    %c48_358 = arith.constant 48 : index
    %522 = vector.load %arg7[%c0_357, %c48_358] : memref<8x216xf32, #tpu.memory_space<vmem>>, vector<8x8xf32>
    %cst_359 = arith.constant dense<0.000000e+00> : vector<8x256xf32>
    %523 = tpu.matmul %522, %423, %cst_359 {dimension_numbers = #tpu.dot_dimension_numbers<[1], [0], [0], [1], [0, 0, 1, 1], [], []>} : vector<8x8xf32>, vector<8x256xf32>, vector<8x256xf32> -> vector<8x256xf32>
    %524 = arith.addf %521, %523 : vector<8x256xf32>
    %c0_360 = arith.constant 0 : index
    %c56_361 = arith.constant 56 : index
    %525 = vector.load %arg7[%c0_360, %c56_361] : memref<8x216xf32, #tpu.memory_space<vmem>>, vector<8x8xf32>
    %cst_362 = arith.constant dense<0.000000e+00> : vector<8x256xf32>
    %526 = tpu.matmul %525, %427, %cst_362 {dimension_numbers = #tpu.dot_dimension_numbers<[1], [0], [0], [1], [0, 0, 1, 1], [], []>} : vector<8x8xf32>, vector<8x256xf32>, vector<8x256xf32> -> vector<8x256xf32>
    %527 = arith.addf %524, %526 : vector<8x256xf32>
    %c0_363 = arith.constant 0 : index
    %c64_364 = arith.constant 64 : index
    %528 = vector.load %arg7[%c0_363, %c64_364] : memref<8x216xf32, #tpu.memory_space<vmem>>, vector<8x8xf32>
    %cst_365 = arith.constant dense<0.000000e+00> : vector<8x256xf32>
    %529 = tpu.matmul %528, %431, %cst_365 {dimension_numbers = #tpu.dot_dimension_numbers<[1], [0], [0], [1], [0, 0, 1, 1], [], []>} : vector<8x8xf32>, vector<8x256xf32>, vector<8x256xf32> -> vector<8x256xf32>
    %530 = arith.addf %527, %529 : vector<8x256xf32>
    %c0_366 = arith.constant 0 : index
    %c72_367 = arith.constant 72 : index
    %531 = vector.load %arg7[%c0_366, %c72_367] : memref<8x216xf32, #tpu.memory_space<vmem>>, vector<8x8xf32>
    %cst_368 = arith.constant dense<0.000000e+00> : vector<8x256xf32>
    %532 = tpu.matmul %531, %435, %cst_368 {dimension_numbers = #tpu.dot_dimension_numbers<[1], [0], [0], [1], [0, 0, 1, 1], [], []>} : vector<8x8xf32>, vector<8x256xf32>, vector<8x256xf32> -> vector<8x256xf32>
    %533 = arith.addf %530, %532 : vector<8x256xf32>
    %c0_369 = arith.constant 0 : index
    %c80_370 = arith.constant 80 : index
    %534 = vector.load %arg7[%c0_369, %c80_370] : memref<8x216xf32, #tpu.memory_space<vmem>>, vector<8x8xf32>
    %cst_371 = arith.constant dense<0.000000e+00> : vector<8x256xf32>
    %535 = tpu.matmul %534, %439, %cst_371 {dimension_numbers = #tpu.dot_dimension_numbers<[1], [0], [0], [1], [0, 0, 1, 1], [], []>} : vector<8x8xf32>, vector<8x256xf32>, vector<8x256xf32> -> vector<8x256xf32>
    %536 = arith.addf %533, %535 : vector<8x256xf32>
    %c0_372 = arith.constant 0 : index
    %c88_373 = arith.constant 88 : index
    %537 = vector.load %arg7[%c0_372, %c88_373] : memref<8x216xf32, #tpu.memory_space<vmem>>, vector<8x8xf32>
    %cst_374 = arith.constant dense<0.000000e+00> : vector<8x256xf32>
    %538 = tpu.matmul %537, %443, %cst_374 {dimension_numbers = #tpu.dot_dimension_numbers<[1], [0], [0], [1], [0, 0, 1, 1], [], []>} : vector<8x8xf32>, vector<8x256xf32>, vector<8x256xf32> -> vector<8x256xf32>
    %539 = arith.addf %536, %538 : vector<8x256xf32>
    %c0_375 = arith.constant 0 : index
    %c96_376 = arith.constant 96 : index
    %540 = vector.load %arg7[%c0_375, %c96_376] : memref<8x216xf32, #tpu.memory_space<vmem>>, vector<8x8xf32>
    %cst_377 = arith.constant dense<0.000000e+00> : vector<8x256xf32>
    %541 = tpu.matmul %540, %447, %cst_377 {dimension_numbers = #tpu.dot_dimension_numbers<[1], [0], [0], [1], [0, 0, 1, 1], [], []>} : vector<8x8xf32>, vector<8x256xf32>, vector<8x256xf32> -> vector<8x256xf32>
    %542 = arith.addf %539, %541 : vector<8x256xf32>
    %c0_378 = arith.constant 0 : index
    %c104_379 = arith.constant 104 : index
    %543 = vector.load %arg7[%c0_378, %c104_379] : memref<8x216xf32, #tpu.memory_space<vmem>>, vector<8x8xf32>
    %cst_380 = arith.constant dense<0.000000e+00> : vector<8x256xf32>
    %544 = tpu.matmul %543, %450, %cst_380 {dimension_numbers = #tpu.dot_dimension_numbers<[1], [0], [0], [1], [0, 0, 1, 1], [], []>} : vector<8x8xf32>, vector<8x256xf32>, vector<8x256xf32> -> vector<8x256xf32>
    %545 = arith.addf %542, %544 : vector<8x256xf32>
    %c0_381 = arith.constant 0 : index
    %c112_382 = arith.constant 112 : index
    %546 = vector.load %arg7[%c0_381, %c112_382] : memref<8x216xf32, #tpu.memory_space<vmem>>, vector<8x8xf32>
    %cst_383 = arith.constant dense<0.000000e+00> : vector<8x256xf32>
    %547 = tpu.matmul %546, %454, %cst_383 {dimension_numbers = #tpu.dot_dimension_numbers<[1], [0], [0], [1], [0, 0, 1, 1], [], []>} : vector<8x8xf32>, vector<8x256xf32>, vector<8x256xf32> -> vector<8x256xf32>
    %548 = arith.addf %545, %547 : vector<8x256xf32>
    %c0_384 = arith.constant 0 : index
    %c120_385 = arith.constant 120 : index
    %549 = vector.load %arg7[%c0_384, %c120_385] : memref<8x216xf32, #tpu.memory_space<vmem>>, vector<8x8xf32>
    %cst_386 = arith.constant dense<0.000000e+00> : vector<8x256xf32>
    %550 = tpu.matmul %549, %458, %cst_386 {dimension_numbers = #tpu.dot_dimension_numbers<[1], [0], [0], [1], [0, 0, 1, 1], [], []>} : vector<8x8xf32>, vector<8x256xf32>, vector<8x256xf32> -> vector<8x256xf32>
    %551 = arith.addf %548, %550 : vector<8x256xf32>
    %c0_387 = arith.constant 0 : index
    %c128_388 = arith.constant 128 : index
    %552 = vector.load %arg7[%c0_387, %c128_388] : memref<8x216xf32, #tpu.memory_space<vmem>>, vector<8x8xf32>
    %cst_389 = arith.constant dense<0.000000e+00> : vector<8x256xf32>
    %553 = tpu.matmul %552, %462, %cst_389 {dimension_numbers = #tpu.dot_dimension_numbers<[1], [0], [0], [1], [0, 0, 1, 1], [], []>} : vector<8x8xf32>, vector<8x256xf32>, vector<8x256xf32> -> vector<8x256xf32>
    %554 = arith.addf %551, %553 : vector<8x256xf32>
    %c0_390 = arith.constant 0 : index
    %c136_391 = arith.constant 136 : index
    %555 = vector.load %arg7[%c0_390, %c136_391] : memref<8x216xf32, #tpu.memory_space<vmem>>, vector<8x8xf32>
    %cst_392 = arith.constant dense<0.000000e+00> : vector<8x256xf32>
    %556 = tpu.matmul %555, %466, %cst_392 {dimension_numbers = #tpu.dot_dimension_numbers<[1], [0], [0], [1], [0, 0, 1, 1], [], []>} : vector<8x8xf32>, vector<8x256xf32>, vector<8x256xf32> -> vector<8x256xf32>
    %557 = arith.addf %554, %556 : vector<8x256xf32>
    %c0_393 = arith.constant 0 : index
    %c144_394 = arith.constant 144 : index
    %558 = vector.load %arg7[%c0_393, %c144_394] : memref<8x216xf32, #tpu.memory_space<vmem>>, vector<8x8xf32>
    %cst_395 = arith.constant dense<0.000000e+00> : vector<8x256xf32>
    %559 = tpu.matmul %558, %470, %cst_395 {dimension_numbers = #tpu.dot_dimension_numbers<[1], [0], [0], [1], [0, 0, 1, 1], [], []>} : vector<8x8xf32>, vector<8x256xf32>, vector<8x256xf32> -> vector<8x256xf32>
    %560 = arith.addf %557, %559 : vector<8x256xf32>
    %c0_396 = arith.constant 0 : index
    %c152_397 = arith.constant 152 : index
    %561 = vector.load %arg7[%c0_396, %c152_397] : memref<8x216xf32, #tpu.memory_space<vmem>>, vector<8x8xf32>
    %cst_398 = arith.constant dense<0.000000e+00> : vector<8x256xf32>
    %562 = tpu.matmul %561, %474, %cst_398 {dimension_numbers = #tpu.dot_dimension_numbers<[1], [0], [0], [1], [0, 0, 1, 1], [], []>} : vector<8x8xf32>, vector<8x256xf32>, vector<8x256xf32> -> vector<8x256xf32>
    %563 = arith.addf %560, %562 : vector<8x256xf32>
    %c0_399 = arith.constant 0 : index
    %c160_400 = arith.constant 160 : index
    %564 = vector.load %arg7[%c0_399, %c160_400] : memref<8x216xf32, #tpu.memory_space<vmem>>, vector<8x8xf32>
    %cst_401 = arith.constant dense<0.000000e+00> : vector<8x256xf32>
    %565 = tpu.matmul %564, %478, %cst_401 {dimension_numbers = #tpu.dot_dimension_numbers<[1], [0], [0], [1], [0, 0, 1, 1], [], []>} : vector<8x8xf32>, vector<8x256xf32>, vector<8x256xf32> -> vector<8x256xf32>
    %566 = arith.addf %563, %565 : vector<8x256xf32>
    %c0_402 = arith.constant 0 : index
    %c168_403 = arith.constant 168 : index
    %567 = vector.load %arg7[%c0_402, %c168_403] : memref<8x216xf32, #tpu.memory_space<vmem>>, vector<8x8xf32>
    %cst_404 = arith.constant dense<0.000000e+00> : vector<8x256xf32>
    %568 = tpu.matmul %567, %482, %cst_404 {dimension_numbers = #tpu.dot_dimension_numbers<[1], [0], [0], [1], [0, 0, 1, 1], [], []>} : vector<8x8xf32>, vector<8x256xf32>, vector<8x256xf32> -> vector<8x256xf32>
    %569 = arith.addf %566, %568 : vector<8x256xf32>
    %c0_405 = arith.constant 0 : index
    %c176_406 = arith.constant 176 : index
    %570 = vector.load %arg7[%c0_405, %c176_406] : memref<8x216xf32, #tpu.memory_space<vmem>>, vector<8x8xf32>
    %cst_407 = arith.constant dense<0.000000e+00> : vector<8x256xf32>
    %571 = tpu.matmul %570, %486, %cst_407 {dimension_numbers = #tpu.dot_dimension_numbers<[1], [0], [0], [1], [0, 0, 1, 1], [], []>} : vector<8x8xf32>, vector<8x256xf32>, vector<8x256xf32> -> vector<8x256xf32>
    %572 = arith.addf %569, %571 : vector<8x256xf32>
    %c0_408 = arith.constant 0 : index
    %c184_409 = arith.constant 184 : index
    %573 = vector.load %arg7[%c0_408, %c184_409] : memref<8x216xf32, #tpu.memory_space<vmem>>, vector<8x8xf32>
    %cst_410 = arith.constant dense<0.000000e+00> : vector<8x256xf32>
    %574 = tpu.matmul %573, %490, %cst_410 {dimension_numbers = #tpu.dot_dimension_numbers<[1], [0], [0], [1], [0, 0, 1, 1], [], []>} : vector<8x8xf32>, vector<8x256xf32>, vector<8x256xf32> -> vector<8x256xf32>
    %575 = arith.addf %572, %574 : vector<8x256xf32>
    %c0_411 = arith.constant 0 : index
    %c192_412 = arith.constant 192 : index
    %576 = vector.load %arg7[%c0_411, %c192_412] : memref<8x216xf32, #tpu.memory_space<vmem>>, vector<8x8xf32>
    %cst_413 = arith.constant dense<0.000000e+00> : vector<8x256xf32>
    %577 = tpu.matmul %576, %494, %cst_413 {dimension_numbers = #tpu.dot_dimension_numbers<[1], [0], [0], [1], [0, 0, 1, 1], [], []>} : vector<8x8xf32>, vector<8x256xf32>, vector<8x256xf32> -> vector<8x256xf32>
    %578 = arith.addf %575, %577 : vector<8x256xf32>
    %c0_414 = arith.constant 0 : index
    %c200_415 = arith.constant 200 : index
    %579 = vector.load %arg7[%c0_414, %c200_415] : memref<8x216xf32, #tpu.memory_space<vmem>>, vector<8x8xf32>
    %cst_416 = arith.constant dense<0.000000e+00> : vector<8x256xf32>
    %580 = tpu.matmul %579, %498, %cst_416 {dimension_numbers = #tpu.dot_dimension_numbers<[1], [0], [0], [1], [0, 0, 1, 1], [], []>} : vector<8x8xf32>, vector<8x256xf32>, vector<8x256xf32> -> vector<8x256xf32>
    %581 = arith.addf %578, %580 : vector<8x256xf32>
    %c0_417 = arith.constant 0 : index
    %c208_418 = arith.constant 208 : index
    %582 = vector.load %arg7[%c0_417, %c208_418] : memref<8x216xf32, #tpu.memory_space<vmem>>, vector<8x8xf32>
    %cst_419 = arith.constant dense<0.000000e+00> : vector<8x256xf32>
    %583 = tpu.matmul %582, %502, %cst_419 {dimension_numbers = #tpu.dot_dimension_numbers<[1], [0], [0], [1], [0, 0, 1, 1], [], []>} : vector<8x8xf32>, vector<8x256xf32>, vector<8x256xf32> -> vector<8x256xf32>
    %584 = arith.addf %581, %583 : vector<8x256xf32>
    %c0_420 = arith.constant 0 : index
    %c0_421 = arith.constant 0 : index
    %585 = vector.load %arg8[%c0_420, %c0_421] : memref<8x1xf32, #tpu.memory_space<vmem>>, vector<8x1xf32>
    %586 = vector.broadcast %585 : vector<8x1xf32> to vector<8x256xf32>
    %587 = arith.addf %584, %586 : vector<8x256xf32>
    %588 = arith.addf %587, %1 : vector<8x256xf32>
    %cst_422 = arith.constant 0.000000e+00 : f32
    %589 = vector.broadcast %cst_422 : f32 to vector<8x256xf32>
    %590 = arith.cmpf oge, %588, %589 : vector<8x256xf32>
    %cst_423 = arith.constant 1.000000e-01 : f32
    %591 = vector.broadcast %cst_423 : f32 to vector<8x256xf32>
    %592 = arith.mulf %591, %588 : vector<8x256xf32>
    %593 = arith.select %590, %588, %592 : vector<8x256xi1>, vector<8x256xf32>
    %c0_424 = arith.constant 0 : index
    %c0_425 = arith.constant 0 : index
    %c0_426 = arith.constant 0 : index
    %594 = vector.load %arg9[%c0_424, %c0_425, %c0_426] : memref<1x8x256xf32, #tpu.memory_space<vmem>>, vector<1x8x256xf32>
    %595 = vector.shape_cast %594 : vector<1x8x256xf32> to vector<8x256xf32>
    %596 = vector.shape_cast %593 : vector<8x256xf32> to vector<1x8x256xf32>
    tpu.vector_store %arg9[%c0_424, %c0_425, %c0_426], %596 {strides = array<i32>} : memref<1x8x256xf32, #tpu.memory_space<vmem>>, vector<1x8x256xf32>,
    return
  }
  func.func @transform_0(%arg0: i32) -> (i32, i32, i32) {
    %c0_i32 = arith.constant 0 : i32
    %c0_i32_0 = arith.constant 0 : i32
    %c0_i32_1 = arith.constant 0 : i32
    return %arg0, %c0_i32, %c0_i32_0 : i32, i32, i32
  }
  func.func @transform_1(%arg0: i32) -> (i32, i32) {
    %c0_i32 = arith.constant 0 : i32
    %c0_i32_0 = arith.constant 0 : i32
    %c0_i32_1 = arith.constant 0 : i32
    return %c0_i32, %c0_i32_0 : i32, i32
  }
  func.func @transform_2(%arg0: i32) -> (i32, i32) {
    %c0_i32 = arith.constant 0 : i32
    %c0_i32_0 = arith.constant 0 : i32
    %c0_i32_1 = arith.constant 0 : i32
    return %c0_i32, %c0_i32_0 : i32, i32
  }
  func.func @transform_3(%arg0: i32) -> (i32, i32) {
    %c0_i32 = arith.constant 0 : i32
    %c0_i32_0 = arith.constant 0 : i32
    %c0_i32_1 = arith.constant 0 : i32
    return %c0_i32, %c0_i32_0 : i32, i32
  }
  func.func @transform_4(%arg0: i32) -> (i32, i32) {
    %c0_i32 = arith.constant 0 : i32
    %c0_i32_0 = arith.constant 0 : i32
    %c0_i32_1 = arith.constant 0 : i32
    return %c0_i32, %c0_i32_0 : i32, i32
  }
  func.func @transform_5(%arg0: i32) -> (i32, i32) {
    %c0_i32 = arith.constant 0 : i32
    %c0_i32_0 = arith.constant 0 : i32
    %c0_i32_1 = arith.constant 0 : i32
    return %c0_i32, %c0_i32_0 : i32, i32
  }
  func.func @transform_6(%arg0: i32) -> (i32, i32) {
    %c0_i32 = arith.constant 0 : i32
    %c0_i32_0 = arith.constant 0 : i32
    %c0_i32_1 = arith.constant 0 : i32
    return %c0_i32, %c0_i32_0 : i32, i32
  }
  func.func @transform_7(%arg0: i32) -> (i32, i32) {
    %c0_i32 = arith.constant 0 : i32
    %c0_i32_0 = arith.constant 0 : i32
    %c0_i32_1 = arith.constant 0 : i32
    return %c0_i32, %c0_i32_0 : i32, i32
  }
  func.func @transform_8(%arg0: i32) -> (i32, i32, i32) {
    %c0_i32 = arith.constant 0 : i32
    %c0_i32_0 = arith.constant 0 : i32
    %c0_i32_1 = arith.constant 0 : i32
    return %arg0, %c0_i32, %c0_i32_0 : i32, i32, i32
  }
}

</mosaic_0001>

<llo_original>
// kernel: resblock3d_forward.1
$region0: #{resblock3d_forward.1}
  #allocation0 [shape = 'u32[]', space=smem, size = 0x4, offset = 0x4, fixed_abs, tag = 'smem constant byte address 0x4 - core index']
  #allocation1 [shape = 'u32[144,128]{1,0:T(1,128)}', space=vmem, size = 0x12000, scoped, tag = 'internal scratch']
  %s0 = inlined_call_operand.vmem [shape: f32[2,8,256], index: 0, kind: input, shape index: {}]
  %s1 = inlined_call_operand.vmem [shape: f32[27,256], index: 1, kind: input, shape index: {}]
  %s2 = inlined_call_operand.vmem [shape: f32[8,216], index: 2, kind: input, shape index: {}]
  %s3 = inlined_call_operand.vmem [shape: f32[8,1], index: 3, kind: input, shape index: {}]
  %s4 = inlined_call_operand.vmem [shape: f32[8,216], index: 4, kind: input, shape index: {}]
  %s5 = inlined_call_operand.vmem [shape: f32[8,1], index: 5, kind: input, shape index: {}]
  %s6 = inlined_call_operand.vmem [shape: f32[8,216], index: 6, kind: input, shape index: {}]
  %s7 = inlined_call_operand.vmem [shape: f32[8,1], index: 7, kind: input, shape index: {}]
  %s8 = inlined_call_operand.vmem [shape: f32[2,8,256], index: 8, kind: output, shape index: {}]
  %s9 = sld [smem:[#allocation0]]
  $region65: #{resblock3d_forward.1} parent=0
    _
  %s11 = ssub.s32 1, %s9
  %s12 = scalar_select 0, %s11, %s9
  loop: start=0, step=1, limit=4
  $region2: #{resblock3d_forward.1} parent=0 // loop_pre_header
    _
  $region3: #{resblock3d_forward.1} parent=0 // loop_header
    %s14 = sphi 0, %s18
    %p15 = scmp.ge.s32.totalorder %s14, 4
    %s24 = sphi 0, %s26
    %s27 = sphi 0, %s24
    %s28 = sphi 0, %s27
    %s44 = sphi 0, %s28
    %s48 = sphi 0, %s48
    %s50 = sphi 0, %s48
    %s51 = sphi 0, %s50
    %s65 = sphi 0, %s51
    %s69 = sphi 0, %s69
    %s71 = sphi 0, %s69
    %s72 = sphi 0, %s71
    %s86 = sphi 0, %s72
    %s90 = sphi 0, %s90
    %s92 = sphi 0, %s90
    %s93 = sphi 0, %s92
    %s107 = sphi 0, %s93
    %s111 = sphi 0, %s111
    %s113 = sphi 0, %s111
    %s114 = sphi 0, %s113
    %s128 = sphi 0, %s114
    %s132 = sphi 0, %s132
    %s134 = sphi 0, %s132
    %s135 = sphi 0, %s134
    %s149 = sphi 0, %s135
    %s153 = sphi 0, %s153
    %s155 = sphi 0, %s153
    %s156 = sphi 0, %s155
    %s170 = sphi 0, %s156
    %s174 = sphi 0, %s174
    %s176 = sphi 0, %s174
    %s177 = sphi 0, %s176
    %s191 = sphi 0, %s177
    %s197 = sphi 0, %s199
    %s200 = sphi 0, %s197
    %s201 = sphi 0, %s200
    %s217 = sphi 0, %s201
  $region4: #{resblock3d_forward.1} parent=0 // loop_header_branch
    %17 = sbr.rel (%p15) target = $region8
  $region5: #{resblock3d_forward.1} parent=0 // loop_body
    %s19 = ssub.s32 %s14, 1
    %s20 = ssub.s32 %s14, 2
    %s21 = sadd.s32 %s14, 1
    %s22 = ssub.s32 %s14, %s21
    %p23 = scmp.eq.s32.totalorder %s22, 0
    %s25 = sadd.s32 %s24, 1
    %s26 = scalar_select %p23, %s24, %s25
    %p29 = pneg %p23
    %p30 = scmp.eq.s32.totalorder %s14, 1
    %p31 = por %p29, %p30
    %p32 = scmp.ne.s32.totalorder %s24, %s27
    %p33 = scmp.eq.s32.totalorder %s14, 0
    %p34 = por %p32, %p33
    %p35 = scmp.ne.s32.totalorder %s24, %s27
    %p36 = scmp.eq.s32.totalorder %s19, 1
    %p37 = por %p35, %p36
    %p38 = scmp.ne.s32.totalorder %s27, %s28
    %p39 = scmp.eq.s32.totalorder %s19, 0
    %p40 = por %p38, %p39
    %p41 = scmp.ne.s32.totalorder %s27, %s28
    %p42 = scmp.eq.s32.totalorder %s20, 1
    %p43 = por %p41, %p42
    %p45 = scmp.ne.s32.totalorder %s28, %s44
    %p46 = scmp.eq.s32.totalorder %s20, 0
    %p47 = por %p45, %p46
    %s49 = sadd.s32 %s48, 1
    %p52 = scmp.eq.s32.totalorder %s14, 1
    %p53 = scmp.ne.s32.totalorder %s48, %s50
    %p54 = scmp.eq.s32.totalorder %s14, 0
    %p55 = por %p53, %p54
    %p56 = scmp.ne.s32.totalorder %s48, %s50
    %p57 = scmp.eq.s32.totalorder %s19, 1
    %p58 = por %p56, %p57
    %p59 = scmp.ne.s32.totalorder %s50, %s51
    %p60 = scmp.eq.s32.totalorder %s19, 0
    %p61 = por %p59, %p60
    %p62 = scmp.ne.s32.totalorder %s50, %s51
    %p63 = scmp.eq.s32.totalorder %s20, 1
    %p64 = por %p62, %p63
    %p66 = scmp.ne.s32.totalorder %s51, %s65
    %p67 = scmp.eq.s32.totalorder %s20, 0
    %p68 = por %p66, %p67
    %s70 = sadd.s32 %s69, 1
    %p73 = scmp.eq.s32.totalorder %s14, 1
    %p74 = scmp.ne.s32.totalorder %s69, %s71
    %p75 = scmp.eq.s32.totalorder %s14, 0
    %p76 = por %p74, %p75
    %p77 = scmp.ne.s32.totalorder %s69, %s71
    %p78 = scmp.eq.s32.totalorder %s19, 1
    %p79 = por %p77, %p78
    %p80 = scmp.ne.s32.totalorder %s71, %s72
    %p81 = scmp.eq.s32.totalorder %s19, 0
    %p82 = por %p80, %p81
    %p83 = scmp.ne.s32.totalorder %s71, %s72
    %p84 = scmp.eq.s32.totalorder %s20, 1
    %p85 = por %p83, %p84
    %p87 = scmp.ne.s32.totalorder %s72, %s86
    %p88 = scmp.eq.s32.totalorder %s20, 0
    %p89 = por %p87, %p88
    %s91 = sadd.s32 %s90, 1
    %p94 = scmp.eq.s32.totalorder %s14, 1
    %p95 = scmp.ne.s32.totalorder %s90, %s92
    %p96 = scmp.eq.s32.totalorder %s14, 0
    %p97 = por %p95, %p96
    %p98 = scmp.ne.s32.totalorder %s90, %s92
    %p99 = scmp.eq.s32.totalorder %s19, 1
    %p100 = por %p98, %p99
    %p101 = scmp.ne.s32.totalorder %s92, %s93
    %p102 = scmp.eq.s32.totalorder %s19, 0
    %p103 = por %p101, %p102
    %p104 = scmp.ne.s32.totalorder %s92, %s93
    %p105 = scmp.eq.s32.totalorder %s20, 1
    %p106 = por %p104, %p105
    %p108 = scmp.ne.s32.totalorder %s93, %s107
    %p109 = scmp.eq.s32.totalorder %s20, 0
    %p110 = por %p108, %p109
    %s112 = sadd.s32 %s111, 1
    %p115 = scmp.eq.s32.totalorder %s14, 1
    %p116 = scmp.ne.s32.totalorder %s111, %s113
    %p117 = scmp.eq.s32.totalorder %s14, 0
    %p118 = por %p116, %p117
    %p119 = scmp.ne.s32.totalorder %s111, %s113
    %p120 = scmp.eq.s32.totalorder %s19, 1
    %p121 = por %p119, %p120
    %p122 = scmp.ne.s32.totalorder %s113, %s114
    %p123 = scmp.eq.s32.totalorder %s19, 0
    %p124 = por %p122, %p123
    %p125 = scmp.ne.s32.totalorder %s113, %s114
    %p126 = scmp.eq.s32.totalorder %s20, 1
    %p127 = por %p125, %p126
    %p129 = scmp.ne.s32.totalorder %s114, %s128
    %p130 = scmp.eq.s32.totalorder %s20, 0
    %p131 = por %p129, %p130
    %s133 = sadd.s32 %s132, 1
    %p136 = scmp.eq.s32.totalorder %s14, 1
    %p137 = scmp.ne.s32.totalorder %s132, %s134
    %p138 = scmp.eq.s32.totalorder %s14, 0
    %p139 = por %p137, %p138
    %p140 = scmp.ne.s32.totalorder %s132, %s134
    %p141 = scmp.eq.s32.totalorder %s19, 1
    %p142 = por %p140, %p141
    %p143 = scmp.ne.s32.totalorder %s134, %s135
    %p144 = scmp.eq.s32.totalorder %s19, 0
    %p145 = por %p143, %p144
    %p146 = scmp.ne.s32.totalorder %s134, %s135
    %p147 = scmp.eq.s32.totalorder %s20, 1
    %p148 = por %p146, %p147
    %p150 = scmp.ne.s32.totalorder %s135, %s149
    %p151 = scmp.eq.s32.totalorder %s20, 0
    %p152 = por %p150, %p151
    %s154 = sadd.s32 %s153, 1
    %p157 = scmp.eq.s32.totalorder %s14, 1
    %p158 = scmp.ne.s32.totalorder %s153, %s155
    %p159 = scmp.eq.s32.totalorder %s14, 0
    %p160 = por %p158, %p159
    %p161 = scmp.ne.s32.totalorder %s153, %s155
    %p162 = scmp.eq.s32.totalorder %s19, 1
    %p163 = por %p161, %p162
    %p164 = scmp.ne.s32.totalorder %s155, %s156
    %p165 = scmp.eq.s32.totalorder %s19, 0
    %p166 = por %p164, %p165
    %p167 = scmp.ne.s32.totalorder %s155, %s156
    %p168 = scmp.eq.s32.totalorder %s20, 1
    %p169 = por %p167, %p168
    %p171 = scmp.ne.s32.totalorder %s156, %s170
    %p172 = scmp.eq.s32.totalorder %s20, 0
    %p173 = por %p171, %p172
    %s175 = sadd.s32 %s174, 1
    %p178 = scmp.eq.s32.totalorder %s14, 1
    %p179 = scmp.ne.s32.totalorder %s174, %s176
    %p180 = scmp.eq.s32.totalorder %s14, 0
    %p181 = por %p179, %p180
    %p182 = scmp.ne.s32.totalorder %s174, %s176
    %p183 = scmp.eq.s32.totalorder %s19, 1
    %p184 = por %p182, %p183
    %p185 = scmp.ne.s32.totalorder %s176, %s177
    %p186 = scmp.eq.s32.totalorder %s19, 0
    %p187 = por %p185, %p186
    %p188 = scmp.ne.s32.totalorder %s176, %s177
    %p189 = scmp.eq.s32.totalorder %s20, 1
    %p190 = por %p188, %p189
    %p192 = scmp.ne.s32.totalorder %s177, %s191
    %p193 = scmp.eq.s32.totalorder %s20, 0
    %p194 = por %p192, %p193
    %s195 = ssub.s32 %s14, %s21
    %p196 = scmp.eq.s32.totalorder %s195, 0
    %s198 = sadd.s32 %s197, 1
    %s199 = scalar_select %p196, %s197, %s198
    %p202 = pneg %p196
    %p203 = scmp.eq.s32.totalorder %s14, 1
    %p204 = por %p202, %p203
    %p205 = scmp.ne.s32.totalorder %s197, %s200
    %p206 = scmp.eq.s32.totalorder %s14, 0
    %p207 = por %p205, %p206
    %p208 = scmp.ne.s32.totalorder %s197, %s200
    %p209 = scmp.eq.s32.totalorder %s19, 1
    %p210 = por %p208, %p209
    %p211 = scmp.ne.s32.totalorder %s200, %s201
    %p212 = scmp.eq.s32.totalorder %s19, 0
    %p213 = por %p211, %p212
    %p214 = scmp.ne.s32.totalorder %s200, %s201
    %p215 = scmp.eq.s32.totalorder %s20, 1
    %p216 = por %p214, %p215
    %p218 = scmp.ne.s32.totalorder %s201, %s217
    %p219 = scmp.eq.s32.totalorder %s20, 0
    %p220 = por %p218, %p219
    %p221 = scmp.le.s32.totalorder 1, %s14
    %p222 = scmp.lt.s32.totalorder %s14, 3
    %p223 = pnand %p221, %p222
    %p224 = pneg %p223
    // Predicated region
    $region9: #{resblock3d_forward.1} parent=5 // pred_check
      _
    $region10: #{resblock3d_forward.1} parent=5 // pred_check_branch
      %226 = sbr.rel (%p223) target = $region12
    $region11: #{resblock3d_forward.1} parent=5 // pred_region
      %s227 = ssub.s32 %s14, 1
      // Predicated region
      $region13: #{resblock3d_forward.1} parent=11 // pred_check
        %p228 = pneg %p61
      $region14: #{resblock3d_forward.1} parent=11 // pred_check_branch
        %230 = sbr.rel (%p228) target = $region16
      $region15: #{resblock3d_forward.1} parent=11 // pred_region
        _
      $region16: #{resblock3d_forward.1} parent=11 // pred_fallthru
        _
      // Predicated region
      $region17: #{resblock3d_forward.1} parent=11 // pred_check
        %p231 = pneg %p82
      $region18: #{resblock3d_forward.1} parent=11 // pred_check_branch
        %233 = sbr.rel (%p231) target = $region20
      $region19: #{resblock3d_forward.1} parent=11 // pred_region
        _
      $region20: #{resblock3d_forward.1} parent=11 // pred_fallthru
        _
      // Predicated region
      $region21: #{resblock3d_forward.1} parent=11 // pred_check
        %p234 = pneg %p103
      $region22: #{resblock3d_forward.1} parent=11 // pred_check_branch
        %236 = sbr.rel (%p234) target = $region24
      $region23: #{resblock3d_forward.1} parent=11 // pred_region
        _
      $region24: #{resblock3d_forward.1} parent=11 // pred_fallthru
        _
      // Predicated region
      $region25: #{resblock3d_forward.1} parent=11 // pred_check
        %p237 = pneg %p124
      $region26: #{resblock3d_forward.1} parent=11 // pred_check_branch
        %239 = sbr.rel (%p237) target = $region28
      $region27: #{resblock3d_forward.1} parent=11 // pred_region
        _
      $region28: #{resblock3d_forward.1} parent=11 // pred_fallthru
        _
      // Predicated region
      $region29: #{resblock3d_forward.1} parent=11 // pred_check
        %p240 = pneg %p145
      $region30: #{resblock3d_forward.1} parent=11 // pred_check_branch
        %242 = sbr.rel (%p240) target = $region32
      $region31: #{resblock3d_forward.1} parent=11 // pred_region
        _
      $region32: #{resblock3d_forward.1} parent=11 // pred_fallthru
        _
      // Predicated region
      $region33: #{resblock3d_forward.1} parent=11 // pred_check
        %p243 = pneg %p166
      $region34: #{resblock3d_forward.1} parent=11 // pred_check_branch
        %245 = sbr.rel (%p243) target = $region36
      $region35: #{resblock3d_forward.1} parent=11 // pred_region
        _
      $region36: #{resblock3d_forward.1} parent=11 // pred_fallthru
        _
      // Predicated region
      $region37: #{resblock3d_forward.1} parent=11 // pred_check
        %p246 = pneg %p187
      $region38: #{resblock3d_forward.1} parent=11 // pred_check_branch
        %248 = sbr.rel (%p246) target = $region40
      $region39: #{resblock3d_forward.1} parent=11 // pred_region
        _
      $region40: #{resblock3d_forward.1} parent=11 // pred_fallthru
        _
    $region12: #{resblock3d_forward.1} parent=5 // pred_fallthru
      _
    %p249 = scmp.lt.s32.totalorder %s14, 2
    // Predicated region
    $region41: #{resblock3d_forward.1} parent=5 // pred_check
      %p250 = pneg %p249
    $region42: #{resblock3d_forward.1} parent=5 // pred_check_branch
      %252 = sbr.rel (%p250) target = $region44
    $region43: #{resblock3d_forward.1} parent=5 // pred_region
      // Predicated region
      $region45: #{resblock3d_forward.1} parent=43 // pred_check
        %p253 = pneg %p34
      $region46: #{resblock3d_forward.1} parent=43 // pred_check_branch
        %255 = sbr.rel (%p253) target = $region48
      $region47: #{resblock3d_forward.1} parent=43 // pred_region
        %p256 = scmp.lt.s32.totalorder %s14, 1
        %s257 = scalar_select %p256, %s14, 1
        %s258 = smul.addr %s257, 2
        %s259 = smul.addr %s258, 8
        %s260 = scalar_lea.vmem %s0, %s259
      $region48: #{resblock3d_forward.1} parent=43 // pred_fallthru
        _
    $region44: #{resblock3d_forward.1} parent=5 // pred_fallthru
      _
    %p261 = scmp.le.s32.totalorder 1, %s14
    %p262 = scmp.lt.s32.totalorder %s14, 3
    %p263 = pnand %p261, %p262
    %p264 = pneg %p263
    // Predicated region
    $region49: #{resblock3d_forward.1} parent=5 // pred_check
      _
    $region50: #{resblock3d_forward.1} parent=5 // pred_check_branch
      %266 = sbr.rel (%p263) target = $region52
    $region51: #{resblock3d_forward.1} parent=5 // pred_region
      %s267 = ssub.s32 %s14, 1
      %p268 = scmp.lt.s32.totalorder %s19, 1
      %s269 = scalar_select %p268, %s19, 1
      %s270 = smul.addr %s269, 2
      %s271 = smul.addr %s270, 8
      %s272 = scalar_lea.vmem %s0, %s271
      %p273 = pneg %p40
      %p274 = pneg %p37
      %p275 = pneg %p61
      %p276 = pneg %p58
      %p277 = pneg %p82
      %p278 = pneg %p79
      %p279 = pneg %p103
      %p280 = pneg %p100
      %p281 = pneg %p124
      %p282 = pneg %p121
      %p283 = pneg %p145
      %p284 = pneg %p142
      %p285 = pneg %p166
      %p286 = pneg %p163
      %p287 = pneg %p187
      %p288 = pneg %p184
      %p289 = pneg %p213
      %p290 = pneg %p210
      %p291 = scmp.lt.s32.totalorder %s19, 1
      %s292 = scalar_select %p291, %s19, 1
      %s293 = smul.addr %s292, 2
      %s294 = smul.addr %s293, 8
      %s295 = scalar_lea.vmem %s8, %s294
      %p296 = scmp.lt.s32.totalorder %s19, 1
      %s297 = scalar_select %p296, %s19, 1
      %s298 = smul.addr %s297, 2
      %s299 = smul.addr %s298, 8
      %s300 = scalar_lea.vmem %s0, %s299
      %p301 = scmp.lt.s32.totalorder %s19, 1
      %s302 = scalar_select %p301, %s19, 1
      %s303 = smul.addr %s302, 2
      %s304 = smul.addr %s303, 8
      %s305 = scalar_lea.vmem %s8, %s304
      %v306 = vld [vmem:[%s300] sm:$0xff]
      %v307 = vld [vmem:[%s300 + $0x8] sm:$0xff]
      %308 = vrot.lane.b32.xlu0 %v306, 73
      %v309 = vpop.permute.xlu0 %308
      %310 = vrot.lane.b32.xlu0 %v307, 73
      %v311 = vpop.permute.xlu0 %310
      %v312 = vlaneseq
      %v313 = vand.u32 %v312, 127
      %vm314 = vcmp.lt.s32.totalorder %v313, 73
      %v315 = vsel %vm314, %v309, %v311
      %v316 = vsel %vm314, %v311, %v309
      %v317 = vld [vmem:[%s1] ss:$8 sm:$0x3]
      %v319 = vlaneseq
      %v320 = vshrl.u32 %v319, 7
      %v321 = vsub.s32 0, %v320
      %v322 = vrot.slane %v317, %v321
      %v323 = vlaneseq
      %v324 = vshrl.u32 %v323, 7
      %v325 = vsub.s32 1, %v324
      %v326 = vrot.slane %v317, %v325
      %v329 = vmul.f32 %v316, %v322
      %v330 = vmul.f32 %v315, %v326
      %331 = vrot.lane.b32.xlu0 %v306, 72
      %v332 = vpop.permute.xlu0 %331
      %333 = vrot.lane.b32.xlu0 %v307, 72
      %v334 = vpop.permute.xlu0 %333
      %vm335 = vcmp.lt.s32.totalorder %v313, 72
      %v336 = vsel %vm335, %v332, %v334
      %v337 = vsel %vm335, %v334, %v332
      %s338 = scalar_lea.vmem %s1, 1
      %v339 = vld [vmem:[%s338] ss:$8 sm:$0x3]
      %v341 = vlaneseq
      %v342 = vshrl.u32 %v341, 7
      %v343 = vsub.s32 0, %v342
      %v344 = vrot.slane %v339, %v343
      %v345 = vlaneseq
      %v346 = vshrl.u32 %v345, 7
      %v347 = vsub.s32 1, %v346
      %v348 = vrot.slane %v339, %v347
      %v351 = vmul.f32 %v337, %v344
      %v352 = vmul.f32 %v336, %v348
      %353 = vrot.lane.b32.xlu0 %v306, 71
      %v354 = vpop.permute.xlu0 %353
      %355 = vrot.lane.b32.xlu0 %v307, 71
      %v356 = vpop.permute.xlu0 %355
      %vm357 = vcmp.lt.s32.totalorder %v313, 71
      %v358 = vsel %vm357, %v354, %v356
      %v359 = vsel %vm357, %v356, %v354
      %s360 = scalar_lea.vmem %s1, 2
      %v361 = vld [vmem:[%s360] ss:$8 sm:$0x3]
      %v363 = vlaneseq
      %v364 = vshrl.u32 %v363, 7
      %v365 = vsub.s32 0, %v364
      %v366 = vrot.slane %v361, %v365
      %v367 = vlaneseq
      %v368 = vshrl.u32 %v367, 7
      %v369 = vsub.s32 1, %v368
      %v370 = vrot.slane %v361, %v369
      %v373 = vmul.f32 %v359, %v366
      %v374 = vmul.f32 %v358, %v370
      %375 = vrot.lane.b32.xlu0 %v306, 65
      %v376 = vpop.permute.xlu0 %375
      %377 = vrot.lane.b32.xlu0 %v307, 65
      %v378 = vpop.permute.xlu0 %377
      %vm379 = vcmp.lt.s32.totalorder %v313, 65
      %v380 = vsel %vm379, %v376, %v378
      %v381 = vsel %vm379, %v378, %v376
      %s382 = scalar_lea.vmem %s1, 3
      %v383 = vld [vmem:[%s382] ss:$8 sm:$0x3]
      %v385 = vlaneseq
      %v386 = vshrl.u32 %v385, 7
      %v387 = vsub.s32 0, %v386
      %v388 = vrot.slane %v383, %v387
      %v389 = vlaneseq
      %v390 = vshrl.u32 %v389, 7
      %v391 = vsub.s32 1, %v390
      %v392 = vrot.slane %v383, %v391
      %v395 = vmul.f32 %v381, %v388
      %v396 = vmul.f32 %v380, %v392
      %397 = vrot.lane.b32.xlu0 %v306, 64
      %v398 = vpop.permute.xlu0 %397
      %399 = vrot.lane.b32.xlu0 %v307, 64
      %v400 = vpop.permute.xlu0 %399
      %vm401 = vcmp.lt.s32.totalorder %v313, 64
      %v402 = vsel %vm401, %v398, %v400
      %v403 = vsel %vm401, %v400, %v398
      %s404 = scalar_lea.vmem %s1, 4
      %v405 = vld [vmem:[%s404] ss:$8 sm:$0x3]
      %v407 = vlaneseq
      %v408 = vshrl.u32 %v407, 7
      %v409 = vsub.s32 0, %v408
      %v410 = vrot.slane %v405, %v409
      %v411 = vlaneseq
      %v412 = vshrl.u32 %v411, 7
      %v413 = vsub.s32 1, %v412
      %v414 = vrot.slane %v405, %v413
      %v417 = vmul.f32 %v403, %v410
      %v418 = vmul.f32 %v402, %v414
      %419 = vrot.lane.b32.xlu0 %v306, 63
      %v420 = vpop.permute.xlu0 %419
      %421 = vrot.lane.b32.xlu0 %v307, 63
      %v422 = vpop.permute.xlu0 %421
      %vm423 = vcmp.lt.s32.totalorder %v313, 63
      %v424 = vsel %vm423, %v420, %v422
      %v425 = vsel %vm423, %v422, %v420
      %s426 = scalar_lea.vmem %s1, 5
      %v427 = vld [vmem:[%s426] ss:$8 sm:$0x3]
      %v429 = vlaneseq
      %v430 = vshrl.u32 %v429, 7
      %v431 = vsub.s32 0, %v430
      %v432 = vrot.slane %v427, %v431
      %v433 = vlaneseq
      %v434 = vshrl.u32 %v433, 7
      %v435 = vsub.s32 1, %v434
      %v436 = vrot.slane %v427, %v435
      %v439 = vmul.f32 %v425, %v432
      %v440 = vmul.f32 %v424, %v436
      %441 = vrot.lane.b32.xlu0 %v306, 57
      %v442 = vpop.permute.xlu0 %441
      %443 = vrot.lane.b32.xlu0 %v307, 57
      %v444 = vpop.permute.xlu0 %443
      %vm445 = vcmp.lt.s32.totalorder %v313, 57
      %v446 = vsel %vm445, %v442, %v444
      %v447 = vsel %vm445, %v444, %v442
      %s448 = scalar_lea.vmem %s1, 6
      %v449 = vld [vmem:[%s448] ss:$8 sm:$0x3]
      %v451 = vlaneseq
      %v452 = vshrl.u32 %v451, 7
      %v453 = vsub.s32 0, %v452
      %v454 = vrot.slane %v449, %v453
      %v455 = vlaneseq
      %v456 = vshrl.u32 %v455, 7
      %v457 = vsub.s32 1, %v456
      %v458 = vrot.slane %v449, %v457
      %v461 = vmul.f32 %v447, %v454
      %v462 = vmul.f32 %v446, %v458
      %463 = vrot.lane.b32.xlu0 %v306, 56
      %v464 = vpop.permute.xlu0 %463
      %465 = vrot.lane.b32.xlu0 %v307, 56
      %v466 = vpop.permute.xlu0 %465
      %vm467 = vcmp.lt.s32.totalorder %v313, 56
      %v468 = vsel %vm467, %v464, %v466
      %v469 = vsel %vm467, %v466, %v464
      %s470 = scalar_lea.vmem %s1, 7
      %v471 = vld [vmem:[%s470] ss:$8 sm:$0x3]
      %v473 = vlaneseq
      %v474 = vshrl.u32 %v473, 7
      %v475 = vsub.s32 0, %v474
      %v476 = vrot.slane %v471, %v475
      %v477 = vlaneseq
      %v478 = vshrl.u32 %v477, 7
      %v479 = vsub.s32 1, %v478
      %v480 = vrot.slane %v471, %v479
      %v483 = vmul.f32 %v469, %v476
      %v484 = vmul.f32 %v468, %v480
      %485 = vrot.lane.b32.xlu0 %v306, 55
      %v486 = vpop.permute.xlu0 %485
      %487 = vrot.lane.b32.xlu0 %v307, 55
      %v488 = vpop.permute.xlu0 %487
      %vm489 = vcmp.lt.s32.totalorder %v313, 55
      %v490 = vsel %vm489, %v486, %v488
      %v491 = vsel %vm489, %v488, %v486
      %s492 = scalar_lea.vmem %s1, 16
      %v493 = vld [vmem:[%s492] ss:$8 sm:$0x3]
      %v495 = vlaneseq
      %v496 = vshrl.u32 %v495, 7
      %v497 = vsub.s32 0, %v496
      %v498 = vrot.slane %v493, %v497
      %v499 = vlaneseq
      %v500 = vshrl.u32 %v499, 7
      %v501 = vsub.s32 1, %v500
      %v502 = vrot.slane %v493, %v501
      %v505 = vmul.f32 %v491, %v498
      %v506 = vmul.f32 %v490, %v502
      %507 = vrot.lane.b32.xlu0 %v306, 9
      %v508 = vpop.permute.xlu0 %507
      %509 = vrot.lane.b32.xlu0 %v307, 9
      %v510 = vpop.permute.xlu0 %509
      %vm511 = vcmp.lt.s32.totalorder %v313, 9
      %v512 = vsel %vm511, %v508, %v510
      %v513 = vsel %vm511, %v510, %v508
      %s514 = scalar_lea.vmem %s1, 17
      %v515 = vld [vmem:[%s514] ss:$8 sm:$0x3]
      %v517 = vlaneseq
      %v518 = vshrl.u32 %v517, 7
      %v519 = vsub.s32 0, %v518
      %v520 = vrot.slane %v515, %v519
      %v521 = vlaneseq
      %v522 = vshrl.u32 %v521, 7
      %v523 = vsub.s32 1, %v522
      %v524 = vrot.slane %v515, %v523
      %v527 = vmul.f32 %v513, %v520
      %v528 = vmul.f32 %v512, %v524
      %529 = vrot.lane.b32.xlu0 %v306, 8
      %v530 = vpop.permute.xlu0 %529
      %531 = vrot.lane.b32.xlu0 %v307, 8
      %v532 = vpop.permute.xlu0 %531
      %vm533 = vcmp.lt.s32.totalorder %v313, 8
      %v534 = vsel %vm533, %v530, %v532
      %v535 = vsel %vm533, %v532, %v530
      %s536 = scalar_lea.vmem %s1, 18
      %v537 = vld [vmem:[%s536] ss:$8 sm:$0x3]
      %v539 = vlaneseq
      %v540 = vshrl.u32 %v539, 7
      %v541 = vsub.s32 0, %v540
      %v542 = vrot.slane %v537, %v541
      %v543 = vlaneseq
      %v544 = vshrl.u32 %v543, 7
      %v545 = vsub.s32 1, %v544
      %v546 = vrot.slane %v537, %v545
      %v549 = vmul.f32 %v535, %v542
      %v550 = vmul.f32 %v534, %v546
      %551 = vrot.lane.b32.xlu0 %v306, 7
      %v552 = vpop.permute.xlu0 %551
      %553 = vrot.lane.b32.xlu0 %v307, 7
      %v554 = vpop.permute.xlu0 %553
      %vm555 = vcmp.lt.s32.totalorder %v313, 7
      %v556 = vsel %vm555, %v552, %v554
      %v557 = vsel %vm555, %v554, %v552
      %s558 = scalar_lea.vmem %s1, 19
      %v559 = vld [vmem:[%s558] ss:$8 sm:$0x3]
      %v561 = vlaneseq
      %v562 = vshrl.u32 %v561, 7
      %v563 = vsub.s32 0, %v562
      %v564 = vrot.slane %v559, %v563
      %v565 = vlaneseq
      %v566 = vshrl.u32 %v565, 7
      %v567 = vsub.s32 1, %v566
      %v568 = vrot.slane %v559, %v567
      %v571 = vmul.f32 %v557, %v564
      %v572 = vmul.f32 %v556, %v568
      %573 = vrot.lane.b32.xlu0 %v306, 1
      %v574 = vpop.permute.xlu0 %573
      %575 = vrot.lane.b32.xlu0 %v307, 1
      %v576 = vpop.permute.xlu0 %575
      %vm577 = vcmp.lt.s32.totalorder %v313, 1
      %v578 = vsel %vm577, %v574, %v576
      %v579 = vsel %vm577, %v576, %v574
      %s580 = scalar_lea.vmem %s1, 20
      %v581 = vld [vmem:[%s580] ss:$8 sm:$0x3]
      %v583 = vlaneseq
      %v584 = vshrl.u32 %v583, 7
      %v585 = vsub.s32 0, %v584
      %v586 = vrot.slane %v581, %v585
      %v587 = vlaneseq
      %v588 = vshrl.u32 %v587, 7
      %v589 = vsub.s32 1, %v588
      %v590 = vrot.slane %v581, %v589
      %v593 = vmul.f32 %v579, %v586
      %v594 = vmul.f32 %v578, %v590
      %s595 = scalar_lea.vmem %s1, 21
      %v596 = vld [vmem:[%s595] ss:$8 sm:$0x3]
      %v598 = vlaneseq
      %v599 = vshrl.u32 %v598, 7
      %v600 = vsub.s32 0, %v599
      %v601 = vrot.slane %v596, %v600
      %v602 = vlaneseq
      %v603 = vshrl.u32 %v602, 7
      %v604 = vsub.s32 1, %v603
      %v605 = vrot.slane %v596, %v604
      %v608 = vmul.f32 %v306, %v601
      %v609 = vmul.f32 %v307, %v605
      %610 = vrot.lane.b32.xlu0 %v306, 127
      %v611 = vpop.permute.xlu0 %610
      %612 = vrot.lane.b32.xlu0 %v307, 127
      %v613 = vpop.permute.xlu0 %612
      %vm614 = vcmp.lt.s32.totalorder %v313, 127
      %v615 = vsel %vm614, %v611, %v613
      %v616 = vsel %vm614, %v613, %v611
      %s617 = scalar_lea.vmem %s1, 22
      %v618 = vld [vmem:[%s617] ss:$8 sm:$0x3]
      %v620 = vlaneseq
      %v621 = vshrl.u32 %v620, 7
      %v622 = vsub.s32 0, %v621
      %v623 = vrot.slane %v618, %v622
      %v624 = vlaneseq
      %v625 = vshrl.u32 %v624, 7
      %v626 = vsub.s32 1, %v625
      %v627 = vrot.slane %v618, %v626
      %v630 = vmul.f32 %v615, %v623
      %v631 = vmul.f32 %v616, %v627
      %632 = vrot.lane.b32.xlu0 %v306, 121
      %v633 = vpop.permute.xlu0 %632
      %634 = vrot.lane.b32.xlu0 %v307, 121
      %v635 = vpop.permute.xlu0 %634
      %vm636 = vcmp.lt.s32.totalorder %v313, 121
      %v637 = vsel %vm636, %v633, %v635
      %v638 = vsel %vm636, %v635, %v633
      %s639 = scalar_lea.vmem %s1, 23
      %v640 = vld [vmem:[%s639] ss:$8 sm:$0x3]
      %v642 = vlaneseq
      %v643 = vshrl.u32 %v642, 7
      %v644 = vsub.s32 0, %v643
      %v645 = vrot.slane %v640, %v644
      %v646 = vlaneseq
      %v647 = vshrl.u32 %v646, 7
      %v648 = vsub.s32 1, %v647
      %v649 = vrot.slane %v640, %v648
      %v652 = vmul.f32 %v637, %v645
      %v653 = vmul.f32 %v638, %v649
      %654 = vrot.lane.b32.xlu0 %v306, 120
      %v655 = vpop.permute.xlu0 %654
      %656 = vrot.lane.b32.xlu0 %v307, 120
      %v657 = vpop.permute.xlu0 %656
      %vm658 = vcmp.lt.s32.totalorder %v313, 120
      %v659 = vsel %vm658, %v655, %v657
      %v660 = vsel %vm658, %v657, %v655
      %s661 = scalar_lea.vmem %s1, 32
      %v662 = vld [vmem:[%s661] ss:$8 sm:$0x3]
      %v664 = vlaneseq
      %v665 = vshrl.u32 %v664, 7
      %v666 = vsub.s32 0, %v665
      %v667 = vrot.slane %v662, %v666
      %v668 = vlaneseq
      %v669 = vshrl.u32 %v668, 7
      %v670 = vsub.s32 1, %v669
      %v671 = vrot.slane %v662, %v670
      %v674 = vmul.f32 %v659, %v667
      %v675 = vmul.f32 %v660, %v671
      %676 = vrot.lane.b32.xlu0 %v306, 119
      %v677 = vpop.permute.xlu0 %676
      %678 = vrot.lane.b32.xlu0 %v307, 119
      %v679 = vpop.permute.xlu0 %678
      %vm680 = vcmp.lt.s32.totalorder %v313, 119
      %v681 = vsel %vm680, %v677, %v679
      %v682 = vsel %vm680, %v679, %v677
      %s683 = scalar_lea.vmem %s1, 33
      %v684 = vld [vmem:[%s683] ss:$8 sm:$0x3]
      %v686 = vlaneseq
      %v687 = vshrl.u32 %v686, 7
      %v688 = vsub.s32 0, %v687
      %v689 = vrot.slane %v684, %v688
      %v690 = vlaneseq
      %v691 = vshrl.u32 %v690, 7
      %v692 = vsub.s32 1, %v691
      %v693 = vrot.slane %v684, %v692
      %v696 = vmul.f32 %v681, %v689
      %v697 = vmul.f32 %v682, %v693
      %s698 = scalar_lea.vmem %s1, 34
      %v699 = vld [vmem:[%s698] ss:$8 sm:$0x3]
      %v701 = vlaneseq
      %v702 = vshrl.u32 %v701, 7
      %v703 = vsub.s32 0, %v702
      %v704 = vrot.slane %v699, %v703
      %v705 = vlaneseq
      %v706 = vshrl.u32 %v705, 7
      %v707 = vsub.s32 1, %v706
      %v708 = vrot.slane %v699, %v707
      %v711 = vmul.f32 %v315, %v704
      %v712 = vmul.f32 %v316, %v708
      %s713 = scalar_lea.vmem %s1, 35
      %v714 = vld [vmem:[%s713] ss:$8 sm:$0x3]
      %v716 = vlaneseq
      %v717 = vshrl.u32 %v716, 7
      %v718 = vsub.s32 0, %v717
      %v719 = vrot.slane %v714, %v718
      %v720 = vlaneseq
      %v721 = vshrl.u32 %v720, 7
      %v722 = vsub.s32 1, %v721
      %v723 = vrot.slane %v714, %v722
      %v726 = vmul.f32 %v336, %v719
      %v727 = vmul.f32 %v337, %v723
      %s728 = scalar_lea.vmem %s1, 36
      %v729 = vld [vmem:[%s728] ss:$8 sm:$0x3]
      %v731 = vlaneseq
      %v732 = vshrl.u32 %v731, 7
      %v733 = vsub.s32 0, %v732
      %v734 = vrot.slane %v729, %v733
      %v735 = vlaneseq
      %v736 = vshrl.u32 %v735, 7
      %v737 = vsub.s32 1, %v736
      %v738 = vrot.slane %v729, %v737
      %v741 = vmul.f32 %v358, %v734
      %v742 = vmul.f32 %v359, %v738
      %s743 = scalar_lea.vmem %s1, 37
      %v744 = vld [vmem:[%s743] ss:$8 sm:$0x3]
      %v746 = vlaneseq
      %v747 = vshrl.u32 %v746, 7
      %v748 = vsub.s32 0, %v747
      %v749 = vrot.slane %v744, %v748
      %v750 = vlaneseq
      %v751 = vshrl.u32 %v750, 7
      %v752 = vsub.s32 1, %v751
      %v753 = vrot.slane %v744, %v752
      %v756 = vmul.f32 %v380, %v749
      %v757 = vmul.f32 %v381, %v753
      %s758 = scalar_lea.vmem %s1, 38
      %v759 = vld [vmem:[%s758] ss:$8 sm:$0x3]
      %v761 = vlaneseq
      %v762 = vshrl.u32 %v761, 7
      %v763 = vsub.s32 0, %v762
      %v764 = vrot.slane %v759, %v763
      %v765 = vlaneseq
      %v766 = vshrl.u32 %v765, 7
      %v767 = vsub.s32 1, %v766
      %v768 = vrot.slane %v759, %v767
      %v771 = vmul.f32 %v402, %v764
      %v772 = vmul.f32 %v403, %v768
      %s773 = scalar_lea.vmem %s1, 39
      %v774 = vld [vmem:[%s773] ss:$8 sm:$0x3]
      %v776 = vlaneseq
      %v777 = vshrl.u32 %v776, 7
      %v778 = vsub.s32 0, %v777
      %v779 = vrot.slane %v774, %v778
      %v780 = vlaneseq
      %v781 = vshrl.u32 %v780, 7
      %v782 = vsub.s32 1, %v781
      %v783 = vrot.slane %v774, %v782
      %v786 = vmul.f32 %v424, %v779
      %v787 = vmul.f32 %v425, %v783
      %s788 = scalar_lea.vmem %s1, 48
      %v789 = vld [vmem:[%s788] ss:$8 sm:$0x3]
      %v791 = vlaneseq
      %v792 = vshrl.u32 %v791, 7
      %v793 = vsub.s32 0, %v792
      %v794 = vrot.slane %v789, %v793
      %v795 = vlaneseq
      %v796 = vshrl.u32 %v795, 7
      %v797 = vsub.s32 1, %v796
      %v798 = vrot.slane %v789, %v797
      %v801 = vmul.f32 %v446, %v794
      %v802 = vmul.f32 %v447, %v798
      %s803 = scalar_lea.vmem %s1, 49
      %v804 = vld [vmem:[%s803] ss:$8 sm:$0x3]
      %v806 = vlaneseq
      %v807 = vshrl.u32 %v806, 7
      %v808 = vsub.s32 0, %v807
      %v809 = vrot.slane %v804, %v808
      %v810 = vlaneseq
      %v811 = vshrl.u32 %v810, 7
      %v812 = vsub.s32 1, %v811
      %v813 = vrot.slane %v804, %v812
      %v816 = vmul.f32 %v468, %v809
      %v817 = vmul.f32 %v469, %v813
      %s818 = scalar_lea.vmem %s1, 50
      %v819 = vld [vmem:[%s818] ss:$8 sm:$0x3]
      %v821 = vlaneseq
      %v822 = vshrl.u32 %v821, 7
      %v823 = vsub.s32 0, %v822
      %v824 = vrot.slane %v819, %v823
      %v825 = vlaneseq
      %v826 = vshrl.u32 %v825, 7
      %v827 = vsub.s32 1, %v826
      %v828 = vrot.slane %v819, %v827
      %v831 = vmul.f32 %v490, %v824
      %v832 = vmul.f32 %v491, %v828
      %v833 = vld [vmem:[%s2] sm:$0xff]
      %v834 = vld [vmem:[%s2 + $0x8] sm:$0xff]
      %v835 = vld [vmem:[%s3] sm:$0xff]
      %837 = vset.pattern.permute.xlu0 0
      %838 = vperm.xlu0 %837, %v835
      %v839 = vpop.permute.xlu0 %838
      %vm841 = vcmask 719872
      %v843 = vsel %vm841, %v834, 0
      %845 = vmatprep.subr.mxu0 %v330
      %846 = vmatpush1.msra.mxu0 %v329
      %847 = vmatprep.subr.mxu0 %v352
      %848 = vmatpush1.msra.mxu0 %v351
      %849 = vmatprep.subr.mxu0 %v374
      %850 = vmatpush1.msra.mxu0 %v373
      %851 = vmatprep.subr.mxu0 %v396
      %852 = vmatpush1.msra.mxu0 %v395
      %853 = vmatprep.subr.mxu0 %v418
      %854 = vmatpush1.msra.mxu0 %v417
      %855 = vmatprep.subr.mxu0 %v440
      %856 = vmatpush1.msra.mxu0 %v439
      %857 = vmatprep.subr.mxu0 %v462
      %858 = vmatpush1.msra.mxu0 %v461
      %859 = vmatprep.subr.mxu0 %v484
      %860 = vmatpush1.msra.mxu0 %v483
      %861 = vmatprep.subr.mxu0 %v506
      %862 = vmatpush1.msra.mxu0 %v505
      %863 = vmatprep.subr.mxu0 %v528
      %864 = vmatpush1.msra.mxu0 %v527
      %865 = vmatprep.subr.mxu0 %v550
      %866 = vmatpush1.msra.mxu0 %v549
      %867 = vmatprep.subr.mxu0 %v572
      %868 = vmatpush1.msra.mxu0 %v571
      %869 = vmatprep.subr.mxu0 %v594
      %870 = vmatpush1.msra.mxu0 %v593
      %871 = vmatprep.subr.mxu0 %v609
      %872 = vmatpush1.msra.mxu0 %v608
      %873 = vmatprep.subr.mxu0 %v631
      %874 = vmatpush1.msra.mxu0 %v630
      %875 = vmatprep.subr.mxu0 %v653
      %876 = vmatpush1.msra.mxu0 %v652
      %877 = vmatprep.subr.mxu0 %v675
      %878 = vmatpush1.msra.mxu0 %v674
      %879 = vmatprep.subr.mxu0 %v697
      %880 = vmatpush1.msra.mxu0 %v696
      %881 = vmatprep.subr.mxu0 %v712
      %882 = vmatpush1.msra.mxu0 %v711
      %883 = vmatprep.subr.mxu0 %v727
      %884 = vmatpush1.msra.mxu0 %v726
      %885 = vmatprep.subr.mxu0 %v742
      %886 = vmatpush1.msra.mxu0 %v741
      %887 = vmatprep.subr.mxu0 %v757
      %888 = vmatpush1.msra.mxu0 %v756
      %889 = vmatprep.subr.mxu0 %v772
      %890 = vmatpush1.msra.mxu0 %v771
      %891 = vmatprep.subr.mxu0 %v787
      %892 = vmatpush1.msra.mxu0 %v786
      %893 = vmatprep.subr.mxu0 %v802
      %894 = vmatpush1.msra.mxu0 %v801
      %895 = vmatprep.subr.mxu0 %v817
      %896 = vmatpush1.msra.mxu0 %v816
      %897 = vmatprep.subr.mxu0 %v832
      %898 = vmatpush1.msra.mxu0 %v831
      %899 = vmatprep.subr.mxu0 0.0
      %900 = vmatpush1.msra.mxu0 0.0
      %901 = vmatprep.subr.mxu0 0.0
      %902 = vmatpush1.msra.mxu0 0.0
      %903 = vmatprep.subr.mxu0 0.0
      %904 = vmatpush1.msra.mxu0 0.0
      %905 = vmatprep.subr.mxu0 0.0
      %906 = vmatpush1.msra.mxu0 0.0
      %907 = vmatprep.subr.mxu0 0.0
      %908 = vmatpush1.msra.mxu0 0.0
      %909 = vmatprep.mubr.f32.mxu0 %v843
      %910 = vmatmul.mubr.f32.gmra.mrb[0].mxu0 %v833
      %v911 = vpop.f32.mrb[0].mxu0
      %v912 = vadd.f32 %v839, %v911
      %v913 = vpop.f32.mrb[0].mxu0
      %v914 = vadd.f32 %v839, %v913
      %915 = vdwg.mxu0
      %vm916 = vcmp.ge.f32.partialorder %v912, 0.0
      %vm917 = vcmp.ge.f32.partialorder %v914, 0.0
      %v918 = vmul.f32 %v912, 0.1
      %v919 = vmul.f32 %v914, 0.1
      %v920 = vsel %vm916, %v912, %v918
      %v921 = vsel %vm917, %v914, %v919
      %922 = vrot.lane.b32.xlu0 %v920, 73
      %v923 = vpop.permute.xlu0 %922
      %924 = vrot.lane.b32.xlu0 %v921, 73
      %v925 = vpop.permute.xlu0 %924
      %v926 = vsel %vm314, %v923, %v925
      %v927 = vsel %vm314, %v925, %v923
      %v928 = vmul.f32 %v927, %v322
      %v929 = vmul.f32 %v926, %v326
      %930 = vrot.lane.b32.xlu0 %v920, 72
      %v931 = vpop.permute.xlu0 %930
      %932 = vrot.lane.b32.xlu0 %v921, 72
      %v933 = vpop.permute.xlu0 %932
      %v934 = vsel %vm335, %v931, %v933
      %v935 = vsel %vm335, %v933, %v931
      %v936 = vmul.f32 %v935, %v344
      %v937 = vmul.f32 %v934, %v348
      %938 = vrot.lane.b32.xlu0 %v920, 71
      %v939 = vpop.permute.xlu0 %938
      %940 = vrot.lane.b32.xlu0 %v921, 71
      %v941 = vpop.permute.xlu0 %940
      %v942 = vsel %vm357, %v939, %v941
      %v943 = vsel %vm357, %v941, %v939
      %v944 = vmul.f32 %v943, %v366
      %v945 = vmul.f32 %v942, %v370
      %946 = vrot.lane.b32.xlu0 %v920, 65
      %v947 = vpop.permute.xlu0 %946
      %948 = vrot.lane.b32.xlu0 %v921, 65
      %v949 = vpop.permute.xlu0 %948
      %v950 = vsel %vm379, %v947, %v949
      %v951 = vsel %vm379, %v949, %v947
      %v952 = vmul.f32 %v951, %v388
      %v953 = vmul.f32 %v950, %v392
      %954 = vrot.lane.b32.xlu0 %v920, 64
      %v955 = vpop.permute.xlu0 %954
      %956 = vrot.lane.b32.xlu0 %v921, 64
      %v957 = vpop.permute.xlu0 %956
      %v958 = vsel %vm401, %v955, %v957
      %v959 = vsel %vm401, %v957, %v955
      %v960 = vmul.f32 %v959, %v410
      %v961 = vmul.f32 %v958, %v414
      %962 = vrot.lane.b32.xlu0 %v920, 63
      %v963 = vpop.permute.xlu0 %962
      %964 = vrot.lane.b32.xlu0 %v921, 63
      %v965 = vpop.permute.xlu0 %964
      %v966 = vsel %vm423, %v963, %v965
      %v967 = vsel %vm423, %v965, %v963
      %v968 = vmul.f32 %v967, %v432
      %v969 = vmul.f32 %v966, %v436
      %970 = vrot.lane.b32.xlu0 %v920, 57
      %v971 = vpop.permute.xlu0 %970
      %972 = vrot.lane.b32.xlu0 %v921, 57
      %v973 = vpop.permute.xlu0 %972
      %v974 = vsel %vm445, %v971, %v973
      %v975 = vsel %vm445, %v973, %v971
      %v976 = vmul.f32 %v975, %v454
      %v977 = vmul.f32 %v974, %v458
      %978 = vrot.lane.b32.xlu0 %v920, 56
      %v979 = vpop.permute.xlu0 %978
      %980 = vrot.lane.b32.xlu0 %v921, 56
      %v981 = vpop.permute.xlu0 %980
      %v982 = vsel %vm467, %v979, %v981
      %v983 = vsel %vm467, %v981, %v979
      %v984 = vmul.f32 %v983, %v476
      %v985 = vmul.f32 %v982, %v480
      %986 = vrot.lane.b32.xlu0 %v920, 55
      %v987 = vpop.permute.xlu0 %986
      %988 = vrot.lane.b32.xlu0 %v921, 55
      %v989 = vpop.permute.xlu0 %988
      %v990 = vsel %vm489, %v987, %v989
      %v991 = vsel %vm489, %v989, %v987
      %v992 = vmul.f32 %v991, %v498
      %v993 = vmul.f32 %v990, %v502
      %994 = vrot.lane.b32.xlu0 %v920, 9
      %v995 = vpop.permute.xlu0 %994
      %996 = vrot.lane.b32.xlu0 %v921, 9
      %v997 = vpop.permute.xlu0 %996
      %v998 = vsel %vm511, %v995, %v997
      %v999 = vsel %vm511, %v997, %v995
      %v1000 = vmul.f32 %v999, %v520
      %v1001 = vmul.f32 %v998, %v524
      %1002 = vrot.lane.b32.xlu0 %v920, 8
      %v1003 = vpop.permute.xlu0 %1002
      %1004 = vrot.lane.b32.xlu0 %v921, 8
      %v1005 = vpop.permute.xlu0 %1004
      %v1006 = vsel %vm533, %v1003, %v1005
      %v1007 = vsel %vm533, %v1005, %v1003
      %v1008 = vmul.f32 %v1007, %v542
      %v1009 = vmul.f32 %v1006, %v546
      %1010 = vrot.lane.b32.xlu0 %v920, 7
      %v1011 = vpop.permute.xlu0 %1010
      %1012 = vrot.lane.b32.xlu0 %v921, 7
      %v1013 = vpop.permute.xlu0 %1012
      %v1014 = vsel %vm555, %v1011, %v1013
      %v1015 = vsel %vm555, %v1013, %v1011
      %v1016 = vmul.f32 %v1015, %v564
      %v1017 = vmul.f32 %v1014, %v568
      %1018 = vrot.lane.b32.xlu0 %v920, 1
      %v1019 = vpop.permute.xlu0 %1018
      %1020 = vrot.lane.b32.xlu0 %v921, 1
      %v1021 = vpop.permute.xlu0 %1020
      %v1022 = vsel %vm577, %v1019, %v1021
      %v1023 = vsel %vm577, %v1021, %v1019
      %v1024 = vmul.f32 %v1023, %v586
      %v1025 = vmul.f32 %v1022, %v590
      %v1026 = vmul.f32 %v920, %v601
      %v1027 = vmul.f32 %v921, %v605
      %1028 = vrot.lane.b32.xlu0 %v920, 127
      %v1029 = vpop.permute.xlu0 %1028
      %1030 = vrot.lane.b32.xlu0 %v921, 127
      %v1031 = vpop.permute.xlu0 %1030
      %v1032 = vsel %vm614, %v1029, %v1031
      %v1033 = vsel %vm614, %v1031, %v1029
      %v1034 = vmul.f32 %v1032, %v623
      %v1035 = vmul.f32 %v1033, %v627
      %1036 = vrot.lane.b32.xlu0 %v920, 121
      %v1037 = vpop.permute.xlu0 %1036
      %1038 = vrot.lane.b32.xlu0 %v921, 121
      %v1039 = vpop.permute.xlu0 %1038
      %v1040 = vsel %vm636, %v1037, %v1039
      %v1041 = vsel %vm636, %v1039, %v1037
      %v1042 = vmul.f32 %v1040, %v645
      %v1043 = vmul.f32 %v1041, %v649
      %1044 = vrot.lane.b32.xlu0 %v920, 120
      %v1045 = vpop.permute.xlu0 %1044
      %1046 = vrot.lane.b32.xlu0 %v921, 120
      %v1047 = vpop.permute.xlu0 %1046
      %v1048 = vsel %vm658, %v1045, %v1047
      %v1049 = vsel %vm658, %v1047, %v1045
      %v1050 = vmul.f32 %v1048, %v667
      %v1051 = vmul.f32 %v1049, %v671
      %1052 = vrot.lane.b32.xlu0 %v920, 119
      %v1053 = vpop.permute.xlu0 %1052
      %1054 = vrot.lane.b32.xlu0 %v921, 119
      %v1055 = vpop.permute.xlu0 %1054
      %v1056 = vsel %vm680, %v1053, %v1055
      %v1057 = vsel %vm680, %v1055, %v1053
      %v1058 = vmul.f32 %v1056, %v689
      %v1059 = vmul.f32 %v1057, %v693
      %v1060 = vmul.f32 %v926, %v704
      %v1061 = vmul.f32 %v927, %v708
      %v1062 = vmul.f32 %v934, %v719
      %v1063 = vmul.f32 %v935, %v723
      %v1064 = vmul.f32 %v942, %v734
      %v1065 = vmul.f32 %v943, %v738
      %v1066 = vmul.f32 %v950, %v749
      %v1067 = vmul.f32 %v951, %v753
      %v1068 = vmul.f32 %v958, %v764
      %v1069 = vmul.f32 %v959, %v768
      %v1070 = vmul.f32 %v966, %v779
      %v1071 = vmul.f32 %v967, %v783
      %v1072 = vmul.f32 %v974, %v794
      %v1073 = vmul.f32 %v975, %v798
      %v1074 = vmul.f32 %v982, %v809
      %v1075 = vmul.f32 %v983, %v813
      %v1076 = vmul.f32 %v990, %v824
      %v1077 = vmul.f32 %v991, %v828
      %v1078 = vld [vmem:[%s4] sm:$0xff]
      %v1079 = vld [vmem:[%s4 + $0x8] sm:$0xff]
      %v1080 = vld [vmem:[%s5] sm:$0xff]
      %1082 = vset.pattern.permute.xlu0 0
      %1083 = vperm.xlu0 %1082, %v1080
      %v1084 = vpop.permute.xlu0 %1083
      %v1087 = vsel %vm841, %v1079, 0
      %1089 = vmatprep.subr.mxu0 %v929
      %1090 = vmatpush1.msra.mxu0 %v928
      %1091 = vmatprep.subr.mxu0 %v937
      %1092 = vmatpush1.msra.mxu0 %v936
      %1093 = vmatprep.subr.mxu0 %v945
      %1094 = vmatpush1.msra.mxu0 %v944
      %1095 = vmatprep.subr.mxu0 %v953
      %1096 = vmatpush1.msra.mxu0 %v952
      %1097 = vmatprep.subr.mxu0 %v961
      %1098 = vmatpush1.msra.mxu0 %v960
      %1099 = vmatprep.subr.mxu0 %v969
      %1100 = vmatpush1.msra.mxu0 %v968
      %1101 = vmatprep.subr.mxu0 %v977
      %1102 = vmatpush1.msra.mxu0 %v976
      %1103 = vmatprep.subr.mxu0 %v985
      %1104 = vmatpush1.msra.mxu0 %v984
      %1105 = vmatprep.subr.mxu0 %v993
      %1106 = vmatpush1.msra.mxu0 %v992
      %1107 = vmatprep.subr.mxu0 %v1001
      %1108 = vmatpush1.msra.mxu0 %v1000
      %1109 = vmatprep.subr.mxu0 %v1009
      %1110 = vmatpush1.msra.mxu0 %v1008
      %1111 = vmatprep.subr.mxu0 %v1017
      %1112 = vmatpush1.msra.mxu0 %v1016
      %1113 = vmatprep.subr.mxu0 %v1025
      %1114 = vmatpush1.msra.mxu0 %v1024
      %1115 = vmatprep.subr.mxu0 %v1027
      %1116 = vmatpush1.msra.mxu0 %v1026
      %1117 = vmatprep.subr.mxu0 %v1035
      %1118 = vmatpush1.msra.mxu0 %v1034
      %1119 = vmatprep.subr.mxu0 %v1043
      %1120 = vmatpush1.msra.mxu0 %v1042
      %1121 = vmatprep.subr.mxu0 %v1051
      %1122 = vmatpush1.msra.mxu0 %v1050
      %1123 = vmatprep.subr.mxu0 %v1059
      %1124 = vmatpush1.msra.mxu0 %v1058
      %1125 = vmatprep.subr.mxu0 %v1061
      %1126 = vmatpush1.msra.mxu0 %v1060
      %1127 = vmatprep.subr.mxu0 %v1063
      %1128 = vmatpush1.msra.mxu0 %v1062
      %1129 = vmatprep.subr.mxu0 %v1065
      %1130 = vmatpush1.msra.mxu0 %v1064
      %1131 = vmatprep.subr.mxu0 %v1067
      %1132 = vmatpush1.msra.mxu0 %v1066
      %1133 = vmatprep.subr.mxu0 %v1069
      %1134 = vmatpush1.msra.mxu0 %v1068
      %1135 = vmatprep.subr.mxu0 %v1071
      %1136 = vmatpush1.msra.mxu0 %v1070
      %1137 = vmatprep.subr.mxu0 %v1073
      %1138 = vmatpush1.msra.mxu0 %v1072
      %1139 = vmatprep.subr.mxu0 %v1075
      %1140 = vmatpush1.msra.mxu0 %v1074
      %1141 = vmatprep.subr.mxu0 %v1077
      %1142 = vmatpush1.msra.mxu0 %v1076
      %1143 = vmatprep.subr.mxu0 0.0
      %1144 = vmatpush1.msra.mxu0 0.0
      %1145 = vmatprep.subr.mxu0 0.0
      %1146 = vmatpush1.msra.mxu0 0.0
      %1147 = vmatprep.subr.mxu0 0.0
      %1148 = vmatpush1.msra.mxu0 0.0
      %1149 = vmatprep.subr.mxu0 0.0
      %1150 = vmatpush1.msra.mxu0 0.0
      %1151 = vmatprep.subr.mxu0 0.0
      %1152 = vmatpush1.msra.mxu0 0.0
      %1153 = vmatprep.mubr.f32.mxu0 %v1087
      %1154 = vmatmul.mubr.f32.gmra.mrb[0].mxu0 %v1078
      %v1155 = vpop.f32.mrb[0].mxu0
      %v1156 = vadd.f32 %v1084, %v1155
      %v1157 = vpop.f32.mrb[0].mxu0
      %v1158 = vadd.f32 %v1084, %v1157
      %1159 = vdwg.mxu0
      %vm1160 = vcmp.ge.f32.partialorder %v1156, 0.0
      %vm1161 = vcmp.ge.f32.partialorder %v1158, 0.0
      %v1162 = vmul.f32 %v1156, 0.1
      %v1163 = vmul.f32 %v1158, 0.1
      %v1164 = vsel %vm1160, %v1156, %v1162
      %v1165 = vsel %vm1161, %v1158, %v1163
      %1166 = vrot.lane.b32.xlu0 %v1164, 73
      %v1167 = vpop.permute.xlu0 %1166
      %1168 = vrot.lane.b32.xlu0 %v1165, 73
      %v1169 = vpop.permute.xlu0 %1168
      %v1170 = vsel %vm314, %v1167, %v1169
      %v1171 = vsel %vm314, %v1169, %v1167
      %v1172 = vmul.f32 %v1171, %v322
      %v1173 = vmul.f32 %v1170, %v326
      %1174 = vrot.lane.b32.xlu0 %v1164, 72
      %v1175 = vpop.permute.xlu0 %1174
      %1176 = vrot.lane.b32.xlu0 %v1165, 72
      %v1177 = vpop.permute.xlu0 %1176
      %v1178 = vsel %vm335, %v1175, %v1177
      %v1179 = vsel %vm335, %v1177, %v1175
      %v1180 = vmul.f32 %v1179, %v344
      %v1181 = vmul.f32 %v1178, %v348
      %1182 = vrot.lane.b32.xlu0 %v1164, 71
      %v1183 = vpop.permute.xlu0 %1182
      %1184 = vrot.lane.b32.xlu0 %v1165, 71
      %v1185 = vpop.permute.xlu0 %1184
      %v1186 = vsel %vm357, %v1183, %v1185
      %v1187 = vsel %vm357, %v1185, %v1183
      %v1188 = vmul.f32 %v1187, %v366
      %v1189 = vmul.f32 %v1186, %v370
      %1190 = vrot.lane.b32.xlu0 %v1164, 65
      %v1191 = vpop.permute.xlu0 %1190
      %1192 = vrot.lane.b32.xlu0 %v1165, 65
      %v1193 = vpop.permute.xlu0 %1192
      %v1194 = vsel %vm379, %v1191, %v1193
      %v1195 = vsel %vm379, %v1193, %v1191
      %v1196 = vmul.f32 %v1195, %v388
      %v1197 = vmul.f32 %v1194, %v392
      %1198 = vrot.lane.b32.xlu0 %v1164, 64
      %v1199 = vpop.permute.xlu0 %1198
      %1200 = vrot.lane.b32.xlu0 %v1165, 64
      %v1201 = vpop.permute.xlu0 %1200
      %v1202 = vsel %vm401, %v1199, %v1201
      %v1203 = vsel %vm401, %v1201, %v1199
      %v1204 = vmul.f32 %v1203, %v410
      %v1205 = vmul.f32 %v1202, %v414
      %1206 = vrot.lane.b32.xlu0 %v1164, 63
      %v1207 = vpop.permute.xlu0 %1206
      %1208 = vrot.lane.b32.xlu0 %v1165, 63
      %v1209 = vpop.permute.xlu0 %1208
      %v1210 = vsel %vm423, %v1207, %v1209
      %v1211 = vsel %vm423, %v1209, %v1207
      %v1212 = vmul.f32 %v1211, %v432
      %v1213 = vmul.f32 %v1210, %v436
      %1214 = vrot.lane.b32.xlu0 %v1164, 57
      %v1215 = vpop.permute.xlu0 %1214
      %1216 = vrot.lane.b32.xlu0 %v1165, 57
      %v1217 = vpop.permute.xlu0 %1216
      %v1218 = vsel %vm445, %v1215, %v1217
      %v1219 = vsel %vm445, %v1217, %v1215
      %v1220 = vmul.f32 %v1219, %v454
      %v1221 = vmul.f32 %v1218, %v458
      %1222 = vrot.lane.b32.xlu0 %v1164, 56
      %v1223 = vpop.permute.xlu0 %1222
      %1224 = vrot.lane.b32.xlu0 %v1165, 56
      %v1225 = vpop.permute.xlu0 %1224
      %v1226 = vsel %vm467, %v1223, %v1225
      %v1227 = vsel %vm467, %v1225, %v1223
      %v1228 = vmul.f32 %v1227, %v476
      %v1229 = vmul.f32 %v1226, %v480
      %1230 = vrot.lane.b32.xlu0 %v1164, 55
      %v1231 = vpop.permute.xlu0 %1230
      %1232 = vrot.lane.b32.xlu0 %v1165, 55
      %v1233 = vpop.permute.xlu0 %1232
      %v1234 = vsel %vm489, %v1231, %v1233
      %v1235 = vsel %vm489, %v1233, %v1231
      %v1236 = vmul.f32 %v1235, %v498
      %v1237 = vmul.f32 %v1234, %v502
      %1238 = vrot.lane.b32.xlu0 %v1164, 9
      %v1239 = vpop.permute.xlu0 %1238
      %1240 = vrot.lane.b32.xlu0 %v1165, 9
      %v1241 = vpop.permute.xlu0 %1240
      %v1242 = vsel %vm511, %v1239, %v1241
      %v1243 = vsel %vm511, %v1241, %v1239
      %v1244 = vmul.f32 %v1243, %v520
      %v1245 = vmul.f32 %v1242, %v524
      %1246 = vrot.lane.b32.xlu0 %v1164, 8
      %v1247 = vpop.permute.xlu0 %1246
      %1248 = vrot.lane.b32.xlu0 %v1165, 8
      %v1249 = vpop.permute.xlu0 %1248
      %v1250 = vsel %vm533, %v1247, %v1249
      %v1251 = vsel %vm533, %v1249, %v1247
      %v1252 = vmul.f32 %v1251, %v542
      %v1253 = vmul.f32 %v1250, %v546
      %1254 = vrot.lane.b32.xlu0 %v1164, 7
      %v1255 = vpop.permute.xlu0 %1254
      %1256 = vrot.lane.b32.xlu0 %v1165, 7
      %v1257 = vpop.permute.xlu0 %1256
      %v1258 = vsel %vm555, %v1255, %v1257
      %v1259 = vsel %vm555, %v1257, %v1255
      %v1260 = vmul.f32 %v1259, %v564
      %v1261 = vmul.f32 %v1258, %v568
      %1262 = vrot.lane.b32.xlu0 %v1164, 1
      %v1263 = vpop.permute.xlu0 %1262
      %1264 = vrot.lane.b32.xlu0 %v1165, 1
      %v1265 = vpop.permute.xlu0 %1264
      %v1266 = vsel %vm577, %v1263, %v1265
      %v1267 = vsel %vm577, %v1265, %v1263
      %v1268 = vmul.f32 %v1267, %v586
      %v1269 = vmul.f32 %v1266, %v590
      %v1270 = vmul.f32 %v1164, %v601
      %v1271 = vmul.f32 %v1165, %v605
      %1272 = vrot.lane.b32.xlu0 %v1164, 127
      %v1273 = vpop.permute.xlu0 %1272
      %1274 = vrot.lane.b32.xlu0 %v1165, 127
      %v1275 = vpop.permute.xlu0 %1274
      %v1276 = vsel %vm614, %v1273, %v1275
      %v1277 = vsel %vm614, %v1275, %v1273
      %v1278 = vmul.f32 %v1276, %v623
      %v1279 = vmul.f32 %v1277, %v627
      %1280 = vrot.lane.b32.xlu0 %v1164, 121
      %v1281 = vpop.permute.xlu0 %1280
      %1282 = vrot.lane.b32.xlu0 %v1165, 121
      %v1283 = vpop.permute.xlu0 %1282
      %v1284 = vsel %vm636, %v1281, %v1283
      %v1285 = vsel %vm636, %v1283, %v1281
      %v1286 = vmul.f32 %v1284, %v645
      %v1287 = vmul.f32 %v1285, %v649
      %1288 = vrot.lane.b32.xlu0 %v1164, 120
      %v1289 = vpop.permute.xlu0 %1288
      %1290 = vrot.lane.b32.xlu0 %v1165, 120
      %v1291 = vpop.permute.xlu0 %1290
      %v1292 = vsel %vm658, %v1289, %v1291
      %v1293 = vsel %vm658, %v1291, %v1289
      %v1294 = vmul.f32 %v1292, %v667
      %v1295 = vmul.f32 %v1293, %v671
      %1296 = vrot.lane.b32.xlu0 %v1164, 119
      %v1297 = vpop.permute.xlu0 %1296
      %1298 = vrot.lane.b32.xlu0 %v1165, 119
      %v1299 = vpop.permute.xlu0 %1298
      %v1300 = vsel %vm680, %v1297, %v1299
      %v1301 = vsel %vm680, %v1299, %v1297
      %v1302 = vmul.f32 %v1300, %v689
      %v1303 = vmul.f32 %v1301, %v693
      %v1304 = vmul.f32 %v1170, %v704
      %v1305 = vmul.f32 %v1171, %v708
      %v1306 = vmul.f32 %v1178, %v719
      %v1307 = vmul.f32 %v1179, %v723
      %v1308 = vmul.f32 %v1186, %v734
      %v1309 = vmul.f32 %v1187, %v738
      %v1310 = vmul.f32 %v1194, %v749
      %v1311 = vmul.f32 %v1195, %v753
      %v1312 = vmul.f32 %v1202, %v764
      %v1313 = vmul.f32 %v1203, %v768
      %v1314 = vmul.f32 %v1210, %v779
      %v1315 = vmul.f32 %v1211, %v783
      %v1316 = vmul.f32 %v1218, %v794
      %v1317 = vmul.f32 %v1219, %v798
      %v1318 = vmul.f32 %v1226, %v809
      %v1319 = vmul.f32 %v1227, %v813
      %v1320 = vmul.f32 %v1234, %v824
      %v1321 = vmul.f32 %v1235, %v828
      %v1322 = vld [vmem:[%s6] sm:$0xff]
      %v1323 = vld [vmem:[%s6 + $0x8] sm:$0xff]
      %v1324 = vld [vmem:[%s7] sm:$0xff]
      %1326 = vset.pattern.permute.xlu0 0
      %1327 = vperm.xlu0 %1326, %v1324
      %v1328 = vpop.permute.xlu0 %1327
      %v1331 = vsel %vm841, %v1323, 0
      %1333 = vmatprep.subr.mxu0 %v1173
      %1334 = vmatpush1.msra.mxu0 %v1172
      %1335 = vmatprep.subr.mxu0 %v1181
      %1336 = vmatpush1.msra.mxu0 %v1180
      %1337 = vmatprep.subr.mxu0 %v1189
      %1338 = vmatpush1.msra.mxu0 %v1188
      %1339 = vmatprep.subr.mxu0 %v1197
      %1340 = vmatpush1.msra.mxu0 %v1196
      %1341 = vmatprep.subr.mxu0 %v1205
      %1342 = vmatpush1.msra.mxu0 %v1204
      %1343 = vmatprep.subr.mxu0 %v1213
      %1344 = vmatpush1.msra.mxu0 %v1212
      %1345 = vmatprep.subr.mxu0 %v1221
      %1346 = vmatpush1.msra.mxu0 %v1220
      %1347 = vmatprep.subr.mxu0 %v1229
      %1348 = vmatpush1.msra.mxu0 %v1228
      %1349 = vmatprep.subr.mxu0 %v1237
      %1350 = vmatpush1.msra.mxu0 %v1236
      %1351 = vmatprep.subr.mxu0 %v1245
      %1352 = vmatpush1.msra.mxu0 %v1244
      %1353 = vmatprep.subr.mxu0 %v1253
      %1354 = vmatpush1.msra.mxu0 %v1252
      %1355 = vmatprep.subr.mxu0 %v1261
      %1356 = vmatpush1.msra.mxu0 %v1260
      %1357 = vmatprep.subr.mxu0 %v1269
      %1358 = vmatpush1.msra.mxu0 %v1268
      %1359 = vmatprep.subr.mxu0 %v1271
      %1360 = vmatpush1.msra.mxu0 %v1270
      %1361 = vmatprep.subr.mxu0 %v1279
      %1362 = vmatpush1.msra.mxu0 %v1278
      %1363 = vmatprep.subr.mxu0 %v1287
      %1364 = vmatpush1.msra.mxu0 %v1286
      %1365 = vmatprep.subr.mxu0 %v1295
      %1366 = vmatpush1.msra.mxu0 %v1294
      %1367 = vmatprep.subr.mxu0 %v1303
      %1368 = vmatpush1.msra.mxu0 %v1302
      %1369 = vmatprep.subr.mxu0 %v1305
      %1370 = vmatpush1.msra.mxu0 %v1304
      %1371 = vmatprep.subr.mxu0 %v1307
      %1372 = vmatpush1.msra.mxu0 %v1306
      %1373 = vmatprep.subr.mxu0 %v1309
      %1374 = vmatpush1.msra.mxu0 %v1308
      %1375 = vmatprep.subr.mxu0 %v1311
      %1376 = vmatpush1.msra.mxu0 %v1310
      %1377 = vmatprep.subr.mxu0 %v1313
      %1378 = vmatpush1.msra.mxu0 %v1312
      %1379 = vmatprep.subr.mxu0 %v1315
      %1380 = vmatpush1.msra.mxu0 %v1314
      %1381 = vmatprep.subr.mxu0 %v1317
      %1382 = vmatpush1.msra.mxu0 %v1316
      %1383 = vmatprep.subr.mxu0 %v1319
      %1384 = vmatpush1.msra.mxu0 %v1318
      %1385 = vmatprep.subr.mxu0 %v1321
      %1386 = vmatpush1.msra.mxu0 %v1320
      %1387 = vmatprep.subr.mxu0 0.0
      %1388 = vmatpush1.msra.mxu0 0.0
      %1389 = vmatprep.subr.mxu0 0.0
      %1390 = vmatpush1.msra.mxu0 0.0
      %1391 = vmatprep.subr.mxu0 0.0
      %1392 = vmatpush1.msra.mxu0 0.0
      %1393 = vmatprep.subr.mxu0 0.0
      %1394 = vmatpush1.msra.mxu0 0.0
      %1395 = vmatprep.subr.mxu0 0.0
      %1396 = vmatpush1.msra.mxu0 0.0
      %1397 = vmatprep.mubr.f32.mxu0 %v1331
      %1398 = vmatmul.mubr.f32.gmra.mrb[0].mxu0 %v1322
      %v1399 = vpop.f32.mrb[0].mxu0
      %v1400 = vadd.f32 %v1328, %v1399
      %v1401 = vpop.f32.mrb[0].mxu0
      %v1402 = vadd.f32 %v1328, %v1401
      %1403 = vdwg.mxu0
      %v1404 = vadd.f32 %v1400, %v306
      %v1405 = vadd.f32 %v1402, %v307
      %vm1406 = vcmp.ge.f32.partialorder %v1404, 0.0
      %vm1407 = vcmp.ge.f32.partialorder %v1405, 0.0
      %v1408 = vmul.f32 %v1404, 0.1
      %v1409 = vmul.f32 %v1405, 0.1
      %v1410 = vsel %vm1406, %v1404, %v1408
      %v1411 = vsel %vm1407, %v1405, %v1409
      %1412 = vst [vmem:[%s305] sm:$0xff] %v1410
      %1413 = vst [vmem:[%s305 + $0x8] sm:$0xff] %v1411
      %p1414 = scmp.lt.s32.totalorder %s19, 1
      %s1415 = scalar_select %p1414, %s19, 1
      %s1416 = smul.addr %s1415, 2
      %s1417 = smul.addr %s1416, 8
      %s1418 = scalar_lea.vmem %s8, %s1417
      // Predicated region
      $region53: #{resblock3d_forward.1} parent=51 // pred_check
        %p1419 = pneg %p210
      $region54: #{resblock3d_forward.1} parent=51 // pred_check_branch
        %1421 = sbr.rel (%p1419) target = $region56
      $region55: #{resblock3d_forward.1} parent=51 // pred_region
        _
      $region56: #{resblock3d_forward.1} parent=51 // pred_fallthru
        _
    $region52: #{resblock3d_forward.1} parent=5 // pred_fallthru
      _
    %p1422 = scmp.le.s32.totalorder 2, %s14
    // Predicated region
    $region57: #{resblock3d_forward.1} parent=5 // pred_check
      %p1423 = pneg %p1422
    $region58: #{resblock3d_forward.1} parent=5 // pred_check_branch
      %1425 = sbr.rel (%p1423) target = $region60
    $region59: #{resblock3d_forward.1} parent=5 // pred_region
      %s1426 = ssub.s32 %s14, 2
      // Predicated region
      $region61: #{resblock3d_forward.1} parent=59 // pred_check
        %p1427 = pneg %p216
      $region62: #{resblock3d_forward.1} parent=59 // pred_check_branch
        %1429 = sbr.rel (%p1427) target = $region64
      $region63: #{resblock3d_forward.1} parent=59 // pred_region
        %p1430 = scmp.lt.s32.totalorder %s20, 1
        %s1431 = scalar_select %p1430, %s20, 1
        %s1432 = smul.addr %s1431, 2
        %s1433 = smul.addr %s1432, 8
        %s1434 = scalar_lea.vmem %s8, %s1433
      $region64: #{resblock3d_forward.1} parent=59 // pred_fallthru
        _
    $region60: #{resblock3d_forward.1} parent=5 // pred_fallthru
      _
  $region6: #{resblock3d_forward.1} parent=0 // loop_footer
    %s18 = sadd.s32 1, %s14
  $region7: #{resblock3d_forward.1} parent=0 // loop_footer_branch
    %13 = sbr.rel target = $region3
  $region8: #{resblock3d_forward.1} parent=0 // loop_exit
    _

// kernel: resblock3d_forward.1
$region0: #{resblock3d_forward.1}
  #allocation0 [shape = 'u32[]', space=smem, size = 0x4, offset = 0x4, fixed_abs, tag = 'smem constant byte address 0x4 - core index']
  #allocation1 [shape = 'u32[144,128]{1,0:T(1,128)}', space=vmem, size = 0x12000, scoped, tag = 'internal scratch']
  %s0 = inlined_call_operand.vmem [shape: f32[2,8,256], index: 0, kind: input, shape index: {}]
  %s1 = inlined_call_operand.vmem [shape: f32[27,256], index: 1, kind: input, shape index: {}]
  %s2 = inlined_call_operand.vmem [shape: f32[8,216], index: 2, kind: input, shape index: {}]
  %s3 = inlined_call_operand.vmem [shape: f32[8,1], index: 3, kind: input, shape index: {}]
  %s4 = inlined_call_operand.vmem [shape: f32[8,216], index: 4, kind: input, shape index: {}]
  %s5 = inlined_call_operand.vmem [shape: f32[8,1], index: 5, kind: input, shape index: {}]
  %s6 = inlined_call_operand.vmem [shape: f32[8,216], index: 6, kind: input, shape index: {}]
  %s7 = inlined_call_operand.vmem [shape: f32[8,1], index: 7, kind: input, shape index: {}]
  %s8 = inlined_call_operand.vmem [shape: f32[2,8,256], index: 8, kind: output, shape index: {}]
  %s9 = sld [smem:[#allocation0]]
  $region65: #{resblock3d_forward.1} parent=0
    _
  %s11 = ssub.s32 1, %s9
  %s12 = scalar_select 0, %s11, %s9
  loop: start=0, step=1, limit=4
  $region2: #{resblock3d_forward.1} parent=0 // loop_pre_header
    _
  $region3: #{resblock3d_forward.1} parent=0 // loop_header
    %s14 = sphi 0, %s18
    %p15 = scmp.ge.s32.totalorder %s14, 4
    %s24 = sphi 0, %s26
    %s27 = sphi 0, %s24
    %s28 = sphi 0, %s27
    %s44 = sphi 0, %s28
    %s48 = sphi 0, %s48
    %s50 = sphi 0, %s48
    %s51 = sphi 0, %s50
    %s65 = sphi 0, %s51
    %s69 = sphi 0, %s69
    %s71 = sphi 0, %s69
    %s72 = sphi 0, %s71
    %s86 = sphi 0, %s72
    %s90 = sphi 0, %s90
    %s92 = sphi 0, %s90
    %s93 = sphi 0, %s92
    %s107 = sphi 0, %s93
    %s111 = sphi 0, %s111
    %s113 = sphi 0, %s111
    %s114 = sphi 0, %s113
    %s128 = sphi 0, %s114
    %s132 = sphi 0, %s132
    %s134 = sphi 0, %s132
    %s135 = sphi 0, %s134
    %s149 = sphi 0, %s135
    %s153 = sphi 0, %s153
    %s155 = sphi 0, %s153
    %s156 = sphi 0, %s155
    %s170 = sphi 0, %s156
    %s174 = sphi 0, %s174
    %s176 = sphi 0, %s174
    %s177 = sphi 0, %s176
    %s191 = sphi 0, %s177
    %s197 = sphi 0, %s199
    %s200 = sphi 0, %s197
    %s201 = sphi 0, %s200
    %s217 = sphi 0, %s201
  $region4: #{resblock3d_forward.1} parent=0 // loop_header_branch
    %17 = sbr.rel (%p15) target = $region8
  $region5: #{resblock3d_forward.1} parent=0 // loop_body
    %s19 = ssub.s32 %s14, 1
    %s20 = ssub.s32 %s14, 2
    %s21 = sadd.s32 %s14, 1
    %s22 = ssub.s32 %s14, %s21
    %p23 = scmp.eq.s32.totalorder %s22, 0
    %s25 = sadd.s32 %s24, 1
    %s26 = scalar_select %p23, %s24, %s25
    %p29 = pneg %p23
    %p30 = scmp.eq.s32.totalorder %s14, 1
    %p31 = por %p29, %p30
    %p32 = scmp.ne.s32.totalorder %s24, %s27
    %p33 = scmp.eq.s32.totalorder %s14, 0
    %p34 = por %p32, %p33
    %p35 = scmp.ne.s32.totalorder %s24, %s27
    %p36 = scmp.eq.s32.totalorder %s19, 1
    %p37 = por %p35, %p36
    %p38 = scmp.ne.s32.totalorder %s27, %s28
    %p39 = scmp.eq.s32.totalorder %s19, 0
    %p40 = por %p38, %p39
    %p41 = scmp.ne.s32.totalorder %s27, %s28
    %p42 = scmp.eq.s32.totalorder %s20, 1
    %p43 = por %p41, %p42
    %p45 = scmp.ne.s32.totalorder %s28, %s44
    %p46 = scmp.eq.s32.totalorder %s20, 0
    %p47 = por %p45, %p46
    %s49 = sadd.s32 %s48, 1
    %p52 = scmp.eq.s32.totalorder %s14, 1
    %p53 = scmp.ne.s32.totalorder %s48, %s50
    %p54 = scmp.eq.s32.totalorder %s14, 0
    %p55 = por %p53, %p54
    %p56 = scmp.ne.s32.totalorder %s48, %s50
    %p57 = scmp.eq.s32.totalorder %s19, 1
    %p58 = por %p56, %p57
    %p59 = scmp.ne.s32.totalorder %s50, %s51
    %p60 = scmp.eq.s32.totalorder %s19, 0
    %p61 = por %p59, %p60
    %p62 = scmp.ne.s32.totalorder %s50, %s51
    %p63 = scmp.eq.s32.totalorder %s20, 1
    %p64 = por %p62, %p63
    %p66 = scmp.ne.s32.totalorder %s51, %s65
    %p67 = scmp.eq.s32.totalorder %s20, 0
    %p68 = por %p66, %p67
    %s70 = sadd.s32 %s69, 1
    %p73 = scmp.eq.s32.totalorder %s14, 1
    %p74 = scmp.ne.s32.totalorder %s69, %s71
    %p75 = scmp.eq.s32.totalorder %s14, 0
    %p76 = por %p74, %p75
    %p77 = scmp.ne.s32.totalorder %s69, %s71
    %p78 = scmp.eq.s32.totalorder %s19, 1
    %p79 = por %p77, %p78
    %p80 = scmp.ne.s32.totalorder %s71, %s72
    %p81 = scmp.eq.s32.totalorder %s19, 0
    %p82 = por %p80, %p81
    %p83 = scmp.ne.s32.totalorder %s71, %s72
    %p84 = scmp.eq.s32.totalorder %s20, 1
    %p85 = por %p83, %p84
    %p87 = scmp.ne.s32.totalorder %s72, %s86
    %p88 = scmp.eq.s32.totalorder %s20, 0
    %p89 = por %p87, %p88
    %s91 = sadd.s32 %s90, 1
    %p94 = scmp.eq.s32.totalorder %s14, 1
    %p95 = scmp.ne.s32.totalorder %s90, %s92
    %p96 = scmp.eq.s32.totalorder %s14, 0
    %p97 = por %p95, %p96
    %p98 = scmp.ne.s32.totalorder %s90, %s92
    %p99 = scmp.eq.s32.totalorder %s19, 1
    %p100 = por %p98, %p99
    %p101 = scmp.ne.s32.totalorder %s92, %s93
    %p102 = scmp.eq.s32.totalorder %s19, 0
    %p103 = por %p101, %p102
    %p104 = scmp.ne.s32.totalorder %s92, %s93
    %p105 = scmp.eq.s32.totalorder %s20, 1
    %p106 = por %p104, %p105
    %p108 = scmp.ne.s32.totalorder %s93, %s107
    %p109 = scmp.eq.s32.totalorder %s20, 0
    %p110 = por %p108, %p109
    %s112 = sadd.s32 %s111, 1
    %p115 = scmp.eq.s32.totalorder %s14, 1
    %p116 = scmp.ne.s32.totalorder %s111, %s113
    %p117 = scmp.eq.s32.totalorder %s14, 0
    %p118 = por %p116, %p117
    %p119 = scmp.ne.s32.totalorder %s111, %s113
    %p120 = scmp.eq.s32.totalorder %s19, 1
    %p121 = por %p119, %p120
    %p122 = scmp.ne.s32.totalorder %s113, %s114
    %p123 = scmp.eq.s32.totalorder %s19, 0
    %p124 = por %p122, %p123
    %p125 = scmp.ne.s32.totalorder %s113, %s114
    %p126 = scmp.eq.s32.totalorder %s20, 1
    %p127 = por %p125, %p126
    %p129 = scmp.ne.s32.totalorder %s114, %s128
    %p130 = scmp.eq.s32.totalorder %s20, 0
    %p131 = por %p129, %p130
    %s133 = sadd.s32 %s132, 1
    %p136 = scmp.eq.s32.totalorder %s14, 1
    %p137 = scmp.ne.s32.totalorder %s132, %s134
    %p138 = scmp.eq.s32.totalorder %s14, 0
    %p139 = por %p137, %p138
    %p140 = scmp.ne.s32.totalorder %s132, %s134
    %p141 = scmp.eq.s32.totalorder %s19, 1
    %p142 = por %p140, %p141
    %p143 = scmp.ne.s32.totalorder %s134, %s135
    %p144 = scmp.eq.s32.totalorder %s19, 0
    %p145 = por %p143, %p144
    %p146 = scmp.ne.s32.totalorder %s134, %s135
    %p147 = scmp.eq.s32.totalorder %s20, 1
    %p148 = por %p146, %p147
    %p150 = scmp.ne.s32.totalorder %s135, %s149
    %p151 = scmp.eq.s32.totalorder %s20, 0
    %p152 = por %p150, %p151
    %s154 = sadd.s32 %s153, 1
    %p157 = scmp.eq.s32.totalorder %s14, 1
    %p158 = scmp.ne.s32.totalorder %s153, %s155
    %p159 = scmp.eq.s32.totalorder %s14, 0
    %p160 = por %p158, %p159
    %p161 = scmp.ne.s32.totalorder %s153, %s155
    %p162 = scmp.eq.s32.totalorder %s19, 1
    %p163 = por %p161, %p162
    %p164 = scmp.ne.s32.totalorder %s155, %s156
    %p165 = scmp.eq.s32.totalorder %s19, 0
    %p166 = por %p164, %p165
    %p167 = scmp.ne.s32.totalorder %s155, %s156
    %p168 = scmp.eq.s32.totalorder %s20, 1
    %p169 = por %p167, %p168
    %p171 = scmp.ne.s32.totalorder %s156, %s170
    %p172 = scmp.eq.s32.totalorder %s20, 0
    %p173 = por %p171, %p172
    %s175 = sadd.s32 %s174, 1
    %p178 = scmp.eq.s32.totalorder %s14, 1
    %p179 = scmp.ne.s32.totalorder %s174, %s176
    %p180 = scmp.eq.s32.totalorder %s14, 0
    %p181 = por %p179, %p180
    %p182 = scmp.ne.s32.totalorder %s174, %s176
    %p183 = scmp.eq.s32.totalorder %s19, 1
    %p184 = por %p182, %p183
    %p185 = scmp.ne.s32.totalorder %s176, %s177
    %p186 = scmp.eq.s32.totalorder %s19, 0
    %p187 = por %p185, %p186
    %p188 = scmp.ne.s32.totalorder %s176, %s177
    %p189 = scmp.eq.s32.totalorder %s20, 1
    %p190 = por %p188, %p189
    %p192 = scmp.ne.s32.totalorder %s177, %s191
    %p193 = scmp.eq.s32.totalorder %s20, 0
    %p194 = por %p192, %p193
    %s195 = ssub.s32 %s14, %s21
    %p196 = scmp.eq.s32.totalorder %s195, 0
    %s198 = sadd.s32 %s197, 1
    %s199 = scalar_select %p196, %s197, %s198
    %p202 = pneg %p196
    %p203 = scmp.eq.s32.totalorder %s14, 1
    %p204 = por %p202, %p203
    %p205 = scmp.ne.s32.totalorder %s197, %s200
    %p206 = scmp.eq.s32.totalorder %s14, 0
    %p207 = por %p205, %p206
    %p208 = scmp.ne.s32.totalorder %s197, %s200
    %p209 = scmp.eq.s32.totalorder %s19, 1
    %p210 = por %p208, %p209
    %p211 = scmp.ne.s32.totalorder %s200, %s201
    %p212 = scmp.eq.s32.totalorder %s19, 0
    %p213 = por %p211, %p212
    %p214 = scmp.ne.s32.totalorder %s200, %s201
    %p215 = scmp.eq.s32.totalorder %s20, 1
    %p216 = por %p214, %p215
    %p218 = scmp.ne.s32.totalorder %s201, %s217
    %p219 = scmp.eq.s32.totalorder %s20, 0
    %p220 = por %p218, %p219
    %p221 = scmp.le.s32.totalorder 1, %s14
    %p222 = scmp.lt.s32.totalorder %s14, 3
    %p223 = pnand %p221, %p222
    %p224 = pneg %p223
    // Predicated region
    $region9: #{resblock3d_forward.1} parent=5 // pred_check
      _
    $region10: #{resblock3d_forward.1} parent=5 // pred_check_branch
      %226 = sbr.rel (%p223) target = $region12
    $region11: #{resblock3d_forward.1} parent=5 // pred_region
      %s227 = ssub.s32 %s14, 1
      // Predicated region
      $region13: #{resblock3d_forward.1} parent=11 // pred_check
        %p228 = pneg %p61
      $region14: #{resblock3d_forward.1} parent=11 // pred_check_branch
        %230 = sbr.rel (%p228) target = $region16
      $region15: #{resblock3d_forward.1} parent=11 // pred_region
        _
      $region16: #{resblock3d_forward.1} parent=11 // pred_fallthru
        _
      // Predicated region
      $region17: #{resblock3d_forward.1} parent=11 // pred_check
        %p231 = pneg %p82
      $region18: #{resblock3d_forward.1} parent=11 // pred_check_branch
        %233 = sbr.rel (%p231) target = $region20
      $region19: #{resblock3d_forward.1} parent=11 // pred_region
        _
      $region20: #{resblock3d_forward.1} parent=11 // pred_fallthru
        _
      // Predicated region
      $region21: #{resblock3d_forward.1} parent=11 // pred_check
        %p234 = pneg %p103
      $region22: #{resblock3d_forward.1} parent=11 // pred_check_branch
        %236 = sbr.rel (%p234) target = $region24
      $region23: #{resblock3d_forward.1} parent=11 // pred_region
        _
      $region24: #{resblock3d_forward.1} parent=11 // pred_fallthru
        _
      // Predicated region
      $region25: #{resblock3d_forward.1} parent=11 // pred_check
        %p237 = pneg %p124
      $region26: #{resblock3d_forward.1} parent=11 // pred_check_branch
        %239 = sbr.rel (%p237) target = $region28
      $region27: #{resblock3d_forward.1} parent=11 // pred_region
        _
      $region28: #{resblock3d_forward.1} parent=11 // pred_fallthru
        _
      // Predicated region
      $region29: #{resblock3d_forward.1} parent=11 // pred_check
        %p240 = pneg %p145
      $region30: #{resblock3d_forward.1} parent=11 // pred_check_branch
        %242 = sbr.rel (%p240) target = $region32
      $region31: #{resblock3d_forward.1} parent=11 // pred_region
        _
      $region32: #{resblock3d_forward.1} parent=11 // pred_fallthru
        _
      // Predicated region
      $region33: #{resblock3d_forward.1} parent=11 // pred_check
        %p243 = pneg %p166
      $region34: #{resblock3d_forward.1} parent=11 // pred_check_branch
        %245 = sbr.rel (%p243) target = $region36
      $region35: #{resblock3d_forward.1} parent=11 // pred_region
        _
      $region36: #{resblock3d_forward.1} parent=11 // pred_fallthru
        _
      // Predicated region
      $region37: #{resblock3d_forward.1} parent=11 // pred_check
        %p246 = pneg %p187
      $region38: #{resblock3d_forward.1} parent=11 // pred_check_branch
        %248 = sbr.rel (%p246) target = $region40
      $region39: #{resblock3d_forward.1} parent=11 // pred_region
        _
      $region40: #{resblock3d_forward.1} parent=11 // pred_fallthru
        _
    $region12: #{resblock3d_forward.1} parent=5 // pred_fallthru
      _
    %p249 = scmp.lt.s32.totalorder %s14, 2
    // Predicated region
    $region41: #{resblock3d_forward.1} parent=5 // pred_check
      %p250 = pneg %p249
    $region42: #{resblock3d_forward.1} parent=5 // pred_check_branch
      %252 = sbr.rel (%p250) target = $region44
    $region43: #{resblock3d_forward.1} parent=5 // pred_region
      // Predicated region
      $region45: #{resblock3d_forward.1} parent=43 // pred_check
        %p253 = pneg %p34
      $region46: #{resblock3d_forward.1} parent=43 // pred_check_branch
        %255 = sbr.rel (%p253) target = $region48
      $region47: #{resblock3d_forward.1} parent=43 // pred_region
        %p256 = scmp.lt.s32.totalorder %s14, 1
        %s257 = scalar_select %p256, %s14, 1
        %s258 = smul.addr %s257, 2
        %s259 = smul.addr %s258, 8
        %s260 = scalar_lea.vmem %s0, %s259
      $region48: #{resblock3d_forward.1} parent=43 // pred_fallthru
        _
    $region44: #{resblock3d_forward.1} parent=5 // pred_fallthru
      _
    %p261 = scmp.le.s32.totalorder 1, %s14
    %p262 = scmp.lt.s32.totalorder %s14, 3
    %p263 = pnand %p261, %p262
    %p264 = pneg %p263
    // Predicated region
    $region49: #{resblock3d_forward.1} parent=5 // pred_check
      _
    $region50: #{resblock3d_forward.1} parent=5 // pred_check_branch
      %266 = sbr.rel (%p263) target = $region52
    $region51: #{resblock3d_forward.1} parent=5 // pred_region
      %s267 = ssub.s32 %s14, 1
      %p268 = scmp.lt.s32.totalorder %s19, 1
      %s269 = scalar_select %p268, %s19, 1
      %s270 = smul.addr %s269, 2
      %s271 = smul.addr %s270, 8
      %s272 = scalar_lea.vmem %s0, %s271
      %p273 = pneg %p40
      %p274 = pneg %p37
      %p275 = pneg %p61
      %p276 = pneg %p58
      %p277 = pneg %p82
      %p278 = pneg %p79
      %p279 = pneg %p103
      %p280 = pneg %p100
      %p281 = pneg %p124
      %p282 = pneg %p121
      %p283 = pneg %p145
      %p284 = pneg %p142
      %p285 = pneg %p166
      %p286 = pneg %p163
      %p287 = pneg %p187
      %p288 = pneg %p184
      %p289 = pneg %p213
      %p290 = pneg %p210
      %p291 = scmp.lt.s32.totalorder %s19, 1
      %s292 = scalar_select %p291, %s19, 1
      %s293 = smul.addr %s292, 2
      %s294 = smul.addr %s293, 8
      %s295 = scalar_lea.vmem %s8, %s294
      %p296 = scmp.lt.s32.totalorder %s19, 1
      %s297 = scalar_select %p296, %s19, 1
      %s298 = smul.addr %s297, 2
      %s299 = smul.addr %s298, 8
      %s300 = scalar_lea.vmem %s0, %s299
      %p301 = scmp.lt.s32.totalorder %s19, 1
      %s302 = scalar_select %p301, %s19, 1
      %s303 = smul.addr %s302, 2
      %s304 = smul.addr %s303, 8
      %s305 = scalar_lea.vmem %s8, %s304
      %v306 = vld [vmem:[%s300] sm:$0xff]
      %v307 = vld [vmem:[%s300 + $0x8] sm:$0xff]
      %308 = vrot.lane.b32.xlu0 %v306, 73
      %v309 = vpop.permute.xlu0 %308
      %310 = vrot.lane.b32.xlu0 %v307, 73
      %v311 = vpop.permute.xlu0 %310
      %v312 = vlaneseq
      %v313 = vand.u32 %v312, 127
      %vm314 = vcmp.lt.s32.totalorder %v313, 73
      %v315 = vsel %vm314, %v309, %v311
      %v316 = vsel %vm314, %v311, %v309
      %v317 = vld [vmem:[%s1] ss:$8 sm:$0x3]
      %v319 = vlaneseq
      %v320 = vshrl.u32 %v319, 7
      %v321 = vsub.s32 0, %v320
      %v322 = vrot.slane %v317, %v321
      %v323 = vlaneseq
      %v324 = vshrl.u32 %v323, 7
      %v325 = vsub.s32 1, %v324
      %v326 = vrot.slane %v317, %v325
      %v329 = vmul.f32 %v316, %v322
      %v330 = vmul.f32 %v315, %v326
      %331 = vrot.lane.b32.xlu0 %v306, 72
      %v332 = vpop.permute.xlu0 %331
      %333 = vrot.lane.b32.xlu0 %v307, 72
      %v334 = vpop.permute.xlu0 %333
      %vm335 = vcmp.lt.s32.totalorder %v313, 72
      %v336 = vsel %vm335, %v332, %v334
      %v337 = vsel %vm335, %v334, %v332
      %s338 = scalar_lea.vmem %s1, 1
      %v339 = vld [vmem:[%s338] ss:$8 sm:$0x3]
      %v341 = vlaneseq
      %v342 = vshrl.u32 %v341, 7
      %v343 = vsub.s32 0, %v342
      %v344 = vrot.slane %v339, %v343
      %v345 = vlaneseq
      %v346 = vshrl.u32 %v345, 7
      %v347 = vsub.s32 1, %v346
      %v348 = vrot.slane %v339, %v347
      %v351 = vmul.f32 %v337, %v344
      %v352 = vmul.f32 %v336, %v348
      %353 = vrot.lane.b32.xlu0 %v306, 71
      %v354 = vpop.permute.xlu0 %353
      %355 = vrot.lane.b32.xlu0 %v307, 71
      %v356 = vpop.permute.xlu0 %355
      %vm357 = vcmp.lt.s32.totalorder %v313, 71
      %v358 = vsel %vm357, %v354, %v356
      %v359 = vsel %vm357, %v356, %v354
      %s360 = scalar_lea.vmem %s1, 2
      %v361 = vld [vmem:[%s360] ss:$8 sm:$0x3]
      %v363 = vlaneseq
      %v364 = vshrl.u32 %v363, 7
      %v365 = vsub.s32 0, %v364
      %v366 = vrot.slane %v361, %v365
      %v367 = vlaneseq
      %v368 = vshrl.u32 %v367, 7
      %v369 = vsub.s32 1, %v368
      %v370 = vrot.slane %v361, %v369
      %v373 = vmul.f32 %v359, %v366
      %v374 = vmul.f32 %v358, %v370
      %375 = vrot.lane.b32.xlu0 %v306, 65
      %v376 = vpop.permute.xlu0 %375
      %377 = vrot.lane.b32.xlu0 %v307, 65
      %v378 = vpop.permute.xlu0 %377
      %vm379 = vcmp.lt.s32.totalorder %v313, 65
      %v380 = vsel %vm379, %v376, %v378
      %v381 = vsel %vm379, %v378, %v376
      %s382 = scalar_lea.vmem %s1, 3
      %v383 = vld [vmem:[%s382] ss:$8 sm:$0x3]
      %v385 = vlaneseq
      %v386 = vshrl.u32 %v385, 7
      %v387 = vsub.s32 0, %v386
      %v388 = vrot.slane %v383, %v387
      %v389 = vlaneseq
      %v390 = vshrl.u32 %v389, 7
      %v391 = vsub.s32 1, %v390
      %v392 = vrot.slane %v383, %v391
      %v395 = vmul.f32 %v381, %v388
      %v396 = vmul.f32 %v380, %v392
      %397 = vrot.lane.b32.xlu0 %v306, 64
      %v398 = vpop.permute.xlu0 %397
      %399 = vrot.lane.b32.xlu0 %v307, 64
      %v400 = vpop.permute.xlu0 %399
      %vm401 = vcmp.lt.s32.totalorder %v313, 64
      %v402 = vsel %vm401, %v398, %v400
      %v403 = vsel %vm401, %v400, %v398
      %s404 = scalar_lea.vmem %s1, 4
      %v405 = vld [vmem:[%s404] ss:$8 sm:$0x3]
      %v407 = vlaneseq
      %v408 = vshrl.u32 %v407, 7
      %v409 = vsub.s32 0, %v408
      %v410 = vrot.slane %v405, %v409
      %v411 = vlaneseq
      %v412 = vshrl.u32 %v411, 7
      %v413 = vsub.s32 1, %v412
      %v414 = vrot.slane %v405, %v413
      %v417 = vmul.f32 %v403, %v410
      %v418 = vmul.f32 %v402, %v414
      %419 = vrot.lane.b32.xlu0 %v306, 63
      %v420 = vpop.permute.xlu0 %419
      %421 = vrot.lane.b32.xlu0 %v307, 63
      %v422 = vpop.permute.xlu0 %421
      %vm423 = vcmp.lt.s32.totalorder %v313, 63
      %v424 = vsel %vm423, %v420, %v422
      %v425 = vsel %vm423, %v422, %v420
      %s426 = scalar_lea.vmem %s1, 5
      %v427 = vld [vmem:[%s426] ss:$8 sm:$0x3]
      %v429 = vlaneseq
      %v430 = vshrl.u32 %v429, 7
      %v431 = vsub.s32 0, %v430
      %v432 = vrot.slane %v427, %v431
      %v433 = vlaneseq
      %v434 = vshrl.u32 %v433, 7
      %v435 = vsub.s32 1, %v434
      %v436 = vrot.slane %v427, %v435
      %v439 = vmul.f32 %v425, %v432
      %v440 = vmul.f32 %v424, %v436
      %441 = vrot.lane.b32.xlu0 %v306, 57
      %v442 = vpop.permute.xlu0 %441
      %443 = vrot.lane.b32.xlu0 %v307, 57
      %v444 = vpop.permute.xlu0 %443
      %vm445 = vcmp.lt.s32.totalorder %v313, 57
      %v446 = vsel %vm445, %v442, %v444
      %v447 = vsel %vm445, %v444, %v442
      %s448 = scalar_lea.vmem %s1, 6
      %v449 = vld [vmem:[%s448] ss:$8 sm:$0x3]
      %v451 = vlaneseq
      %v452 = vshrl.u32 %v451, 7
      %v453 = vsub.s32 0, %v452
      %v454 = vrot.slane %v449, %v453
      %v455 = vlaneseq
      %v456 = vshrl.u32 %v455, 7
      %v457 = vsub.s32 1, %v456
      %v458 = vrot.slane %v449, %v457
      %v461 = vmul.f32 %v447, %v454
      %v462 = vmul.f32 %v446, %v458
      %463 = vrot.lane.b32.xlu0 %v306, 56
      %v464 = vpop.permute.xlu0 %463
      %465 = vrot.lane.b32.xlu0 %v307, 56
      %v466 = vpop.permute.xlu0 %465
      %vm467 = vcmp.lt.s32.totalorder %v313, 56
      %v468 = vsel %vm467, %v464, %v466
      %v469 = vsel %vm467, %v466, %v464
      %s470 = scalar_lea.vmem %s1, 7
      %v471 = vld [vmem:[%s470] ss:$8 sm:$0x3]
      %v473 = vlaneseq
      %v474 = vshrl.u32 %v473, 7
      %v475 = vsub.s32 0, %v474
      %v476 = vrot.slane %v471, %v475
      %v477 = vlaneseq
      %v478 = vshrl.u32 %v477, 7
      %v479 = vsub.s32 1, %v478
      %v480 = vrot.slane %v471, %v479
      %v483 = vmul.f32 %v469, %v476
      %v484 = vmul.f32 %v468, %v480
      %485 = vrot.lane.b32.xlu0 %v306, 55
      %v486 = vpop.permute.xlu0 %485
      %487 = vrot.lane.b32.xlu0 %v307, 55
      %v488 = vpop.permute.xlu0 %487
      %vm489 = vcmp.lt.s32.totalorder %v313, 55
      %v490 = vsel %vm489, %v486, %v488
      %v491 = vsel %vm489, %v488, %v486
      %s492 = scalar_lea.vmem %s1, 16
      %v493 = vld [vmem:[%s492] ss:$8 sm:$0x3]
      %v495 = vlaneseq
      %v496 = vshrl.u32 %v495, 7
      %v497 = vsub.s32 0, %v496
      %v498 = vrot.slane %v493, %v497
      %v499 = vlaneseq
      %v500 = vshrl.u32 %v499, 7
      %v501 = vsub.s32 1, %v500
      %v502 = vrot.slane %v493, %v501
      %v505 = vmul.f32 %v491, %v498
      %v506 = vmul.f32 %v490, %v502
      %507 = vrot.lane.b32.xlu0 %v306, 9
      %v508 = vpop.permute.xlu0 %507
      %509 = vrot.lane.b32.xlu0 %v307, 9
      %v510 = vpop.permute.xlu0 %509
      %vm511 = vcmp.lt.s32.totalorder %v313, 9
      %v512 = vsel %vm511, %v508, %v510
      %v513 = vsel %vm511, %v510, %v508
      %s514 = scalar_lea.vmem %s1, 17
      %v515 = vld [vmem:[%s514] ss:$8 sm:$0x3]
      %v517 = vlaneseq
      %v518 = vshrl.u32 %v517, 7
      %v519 = vsub.s32 0, %v518
      %v520 = vrot.slane %v515, %v519
      %v521 = vlaneseq
      %v522 = vshrl.u32 %v521, 7
      %v523 = vsub.s32 1, %v522
      %v524 = vrot.slane %v515, %v523
      %v527 = vmul.f32 %v513, %v520
      %v528 = vmul.f32 %v512, %v524
      %529 = vrot.lane.b32.xlu0 %v306, 8
      %v530 = vpop.permute.xlu0 %529
      %531 = vrot.lane.b32.xlu0 %v307, 8
      %v532 = vpop.permute.xlu0 %531
      %vm533 = vcmp.lt.s32.totalorder %v313, 8
      %v534 = vsel %vm533, %v530, %v532
      %v535 = vsel %vm533, %v532, %v530
      %s536 = scalar_lea.vmem %s1, 18
      %v537 = vld [vmem:[%s536] ss:$8 sm:$0x3]
      %v539 = vlaneseq
      %v540 = vshrl.u32 %v539, 7
      %v541 = vsub.s32 0, %v540
      %v542 = vrot.slane %v537, %v541
      %v543 = vlaneseq
      %v544 = vshrl.u32 %v543, 7
      %v545 = vsub.s32 1, %v544
      %v546 = vrot.slane %v537, %v545
      %v549 = vmul.f32 %v535, %v542
      %v550 = vmul.f32 %v534, %v546
      %551 = vrot.lane.b32.xlu0 %v306, 7
      %v552 = vpop.permute.xlu0 %551
      %553 = vrot.lane.b32.xlu0 %v307, 7
      %v554 = vpop.permute.xlu0 %553
      %vm555 = vcmp.lt.s32.totalorder %v313, 7
      %v556 = vsel %vm555, %v552, %v554
      %v557 = vsel %vm555, %v554, %v552
      %s558 = scalar_lea.vmem %s1, 19
      %v559 = vld [vmem:[%s558] ss:$8 sm:$0x3]
      %v561 = vlaneseq
      %v562 = vshrl.u32 %v561, 7
      %v563 = vsub.s32 0, %v562
      %v564 = vrot.slane %v559, %v563
      %v565 = vlaneseq
      %v566 = vshrl.u32 %v565, 7
      %v567 = vsub.s32 1, %v566
      %v568 = vrot.slane %v559, %v567
      %v571 = vmul.f32 %v557, %v564
      %v572 = vmul.f32 %v556, %v568
      %573 = vrot.lane.b32.xlu0 %v306, 1
      %v574 = vpop.permute.xlu0 %573
      %575 = vrot.lane.b32.xlu0 %v307, 1
      %v576 = vpop.permute.xlu0 %575
      %vm577 = vcmp.lt.s32.totalorder %v313, 1
      %v578 = vsel %vm577, %v574, %v576
      %v579 = vsel %vm577, %v576, %v574
      %s580 = scalar_lea.vmem %s1, 20
      %v581 = vld [vmem:[%s580] ss:$8 sm:$0x3]
      %v583 = vlaneseq
      %v584 = vshrl.u32 %v583, 7
      %v585 = vsub.s32 0, %v584
      %v586 = vrot.slane %v581, %v585
      %v587 = vlaneseq
      %v588 = vshrl.u32 %v587, 7
      %v589 = vsub.s32 1, %v588
      %v590 = vrot.slane %v581, %v589
      %v593 = vmul.f32 %v579, %v586
      %v594 = vmul.f32 %v578, %v590
      %s595 = scalar_lea.vmem %s1, 21
      %v596 = vld [vmem:[%s595] ss:$8 sm:$0x3]
      %v598 = vlaneseq
      %v599 = vshrl.u32 %v598, 7
      %v600 = vsub.s32 0, %v599
      %v601 = vrot.slane %v596, %v600
      %v602 = vlaneseq
      %v603 = vshrl.u32 %v602, 7
      %v604 = vsub.s32 1, %v603
      %v605 = vrot.slane %v596, %v604
      %v608 = vmul.f32 %v306, %v601
      %v609 = vmul.f32 %v307, %v605
      %610 = vrot.lane.b32.xlu0 %v306, 127
      %v611 = vpop.permute.xlu0 %610
      %612 = vrot.lane.b32.xlu0 %v307, 127
      %v613 = vpop.permute.xlu0 %612
      %vm614 = vcmp.lt.s32.totalorder %v313, 127
      %v615 = vsel %vm614, %v611, %v613
      %v616 = vsel %vm614, %v613, %v611
      %s617 = scalar_lea.vmem %s1, 22
      %v618 = vld [vmem:[%s617] ss:$8 sm:$0x3]
      %v620 = vlaneseq
      %v621 = vshrl.u32 %v620, 7
      %v622 = vsub.s32 0, %v621
      %v623 = vrot.slane %v618, %v622
      %v624 = vlaneseq
      %v625 = vshrl.u32 %v624, 7
      %v626 = vsub.s32 1, %v625
      %v627 = vrot.slane %v618, %v626
      %v630 = vmul.f32 %v615, %v623
      %v631 = vmul.f32 %v616, %v627
      %632 = vrot.lane.b32.xlu0 %v306, 121
      %v633 = vpop.permute.xlu0 %632
      %634 = vrot.lane.b32.xlu0 %v307, 121
      %v635 = vpop.permute.xlu0 %634
      %vm636 = vcmp.lt.s32.totalorder %v313, 121
      %v637 = vsel %vm636, %v633, %v635
      %v638 = vsel %vm636, %v635, %v633
      %s639 = scalar_lea.vmem %s1, 23
      %v640 = vld [vmem:[%s639] ss:$8 sm:$0x3]
      %v642 = vlaneseq
      %v643 = vshrl.u32 %v642, 7
      %v644 = vsub.s32 0, %v643
      %v645 = vrot.slane %v640, %v644
      %v646 = vlaneseq
      %v647 = vshrl.u32 %v646, 7
      %v648 = vsub.s32 1, %v647
      %v649 = vrot.slane %v640, %v648
      %v652 = vmul.f32 %v637, %v645
      %v653 = vmul.f32 %v638, %v649
      %654 = vrot.lane.b32.xlu0 %v306, 120
      %v655 = vpop.permute.xlu0 %654
      %656 = vrot.lane.b32.xlu0 %v307, 120
      %v657 = vpop.permute.xlu0 %656
      %vm658 = vcmp.lt.s32.totalorder %v313, 120
      %v659 = vsel %vm658, %v655, %v657
      %v660 = vsel %vm658, %v657, %v655
      %s661 = scalar_lea.vmem %s1, 32
      %v662 = vld [vmem:[%s661] ss:$8 sm:$0x3]
      %v664 = vlaneseq
      %v665 = vshrl.u32 %v664, 7
      %v666 = vsub.s32 0, %v665
      %v667 = vrot.slane %v662, %v666
      %v668 = vlaneseq
      %v669 = vshrl.u32 %v668, 7
      %v670 = vsub.s32 1, %v669
      %v671 = vrot.slane %v662, %v670
      %v674 = vmul.f32 %v659, %v667
      %v675 = vmul.f32 %v660, %v671
      %676 = vrot.lane.b32.xlu0 %v306, 119
      %v677 = vpop.permute.xlu0 %676
      %678 = vrot.lane.b32.xlu0 %v307, 119
      %v679 = vpop.permute.xlu0 %678
      %vm680 = vcmp.lt.s32.totalorder %v313, 119
      %v681 = vsel %vm680, %v677, %v679
      %v682 = vsel %vm680, %v679, %v677
      %s683 = scalar_lea.vmem %s1, 33
      %v684 = vld [vmem:[%s683] ss:$8 sm:$0x3]
      %v686 = vlaneseq
      %v687 = vshrl.u32 %v686, 7
      %v688 = vsub.s32 0, %v687
      %v689 = vrot.slane %v684, %v688
      %v690 = vlaneseq
      %v691 = vshrl.u32 %v690, 7
      %v692 = vsub.s32 1, %v691
      %v693 = vrot.slane %v684, %v692
      %v696 = vmul.f32 %v681, %v689
      %v697 = vmul.f32 %v682, %v693
      %s698 = scalar_lea.vmem %s1, 34
      %v699 = vld [vmem:[%s698] ss:$8 sm:$0x3]
      %v701 = vlaneseq
      %v702 = vshrl.u32 %v701, 7
      %v703 = vsub.s32 0, %v702
      %v704 = vrot.slane %v699, %v703
      %v705 = vlaneseq
      %v706 = vshrl.u32 %v705, 7
      %v707 = vsub.s32 1, %v706
      %v708 = vrot.slane %v699, %v707
      %v711 = vmul.f32 %v315, %v704
      %v712 = vmul.f32 %v316, %v708
      %s713 = scalar_lea.vmem %s1, 35
      %v714 = vld [vmem:[%s713] ss:$8 sm:$0x3]
      %v716 = vlaneseq
      %v717 = vshrl.u32 %v716, 7
      %v718 = vsub.s32 0, %v717
      %v719 = vrot.slane %v714, %v718
      %v720 = vlaneseq
      %v721 = vshrl.u32 %v720, 7
      %v722 = vsub.s32 1, %v721
      %v723 = vrot.slane %v714, %v722
      %v726 = vmul.f32 %v336, %v719
      %v727 = vmul.f32 %v337, %v723
      %s728 = scalar_lea.vmem %s1, 36
      %v729 = vld [vmem:[%s728] ss:$8 sm:$0x3]
      %v731 = vlaneseq
      %v732 = vshrl.u32 %v731, 7
      %v733 = vsub.s32 0, %v732
      %v734 = vrot.slane %v729, %v733
      %v735 = vlaneseq
      %v736 = vshrl.u32 %v735, 7
      %v737 = vsub.s32 1, %v736
      %v738 = vrot.slane %v729, %v737
      %v741 = vmul.f32 %v358, %v734
      %v742 = vmul.f32 %v359, %v738
      %s743 = scalar_lea.vmem %s1, 37
      %v744 = vld [vmem:[%s743] ss:$8 sm:$0x3]
      %v746 = vlaneseq
      %v747 = vshrl.u32 %v746, 7
      %v748 = vsub.s32 0, %v747
      %v749 = vrot.slane %v744, %v748
      %v750 = vlaneseq
      %v751 = vshrl.u32 %v750, 7
      %v752 = vsub.s32 1, %v751
      %v753 = vrot.slane %v744, %v752
      %v756 = vmul.f32 %v380, %v749
      %v757 = vmul.f32 %v381, %v753
      %s758 = scalar_lea.vmem %s1, 38
      %v759 = vld [vmem:[%s758] ss:$8 sm:$0x3]
      %v761 = vlaneseq
      %v762 = vshrl.u32 %v761, 7
      %v763 = vsub.s32 0, %v762
      %v764 = vrot.slane %v759, %v763
      %v765 = vlaneseq
      %v766 = vshrl.u32 %v765, 7
      %v767 = vsub.s32 1, %v766
      %v768 = vrot.slane %v759, %v767
      %v771 = vmul.f32 %v402, %v764
      %v772 = vmul.f32 %v403, %v768
      %s773 = scalar_lea.vmem %s1, 39
      %v774 = vld [vmem:[%s773] ss:$8 sm:$0x3]
      %v776 = vlaneseq
      %v777 = vshrl.u32 %v776, 7
      %v778 = vsub.s32 0, %v777
      %v779 = vrot.slane %v774, %v778
      %v780 = vlaneseq
      %v781 = vshrl.u32 %v780, 7
      %v782 = vsub.s32 1, %v781
      %v783 = vrot.slane %v774, %v782
      %v786 = vmul.f32 %v424, %v779
      %v787 = vmul.f32 %v425, %v783
      %s788 = scalar_lea.vmem %s1, 48
      %v789 = vld [vmem:[%s788] ss:$8 sm:$0x3]
      %v791 = vlaneseq
      %v792 = vshrl.u32 %v791, 7
      %v793 = vsub.s32 0, %v792
      %v794 = vrot.slane %v789, %v793
      %v795 = vlaneseq
      %v796 = vshrl.u32 %v795, 7
      %v797 = vsub.s32 1, %v796
      %v798 = vrot.slane %v789, %v797
      %v801 = vmul.f32 %v446, %v794
      %v802 = vmul.f32 %v447, %v798
      %s803 = scalar_lea.vmem %s1, 49
      %v804 = vld [vmem:[%s803] ss:$8 sm:$0x3]
      %v806 = vlaneseq
      %v807 = vshrl.u32 %v806, 7
      %v808 = vsub.s32 0, %v807
      %v809 = vrot.slane %v804, %v808
      %v810 = vlaneseq
      %v811 = vshrl.u32 %v810, 7
      %v812 = vsub.s32 1, %v811
      %v813 = vrot.slane %v804, %v812
      %v816 = vmul.f32 %v468, %v809
      %v817 = vmul.f32 %v469, %v813
      %s818 = scalar_lea.vmem %s1, 50
      %v819 = vld [vmem:[%s818] ss:$8 sm:$0x3]
      %v821 = vlaneseq
      %v822 = vshrl.u32 %v821, 7
      %v823 = vsub.s32 0, %v822
      %v824 = vrot.slane %v819, %v823
      %v825 = vlaneseq
      %v826 = vshrl.u32 %v825, 7
      %v827 = vsub.s32 1, %v826
      %v828 = vrot.slane %v819, %v827
      %v831 = vmul.f32 %v490, %v824
      %v832 = vmul.f32 %v491, %v828
      %v833 = vld [vmem:[%s2] sm:$0xff]
      %835 = vrot.lane.b32.xlu0 %v833, 120
      %v836 = vpop.permute.xlu0 %835
      %vm837 = vcmask 64512
      %v838 = vsel %vm837, %v836, 0
      %840 = vmatprep.subr.mxu0 %v352
      %841 = vmatpush1.msra.mxu0 %v351
      %842 = vmatprep.subr.mxu0 0.0
      %843 = vmatpush1.msra.mxu0 0.0
      %844 = vmatprep.subr.mxu0 0.0
      %845 = vmatpush1.msra.mxu0 0.0
      %846 = vmatprep.subr.mxu0 0.0
      %847 = vmatpush1.msra.mxu0 0.0
      %848 = vmatprep.subr.mxu0 0.0
      %849 = vmatpush1.msra.mxu0 0.0
      %850 = vmatprep.subr.mxu0 0.0
      %851 = vmatpush1.msra.mxu0 0.0
      %852 = vmatprep.subr.mxu0 0.0
      %853 = vmatpush1.msra.mxu0 0.0
      %854 = vmatprep.subr.mxu0 0.0
      %855 = vmatpush1.msra.mxu0 0.0
      %856 = vmatprep.subr.mxu0 0.0
      %857 = vmatpush1.msra.mxu0 0.0
      %858 = vmatprep.subr.mxu0 0.0
      %859 = vmatpush1.msra.mxu0 0.0
      %860 = vmatprep.subr.mxu0 0.0
      %861 = vmatpush1.msra.mxu0 0.0
      %862 = vmatprep.subr.mxu0 0.0
      %863 = vmatpush1.msra.mxu0 0.0
      %864 = vmatprep.subr.mxu0 0.0
      %865 = vmatpush1.msra.mxu0 0.0
      %866 = vmatprep.subr.mxu0 0.0
      %867 = vmatpush1.msra.mxu0 0.0
      %868 = vmatprep.subr.mxu0 0.0
      %869 = vmatpush1.msra.mxu0 0.0
      %870 = vmatprep.subr.mxu0 0.0
      %871 = vmatpush1.msra.mxu0 0.0
      %872 = vmatprep.subr.mxu0 0.0
      %873 = vmatpush1.msra.mxu0 0.0
      %874 = vmatprep.subr.mxu0 0.0
      %875 = vmatpush1.msra.mxu0 0.0
      %876 = vmatprep.subr.mxu0 0.0
      %877 = vmatpush1.msra.mxu0 0.0
      %878 = vmatprep.subr.mxu0 0.0
      %879 = vmatpush1.msra.mxu0 0.0
      %880 = vmatprep.subr.mxu0 0.0
      %881 = vmatpush1.msra.mxu0 0.0
      %882 = vmatprep.subr.mxu0 0.0
      %883 = vmatpush1.msra.mxu0 0.0
      %884 = vmatprep.subr.mxu0 0.0
      %885 = vmatpush1.msra.mxu0 0.0
      %886 = vmatprep.subr.mxu0 0.0
      %887 = vmatpush1.msra.mxu0 0.0
      %888 = vmatprep.subr.mxu0 0.0
      %889 = vmatpush1.msra.mxu0 0.0
      %890 = vmatprep.subr.mxu0 0.0
      %891 = vmatpush1.msra.mxu0 0.0
      %892 = vmatprep.subr.mxu0 0.0
      %893 = vmatpush1.msra.mxu0 0.0
      %894 = vmatprep.subr.mxu0 0.0
      %895 = vmatpush1.msra.mxu0 0.0
      %896 = vmatprep.subr.mxu0 0.0
      %897 = vmatpush1.msra.mxu0 0.0
      %898 = vmatprep.subr.mxu0 0.0
      %899 = vmatpush1.msra.mxu0 0.0
      %900 = vmatprep.subr.mxu0 0.0
      %901 = vmatpush1.msra.mxu0 0.0
      %902 = vmatprep.subr.mxu0 0.0
      %903 = vmatpush1.msra.mxu0 0.0
      %904 = vmatprep.mubr.f32.mxu0 0.0
      %905 = vmatmul.mubr.f32.gmra.mrb[0].mxu0 %v838
      %v906 = vpop.f32.mrb[0].mxu0
      %v907 = vadd.f32 0.0, %v906
      %v908 = vpop.f32.mrb[0].mxu0
      %v909 = vadd.f32 0.0, %v908
      %910 = vdwg.mxu0
      %v911 = vsel %vm837, %v833, 0
      %913 = vmatprep.subr.mxu0 %v330
      %914 = vmatpush1.msra.mxu0 %v329
      %915 = vmatprep.subr.mxu0 0.0
      %916 = vmatpush1.msra.mxu0 0.0
      %917 = vmatprep.subr.mxu0 0.0
      %918 = vmatpush1.msra.mxu0 0.0
      %919 = vmatprep.subr.mxu0 0.0
      %920 = vmatpush1.msra.mxu0 0.0
      %921 = vmatprep.subr.mxu0 0.0
      %922 = vmatpush1.msra.mxu0 0.0
      %923 = vmatprep.subr.mxu0 0.0
      %924 = vmatpush1.msra.mxu0 0.0
      %925 = vmatprep.subr.mxu0 0.0
      %926 = vmatpush1.msra.mxu0 0.0
      %927 = vmatprep.subr.mxu0 0.0
      %928 = vmatpush1.msra.mxu0 0.0
      %929 = vmatprep.subr.mxu0 0.0
      %930 = vmatpush1.msra.mxu0 0.0
      %931 = vmatprep.subr.mxu0 0.0
      %932 = vmatpush1.msra.mxu0 0.0
      %933 = vmatprep.subr.mxu0 0.0
      %934 = vmatpush1.msra.mxu0 0.0
      %935 = vmatprep.subr.mxu0 0.0
      %936 = vmatpush1.msra.mxu0 0.0
      %937 = vmatprep.subr.mxu0 0.0
      %938 = vmatpush1.msra.mxu0 0.0
      %939 = vmatprep.subr.mxu0 0.0
      %940 = vmatpush1.msra.mxu0 0.0
      %941 = vmatprep.subr.mxu0 0.0
      %942 = vmatpush1.msra.mxu0 0.0
      %943 = vmatprep.subr.mxu0 0.0
      %944 = vmatpush1.msra.mxu0 0.0
      %945 = vmatprep.subr.mxu0 0.0
      %946 = vmatpush1.msra.mxu0 0.0
      %947 = vmatprep.subr.mxu0 0.0
      %948 = vmatpush1.msra.mxu0 0.0
      %949 = vmatprep.subr.mxu0 0.0
      %950 = vmatpush1.msra.mxu0 0.0
      %951 = vmatprep.subr.mxu0 0.0
      %952 = vmatpush1.msra.mxu0 0.0
      %953 = vmatprep.subr.mxu0 0.0
      %954 = vmatpush1.msra.mxu0 0.0
      %955 = vmatprep.subr.mxu0 0.0
      %956 = vmatpush1.msra.mxu0 0.0
      %957 = vmatprep.subr.mxu0 0.0
      %958 = vmatpush1.msra.mxu0 0.0
      %959 = vmatprep.subr.mxu0 0.0
      %960 = vmatpush1.msra.mxu0 0.0
      %961 = vmatprep.subr.mxu0 0.0
      %962 = vmatpush1.msra.mxu0 0.0
      %963 = vmatprep.subr.mxu0 0.0
      %964 = vmatpush1.msra.mxu0 0.0
      %965 = vmatprep.subr.mxu0 0.0
      %966 = vmatpush1.msra.mxu0 0.0
      %967 = vmatprep.subr.mxu0 0.0
      %968 = vmatpush1.msra.mxu0 0.0
      %969 = vmatprep.subr.mxu0 0.0
      %970 = vmatpush1.msra.mxu0 0.0
      %971 = vmatprep.subr.mxu0 0.0
      %972 = vmatpush1.msra.mxu0 0.0
      %973 = vmatprep.subr.mxu0 0.0
      %974 = vmatpush1.msra.mxu0 0.0
      %975 = vmatprep.subr.mxu0 0.0
      %976 = vmatpush1.msra.mxu0 0.0
      %977 = vmatprep.mubr.f32.mxu0 0.0
      %978 = vmatmul.mubr.f32.gmra.mrb[0].mxu0 %v911
      %v979 = vpop.f32.mrb[0].mxu0
      %v980 = vadd.f32 %v907, %v979
      %v981 = vpop.f32.mrb[0].mxu0
      %v982 = vadd.f32 %v909, %v981
      %983 = vdwg.mxu0
      %984 = vrot.lane.b32.xlu0 %v833, 112
      %v985 = vpop.permute.xlu0 %984
      %v986 = vsel %vm837, %v985, 0
      %988 = vmatprep.subr.mxu0 %v374
      %989 = vmatpush1.msra.mxu0 %v373
      %990 = vmatprep.subr.mxu0 0.0
      %991 = vmatpush1.msra.mxu0 0.0
      %992 = vmatprep.subr.mxu0 0.0
      %993 = vmatpush1.msra.mxu0 0.0
      %994 = vmatprep.subr.mxu0 0.0
      %995 = vmatpush1.msra.mxu0 0.0
      %996 = vmatprep.subr.mxu0 0.0
      %997 = vmatpush1.msra.mxu0 0.0
      %998 = vmatprep.subr.mxu0 0.0
      %999 = vmatpush1.msra.mxu0 0.0
      %1000 = vmatprep.subr.mxu0 0.0
      %1001 = vmatpush1.msra.mxu0 0.0
      %1002 = vmatprep.subr.mxu0 0.0
      %1003 = vmatpush1.msra.mxu0 0.0
      %1004 = vmatprep.subr.mxu0 0.0
      %1005 = vmatpush1.msra.mxu0 0.0
      %1006 = vmatprep.subr.mxu0 0.0
      %1007 = vmatpush1.msra.mxu0 0.0
      %1008 = vmatprep.subr.mxu0 0.0
      %1009 = vmatpush1.msra.mxu0 0.0
      %1010 = vmatprep.subr.mxu0 0.0
      %1011 = vmatpush1.msra.mxu0 0.0
      %1012 = vmatprep.subr.mxu0 0.0
      %1013 = vmatpush1.msra.mxu0 0.0
      %1014 = vmatprep.subr.mxu0 0.0
      %1015 = vmatpush1.msra.mxu0 0.0
      %1016 = vmatprep.subr.mxu0 0.0
      %1017 = vmatpush1.msra.mxu0 0.0
      %1018 = vmatprep.subr.mxu0 0.0
      %1019 = vmatpush1.msra.mxu0 0.0
      %1020 = vmatprep.subr.mxu0 0.0
      %1021 = vmatpush1.msra.mxu0 0.0
      %1022 = vmatprep.subr.mxu0 0.0
      %1023 = vmatpush1.msra.mxu0 0.0
      %1024 = vmatprep.subr.mxu0 0.0
      %1025 = vmatpush1.msra.mxu0 0.0
      %1026 = vmatprep.subr.mxu0 0.0
      %1027 = vmatpush1.msra.mxu0 0.0
      %1028 = vmatprep.subr.mxu0 0.0
      %1029 = vmatpush1.msra.mxu0 0.0
      %1030 = vmatprep.subr.mxu0 0.0
      %1031 = vmatpush1.msra.mxu0 0.0
      %1032 = vmatprep.subr.mxu0 0.0
      %1033 = vmatpush1.msra.mxu0 0.0
      %1034 = vmatprep.subr.mxu0 0.0
      %1035 = vmatpush1.msra.mxu0 0.0
      %1036 = vmatprep.subr.mxu0 0.0
      %1037 = vmatpush1.msra.mxu0 0.0
      %1038 = vmatprep.subr.mxu0 0.0
      %1039 = vmatpush1.msra.mxu0 0.0
      %1040 = vmatprep.subr.mxu0 0.0
      %1041 = vmatpush1.msra.mxu0 0.0
      %1042 = vmatprep.subr.mxu0 0.0
      %1043 = vmatpush1.msra.mxu0 0.0
      %1044 = vmatprep.subr.mxu0 0.0
      %1045 = vmatpush1.msra.mxu0 0.0
      %1046 = vmatprep.subr.mxu0 0.0
      %1047 = vmatpush1.msra.mxu0 0.0
      %1048 = vmatprep.subr.mxu0 0.0
      %1049 = vmatpush1.msra.mxu0 0.0
      %1050 = vmatprep.subr.mxu0 0.0
      %1051 = vmatpush1.msra.mxu0 0.0
      %1052 = vmatprep.mubr.f32.mxu0 0.0
      %1053 = vmatmul.mubr.f32.gmra.mrb[0].mxu0 %v986
      %v1054 = vpop.f32.mrb[0].mxu0
      %v1055 = vadd.f32 0.0, %v1054
      %v1056 = vpop.f32.mrb[0].mxu0
      %v1057 = vadd.f32 0.0, %v1056
      %1058 = vdwg.mxu0
      %v1059 = vadd.f32 %v980, %v1055
      %v1060 = vadd.f32 %v982, %v1057
      %1061 = vrot.lane.b32.xlu0 %v833, 104
      %v1062 = vpop.permute.xlu0 %1061
      %v1063 = vsel %vm837, %v1062, 0
      %1065 = vmatprep.subr.mxu0 %v396
      %1066 = vmatpush1.msra.mxu0 %v395
      %1067 = vmatprep.subr.mxu0 0.0
      %1068 = vmatpush1.msra.mxu0 0.0
      %1069 = vmatprep.subr.mxu0 0.0
      %1070 = vmatpush1.msra.mxu0 0.0
      %1071 = vmatprep.subr.mxu0 0.0
      %1072 = vmatpush1.msra.mxu0 0.0
      %1073 = vmatprep.subr.mxu0 0.0
      %1074 = vmatpush1.msra.mxu0 0.0
      %1075 = vmatprep.subr.mxu0 0.0
      %1076 = vmatpush1.msra.mxu0 0.0
      %1077 = vmatprep.subr.mxu0 0.0
      %1078 = vmatpush1.msra.mxu0 0.0
      %1079 = vmatprep.subr.mxu0 0.0
      %1080 = vmatpush1.msra.mxu0 0.0
      %1081 = vmatprep.subr.mxu0 0.0
      %1082 = vmatpush1.msra.mxu0 0.0
      %1083 = vmatprep.subr.mxu0 0.0
      %1084 = vmatpush1.msra.mxu0 0.0
      %1085 = vmatprep.subr.mxu0 0.0
      %1086 = vmatpush1.msra.mxu0 0.0
      %1087 = vmatprep.subr.mxu0 0.0
      %1088 = vmatpush1.msra.mxu0 0.0
      %1089 = vmatprep.subr.mxu0 0.0
      %1090 = vmatpush1.msra.mxu0 0.0
      %1091 = vmatprep.subr.mxu0 0.0
      %1092 = vmatpush1.msra.mxu0 0.0
      %1093 = vmatprep.subr.mxu0 0.0
      %1094 = vmatpush1.msra.mxu0 0.0
      %1095 = vmatprep.subr.mxu0 0.0
      %1096 = vmatpush1.msra.mxu0 0.0
      %1097 = vmatprep.subr.mxu0 0.0
      %1098 = vmatpush1.msra.mxu0 0.0
      %1099 = vmatprep.subr.mxu0 0.0
      %1100 = vmatpush1.msra.mxu0 0.0
      %1101 = vmatprep.subr.mxu0 0.0
      %1102 = vmatpush1.msra.mxu0 0.0
      %1103 = vmatprep.subr.mxu0 0.0
      %1104 = vmatpush1.msra.mxu0 0.0
      %1105 = vmatprep.subr.mxu0 0.0
      %1106 = vmatpush1.msra.mxu0 0.0
      %1107 = vmatprep.subr.mxu0 0.0
      %1108 = vmatpush1.msra.mxu0 0.0
      %1109 = vmatprep.subr.mxu0 0.0
      %1110 = vmatpush1.msra.mxu0 0.0
      %1111 = vmatprep.subr.mxu0 0.0
      %1112 = vmatpush1.msra.mxu0 0.0
      %1113 = vmatprep.subr.mxu0 0.0
      %1114 = vmatpush1.msra.mxu0 0.0
      %1115 = vmatprep.subr.mxu0 0.0
      %1116 = vmatpush1.msra.mxu0 0.0
      %1117 = vmatprep.subr.mxu0 0.0
      %1118 = vmatpush1.msra.mxu0 0.0
      %1119 = vmatprep.subr.mxu0 0.0
      %1120 = vmatpush1.msra.mxu0 0.0
      %1121 = vmatprep.subr.mxu0 0.0
      %1122 = vmatpush1.msra.mxu0 0.0
      %1123 = vmatprep.subr.mxu0 0.0
      %1124 = vmatpush1.msra.mxu0 0.0
      %1125 = vmatprep.subr.mxu0 0.0
      %1126 = vmatpush1.msra.mxu0 0.0
      %1127 = vmatprep.subr.mxu0 0.0
      %1128 = vmatpush1.msra.mxu0 0.0
      %1129 = vmatprep.mubr.f32.mxu0 0.0
      %1130 = vmatmul.mubr.f32.gmra.mrb[0].mxu0 %v1063
      %v1131 = vpop.f32.mrb[0].mxu0
      %v1132 = vadd.f32 0.0, %v1131
      %v1133 = vpop.f32.mrb[0].mxu0
      %v1134 = vadd.f32 0.0, %v1133
      %1135 = vdwg.mxu0
      %v1136 = vadd.f32 %v1059, %v1132
      %v1137 = vadd.f32 %v1060, %v1134
      %1138 = vrot.lane.b32.xlu0 %v833, 96
      %v1139 = vpop.permute.xlu0 %1138
      %v1140 = vsel %vm837, %v1139, 0
      %1142 = vmatprep.subr.mxu0 %v418
      %1143 = vmatpush1.msra.mxu0 %v417
      %1144 = vmatprep.subr.mxu0 0.0
      %1145 = vmatpush1.msra.mxu0 0.0
      %1146 = vmatprep.subr.mxu0 0.0
      %1147 = vmatpush1.msra.mxu0 0.0
      %1148 = vmatprep.subr.mxu0 0.0
      %1149 = vmatpush1.msra.mxu0 0.0
      %1150 = vmatprep.subr.mxu0 0.0
      %1151 = vmatpush1.msra.mxu0 0.0
      %1152 = vmatprep.subr.mxu0 0.0
      %1153 = vmatpush1.msra.mxu0 0.0
      %1154 = vmatprep.subr.mxu0 0.0
      %1155 = vmatpush1.msra.mxu0 0.0
      %1156 = vmatprep.subr.mxu0 0.0
      %1157 = vmatpush1.msra.mxu0 0.0
      %1158 = vmatprep.subr.mxu0 0.0
      %1159 = vmatpush1.msra.mxu0 0.0
      %1160 = vmatprep.subr.mxu0 0.0
      %1161 = vmatpush1.msra.mxu0 0.0
      %1162 = vmatprep.subr.mxu0 0.0
      %1163 = vmatpush1.msra.mxu0 0.0
      %1164 = vmatprep.subr.mxu0 0.0
      %1165 = vmatpush1.msra.mxu0 0.0
      %1166 = vmatprep.subr.mxu0 0.0
      %1167 = vmatpush1.msra.mxu0 0.0
      %1168 = vmatprep.subr.mxu0 0.0
      %1169 = vmatpush1.msra.mxu0 0.0
      %1170 = vmatprep.subr.mxu0 0.0
      %1171 = vmatpush1.msra.mxu0 0.0
      %1172 = vmatprep.subr.mxu0 0.0
      %1173 = vmatpush1.msra.mxu0 0.0
      %1174 = vmatprep.subr.mxu0 0.0
      %1175 = vmatpush1.msra.mxu0 0.0
      %1176 = vmatprep.subr.mxu0 0.0
      %1177 = vmatpush1.msra.mxu0 0.0
      %1178 = vmatprep.subr.mxu0 0.0
      %1179 = vmatpush1.msra.mxu0 0.0
      %1180 = vmatprep.subr.mxu0 0.0
      %1181 = vmatpush1.msra.mxu0 0.0
      %1182 = vmatprep.subr.mxu0 0.0
      %1183 = vmatpush1.msra.mxu0 0.0
      %1184 = vmatprep.subr.mxu0 0.0
      %1185 = vmatpush1.msra.mxu0 0.0
      %1186 = vmatprep.subr.mxu0 0.0
      %1187 = vmatpush1.msra.mxu0 0.0
      %1188 = vmatprep.subr.mxu0 0.0
      %1189 = vmatpush1.msra.mxu0 0.0
      %1190 = vmatprep.subr.mxu0 0.0
      %1191 = vmatpush1.msra.mxu0 0.0
      %1192 = vmatprep.subr.mxu0 0.0
      %1193 = vmatpush1.msra.mxu0 0.0
      %1194 = vmatprep.subr.mxu0 0.0
      %1195 = vmatpush1.msra.mxu0 0.0
      %1196 = vmatprep.subr.mxu0 0.0
      %1197 = vmatpush1.msra.mxu0 0.0
      %1198 = vmatprep.subr.mxu0 0.0
      %1199 = vmatpush1.msra.mxu0 0.0
      %1200 = vmatprep.subr.mxu0 0.0
      %1201 = vmatpush1.msra.mxu0 0.0
      %1202 = vmatprep.subr.mxu0 0.0
      %1203 = vmatpush1.msra.mxu0 0.0
      %1204 = vmatprep.subr.mxu0 0.0
      %1205 = vmatpush1.msra.mxu0 0.0
      %1206 = vmatprep.mubr.f32.mxu0 0.0
      %1207 = vmatmul.mubr.f32.gmra.mrb[0].mxu0 %v1140
      %v1208 = vpop.f32.mrb[0].mxu0
      %v1209 = vadd.f32 0.0, %v1208
      %v1210 = vpop.f32.mrb[0].mxu0
      %v1211 = vadd.f32 0.0, %v1210
      %1212 = vdwg.mxu0
      %v1213 = vadd.f32 %v1136, %v1209
      %v1214 = vadd.f32 %v1137, %v1211
      %1215 = vrot.lane.b32.xlu0 %v833, 88
      %v1216 = vpop.permute.xlu0 %1215
      %v1217 = vsel %vm837, %v1216, 0
      %1219 = vmatprep.subr.mxu0 %v440
      %1220 = vmatpush1.msra.mxu0 %v439
      %1221 = vmatprep.subr.mxu0 0.0
      %1222 = vmatpush1.msra.mxu0 0.0
      %1223 = vmatprep.subr.mxu0 0.0
      %1224 = vmatpush1.msra.mxu0 0.0
      %1225 = vmatprep.subr.mxu0 0.0
      %1226 = vmatpush1.msra.mxu0 0.0
      %1227 = vmatprep.subr.mxu0 0.0
      %1228 = vmatpush1.msra.mxu0 0.0
      %1229 = vmatprep.subr.mxu0 0.0
      %1230 = vmatpush1.msra.mxu0 0.0
      %1231 = vmatprep.subr.mxu0 0.0
      %1232 = vmatpush1.msra.mxu0 0.0
      %1233 = vmatprep.subr.mxu0 0.0
      %1234 = vmatpush1.msra.mxu0 0.0
      %1235 = vmatprep.subr.mxu0 0.0
      %1236 = vmatpush1.msra.mxu0 0.0
      %1237 = vmatprep.subr.mxu0 0.0
      %1238 = vmatpush1.msra.mxu0 0.0
      %1239 = vmatprep.subr.mxu0 0.0
      %1240 = vmatpush1.msra.mxu0 0.0
      %1241 = vmatprep.subr.mxu0 0.0
      %1242 = vmatpush1.msra.mxu0 0.0
      %1243 = vmatprep.subr.mxu0 0.0
      %1244 = vmatpush1.msra.mxu0 0.0
      %1245 = vmatprep.subr.mxu0 0.0
      %1246 = vmatpush1.msra.mxu0 0.0
      %1247 = vmatprep.subr.mxu0 0.0
      %1248 = vmatpush1.msra.mxu0 0.0
      %1249 = vmatprep.subr.mxu0 0.0
      %1250 = vmatpush1.msra.mxu0 0.0
      %1251 = vmatprep.subr.mxu0 0.0
      %1252 = vmatpush1.msra.mxu0 0.0
      %1253 = vmatprep.subr.mxu0 0.0
      %1254 = vmatpush1.msra.mxu0 0.0
      %1255 = vmatprep.subr.mxu0 0.0
      %1256 = vmatpush1.msra.mxu0 0.0
      %1257 = vmatprep.subr.mxu0 0.0
      %1258 = vmatpush1.msra.mxu0 0.0
      %1259 = vmatprep.subr.mxu0 0.0
      %1260 = vmatpush1.msra.mxu0 0.0
      %1261 = vmatprep.subr.mxu0 0.0
      %1262 = vmatpush1.msra.mxu0 0.0
      %1263 = vmatprep.subr.mxu0 0.0
      %1264 = vmatpush1.msra.mxu0 0.0
      %1265 = vmatprep.subr.mxu0 0.0
      %1266 = vmatpush1.msra.mxu0 0.0
      %1267 = vmatprep.subr.mxu0 0.0
      %1268 = vmatpush1.msra.mxu0 0.0
      %1269 = vmatprep.subr.mxu0 0.0
      %1270 = vmatpush1.msra.mxu0 0.0
      %1271 = vmatprep.subr.mxu0 0.0
      %1272 = vmatpush1.msra.mxu0 0.0
      %1273 = vmatprep.subr.mxu0 0.0
      %1274 = vmatpush1.msra.mxu0 0.0
      %1275 = vmatprep.subr.mxu0 0.0
      %1276 = vmatpush1.msra.mxu0 0.0
      %1277 = vmatprep.subr.mxu0 0.0
      %1278 = vmatpush1.msra.mxu0 0.0
      %1279 = vmatprep.subr.mxu0 0.0
      %1280 = vmatpush1.msra.mxu0 0.0
      %1281 = vmatprep.subr.mxu0 0.0
      %1282 = vmatpush1.msra.mxu0 0.0
      %1283 = vmatprep.mubr.f32.mxu0 0.0
      %1284 = vmatmul.mubr.f32.gmra.mrb[0].mxu0 %v1217
      %v1285 = vpop.f32.mrb[0].mxu0
      %v1286 = vadd.f32 0.0, %v1285
      %v1287 = vpop.f32.mrb[0].mxu0
      %v1288 = vadd.f32 0.0, %v1287
      %1289 = vdwg.mxu0
      %v1290 = vadd.f32 %v1213, %v1286
      %v1291 = vadd.f32 %v1214, %v1288
      %1292 = vrot.lane.b32.xlu0 %v833, 80
      %v1293 = vpop.permute.xlu0 %1292
      %v1294 = vsel %vm837, %v1293, 0
      %1296 = vmatprep.subr.mxu0 %v462
      %1297 = vmatpush1.msra.mxu0 %v461
      %1298 = vmatprep.subr.mxu0 0.0
      %1299 = vmatpush1.msra.mxu0 0.0
      %1300 = vmatprep.subr.mxu0 0.0
      %1301 = vmatpush1.msra.mxu0 0.0
      %1302 = vmatprep.subr.mxu0 0.0
      %1303 = vmatpush1.msra.mxu0 0.0
      %1304 = vmatprep.subr.mxu0 0.0
      %1305 = vmatpush1.msra.mxu0 0.0
      %1306 = vmatprep.subr.mxu0 0.0
      %1307 = vmatpush1.msra.mxu0 0.0
      %1308 = vmatprep.subr.mxu0 0.0
      %1309 = vmatpush1.msra.mxu0 0.0
      %1310 = vmatprep.subr.mxu0 0.0
      %1311 = vmatpush1.msra.mxu0 0.0
      %1312 = vmatprep.subr.mxu0 0.0
      %1313 = vmatpush1.msra.mxu0 0.0
      %1314 = vmatprep.subr.mxu0 0.0
      %1315 = vmatpush1.msra.mxu0 0.0
      %1316 = vmatprep.subr.mxu0 0.0
      %1317 = vmatpush1.msra.mxu0 0.0
      %1318 = vmatprep.subr.mxu0 0.0
      %1319 = vmatpush1.msra.mxu0 0.0
      %1320 = vmatprep.subr.mxu0 0.0
      %1321 = vmatpush1.msra.mxu0 0.0
      %1322 = vmatprep.subr.mxu0 0.0
      %1323 = vmatpush1.msra.mxu0 0.0
      %1324 = vmatprep.subr.mxu0 0.0
      %1325 = vmatpush1.msra.mxu0 0.0
      %1326 = vmatprep.subr.mxu0 0.0
      %1327 = vmatpush1.msra.mxu0 0.0
      %1328 = vmatprep.subr.mxu0 0.0
      %1329 = vmatpush1.msra.mxu0 0.0
      %1330 = vmatprep.subr.mxu0 0.0
      %1331 = vmatpush1.msra.mxu0 0.0
      %1332 = vmatprep.subr.mxu0 0.0
      %1333 = vmatpush1.msra.mxu0 0.0
      %1334 = vmatprep.subr.mxu0 0.0
      %1335 = vmatpush1.msra.mxu0 0.0
      %1336 = vmatprep.subr.mxu0 0.0
      %1337 = vmatpush1.msra.mxu0 0.0
      %1338 = vmatprep.subr.mxu0 0.0
      %1339 = vmatpush1.msra.mxu0 0.0
      %1340 = vmatprep.subr.mxu0 0.0
      %1341 = vmatpush1.msra.mxu0 0.0
      %1342 = vmatprep.subr.mxu0 0.0
      %1343 = vmatpush1.msra.mxu0 0.0
      %1344 = vmatprep.subr.mxu0 0.0
      %1345 = vmatpush1.msra.mxu0 0.0
      %1346 = vmatprep.subr.mxu0 0.0
      %1347 = vmatpush1.msra.mxu0 0.0
      %1348 = vmatprep.subr.mxu0 0.0
      %1349 = vmatpush1.msra.mxu0 0.0
      %1350 = vmatprep.subr.mxu0 0.0
      %1351 = vmatpush1.msra.mxu0 0.0
      %1352 = vmatprep.subr.mxu0 0.0
      %1353 = vmatpush1.msra.mxu0 0.0
      %1354 = vmatprep.subr.mxu0 0.0
      %1355 = vmatpush1.msra.mxu0 0.0
      %1356 = vmatprep.subr.mxu0 0.0
      %1357 = vmatpush1.msra.mxu0 0.0
      %1358 = vmatprep.subr.mxu0 0.0
      %1359 = vmatpush1.msra.mxu0 0.0
      %1360 = vmatprep.mubr.f32.mxu0 0.0
      %1361 = vmatmul.mubr.f32.gmra.mrb[0].mxu0 %v1294
      %v1362 = vpop.f32.mrb[0].mxu0
      %v1363 = vadd.f32 0.0, %v1362
      %v1364 = vpop.f32.mrb[0].mxu0
      %v1365 = vadd.f32 0.0, %v1364
      %1366 = vdwg.mxu0
      %v1367 = vadd.f32 %v1290, %v1363
      %v1368 = vadd.f32 %v1291, %v1365
      %1369 = vrot.lane.b32.xlu0 %v833, 72
      %v1370 = vpop.permute.xlu0 %1369
      %v1371 = vsel %vm837, %v1370, 0
      %1373 = vmatprep.subr.mxu0 %v484
      %1374 = vmatpush1.msra.mxu0 %v483
      %1375 = vmatprep.subr.mxu0 0.0
      %1376 = vmatpush1.msra.mxu0 0.0
      %1377 = vmatprep.subr.mxu0 0.0
      %1378 = vmatpush1.msra.mxu0 0.0
      %1379 = vmatprep.subr.mxu0 0.0
      %1380 = vmatpush1.msra.mxu0 0.0
      %1381 = vmatprep.subr.mxu0 0.0
      %1382 = vmatpush1.msra.mxu0 0.0
      %1383 = vmatprep.subr.mxu0 0.0
      %1384 = vmatpush1.msra.mxu0 0.0
      %1385 = vmatprep.subr.mxu0 0.0
      %1386 = vmatpush1.msra.mxu0 0.0
      %1387 = vmatprep.subr.mxu0 0.0
      %1388 = vmatpush1.msra.mxu0 0.0
      %1389 = vmatprep.subr.mxu0 0.0
      %1390 = vmatpush1.msra.mxu0 0.0
      %1391 = vmatprep.subr.mxu0 0.0
      %1392 = vmatpush1.msra.mxu0 0.0
      %1393 = vmatprep.subr.mxu0 0.0
      %1394 = vmatpush1.msra.mxu0 0.0
      %1395 = vmatprep.subr.mxu0 0.0
      %1396 = vmatpush1.msra.mxu0 0.0
      %1397 = vmatprep.subr.mxu0 0.0
      %1398 = vmatpush1.msra.mxu0 0.0
      %1399 = vmatprep.subr.mxu0 0.0
      %1400 = vmatpush1.msra.mxu0 0.0
      %1401 = vmatprep.subr.mxu0 0.0
      %1402 = vmatpush1.msra.mxu0 0.0
      %1403 = vmatprep.subr.mxu0 0.0
      %1404 = vmatpush1.msra.mxu0 0.0
      %1405 = vmatprep.subr.mxu0 0.0
      %1406 = vmatpush1.msra.mxu0 0.0
      %1407 = vmatprep.subr.mxu0 0.0
      %1408 = vmatpush1.msra.mxu0 0.0
      %1409 = vmatprep.subr.mxu0 0.0
      %1410 = vmatpush1.msra.mxu0 0.0
      %1411 = vmatprep.subr.mxu0 0.0
      %1412 = vmatpush1.msra.mxu0 0.0
      %1413 = vmatprep.subr.mxu0 0.0
      %1414 = vmatpush1.msra.mxu0 0.0
      %1415 = vmatprep.subr.mxu0 0.0
      %1416 = vmatpush1.msra.mxu0 0.0
      %1417 = vmatprep.subr.mxu0 0.0
      %1418 = vmatpush1.msra.mxu0 0.0
      %1419 = vmatprep.subr.mxu0 0.0
      %1420 = vmatpush1.msra.mxu0 0.0
      %1421 = vmatprep.subr.mxu0 0.0
      %1422 = vmatpush1.msra.mxu0 0.0
      %1423 = vmatprep.subr.mxu0 0.0
      %1424 = vmatpush1.msra.mxu0 0.0
      %1425 = vmatprep.subr.mxu0 0.0
      %1426 = vmatpush1.msra.mxu0 0.0
      %1427 = vmatprep.subr.mxu0 0.0
      %1428 = vmatpush1.msra.mxu0 0.0
      %1429 = vmatprep.subr.mxu0 0.0
      %1430 = vmatpush1.msra.mxu0 0.0
      %1431 = vmatprep.subr.mxu0 0.0
      %1432 = vmatpush1.msra.mxu0 0.0
      %1433 = vmatprep.subr.mxu0 0.0
      %1434 = vmatpush1.msra.mxu0 0.0
      %1435 = vmatprep.subr.mxu0 0.0
      %1436 = vmatpush1.msra.mxu0 0.0
      %1437 = vmatprep.mubr.f32.mxu0 0.0
      %1438 = vmatmul.mubr.f32.gmra.mrb[0].mxu0 %v1371
      %v1439 = vpop.f32.mrb[0].mxu0
      %v1440 = vadd.f32 0.0, %v1439
      %v1441 = vpop.f32.mrb[0].mxu0
      %v1442 = vadd.f32 0.0, %v1441
      %1443 = vdwg.mxu0
      %v1444 = vadd.f32 %v1367, %v1440
      %v1445 = vadd.f32 %v1368, %v1442
      %1446 = vrot.lane.b32.xlu0 %v833, 64
      %v1447 = vpop.permute.xlu0 %1446
      %v1448 = vsel %vm837, %v1447, 0
      %1450 = vmatprep.subr.mxu0 %v506
      %1451 = vmatpush1.msra.mxu0 %v505
      %1452 = vmatprep.subr.mxu0 0.0
      %1453 = vmatpush1.msra.mxu0 0.0
      %1454 = vmatprep.subr.mxu0 0.0
      %1455 = vmatpush1.msra.mxu0 0.0
      %1456 = vmatprep.subr.mxu0 0.0
      %1457 = vmatpush1.msra.mxu0 0.0
      %1458 = vmatprep.subr.mxu0 0.0
      %1459 = vmatpush1.msra.mxu0 0.0
      %1460 = vmatprep.subr.mxu0 0.0
      %1461 = vmatpush1.msra.mxu0 0.0
      %1462 = vmatprep.subr.mxu0 0.0
      %1463 = vmatpush1.msra.mxu0 0.0
      %1464 = vmatprep.subr.mxu0 0.0
      %1465 = vmatpush1.msra.mxu0 0.0
      %1466 = vmatprep.subr.mxu0 0.0
      %1467 = vmatpush1.msra.mxu0 0.0
      %1468 = vmatprep.subr.mxu0 0.0
      %1469 = vmatpush1.msra.mxu0 0.0
      %1470 = vmatprep.subr.mxu0 0.0
      %1471 = vmatpush1.msra.mxu0 0.0
      %1472 = vmatprep.subr.mxu0 0.0
      %1473 = vmatpush1.msra.mxu0 0.0
      %1474 = vmatprep.subr.mxu0 0.0
      %1475 = vmatpush1.msra.mxu0 0.0
      %1476 = vmatprep.subr.mxu0 0.0
      %1477 = vmatpush1.msra.mxu0 0.0
      %1478 = vmatprep.subr.mxu0 0.0
      %1479 = vmatpush1.msra.mxu0 0.0
      %1480 = vmatprep.subr.mxu0 0.0
      %1481 = vmatpush1.msra.mxu0 0.0
      %1482 = vmatprep.subr.mxu0 0.0
      %1483 = vmatpush1.msra.mxu0 0.0
      %1484 = vmatprep.subr.mxu0 0.0
      %1485 = vmatpush1.msra.mxu0 0.0
      %1486 = vmatprep.subr.mxu0 0.0
      %1487 = vmatpush1.msra.mxu0 0.0
      %1488 = vmatprep.subr.mxu0 0.0
      %1489 = vmatpush1.msra.mxu0 0.0
      %1490 = vmatprep.subr.mxu0 0.0
      %1491 = vmatpush1.msra.mxu0 0.0
      %1492 = vmatprep.subr.mxu0 0.0
      %1493 = vmatpush1.msra.mxu0 0.0
      %1494 = vmatprep.subr.mxu0 0.0
      %1495 = vmatpush1.msra.mxu0 0.0
      %1496 = vmatprep.subr.mxu0 0.0
      %1497 = vmatpush1.msra.mxu0 0.0
      %1498 = vmatprep.subr.mxu0 0.0
      %1499 = vmatpush1.msra.mxu0 0.0
      %1500 = vmatprep.subr.mxu0 0.0
      %1501 = vmatpush1.msra.mxu0 0.0
      %1502 = vmatprep.subr.mxu0 0.0
      %1503 = vmatpush1.msra.mxu0 0.0
      %1504 = vmatprep.subr.mxu0 0.0
      %1505 = vmatpush1.msra.mxu0 0.0
      %1506 = vmatprep.subr.mxu0 0.0
      %1507 = vmatpush1.msra.mxu0 0.0
      %1508 = vmatprep.subr.mxu0 0.0
      %1509 = vmatpush1.msra.mxu0 0.0
      %1510 = vmatprep.subr.mxu0 0.0
      %1511 = vmatpush1.msra.mxu0 0.0
      %1512 = vmatprep.subr.mxu0 0.0
      %1513 = vmatpush1.msra.mxu0 0.0
      %1514 = vmatprep.mubr.f32.mxu0 0.0
      %1515 = vmatmul.mubr.f32.gmra.mrb[0].mxu0 %v1448
      %v1516 = vpop.f32.mrb[0].mxu0
      %v1517 = vadd.f32 0.0, %v1516
      %v1518 = vpop.f32.mrb[0].mxu0
      %v1519 = vadd.f32 0.0, %v1518
      %1520 = vdwg.mxu0
      %v1521 = vadd.f32 %v1444, %v1517
      %v1522 = vadd.f32 %v1445, %v1519
      %1523 = vrot.lane.b32.xlu0 %v833, 56
      %v1524 = vpop.permute.xlu0 %1523
      %v1525 = vsel %vm837, %v1524, 0
      %1527 = vmatprep.subr.mxu0 %v528
      %1528 = vmatpush1.msra.mxu0 %v527
      %1529 = vmatprep.subr.mxu0 0.0
      %1530 = vmatpush1.msra.mxu0 0.0
      %1531 = vmatprep.subr.mxu0 0.0
      %1532 = vmatpush1.msra.mxu0 0.0
      %1533 = vmatprep.subr.mxu0 0.0
      %1534 = vmatpush1.msra.mxu0 0.0
      %1535 = vmatprep.subr.mxu0 0.0
      %1536 = vmatpush1.msra.mxu0 0.0
      %1537 = vmatprep.subr.mxu0 0.0
      %1538 = vmatpush1.msra.mxu0 0.0
      %1539 = vmatprep.subr.mxu0 0.0
      %1540 = vmatpush1.msra.mxu0 0.0
      %1541 = vmatprep.subr.mxu0 0.0
      %1542 = vmatpush1.msra.mxu0 0.0
      %1543 = vmatprep.subr.mxu0 0.0
      %1544 = vmatpush1.msra.mxu0 0.0
      %1545 = vmatprep.subr.mxu0 0.0
      %1546 = vmatpush1.msra.mxu0 0.0
      %1547 = vmatprep.subr.mxu0 0.0
      %1548 = vmatpush1.msra.mxu0 0.0
      %1549 = vmatprep.subr.mxu0 0.0
      %1550 = vmatpush1.msra.mxu0 0.0
      %1551 = vmatprep.subr.mxu0 0.0
      %1552 = vmatpush1.msra.mxu0 0.0
      %1553 = vmatprep.subr.mxu0 0.0
      %1554 = vmatpush1.msra.mxu0 0.0
      %1555 = vmatprep.subr.mxu0 0.0
      %1556 = vmatpush1.msra.mxu0 0.0
      %1557 = vmatprep.subr.mxu0 0.0
      %1558 = vmatpush1.msra.mxu0 0.0
      %1559 = vmatprep.subr.mxu0 0.0
      %1560 = vmatpush1.msra.mxu0 0.0
      %1561 = vmatprep.subr.mxu0 0.0
      %1562 = vmatpush1.msra.mxu0 0.0
      %1563 = vmatprep.subr.mxu0 0.0
      %1564 = vmatpush1.msra.mxu0 0.0
      %1565 = vmatprep.subr.mxu0 0.0
      %1566 = vmatpush1.msra.mxu0 0.0
      %1567 = vmatprep.subr.mxu0 0.0
      %1568 = vmatpush1.msra.mxu0 0.0
      %1569 = vmatprep.subr.mxu0 0.0
      %1570 = vmatpush1.msra.mxu0 0.0
      %1571 = vmatprep.subr.mxu0 0.0
      %1572 = vmatpush1.msra.mxu0 0.0
      %1573 = vmatprep.subr.mxu0 0.0
      %1574 = vmatpush1.msra.mxu0 0.0
      %1575 = vmatprep.subr.mxu0 0.0
      %1576 = vmatpush1.msra.mxu0 0.0
      %1577 = vmatprep.subr.mxu0 0.0
      %1578 = vmatpush1.msra.mxu0 0.0
      %1579 = vmatprep.subr.mxu0 0.0
      %1580 = vmatpush1.msra.mxu0 0.0
      %1581 = vmatprep.subr.mxu0 0.0
      %1582 = vmatpush1.msra.mxu0 0.0
      %1583 = vmatprep.subr.mxu0 0.0
      %1584 = vmatpush1.msra.mxu0 0.0
      %1585 = vmatprep.subr.mxu0 0.0
      %1586 = vmatpush1.msra.mxu0 0.0
      %1587 = vmatprep.subr.mxu0 0.0
      %1588 = vmatpush1.msra.mxu0 0.0
      %1589 = vmatprep.subr.mxu0 0.0
      %1590 = vmatpush1.msra.mxu0 0.0
      %1591 = vmatprep.mubr.f32.mxu0 0.0
      %1592 = vmatmul.mubr.f32.gmra.mrb[0].mxu0 %v1525
      %v1593 = vpop.f32.mrb[0].mxu0
      %v1594 = vadd.f32 0.0, %v1593
      %v1595 = vpop.f32.mrb[0].mxu0
      %v1596 = vadd.f32 0.0, %v1595
      %1597 = vdwg.mxu0
      %v1598 = vadd.f32 %v1521, %v1594
      %v1599 = vadd.f32 %v1522, %v1596
      %1600 = vrot.lane.b32.xlu0 %v833, 48
      %v1601 = vpop.permute.xlu0 %1600
      %v1602 = vsel %vm837, %v1601, 0
      %1604 = vmatprep.subr.mxu0 %v550
      %1605 = vmatpush1.msra.mxu0 %v549
      %1606 = vmatprep.subr.mxu0 0.0
      %1607 = vmatpush1.msra.mxu0 0.0
      %1608 = vmatprep.subr.mxu0 0.0
      %1609 = vmatpush1.msra.mxu0 0.0
      %1610 = vmatprep.subr.mxu0 0.0
      %1611 = vmatpush1.msra.mxu0 0.0
      %1612 = vmatprep.subr.mxu0 0.0
      %1613 = vmatpush1.msra.mxu0 0.0
      %1614 = vmatprep.subr.mxu0 0.0
      %1615 = vmatpush1.msra.mxu0 0.0
      %1616 = vmatprep.subr.mxu0 0.0
      %1617 = vmatpush1.msra.mxu0 0.0
      %1618 = vmatprep.subr.mxu0 0.0
      %1619 = vmatpush1.msra.mxu0 0.0
      %1620 = vmatprep.subr.mxu0 0.0
      %1621 = vmatpush1.msra.mxu0 0.0
      %1622 = vmatprep.subr.mxu0 0.0
      %1623 = vmatpush1.msra.mxu0 0.0
      %1624 = vmatprep.subr.mxu0 0.0
      %1625 = vmatpush1.msra.mxu0 0.0
      %1626 = vmatprep.subr.mxu0 0.0
      %1627 = vmatpush1.msra.mxu0 0.0
      %1628 = vmatprep.subr.mxu0 0.0
      %1629 = vmatpush1.msra.mxu0 0.0
      %1630 = vmatprep.subr.mxu0 0.0
      %1631 = vmatpush1.msra.mxu0 0.0
      %1632 = vmatprep.subr.mxu0 0.0
      %1633 = vmatpush1.msra.mxu0 0.0
      %1634 = vmatprep.subr.mxu0 0.0
      %1635 = vmatpush1.msra.mxu0 0.0
      %1636 = vmatprep.subr.mxu0 0.0
      %1637 = vmatpush1.msra.mxu0 0.0
      %1638 = vmatprep.subr.mxu0 0.0
      %1639 = vmatpush1.msra.mxu0 0.0
      %1640 = vmatprep.subr.mxu0 0.0
      %1641 = vmatpush1.msra.mxu0 0.0
      %1642 = vmatprep.subr.mxu0 0.0
      %1643 = vmatpush1.msra.mxu0 0.0
      %1644 = vmatprep.subr.mxu0 0.0
      %1645 = vmatpush1.msra.mxu0 0.0
      %1646 = vmatprep.subr.mxu0 0.0
      %1647 = vmatpush1.msra.mxu0 0.0
      %1648 = vmatprep.subr.mxu0 0.0
      %1649 = vmatpush1.msra.mxu0 0.0
      %1650 = vmatprep.subr.mxu0 0.0
      %1651 = vmatpush1.msra.mxu0 0.0
      %1652 = vmatprep.subr.mxu0 0.0
      %1653 = vmatpush1.msra.mxu0 0.0
      %1654 = vmatprep.subr.mxu0 0.0
      %1655 = vmatpush1.msra.mxu0 0.0
      %1656 = vmatprep.subr.mxu0 0.0
      %1657 = vmatpush1.msra.mxu0 0.0
      %1658 = vmatprep.subr.mxu0 0.0
      %1659 = vmatpush1.msra.mxu0 0.0
      %1660 = vmatprep.subr.mxu0 0.0
      %1661 = vmatpush1.msra.mxu0 0.0
      %1662 = vmatprep.subr.mxu0 0.0
      %1663 = vmatpush1.msra.mxu0 0.0
      %1664 = vmatprep.subr.mxu0 0.0
      %1665 = vmatpush1.msra.mxu0 0.0
      %1666 = vmatprep.subr.mxu0 0.0
      %1667 = vmatpush1.msra.mxu0 0.0
      %1668 = vmatprep.mubr.f32.mxu0 0.0
      %1669 = vmatmul.mubr.f32.gmra.mrb[0].mxu0 %v1602
      %v1670 = vpop.f32.mrb[0].mxu0
      %v1671 = vadd.f32 0.0, %v1670
      %v1672 = vpop.f32.mrb[0].mxu0
      %v1673 = vadd.f32 0.0, %v1672
      %1674 = vdwg.mxu0
      %v1675 = vadd.f32 %v1598, %v1671
      %v1676 = vadd.f32 %v1599, %v1673
      %1677 = vrot.lane.b32.xlu0 %v833, 40
      %v1678 = vpop.permute.xlu0 %1677
      %v1679 = vsel %vm837, %v1678, 0
      %1681 = vmatprep.subr.mxu0 %v572
      %1682 = vmatpush1.msra.mxu0 %v571
      %1683 = vmatprep.subr.mxu0 0.0
      %1684 = vmatpush1.msra.mxu0 0.0
      %1685 = vmatprep.subr.mxu0 0.0
      %1686 = vmatpush1.msra.mxu0 0.0
      %1687 = vmatprep.subr.mxu0 0.0
      %1688 = vmatpush1.msra.mxu0 0.0
      %1689 = vmatprep.subr.mxu0 0.0
      %1690 = vmatpush1.msra.mxu0 0.0
      %1691 = vmatprep.subr.mxu0 0.0
      %1692 = vmatpush1.msra.mxu0 0.0
      %1693 = vmatprep.subr.mxu0 0.0
      %1694 = vmatpush1.msra.mxu0 0.0
      %1695 = vmatprep.subr.mxu0 0.0
      %1696 = vmatpush1.msra.mxu0 0.0
      %1697 = vmatprep.subr.mxu0 0.0
      %1698 = vmatpush1.msra.mxu0 0.0
      %1699 = vmatprep.subr.mxu0 0.0
      %1700 = vmatpush1.msra.mxu0 0.0
      %1701 = vmatprep.subr.mxu0 0.0
      %1702 = vmatpush1.msra.mxu0 0.0
      %1703 = vmatprep.subr.mxu0 0.0
      %1704 = vmatpush1.msra.mxu0 0.0
      %1705 = vmatprep.subr.mxu0 0.0
      %1706 = vmatpush1.msra.mxu0 0.0
      %1707 = vmatprep.subr.mxu0 0.0
      %1708 = vmatpush1.msra.mxu0 0.0
      %1709 = vmatprep.subr.mxu0 0.0
      %1710 = vmatpush1.msra.mxu0 0.0
      %1711 = vmatprep.subr.mxu0 0.0
      %1712 = vmatpush1.msra.mxu0 0.0
      %1713 = vmatprep.subr.mxu0 0.0
      %1714 = vmatpush1.msra.mxu0 0.0
      %1715 = vmatprep.subr.mxu0 0.0
      %1716 = vmatpush1.msra.mxu0 0.0
      %1717 = vmatprep.subr.mxu0 0.0
      %1718 = vmatpush1.msra.mxu0 0.0
      %1719 = vmatprep.subr.mxu0 0.0
      %1720 = vmatpush1.msra.mxu0 0.0
      %1721 = vmatprep.subr.mxu0 0.0
      %1722 = vmatpush1.msra.mxu0 0.0
      %1723 = vmatprep.subr.mxu0 0.0
      %1724 = vmatpush1.msra.mxu0 0.0
      %1725 = vmatprep.subr.mxu0 0.0
      %1726 = vmatpush1.msra.mxu0 0.0
      %1727 = vmatprep.subr.mxu0 0.0
      %1728 = vmatpush1.msra.mxu0 0.0
      %1729 = vmatprep.subr.mxu0 0.0
      %1730 = vmatpush1.msra.mxu0 0.0
      %1731 = vmatprep.subr.mxu0 0.0
      %1732 = vmatpush1.msra.mxu0 0.0
      %1733 = vmatprep.subr.mxu0 0.0
      %1734 = vmatpush1.msra.mxu0 0.0
      %1735 = vmatprep.subr.mxu0 0.0
      %1736 = vmatpush1.msra.mxu0 0.0
      %1737 = vmatprep.subr.mxu0 0.0
      %1738 = vmatpush1.msra.mxu0 0.0
      %1739 = vmatprep.subr.mxu0 0.0
      %1740 = vmatpush1.msra.mxu0 0.0
      %1741 = vmatprep.subr.mxu0 0.0
      %1742 = vmatpush1.msra.mxu0 0.0
      %1743 = vmatprep.subr.mxu0 0.0
      %1744 = vmatpush1.msra.mxu0 0.0
      %1745 = vmatprep.mubr.f32.mxu0 0.0
      %1746 = vmatmul.mubr.f32.gmra.mrb[0].mxu0 %v1679
      %v1747 = vpop.f32.mrb[0].mxu0
      %v1748 = vadd.f32 0.0, %v1747
      %v1749 = vpop.f32.mrb[0].mxu0
      %v1750 = vadd.f32 0.0, %v1749
      %1751 = vdwg.mxu0
      %v1752 = vadd.f32 %v1675, %v1748
      %v1753 = vadd.f32 %v1676, %v1750
      %1754 = vrot.lane.b32.xlu0 %v833, 32
      %v1755 = vpop.permute.xlu0 %1754
      %v1756 = vsel %vm837, %v1755, 0
      %1758 = vmatprep.subr.mxu0 %v594
      %1759 = vmatpush1.msra.mxu0 %v593
      %1760 = vmatprep.subr.mxu0 0.0
      %1761 = vmatpush1.msra.mxu0 0.0
      %1762 = vmatprep.subr.mxu0 0.0
      %1763 = vmatpush1.msra.mxu0 0.0
      %1764 = vmatprep.subr.mxu0 0.0
      %1765 = vmatpush1.msra.mxu0 0.0
      %1766 = vmatprep.subr.mxu0 0.0
      %1767 = vmatpush1.msra.mxu0 0.0
      %1768 = vmatprep.subr.mxu0 0.0
      %1769 = vmatpush1.msra.mxu0 0.0
      %1770 = vmatprep.subr.mxu0 0.0
      %1771 = vmatpush1.msra.mxu0 0.0
      %1772 = vmatprep.subr.mxu0 0.0
      %1773 = vmatpush1.msra.mxu0 0.0
      %1774 = vmatprep.subr.mxu0 0.0
      %1775 = vmatpush1.msra.mxu0 0.0
      %1776 = vmatprep.subr.mxu0 0.0
      %1777 = vmatpush1.msra.mxu0 0.0
      %1778 = vmatprep.subr.mxu0 0.0
      %1779 = vmatpush1.msra.mxu0 0.0
      %1780 = vmatprep.subr.mxu0 0.0
      %1781 = vmatpush1.msra.mxu0 0.0
      %1782 = vmatprep.subr.mxu0 0.0
      %1783 = vmatpush1.msra.mxu0 0.0
      %1784 = vmatprep.subr.mxu0 0.0
      %1785 = vmatpush1.msra.mxu0 0.0
      %1786 = vmatprep.subr.mxu0 0.0
      %1787 = vmatpush1.msra.mxu0 0.0
      %1788 = vmatprep.subr.mxu0 0.0
      %1789 = vmatpush1.msra.mxu0 0.0
      %1790 = vmatprep.subr.mxu0 0.0
      %1791 = vmatpush1.msra.mxu0 0.0
      %1792 = vmatprep.subr.mxu0 0.0
      %1793 = vmatpush1.msra.mxu0 0.0
      %1794 = vmatprep.subr.mxu0 0.0
      %1795 = vmatpush1.msra.mxu0 0.0
      %1796 = vmatprep.subr.mxu0 0.0
      %1797 = vmatpush1.msra.mxu0 0.0
      %1798 = vmatprep.subr.mxu0 0.0
      %1799 = vmatpush1.msra.mxu0 0.0
      %1800 = vmatprep.subr.mxu0 0.0
      %1801 = vmatpush1.msra.mxu0 0.0
      %1802 = vmatprep.subr.mxu0 0.0
      %1803 = vmatpush1.msra.mxu0 0.0
      %1804 = vmatprep.subr.mxu0 0.0
      %1805 = vmatpush1.msra.mxu0 0.0
      %1806 = vmatprep.subr.mxu0 0.0
      %1807 = vmatpush1.msra.mxu0 0.0
      %1808 = vmatprep.subr.mxu0 0.0
      %1809 = vmatpush1.msra.mxu0 0.0
      %1810 = vmatprep.subr.mxu0 0.0
      %1811 = vmatpush1.msra.mxu0 0.0
      %1812 = vmatprep.subr.mxu0 0.0
      %1813 = vmatpush1.msra.mxu0 0.0
      %1814 = vmatprep.subr.mxu0 0.0
      %1815 = vmatpush1.msra.mxu0 0.0
      %1816 = vmatprep.subr.mxu0 0.0
      %1817 = vmatpush1.msra.mxu0 0.0
      %1818 = vmatprep.subr.mxu0 0.0
      %1819 = vmatpush1.msra.mxu0 0.0
      %1820 = vmatprep.subr.mxu0 0.0
      %1821 = vmatpush1.msra.mxu0 0.0
      %1822 = vmatprep.mubr.f32.mxu0 0.0
      %1823 = vmatmul.mubr.f32.gmra.mrb[0].mxu0 %v1756
      %v1824 = vpop.f32.mrb[0].mxu0
      %v1825 = vadd.f32 0.0, %v1824
      %v1826 = vpop.f32.mrb[0].mxu0
      %v1827 = vadd.f32 0.0, %v1826
      %1828 = vdwg.mxu0
      %v1829 = vadd.f32 %v1752, %v1825
      %v1830 = vadd.f32 %v1753, %v1827
      %1831 = vrot.lane.b32.xlu0 %v833, 24
      %v1832 = vpop.permute.xlu0 %1831
      %v1833 = vsel %vm837, %v1832, 0
      %1835 = vmatprep.subr.mxu0 %v609
      %1836 = vmatpush1.msra.mxu0 %v608
      %1837 = vmatprep.subr.mxu0 0.0
      %1838 = vmatpush1.msra.mxu0 0.0
      %1839 = vmatprep.subr.mxu0 0.0
      %1840 = vmatpush1.msra.mxu0 0.0
      %1841 = vmatprep.subr.mxu0 0.0
      %1842 = vmatpush1.msra.mxu0 0.0
      %1843 = vmatprep.subr.mxu0 0.0
      %1844 = vmatpush1.msra.mxu0 0.0
      %1845 = vmatprep.subr.mxu0 0.0
      %1846 = vmatpush1.msra.mxu0 0.0
      %1847 = vmatprep.subr.mxu0 0.0
      %1848 = vmatpush1.msra.mxu0 0.0
      %1849 = vmatprep.subr.mxu0 0.0
      %1850 = vmatpush1.msra.mxu0 0.0
      %1851 = vmatprep.subr.mxu0 0.0
      %1852 = vmatpush1.msra.mxu0 0.0
      %1853 = vmatprep.subr.mxu0 0.0
      %1854 = vmatpush1.msra.mxu0 0.0
      %1855 = vmatprep.subr.mxu0 0.0
      %1856 = vmatpush1.msra.mxu0 0.0
      %1857 = vmatprep.subr.mxu0 0.0
      %1858 = vmatpush1.msra.mxu0 0.0
      %1859 = vmatprep.subr.mxu0 0.0
      %1860 = vmatpush1.msra.mxu0 0.0
      %1861 = vmatprep.subr.mxu0 0.0
      %1862 = vmatpush1.msra.mxu0 0.0
      %1863 = vmatprep.subr.mxu0 0.0
      %1864 = vmatpush1.msra.mxu0 0.0
      %1865 = vmatprep.subr.mxu0 0.0
      %1866 = vmatpush1.msra.mxu0 0.0
      %1867 = vmatprep.subr.mxu0 0.0
      %1868 = vmatpush1.msra.mxu0 0.0
      %1869 = vmatprep.subr.mxu0 0.0
      %1870 = vmatpush1.msra.mxu0 0.0
      %1871 = vmatprep.subr.mxu0 0.0
      %1872 = vmatpush1.msra.mxu0 0.0
      %1873 = vmatprep.subr.mxu0 0.0
      %1874 = vmatpush1.msra.mxu0 0.0
      %1875 = vmatprep.subr.mxu0 0.0
      %1876 = vmatpush1.msra.mxu0 0.0
      %1877 = vmatprep.subr.mxu0 0.0
      %1878 = vmatpush1.msra.mxu0 0.0
      %1879 = vmatprep.subr.mxu0 0.0
      %1880 = vmatpush1.msra.mxu0 0.0
      %1881 = vmatprep.subr.mxu0 0.0
      %1882 = vmatpush1.msra.mxu0 0.0
      %1883 = vmatprep.subr.mxu0 0.0
      %1884 = vmatpush1.msra.mxu0 0.0
      %1885 = vmatprep.subr.mxu0 0.0
      %1886 = vmatpush1.msra.mxu0 0.0
      %1887 = vmatprep.subr.mxu0 0.0
      %1888 = vmatpush1.msra.mxu0 0.0
      %1889 = vmatprep.subr.mxu0 0.0
      %1890 = vmatpush1.msra.mxu0 0.0
      %1891 = vmatprep.subr.mxu0 0.0
      %1892 = vmatpush1.msra.mxu0 0.0
      %1893 = vmatprep.subr.mxu0 0.0
      %1894 = vmatpush1.msra.mxu0 0.0
      %1895 = vmatprep.subr.mxu0 0.0
      %1896 = vmatpush1.msra.mxu0 0.0
      %1897 = vmatprep.subr.mxu0 0.0
      %1898 = vmatpush1.msra.mxu0 0.0
      %1899 = vmatprep.mubr.f32.mxu0 0.0
      %1900 = vmatmul.mubr.f32.gmra.mrb[0].mxu0 %v1833
      %v1901 = vpop.f32.mrb[0].mxu0
      %v1902 = vadd.f32 0.0, %v1901
      %v1903 = vpop.f32.mrb[0].mxu0
      %v1904 = vadd.f32 0.0, %v1903
      %1905 = vdwg.mxu0
      %v1906 = vadd.f32 %v1829, %v1902
      %v1907 = vadd.f32 %v1830, %v1904
      %1908 = vrot.lane.b32.xlu0 %v833, 16
      %v1909 = vpop.permute.xlu0 %1908
      %v1910 = vsel %vm837, %v1909, 0
      %1912 = vmatprep.subr.mxu0 %v631
      %1913 = vmatpush1.msra.mxu0 %v630
      %1914 = vmatprep.subr.mxu0 0.0
      %1915 = vmatpush1.msra.mxu0 0.0
      %1916 = vmatprep.subr.mxu0 0.0
      %1917 = vmatpush1.msra.mxu0 0.0
      %1918 = vmatprep.subr.mxu0 0.0
      %1919 = vmatpush1.msra.mxu0 0.0
      %1920 = vmatprep.subr.mxu0 0.0
      %1921 = vmatpush1.msra.mxu0 0.0
      %1922 = vmatprep.subr.mxu0 0.0
      %1923 = vmatpush1.msra.mxu0 0.0
      %1924 = vmatprep.subr.mxu0 0.0
      %1925 = vmatpush1.msra.mxu0 0.0
      %1926 = vmatprep.subr.mxu0 0.0
      %1927 = vmatpush1.msra.mxu0 0.0
      %1928 = vmatprep.subr.mxu0 0.0
      %1929 = vmatpush1.msra.mxu0 0.0
      %1930 = vmatprep.subr.mxu0 0.0
      %1931 = vmatpush1.msra.mxu0 0.0
      %1932 = vmatprep.subr.mxu0 0.0
      %1933 = vmatpush1.msra.mxu0 0.0
      %1934 = vmatprep.subr.mxu0 0.0
      %1935 = vmatpush1.msra.mxu0 0.0
      %1936 = vmatprep.subr.mxu0 0.0
      %1937 = vmatpush1.msra.mxu0 0.0
      %1938 = vmatprep.subr.mxu0 0.0
      %1939 = vmatpush1.msra.mxu0 0.0
      %1940 = vmatprep.subr.mxu0 0.0
      %1941 = vmatpush1.msra.mxu0 0.0
      %1942 = vmatprep.subr.mxu0 0.0
      %1943 = vmatpush1.msra.mxu0 0.0
      %1944 = vmatprep.subr.mxu0 0.0
      %1945 = vmatpush1.msra.mxu0 0.0
      %1946 = vmatprep.subr.mxu0 0.0
      %1947 = vmatpush1.msra.mxu0 0.0
      %1948 = vmatprep.subr.mxu0 0.0
      %1949 = vmatpush1.msra.mxu0 0.0
      %1950 = vmatprep.subr.mxu0 0.0
      %1951 = vmatpush1.msra.mxu0 0.0
      %1952 = vmatprep.subr.mxu0 0.0
      %1953 = vmatpush1.msra.mxu0 0.0
      %1954 = vmatprep.subr.mxu0 0.0
      %1955 = vmatpush1.msra.mxu0 0.0
      %1956 = vmatprep.subr.mxu0 0.0
      %1957 = vmatpush1.msra.mxu0 0.0
      %1958 = vmatprep.subr.mxu0 0.0
      %1959 = vmatpush1.msra.mxu0 0.0
      %1960 = vmatprep.subr.mxu0 0.0
      %1961 = vmatpush1.msra.mxu0 0.0
      %1962 = vmatprep.subr.mxu0 0.0
      %1963 = vmatpush1.msra.mxu0 0.0
      %1964 = vmatprep.subr.mxu0 0.0
      %1965 = vmatpush1.msra.mxu0 0.0
      %1966 = vmatprep.subr.mxu0 0.0
      %1967 = vmatpush1.msra.mxu0 0.0
      %1968 = vmatprep.subr.mxu0 0.0
      %1969 = vmatpush1.msra.mxu0 0.0
      %1970 = vmatprep.subr.mxu0 0.0
      %1971 = vmatpush1.msra.mxu0 0.0
      %1972 = vmatprep.subr.mxu0 0.0
      %1973 = vmatpush1.msra.mxu0 0.0
      %1974 = vmatprep.subr.mxu0 0.0
      %1975 = vmatpush1.msra.mxu0 0.0
      %1976 = vmatprep.mubr.f32.mxu0 0.0
      %1977 = vmatmul.mubr.f32.gmra.mrb[0].mxu0 %v1910
      %v1978 = vpop.f32.mrb[0].mxu0
      %v1979 = vadd.f32 0.0, %v1978
      %v1980 = vpop.f32.mrb[0].mxu0
      %v1981 = vadd.f32 0.0, %v1980
      %1982 = vdwg.mxu0
      %v1983 = vadd.f32 %v1906, %v1979
      %v1984 = vadd.f32 %v1907, %v1981
      %1985 = vrot.lane.b32.xlu0 %v833, 8
      %v1986 = vpop.permute.xlu0 %1985
      %v1987 = vsel %vm837, %v1986, 0
      %1989 = vmatprep.subr.mxu0 %v653
      %1990 = vmatpush1.msra.mxu0 %v652
      %1991 = vmatprep.subr.mxu0 0.0
      %1992 = vmatpush1.msra.mxu0 0.0
      %1993 = vmatprep.subr.mxu0 0.0
      %1994 = vmatpush1.msra.mxu0 0.0
      %1995 = vmatprep.subr.mxu0 0.0
      %1996 = vmatpush1.msra.mxu0 0.0
      %1997 = vmatprep.subr.mxu0 0.0
      %1998 = vmatpush1.msra.mxu0 0.0
      %1999 = vmatprep.subr.mxu0 0.0
      %2000 = vmatpush1.msra.mxu0 0.0
      %2001 = vmatprep.subr.mxu0 0.0
      %2002 = vmatpush1.msra.mxu0 0.0
      %2003 = vmatprep.subr.mxu0 0.0
      %2004 = vmatpush1.msra.mxu0 0.0
      %2005 = vmatprep.subr.mxu0 0.0
      %2006 = vmatpush1.msra.mxu0 0.0
      %2007 = vmatprep.subr.mxu0 0.0
      %2008 = vmatpush1.msra.mxu0 0.0
      %2009 = vmatprep.subr.mxu0 0.0
      %2010 = vmatpush1.msra.mxu0 0.0
      %2011 = vmatprep.subr.mxu0 0.0
      %2012 = vmatpush1.msra.mxu0 0.0
      %2013 = vmatprep.subr.mxu0 0.0
      %2014 = vmatpush1.msra.mxu0 0.0
      %2015 = vmatprep.subr.mxu0 0.0
      %2016 = vmatpush1.msra.mxu0 0.0
      %2017 = vmatprep.subr.mxu0 0.0
      %2018 = vmatpush1.msra.mxu0 0.0
      %2019 = vmatprep.subr.mxu0 0.0
      %2020 = vmatpush1.msra.mxu0 0.0
      %2021 = vmatprep.subr.mxu0 0.0
      %2022 = vmatpush1.msra.mxu0 0.0
      %2023 = vmatprep.subr.mxu0 0.0
      %2024 = vmatpush1.msra.mxu0 0.0
      %2025 = vmatprep.subr.mxu0 0.0
      %2026 = vmatpush1.msra.mxu0 0.0
      %2027 = vmatprep.subr.mxu0 0.0
      %2028 = vmatpush1.msra.mxu0 0.0
      %2029 = vmatprep.subr.mxu0 0.0
      %2030 = vmatpush1.msra.mxu0 0.0
      %2031 = vmatprep.subr.mxu0 0.0
      %2032 = vmatpush1.msra.mxu0 0.0
      %2033 = vmatprep.subr.mxu0 0.0
      %2034 = vmatpush1.msra.mxu0 0.0
      %2035 = vmatprep.subr.mxu0 0.0
      %2036 = vmatpush1.msra.mxu0 0.0
      %2037 = vmatprep.subr.mxu0 0.0
      %2038 = vmatpush1.msra.mxu0 0.0
      %2039 = vmatprep.subr.mxu0 0.0
      %2040 = vmatpush1.msra.mxu0 0.0
      %2041 = vmatprep.subr.mxu0 0.0
      %2042 = vmatpush1.msra.mxu0 0.0
      %2043 = vmatprep.subr.mxu0 0.0
      %2044 = vmatpush1.msra.mxu0 0.0
      %2045 = vmatprep.subr.mxu0 0.0
      %2046 = vmatpush1.msra.mxu0 0.0
      %2047 = vmatprep.subr.mxu0 0.0
      %2048 = vmatpush1.msra.mxu0 0.0
      %2049 = vmatprep.subr.mxu0 0.0
      %2050 = vmatpush1.msra.mxu0 0.0
      %2051 = vmatprep.subr.mxu0 0.0
      %2052 = vmatpush1.msra.mxu0 0.0
      %2053 = vmatprep.mubr.f32.mxu0 0.0
      %2054 = vmatmul.mubr.f32.gmra.mrb[0].mxu0 %v1987
      %v2055 = vpop.f32.mrb[0].mxu0
      %v2056 = vadd.f32 0.0, %v2055
      %v2057 = vpop.f32.mrb[0].mxu0
      %v2058 = vadd.f32 0.0, %v2057
      %2059 = vdwg.mxu0
      %v2060 = vadd.f32 %v1983, %v2056
      %v2061 = vadd.f32 %v1984, %v2058
      %v2062 = vld [vmem:[%s2 + $0x8] sm:$0xff]
      %v2064 = vsel %vm837, %v2062, 0
      %2066 = vmatprep.subr.mxu0 %v675
      %2067 = vmatpush1.msra.mxu0 %v674
      %2068 = vmatprep.subr.mxu0 0.0
      %2069 = vmatpush1.msra.mxu0 0.0
      %2070 = vmatprep.subr.mxu0 0.0
      %2071 = vmatpush1.msra.mxu0 0.0
      %2072 = vmatprep.subr.mxu0 0.0
      %2073 = vmatpush1.msra.mxu0 0.0
      %2074 = vmatprep.subr.mxu0 0.0
      %2075 = vmatpush1.msra.mxu0 0.0
      %2076 = vmatprep.subr.mxu0 0.0
      %2077 = vmatpush1.msra.mxu0 0.0
      %2078 = vmatprep.subr.mxu0 0.0
      %2079 = vmatpush1.msra.mxu0 0.0
      %2080 = vmatprep.subr.mxu0 0.0
      %2081 = vmatpush1.msra.mxu0 0.0
      %2082 = vmatprep.subr.mxu0 0.0
      %2083 = vmatpush1.msra.mxu0 0.0
      %2084 = vmatprep.subr.mxu0 0.0
      %2085 = vmatpush1.msra.mxu0 0.0
      %2086 = vmatprep.subr.mxu0 0.0
      %2087 = vmatpush1.msra.mxu0 0.0
      %2088 = vmatprep.subr.mxu0 0.0
      %2089 = vmatpush1.msra.mxu0 0.0
      %2090 = vmatprep.subr.mxu0 0.0
      %2091 = vmatpush1.msra.mxu0 0.0
      %2092 = vmatprep.subr.mxu0 0.0
      %2093 = vmatpush1.msra.mxu0 0.0
      %2094 = vmatprep.subr.mxu0 0.0
      %2095 = vmatpush1.msra.mxu0 0.0
      %2096 = vmatprep.subr.mxu0 0.0
      %2097 = vmatpush1.msra.mxu0 0.0
      %2098 = vmatprep.subr.mxu0 0.0
      %2099 = vmatpush1.msra.mxu0 0.0
      %2100 = vmatprep.subr.mxu0 0.0
      %2101 = vmatpush1.msra.mxu0 0.0
      %2102 = vmatprep.subr.mxu0 0.0
      %2103 = vmatpush1.msra.mxu0 0.0
      %2104 = vmatprep.subr.mxu0 0.0
      %2105 = vmatpush1.msra.mxu0 0.0
      %2106 = vmatprep.subr.mxu0 0.0
      %2107 = vmatpush1.msra.mxu0 0.0
      %2108 = vmatprep.subr.mxu0 0.0
      %2109 = vmatpush1.msra.mxu0 0.0
      %2110 = vmatprep.subr.mxu0 0.0
      %2111 = vmatpush1.msra.mxu0 0.0
      %2112 = vmatprep.subr.mxu0 0.0
      %2113 = vmatpush1.msra.mxu0 0.0
      %2114 = vmatprep.subr.mxu0 0.0
      %2115 = vmatpush1.msra.mxu0 0.0
      %2116 = vmatprep.subr.mxu0 0.0
      %2117 = vmatpush1.msra.mxu0 0.0
      %2118 = vmatprep.subr.mxu0 0.0
      %2119 = vmatpush1.msra.mxu0 0.0
      %2120 = vmatprep.subr.mxu0 0.0
      %2121 = vmatpush1.msra.mxu0 0.0
      %2122 = vmatprep.subr.mxu0 0.0
      %2123 = vmatpush1.msra.mxu0 0.0
      %2124 = vmatprep.subr.mxu0 0.0
      %2125 = vmatpush1.msra.mxu0 0.0
      %2126 = vmatprep.subr.mxu0 0.0
      %2127 = vmatpush1.msra.mxu0 0.0
      %2128 = vmatprep.subr.mxu0 0.0
      %2129 = vmatpush1.msra.mxu0 0.0
      %2130 = vmatprep.mubr.f32.mxu0 0.0
      %2131 = vmatmul.mubr.f32.gmra.mrb[0].mxu0 %v2064
      %v2132 = vpop.f32.mrb[0].mxu0
      %v2133 = vadd.f32 0.0, %v2132
      %v2134 = vpop.f32.mrb[0].mxu0
      %v2135 = vadd.f32 0.0, %v2134
      %2136 = vdwg.mxu0
      %v2137 = vadd.f32 %v2060, %v2133
      %v2138 = vadd.f32 %v2061, %v2135
      %2139 = vrot.lane.b32.xlu0 %v2062, 120
      %v2140 = vpop.permute.xlu0 %2139
      %v2141 = vsel %vm837, %v2140, 0
      %2143 = vmatprep.subr.mxu0 %v697
      %2144 = vmatpush1.msra.mxu0 %v696
      %2145 = vmatprep.subr.mxu0 0.0
      %2146 = vmatpush1.msra.mxu0 0.0
      %2147 = vmatprep.subr.mxu0 0.0
      %2148 = vmatpush1.msra.mxu0 0.0
      %2149 = vmatprep.subr.mxu0 0.0
      %2150 = vmatpush1.msra.mxu0 0.0
      %2151 = vmatprep.subr.mxu0 0.0
      %2152 = vmatpush1.msra.mxu0 0.0
      %2153 = vmatprep.subr.mxu0 0.0
      %2154 = vmatpush1.msra.mxu0 0.0
      %2155 = vmatprep.subr.mxu0 0.0
      %2156 = vmatpush1.msra.mxu0 0.0
      %2157 = vmatprep.subr.mxu0 0.0
      %2158 = vmatpush1.msra.mxu0 0.0
      %2159 = vmatprep.subr.mxu0 0.0
      %2160 = vmatpush1.msra.mxu0 0.0
      %2161 = vmatprep.subr.mxu0 0.0
      %2162 = vmatpush1.msra.mxu0 0.0
      %2163 = vmatprep.subr.mxu0 0.0
      %2164 = vmatpush1.msra.mxu0 0.0
      %2165 = vmatprep.subr.mxu0 0.0
      %2166 = vmatpush1.msra.mxu0 0.0
      %2167 = vmatprep.subr.mxu0 0.0
      %2168 = vmatpush1.msra.mxu0 0.0
      %2169 = vmatprep.subr.mxu0 0.0
      %2170 = vmatpush1.msra.mxu0 0.0
      %2171 = vmatprep.subr.mxu0 0.0
      %2172 = vmatpush1.msra.mxu0 0.0
      %2173 = vmatprep.subr.mxu0 0.0
      %2174 = vmatpush1.msra.mxu0 0.0
      %2175 = vmatprep.subr.mxu0 0.0
      %2176 = vmatpush1.msra.mxu0 0.0
      %2177 = vmatprep.subr.mxu0 0.0
      %2178 = vmatpush1.msra.mxu0 0.0
      %2179 = vmatprep.subr.mxu0 0.0
      %2180 = vmatpush1.msra.mxu0 0.0
      %2181 = vmatprep.subr.mxu0 0.0
      %2182 = vmatpush1.msra.mxu0 0.0
      %2183 = vmatprep.subr.mxu0 0.0
      %2184 = vmatpush1.msra.mxu0 0.0
      %2185 = vmatprep.subr.mxu0 0.0
      %2186 = vmatpush1.msra.mxu0 0.0
      %2187 = vmatprep.subr.mxu0 0.0
      %2188 = vmatpush1.msra.mxu0 0.0
      %2189 = vmatprep.subr.mxu0 0.0
      %2190 = vmatpush1.msra.mxu0 0.0
      %2191 = vmatprep.subr.mxu0 0.0
      %2192 = vmatpush1.msra.mxu0 0.0
      %2193 = vmatprep.subr.mxu0 0.0
      %2194 = vmatpush1.msra.mxu0 0.0
      %2195 = vmatprep.subr.mxu0 0.0
      %2196 = vmatpush1.msra.mxu0 0.0
      %2197 = vmatprep.subr.mxu0 0.0
      %2198 = vmatpush1.msra.mxu0 0.0
      %2199 = vmatprep.subr.mxu0 0.0
      %2200 = vmatpush1.msra.mxu0 0.0
      %2201 = vmatprep.subr.mxu0 0.0
      %2202 = vmatpush1.msra.mxu0 0.0
      %2203 = vmatprep.subr.mxu0 0.0
      %2204 = vmatpush1.msra.mxu0 0.0
      %2205 = vmatprep.subr.mxu0 0.0
      %2206 = vmatpush1.msra.mxu0 0.0
      %2207 = vmatprep.mubr.f32.mxu0 0.0
      %2208 = vmatmul.mubr.f32.gmra.mrb[0].mxu0 %v2141
      %v2209 = vpop.f32.mrb[0].mxu0
      %v2210 = vadd.f32 0.0, %v2209
      %v2211 = vpop.f32.mrb[0].mxu0
      %v2212 = vadd.f32 0.0, %v2211
      %2213 = vdwg.mxu0
      %v2214 = vadd.f32 %v2137, %v2210
      %v2215 = vadd.f32 %v2138, %v2212
      %2216 = vrot.lane.b32.xlu0 %v2062, 112
      %v2217 = vpop.permute.xlu0 %2216
      %v2218 = vsel %vm837, %v2217, 0
      %2220 = vmatprep.subr.mxu0 %v712
      %2221 = vmatpush1.msra.mxu0 %v711
      %2222 = vmatprep.subr.mxu0 0.0
      %2223 = vmatpush1.msra.mxu0 0.0
      %2224 = vmatprep.subr.mxu0 0.0
      %2225 = vmatpush1.msra.mxu0 0.0
      %2226 = vmatprep.subr.mxu0 0.0
      %2227 = vmatpush1.msra.mxu0 0.0
      %2228 = vmatprep.subr.mxu0 0.0
      %2229 = vmatpush1.msra.mxu0 0.0
      %2230 = vmatprep.subr.mxu0 0.0
      %2231 = vmatpush1.msra.mxu0 0.0
      %2232 = vmatprep.subr.mxu0 0.0
      %2233 = vmatpush1.msra.mxu0 0.0
      %2234 = vmatprep.subr.mxu0 0.0
      %2235 = vmatpush1.msra.mxu0 0.0
      %2236 = vmatprep.subr.mxu0 0.0
      %2237 = vmatpush1.msra.mxu0 0.0
      %2238 = vmatprep.subr.mxu0 0.0
      %2239 = vmatpush1.msra.mxu0 0.0
      %2240 = vmatprep.subr.mxu0 0.0
      %2241 = vmatpush1.msra.mxu0 0.0
      %2242 = vmatprep.subr.mxu0 0.0
      %2243 = vmatpush1.msra.mxu0 0.0
      %2244 = vmatprep.subr.mxu0 0.0
      %2245 = vmatpush1.msra.mxu0 0.0
      %2246 = vmatprep.subr.mxu0 0.0
      %2247 = vmatpush1.msra.mxu0 0.0
      %2248 = vmatprep.subr.mxu0 0.0
      %2249 = vmatpush1.msra.mxu0 0.0
      %2250 = vmatprep.subr.mxu0 0.0
      %2251 = vmatpush1.msra.mxu0 0.0
      %2252 = vmatprep.subr.mxu0 0.0
      %2253 = vmatpush1.msra.mxu0 0.0
      %2254 = vmatprep.subr.mxu0 0.0
      %2255 = vmatpush1.msra.mxu0 0.0
      %2256 = vmatprep.subr.mxu0 0.0
      %2257 = vmatpush1.msra.mxu0 0.0
      %2258 = vmatprep.subr.mxu0 0.0
      %2259 = vmatpush1.msra.mxu0 0.0
      %2260 = vmatprep.subr.mxu0 0.0
      %2261 = vmatpush1.msra.mxu0 0.0
      %2262 = vmatprep.subr.mxu0 0.0
      %2263 = vmatpush1.msra.mxu0 0.0
      %2264 = vmatprep.subr.mxu0 0.0
      %2265 = vmatpush1.msra.mxu0 0.0
      %2266 = vmatprep.subr.mxu0 0.0
      %2267 = vmatpush1.msra.mxu0 0.0
      %2268 = vmatprep.subr.mxu0 0.0
      %2269 = vmatpush1.msra.mxu0 0.0
      %2270 = vmatprep.subr.mxu0 0.0
      %2271 = vmatpush1.msra.mxu0 0.0
      %2272 = vmatprep.subr.mxu0 0.0
      %2273 = vmatpush1.msra.mxu0 0.0
      %2274 = vmatprep.subr.mxu0 0.0
      %2275 = vmatpush1.msra.mxu0 0.0
      %2276 = vmatprep.subr.mxu0 0.0
      %2277 = vmatpush1.msra.mxu0 0.0
      %2278 = vmatprep.subr.mxu0 0.0
      %2279 = vmatpush1.msra.mxu0 0.0
      %2280 = vmatprep.subr.mxu0 0.0
      %2281 = vmatpush1.msra.mxu0 0.0
      %2282 = vmatprep.subr.mxu0 0.0
      %2283 = vmatpush1.msra.mxu0 0.0
      %2284 = vmatprep.mubr.f32.mxu0 0.0
      %2285 = vmatmul.mubr.f32.gmra.mrb[0].mxu0 %v2218
      %v2286 = vpop.f32.mrb[0].mxu0
      %v2287 = vadd.f32 0.0, %v2286
      %v2288 = vpop.f32.mrb[0].mxu0
      %v2289 = vadd.f32 0.0, %v2288
      %2290 = vdwg.mxu0
      %v2291 = vadd.f32 %v2214, %v2287
      %v2292 = vadd.f32 %v2215, %v2289
      %2293 = vrot.lane.b32.xlu0 %v2062, 104
      %v2294 = vpop.permute.xlu0 %2293
      %v2295 = vsel %vm837, %v2294, 0
      %2297 = vmatprep.subr.mxu0 %v727
      %2298 = vmatpush1.msra.mxu0 %v726
      %2299 = vmatprep.subr.mxu0 0.0
      %2300 = vmatpush1.msra.mxu0 0.0
      %2301 = vmatprep.subr.mxu0 0.0
      %2302 = vmatpush1.msra.mxu0 0.0
      %2303 = vmatprep.subr.mxu0 0.0
      %2304 = vmatpush1.msra.mxu0 0.0
      %2305 = vmatprep.subr.mxu0 0.0
      %2306 = vmatpush1.msra.mxu0 0.0
      %2307 = vmatprep.subr.mxu0 0.0
      %2308 = vmatpush1.msra.mxu0 0.0
      %2309 = vmatprep.subr.mxu0 0.0
      %2310 = vmatpush1.msra.mxu0 0.0
      %2311 = vmatprep.subr.mxu0 0.0
      %2312 = vmatpush1.msra.mxu0 0.0
      %2313 = vmatprep.subr.mxu0 0.0
      %2314 = vmatpush1.msra.mxu0 0.0
      %2315 = vmatprep.subr.mxu0 0.0
      %2316 = vmatpush1.msra.mxu0 0.0
      %2317 = vmatprep.subr.mxu0 0.0
      %2318 = vmatpush1.msra.mxu0 0.0
      %2319 = vmatprep.subr.mxu0 0.0
      %2320 = vmatpush1.msra.mxu0 0.0
      %2321 = vmatprep.subr.mxu0 0.0
      %2322 = vmatpush1.msra.mxu0 0.0
      %2323 = vmatprep.subr.mxu0 0.0
      %2324 = vmatpush1.msra.mxu0 0.0
      %2325 = vmatprep.subr.mxu0 0.0
      %2326 = vmatpush1.msra.mxu0 0.0
      %2327 = vmatprep.subr.mxu0 0.0
      %2328 = vmatpush1.msra.mxu0 0.0
      %2329 = vmatprep.subr.mxu0 0.0
      %2330 = vmatpush1.msra.mxu0 0.0
      %2331 = vmatprep.subr.mxu0 0.0
      %2332 = vmatpush1.msra.mxu0 0.0
      %2333 = vmatprep.subr.mxu0 0.0
      %2334 = vmatpush1.msra.mxu0 0.0
      %2335 = vmatprep.subr.mxu0 0.0
      %2336 = vmatpush1.msra.mxu0 0.0
      %2337 = vmatprep.subr.mxu0 0.0
      %2338 = vmatpush1.msra.mxu0 0.0
      %2339 = vmatprep.subr.mxu0 0.0
      %2340 = vmatpush1.msra.mxu0 0.0
      %2341 = vmatprep.subr.mxu0 0.0
      %2342 = vmatpush1.msra.mxu0 0.0
      %2343 = vmatprep.subr.mxu0 0.0
      %2344 = vmatpush1.msra.mxu0 0.0
      %2345 = vmatprep.subr.mxu0 0.0
      %2346 = vmatpush1.msra.mxu0 0.0
      %2347 = vmatprep.subr.mxu0 0.0
      %2348 = vmatpush1.msra.mxu0 0.0
      %2349 = vmatprep.subr.mxu0 0.0
      %2350 = vmatpush1.msra.mxu0 0.0
      %2351 = vmatprep.subr.mxu0 0.0
      %2352 = vmatpush1.msra.mxu0 0.0
      %2353 = vmatprep.subr.mxu0 0.0
      %2354 = vmatpush1.msra.mxu0 0.0
      %2355 = vmatprep.subr.mxu0 0.0
      %2356 = vmatpush1.msra.mxu0 0.0
      %2357 = vmatprep.subr.mxu0 0.0
      %2358 = vmatpush1.msra.mxu0 0.0
      %2359 = vmatprep.subr.mxu0 0.0
      %2360 = vmatpush1.msra.mxu0 0.0
      %2361 = vmatprep.mubr.f32.mxu0 0.0
      %2362 = vmatmul.mubr.f32.gmra.mrb[0].mxu0 %v2295
      %v2363 = vpop.f32.mrb[0].mxu0
      %v2364 = vadd.f32 0.0, %v2363
      %v2365 = vpop.f32.mrb[0].mxu0
      %v2366 = vadd.f32 0.0, %v2365
      %2367 = vdwg.mxu0
      %v2368 = vadd.f32 %v2291, %v2364
      %v2369 = vadd.f32 %v2292, %v2366
      %2370 = vrot.lane.b32.xlu0 %v2062, 96
      %v2371 = vpop.permute.xlu0 %2370
      %v2372 = vsel %vm837, %v2371, 0
      %2374 = vmatprep.subr.mxu0 %v742
      %2375 = vmatpush1.msra.mxu0 %v741
      %2376 = vmatprep.subr.mxu0 0.0
      %2377 = vmatpush1.msra.mxu0 0.0
      %2378 = vmatprep.subr.mxu0 0.0
      %2379 = vmatpush1.msra.mxu0 0.0
      %2380 = vmatprep.subr.mxu0 0.0
      %2381 = vmatpush1.msra.mxu0 0.0
      %2382 = vmatprep.subr.mxu0 0.0
      %2383 = vmatpush1.msra.mxu0 0.0
      %2384 = vmatprep.subr.mxu0 0.0
      %2385 = vmatpush1.msra.mxu0 0.0
      %2386 = vmatprep.subr.mxu0 0.0
      %2387 = vmatpush1.msra.mxu0 0.0
      %2388 = vmatprep.subr.mxu0 0.0
      %2389 = vmatpush1.msra.mxu0 0.0
      %2390 = vmatprep.subr.mxu0 0.0
      %2391 = vmatpush1.msra.mxu0 0.0
      %2392 = vmatprep.subr.mxu0 0.0
      %2393 = vmatpush1.msra.mxu0 0.0
      %2394 = vmatprep.subr.mxu0 0.0
      %2395 = vmatpush1.msra.mxu0 0.0
      %2396 = vmatprep.subr.mxu0 0.0
      %2397 = vmatpush1.msra.mxu0 0.0
      %2398 = vmatprep.subr.mxu0 0.0
      %2399 = vmatpush1.msra.mxu0 0.0
      %2400 = vmatprep.subr.mxu0 0.0
      %2401 = vmatpush1.msra.mxu0 0.0
      %2402 = vmatprep.subr.mxu0 0.0
      %2403 = vmatpush1.msra.mxu0 0.0
      %2404 = vmatprep.subr.mxu0 0.0
      %2405 = vmatpush1.msra.mxu0 0.0
      %2406 = vmatprep.subr.mxu0 0.0
      %2407 = vmatpush1.msra.mxu0 0.0
      %2408 = vmatprep.subr.mxu0 0.0
      %2409 = vmatpush1.msra.mxu0 0.0
      %2410 = vmatprep.subr.mxu0 0.0
      %2411 = vmatpush1.msra.mxu0 0.0
      %2412 = vmatprep.subr.mxu0 0.0
      %2413 = vmatpush1.msra.mxu0 0.0
      %2414 = vmatprep.subr.mxu0 0.0
      %2415 = vmatpush1.msra.mxu0 0.0
      %2416 = vmatprep.subr.mxu0 0.0
      %2417 = vmatpush1.msra.mxu0 0.0
      %2418 = vmatprep.subr.mxu0 0.0
      %2419 = vmatpush1.msra.mxu0 0.0
      %2420 = vmatprep.subr.mxu0 0.0
      %2421 = vmatpush1.msra.mxu0 0.0
      %2422 = vmatprep.subr.mxu0 0.0
      %2423 = vmatpush1.msra.mxu0 0.0
      %2424 = vmatprep.subr.mxu0 0.0
      %2425 = vmatpush1.msra.mxu0 0.0
      %2426 = vmatprep.subr.mxu0 0.0
      %2427 = vmatpush1.msra.mxu0 0.0
      %2428 = vmatprep.subr.mxu0 0.0
      %2429 = vmatpush1.msra.mxu0 0.0
      %2430 = vmatprep.subr.mxu0 0.0
      %2431 = vmatpush1.msra.mxu0 0.0
      %2432 = vmatprep.subr.mxu0 0.0
      %2433 = vmatpush1.msra.mxu0 0.0
      %2434 = vmatprep.subr.mxu0 0.0
      %2435 = vmatpush1.msra.mxu0 0.0
      %2436 = vmatprep.subr.mxu0 0.0
      %2437 = vmatpush1.msra.mxu0 0.0
      %2438 = vmatprep.mubr.f32.mxu0 0.0
      %2439 = vmatmul.mubr.f32.gmra.mrb[0].mxu0 %v2372
      %v2440 = vpop.f32.mrb[0].mxu0
      %v2441 = vadd.f32 0.0, %v2440
      %v2442 = vpop.f32.mrb[0].mxu0
      %v2443 = vadd.f32 0.0, %v2442
      %2444 = vdwg.mxu0
      %v2445 = vadd.f32 %v2368, %v2441
      %v2446 = vadd.f32 %v2369, %v2443
      %2447 = vrot.lane.b32.xlu0 %v2062, 88
      %v2448 = vpop.permute.xlu0 %2447
      %v2449 = vsel %vm837, %v2448, 0
      %2451 = vmatprep.subr.mxu0 %v757
      %2452 = vmatpush1.msra.mxu0 %v756
      %2453 = vmatprep.subr.mxu0 0.0
      %2454 = vmatpush1.msra.mxu0 0.0
      %2455 = vmatprep.subr.mxu0 0.0
      %2456 = vmatpush1.msra.mxu0 0.0
      %2457 = vmatprep.subr.mxu0 0.0
      %2458 = vmatpush1.msra.mxu0 0.0
      %2459 = vmatprep.subr.mxu0 0.0
      %2460 = vmatpush1.msra.mxu0 0.0
      %2461 = vmatprep.subr.mxu0 0.0
      %2462 = vmatpush1.msra.mxu0 0.0
      %2463 = vmatprep.subr.mxu0 0.0
      %2464 = vmatpush1.msra.mxu0 0.0
      %2465 = vmatprep.subr.mxu0 0.0
      %2466 = vmatpush1.msra.mxu0 0.0
      %2467 = vmatprep.subr.mxu0 0.0
      %2468 = vmatpush1.msra.mxu0 0.0
      %2469 = vmatprep.subr.mxu0 0.0
      %2470 = vmatpush1.msra.mxu0 0.0
      %2471 = vmatprep.subr.mxu0 0.0
      %2472 = vmatpush1.msra.mxu0 0.0
      %2473 = vmatprep.subr.mxu0 0.0
      %2474 = vmatpush1.msra.mxu0 0.0
      %2475 = vmatprep.subr.mxu0 0.0
      %2476 = vmatpush1.msra.mxu0 0.0
      %2477 = vmatprep.subr.mxu0 0.0
      %2478 = vmatpush1.msra.mxu0 0.0
      %2479 = vmatprep.subr.mxu0 0.0
      %2480 = vmatpush1.msra.mxu0 0.0
      %2481 = vmatprep.subr.mxu0 0.0
      %2482 = vmatpush1.msra.mxu0 0.0
      %2483 = vmatprep.subr.mxu0 0.0
      %2484 = vmatpush1.msra.mxu0 0.0
      %2485 = vmatprep.subr.mxu0 0.0
      %2486 = vmatpush1.msra.mxu0 0.0
      %2487 = vmatprep.subr.mxu0 0.0
      %2488 = vmatpush1.msra.mxu0 0.0
      %2489 = vmatprep.subr.mxu0 0.0
      %2490 = vmatpush1.msra.mxu0 0.0
      %2491 = vmatprep.subr.mxu0 0.0
      %2492 = vmatpush1.msra.mxu0 0.0
      %2493 = vmatprep.subr.mxu0 0.0
      %2494 = vmatpush1.msra.mxu0 0.0
      %2495 = vmatprep.subr.mxu0 0.0
      %2496 = vmatpush1.msra.mxu0 0.0
      %2497 = vmatprep.subr.mxu0 0.0
      %2498 = vmatpush1.msra.mxu0 0.0
      %2499 = vmatprep.subr.mxu0 0.0
      %2500 = vmatpush1.msra.mxu0 0.0
      %2501 = vmatprep.subr.mxu0 0.0
      %2502 = vmatpush1.msra.mxu0 0.0
      %2503 = vmatprep.subr.mxu0 0.0
      %2504 = vmatpush1.msra.mxu0 0.0
      %2505 = vmatprep.subr.mxu0 0.0
      %2506 = vmatpush1.msra.mxu0 0.0
      %2507 = vmatprep.subr.mxu0 0.0
      %2508 = vmatpush1.msra.mxu0 0.0
      %2509 = vmatprep.subr.mxu0 0.0
      %2510 = vmatpush1.msra.mxu0 0.0
      %2511 = vmatprep.subr.mxu0 0.0
      %2512 = vmatpush1.msra.mxu0 0.0
      %2513 = vmatprep.subr.mxu0 0.0
      %2514 = vmatpush1.msra.mxu0 0.0
      %2515 = vmatprep.mubr.f32.mxu0 0.0
      %2516 = vmatmul.mubr.f32.gmra.mrb[0].mxu0 %v2449
      %v2517 = vpop.f32.mrb[0].mxu0
      %v2518 = vadd.f32 0.0, %v2517
      %v2519 = vpop.f32.mrb[0].mxu0
      %v2520 = vadd.f32 0.0, %v2519
      %2521 = vdwg.mxu0
      %v2522 = vadd.f32 %v2445, %v2518
      %v2523 = vadd.f32 %v2446, %v2520
      %2524 = vrot.lane.b32.xlu0 %v2062, 80
      %v2525 = vpop.permute.xlu0 %2524
      %v2526 = vsel %vm837, %v2525, 0
      %2528 = vmatprep.subr.mxu0 %v772
      %2529 = vmatpush1.msra.mxu0 %v771
      %2530 = vmatprep.subr.mxu0 0.0
      %2531 = vmatpush1.msra.mxu0 0.0
      %2532 = vmatprep.subr.mxu0 0.0
      %2533 = vmatpush1.msra.mxu0 0.0
      %2534 = vmatprep.subr.mxu0 0.0
      %2535 = vmatpush1.msra.mxu0 0.0
      %2536 = vmatprep.subr.mxu0 0.0
      %2537 = vmatpush1.msra.mxu0 0.0
      %2538 = vmatprep.subr.mxu0 0.0
      %2539 = vmatpush1.msra.mxu0 0.0
      %2540 = vmatprep.subr.mxu0 0.0
      %2541 = vmatpush1.msra.mxu0 0.0
      %2542 = vmatprep.subr.mxu0 0.0
      %2543 = vmatpush1.msra.mxu0 0.0
      %2544 = vmatprep.subr.mxu0 0.0
      %2545 = vmatpush1.msra.mxu0 0.0
      %2546 = vmatprep.subr.mxu0 0.0
      %2547 = vmatpush1.msra.mxu0 0.0
      %2548 = vmatprep.subr.mxu0 0.0
      %2549 = vmatpush1.msra.mxu0 0.0
      %2550 = vmatprep.subr.mxu0 0.0
      %2551 = vmatpush1.msra.mxu0 0.0
      %2552 = vmatprep.subr.mxu0 0.0
      %2553 = vmatpush1.msra.mxu0 0.0
      %2554 = vmatprep.subr.mxu0 0.0
      %2555 = vmatpush1.msra.mxu0 0.0
      %2556 = vmatprep.subr.mxu0 0.0
      %2557 = vmatpush1.msra.mxu0 0.0
      %2558 = vmatprep.subr.mxu0 0.0
      %2559 = vmatpush1.msra.mxu0 0.0
      %2560 = vmatprep.subr.mxu0 0.0
      %2561 = vmatpush1.msra.mxu0 0.0
      %2562 = vmatprep.subr.mxu0 0.0
      %2563 = vmatpush1.msra.mxu0 0.0
      %2564 = vmatprep.subr.mxu0 0.0
      %2565 = vmatpush1.msra.mxu0 0.0
      %2566 = vmatprep.subr.mxu0 0.0
      %2567 = vmatpush1.msra.mxu0 0.0
      %2568 = vmatprep.subr.mxu0 0.0
      %2569 = vmatpush1.msra.mxu0 0.0
      %2570 = vmatprep.subr.mxu0 0.0
      %2571 = vmatpush1.msra.mxu0 0.0
      %2572 = vmatprep.subr.mxu0 0.0
      %2573 = vmatpush1.msra.mxu0 0.0
      %2574 = vmatprep.subr.mxu0 0.0
      %2575 = vmatpush1.msra.mxu0 0.0
      %2576 = vmatprep.subr.mxu0 0.0
      %2577 = vmatpush1.msra.mxu0 0.0
      %2578 = vmatprep.subr.mxu0 0.0
      %2579 = vmatpush1.msra.mxu0 0.0
      %2580 = vmatprep.subr.mxu0 0.0
      %2581 = vmatpush1.msra.mxu0 0.0
      %2582 = vmatprep.subr.mxu0 0.0
      %2583 = vmatpush1.msra.mxu0 0.0
      %2584 = vmatprep.subr.mxu0 0.0
      %2585 = vmatpush1.msra.mxu0 0.0
      %2586 = vmatprep.subr.mxu0 0.0
      %2587 = vmatpush1.msra.mxu0 0.0
      %2588 = vmatprep.subr.mxu0 0.0
      %2589 = vmatpush1.msra.mxu0 0.0
      %2590 = vmatprep.subr.mxu0 0.0
      %2591 = vmatpush1.msra.mxu0 0.0
      %2592 = vmatprep.mubr.f32.mxu0 0.0
      %2593 = vmatmul.mubr.f32.gmra.mrb[0].mxu0 %v2526
      %v2594 = vpop.f32.mrb[0].mxu0
      %v2595 = vadd.f32 0.0, %v2594
      %v2596 = vpop.f32.mrb[0].mxu0
      %v2597 = vadd.f32 0.0, %v2596
      %2598 = vdwg.mxu0
      %v2599 = vadd.f32 %v2522, %v2595
      %v2600 = vadd.f32 %v2523, %v2597
      %2601 = vrot.lane.b32.xlu0 %v2062, 72
      %v2602 = vpop.permute.xlu0 %2601
      %v2603 = vsel %vm837, %v2602, 0
      %2605 = vmatprep.subr.mxu0 %v787
      %2606 = vmatpush1.msra.mxu0 %v786
      %2607 = vmatprep.subr.mxu0 0.0
      %2608 = vmatpush1.msra.mxu0 0.0
      %2609 = vmatprep.subr.mxu0 0.0
      %2610 = vmatpush1.msra.mxu0 0.0
      %2611 = vmatprep.subr.mxu0 0.0
      %2612 = vmatpush1.msra.mxu0 0.0
      %2613 = vmatprep.subr.mxu0 0.0
      %2614 = vmatpush1.msra.mxu0 0.0
      %2615 = vmatprep.subr.mxu0 0.0
      %2616 = vmatpush1.msra.mxu0 0.0
      %2617 = vmatprep.subr.mxu0 0.0
      %2618 = vmatpush1.msra.mxu0 0.0
      %2619 = vmatprep.subr.mxu0 0.0
      %2620 = vmatpush1.msra.mxu0 0.0
      %2621 = vmatprep.subr.mxu0 0.0
      %2622 = vmatpush1.msra.mxu0 0.0
      %2623 = vmatprep.subr.mxu0 0.0
      %2624 = vmatpush1.msra.mxu0 0.0
      %2625 = vmatprep.subr.mxu0 0.0
      %2626 = vmatpush1.msra.mxu0 0.0
      %2627 = vmatprep.subr.mxu0 0.0
      %2628 = vmatpush1.msra.mxu0 0.0
      %2629 = vmatprep.subr.mxu0 0.0
      %2630 = vmatpush1.msra.mxu0 0.0
      %2631 = vmatprep.subr.mxu0 0.0
      %2632 = vmatpush1.msra.mxu0 0.0
      %2633 = vmatprep.subr.mxu0 0.0
      %2634 = vmatpush1.msra.mxu0 0.0
      %2635 = vmatprep.subr.mxu0 0.0
      %2636 = vmatpush1.msra.mxu0 0.0
      %2637 = vmatprep.subr.mxu0 0.0
      %2638 = vmatpush1.msra.mxu0 0.0
      %2639 = vmatprep.subr.mxu0 0.0
      %2640 = vmatpush1.msra.mxu0 0.0
      %2641 = vmatprep.subr.mxu0 0.0
      %2642 = vmatpush1.msra.mxu0 0.0
      %2643 = vmatprep.subr.mxu0 0.0
      %2644 = vmatpush1.msra.mxu0 0.0
      %2645 = vmatprep.subr.mxu0 0.0
      %2646 = vmatpush1.msra.mxu0 0.0
      %2647 = vmatprep.subr.mxu0 0.0
      %2648 = vmatpush1.msra.mxu0 0.0
      %2649 = vmatprep.subr.mxu0 0.0
      %2650 = vmatpush1.msra.mxu0 0.0
      %2651 = vmatprep.subr.mxu0 0.0
      %2652 = vmatpush1.msra.mxu0 0.0
      %2653 = vmatprep.subr.mxu0 0.0
      %2654 = vmatpush1.msra.mxu0 0.0
      %2655 = vmatprep.subr.mxu0 0.0
      %2656 = vmatpush1.msra.mxu0 0.0
      %2657 = vmatprep.subr.mxu0 0.0
      %2658 = vmatpush1.msra.mxu0 0.0
      %2659 = vmatprep.subr.mxu0 0.0
      %2660 = vmatpush1.msra.mxu0 0.0
      %2661 = vmatprep.subr.mxu0 0.0
      %2662 = vmatpush1.msra.mxu0 0.0
      %2663 = vmatprep.subr.mxu0 0.0
      %2664 = vmatpush1.msra.mxu0 0.0
      %2665 = vmatprep.subr.mxu0 0.0
      %2666 = vmatpush1.msra.mxu0 0.0
      %2667 = vmatprep.subr.mxu0 0.0
      %2668 = vmatpush1.msra.mxu0 0.0
      %2669 = vmatprep.mubr.f32.mxu0 0.0
      %2670 = vmatmul.mubr.f32.gmra.mrb[0].mxu0 %v2603
      %v2671 = vpop.f32.mrb[0].mxu0
      %v2672 = vadd.f32 0.0, %v2671
      %v2673 = vpop.f32.mrb[0].mxu0
      %v2674 = vadd.f32 0.0, %v2673
      %2675 = vdwg.mxu0
      %v2676 = vadd.f32 %v2599, %v2672
      %v2677 = vadd.f32 %v2600, %v2674
      %2678 = vrot.lane.b32.xlu0 %v2062, 64
      %v2679 = vpop.permute.xlu0 %2678
      %v2680 = vsel %vm837, %v2679, 0
      %2682 = vmatprep.subr.mxu0 %v802
      %2683 = vmatpush1.msra.mxu0 %v801
      %2684 = vmatprep.subr.mxu0 0.0
      %2685 = vmatpush1.msra.mxu0 0.0
      %2686 = vmatprep.subr.mxu0 0.0
      %2687 = vmatpush1.msra.mxu0 0.0
      %2688 = vmatprep.subr.mxu0 0.0
      %2689 = vmatpush1.msra.mxu0 0.0
      %2690 = vmatprep.subr.mxu0 0.0
      %2691 = vmatpush1.msra.mxu0 0.0
      %2692 = vmatprep.subr.mxu0 0.0
      %2693 = vmatpush1.msra.mxu0 0.0
      %2694 = vmatprep.subr.mxu0 0.0
      %2695 = vmatpush1.msra.mxu0 0.0
      %2696 = vmatprep.subr.mxu0 0.0
      %2697 = vmatpush1.msra.mxu0 0.0
      %2698 = vmatprep.subr.mxu0 0.0
      %2699 = vmatpush1.msra.mxu0 0.0
      %2700 = vmatprep.subr.mxu0 0.0
      %2701 = vmatpush1.msra.mxu0 0.0
      %2702 = vmatprep.subr.mxu0 0.0
      %2703 = vmatpush1.msra.mxu0 0.0
      %2704 = vmatprep.subr.mxu0 0.0
      %2705 = vmatpush1.msra.mxu0 0.0
      %2706 = vmatprep.subr.mxu0 0.0
      %2707 = vmatpush1.msra.mxu0 0.0
      %2708 = vmatprep.subr.mxu0 0.0
      %2709 = vmatpush1.msra.mxu0 0.0
      %2710 = vmatprep.subr.mxu0 0.0
      %2711 = vmatpush1.msra.mxu0 0.0
      %2712 = vmatprep.subr.mxu0 0.0
      %2713 = vmatpush1.msra.mxu0 0.0
      %2714 = vmatprep.subr.mxu0 0.0
      %2715 = vmatpush1.msra.mxu0 0.0
      %2716 = vmatprep.subr.mxu0 0.0
      %2717 = vmatpush1.msra.mxu0 0.0
      %2718 = vmatprep.subr.mxu0 0.0
      %2719 = vmatpush1.msra.mxu0 0.0
      %2720 = vmatprep.subr.mxu0 0.0
      %2721 = vmatpush1.msra.mxu0 0.0
      %2722 = vmatprep.subr.mxu0 0.0
      %2723 = vmatpush1.msra.mxu0 0.0
      %2724 = vmatprep.subr.mxu0 0.0
      %2725 = vmatpush1.msra.mxu0 0.0
      %2726 = vmatprep.subr.mxu0 0.0
      %2727 = vmatpush1.msra.mxu0 0.0
      %2728 = vmatprep.subr.mxu0 0.0
      %2729 = vmatpush1.msra.mxu0 0.0
      %2730 = vmatprep.subr.mxu0 0.0
      %2731 = vmatpush1.msra.mxu0 0.0
      %2732 = vmatprep.subr.mxu0 0.0
      %2733 = vmatpush1.msra.mxu0 0.0
      %2734 = vmatprep.subr.mxu0 0.0
      %2735 = vmatpush1.msra.mxu0 0.0
      %2736 = vmatprep.subr.mxu0 0.0
      %2737 = vmatpush1.msra.mxu0 0.0
      %2738 = vmatprep.subr.mxu0 0.0
      %2739 = vmatpush1.msra.mxu0 0.0
      %2740 = vmatprep.subr.mxu0 0.0
      %2741 = vmatpush1.msra.mxu0 0.0
      %2742 = vmatprep.subr.mxu0 0.0
      %2743 = vmatpush1.msra.mxu0 0.0
      %2744 = vmatprep.subr.mxu0 0.0
      %2745 = vmatpush1.msra.mxu0 0.0
      %2746 = vmatprep.mubr.f32.mxu0 0.0
      %2747 = vmatmul.mubr.f32.gmra.mrb[0].mxu0 %v2680
      %v2748 = vpop.f32.mrb[0].mxu0
      %v2749 = vadd.f32 0.0, %v2748
      %v2750 = vpop.f32.mrb[0].mxu0
      %v2751 = vadd.f32 0.0, %v2750
      %2752 = vdwg.mxu0
      %v2753 = vadd.f32 %v2676, %v2749
      %v2754 = vadd.f32 %v2677, %v2751
      %2755 = vrot.lane.b32.xlu0 %v2062, 56
      %v2756 = vpop.permute.xlu0 %2755
      %v2757 = vsel %vm837, %v2756, 0
      %2759 = vmatprep.subr.mxu0 %v817
      %2760 = vmatpush1.msra.mxu0 %v816
      %2761 = vmatprep.subr.mxu0 0.0
      %2762 = vmatpush1.msra.mxu0 0.0
      %2763 = vmatprep.subr.mxu0 0.0
      %2764 = vmatpush1.msra.mxu0 0.0
      %2765 = vmatprep.subr.mxu0 0.0
      %2766 = vmatpush1.msra.mxu0 0.0
      %2767 = vmatprep.subr.mxu0 0.0
      %2768 = vmatpush1.msra.mxu0 0.0
      %2769 = vmatprep.subr.mxu0 0.0
      %2770 = vmatpush1.msra.mxu0 0.0
      %2771 = vmatprep.subr.mxu0 0.0
      %2772 = vmatpush1.msra.mxu0 0.0
      %2773 = vmatprep.subr.mxu0 0.0
      %2774 = vmatpush1.msra.mxu0 0.0
      %2775 = vmatprep.subr.mxu0 0.0
      %2776 = vmatpush1.msra.mxu0 0.0
      %2777 = vmatprep.subr.mxu0 0.0
      %2778 = vmatpush1.msra.mxu0 0.0
      %2779 = vmatprep.subr.mxu0 0.0
      %2780 = vmatpush1.msra.mxu0 0.0
      %2781 = vmatprep.subr.mxu0 0.0
      %2782 = vmatpush1.msra.mxu0 0.0
      %2783 = vmatprep.subr.mxu0 0.0
      %2784 = vmatpush1.msra.mxu0 0.0
      %2785 = vmatprep.subr.mxu0 0.0
      %2786 = vmatpush1.msra.mxu0 0.0
      %2787 = vmatprep.subr.mxu0 0.0
      %2788 = vmatpush1.msra.mxu0 0.0
      %2789 = vmatprep.subr.mxu0 0.0
      %2790 = vmatpush1.msra.mxu0 0.0
      %2791 = vmatprep.subr.mxu0 0.0
      %2792 = vmatpush1.msra.mxu0 0.0
      %2793 = vmatprep.subr.mxu0 0.0
      %2794 = vmatpush1.msra.mxu0 0.0
      %2795 = vmatprep.subr.mxu0 0.0
      %2796 = vmatpush1.msra.mxu0 0.0
      %2797 = vmatprep.subr.mxu0 0.0
      %2798 = vmatpush1.msra.mxu0 0.0
      %2799 = vmatprep.subr.mxu0 0.0
      %2800 = vmatpush1.msra.mxu0 0.0
      %2801 = vmatprep.subr.mxu0 0.0
      %2802 = vmatpush1.msra.mxu0 0.0
      %2803 = vmatprep.subr.mxu0 0.0
      %2804 = vmatpush1.msra.mxu0 0.0
      %2805 = vmatprep.subr.mxu0 0.0
      %2806 = vmatpush1.msra.mxu0 0.0
      %2807 = vmatprep.subr.mxu0 0.0
      %2808 = vmatpush1.msra.mxu0 0.0
      %2809 = vmatprep.subr.mxu0 0.0
      %2810 = vmatpush1.msra.mxu0 0.0
      %2811 = vmatprep.subr.mxu0 0.0
      %2812 = vmatpush1.msra.mxu0 0.0
      %2813 = vmatprep.subr.mxu0 0.0
      %2814 = vmatpush1.msra.mxu0 0.0
      %2815 = vmatprep.subr.mxu0 0.0
      %2816 = vmatpush1.msra.mxu0 0.0
      %2817 = vmatprep.subr.mxu0 0.0
      %2818 = vmatpush1.msra.mxu0 0.0
      %2819 = vmatprep.subr.mxu0 0.0
      %2820 = vmatpush1.msra.mxu0 0.0
      %2821 = vmatprep.subr.mxu0 0.0
      %2822 = vmatpush1.msra.mxu0 0.0
      %2823 = vmatprep.mubr.f32.mxu0 0.0
      %2824 = vmatmul.mubr.f32.gmra.mrb[0].mxu0 %v2757
      %v2825 = vpop.f32.mrb[0].mxu0
      %v2826 = vadd.f32 0.0, %v2825
      %v2827 = vpop.f32.mrb[0].mxu0
      %v2828 = vadd.f32 0.0, %v2827
      %2829 = vdwg.mxu0
      %v2830 = vadd.f32 %v2753, %v2826
      %v2831 = vadd.f32 %v2754, %v2828
      %2832 = vrot.lane.b32.xlu0 %v2062, 48
      %v2833 = vpop.permute.xlu0 %2832
      %v2834 = vsel %vm837, %v2833, 0
      %2836 = vmatprep.subr.mxu0 %v832
      %2837 = vmatpush1.msra.mxu0 %v831
      %2838 = vmatprep.subr.mxu0 0.0
      %2839 = vmatpush1.msra.mxu0 0.0
      %2840 = vmatprep.subr.mxu0 0.0
      %2841 = vmatpush1.msra.mxu0 0.0
      %2842 = vmatprep.subr.mxu0 0.0
      %2843 = vmatpush1.msra.mxu0 0.0
      %2844 = vmatprep.subr.mxu0 0.0
      %2845 = vmatpush1.msra.mxu0 0.0
      %2846 = vmatprep.subr.mxu0 0.0
      %2847 = vmatpush1.msra.mxu0 0.0
      %2848 = vmatprep.subr.mxu0 0.0
      %2849 = vmatpush1.msra.mxu0 0.0
      %2850 = vmatprep.subr.mxu0 0.0
      %2851 = vmatpush1.msra.mxu0 0.0
      %2852 = vmatprep.subr.mxu0 0.0
      %2853 = vmatpush1.msra.mxu0 0.0
      %2854 = vmatprep.subr.mxu0 0.0
      %2855 = vmatpush1.msra.mxu0 0.0
      %2856 = vmatprep.subr.mxu0 0.0
      %2857 = vmatpush1.msra.mxu0 0.0
      %2858 = vmatprep.subr.mxu0 0.0
      %2859 = vmatpush1.msra.mxu0 0.0
      %2860 = vmatprep.subr.mxu0 0.0
      %2861 = vmatpush1.msra.mxu0 0.0
      %2862 = vmatprep.subr.mxu0 0.0
      %2863 = vmatpush1.msra.mxu0 0.0
      %2864 = vmatprep.subr.mxu0 0.0
      %2865 = vmatpush1.msra.mxu0 0.0
      %2866 = vmatprep.subr.mxu0 0.0
      %2867 = vmatpush1.msra.mxu0 0.0
      %2868 = vmatprep.subr.mxu0 0.0
      %2869 = vmatpush1.msra.mxu0 0.0
      %2870 = vmatprep.subr.mxu0 0.0
      %2871 = vmatpush1.msra.mxu0 0.0
      %2872 = vmatprep.subr.mxu0 0.0
      %2873 = vmatpush1.msra.mxu0 0.0
      %2874 = vmatprep.subr.mxu0 0.0
      %2875 = vmatpush1.msra.mxu0 0.0
      %2876 = vmatprep.subr.mxu0 0.0
      %2877 = vmatpush1.msra.mxu0 0.0
      %2878 = vmatprep.subr.mxu0 0.0
      %2879 = vmatpush1.msra.mxu0 0.0
      %2880 = vmatprep.subr.mxu0 0.0
      %2881 = vmatpush1.msra.mxu0 0.0
      %2882 = vmatprep.subr.mxu0 0.0
      %2883 = vmatpush1.msra.mxu0 0.0
      %2884 = vmatprep.subr.mxu0 0.0
      %2885 = vmatpush1.msra.mxu0 0.0
      %2886 = vmatprep.subr.mxu0 0.0
      %2887 = vmatpush1.msra.mxu0 0.0
      %2888 = vmatprep.subr.mxu0 0.0
      %2889 = vmatpush1.msra.mxu0 0.0
      %2890 = vmatprep.subr.mxu0 0.0
      %2891 = vmatpush1.msra.mxu0 0.0
      %2892 = vmatprep.subr.mxu0 0.0
      %2893 = vmatpush1.msra.mxu0 0.0
      %2894 = vmatprep.subr.mxu0 0.0
      %2895 = vmatpush1.msra.mxu0 0.0
      %2896 = vmatprep.subr.mxu0 0.0
      %2897 = vmatpush1.msra.mxu0 0.0
      %2898 = vmatprep.subr.mxu0 0.0
      %2899 = vmatpush1.msra.mxu0 0.0
      %2900 = vmatprep.mubr.f32.mxu0 0.0
      %2901 = vmatmul.mubr.f32.gmra.mrb[0].mxu0 %v2834
      %v2902 = vpop.f32.mrb[0].mxu0
      %v2903 = vadd.f32 0.0, %v2902
      %v2904 = vpop.f32.mrb[0].mxu0
      %v2905 = vadd.f32 0.0, %v2904
      %2906 = vdwg.mxu0
      %v2907 = vadd.f32 %v2830, %v2903
      %v2908 = vadd.f32 %v2831, %v2905
      %v2909 = vld [vmem:[%s3] sm:$0xff]
      %2911 = vset.pattern.permute.xlu0 0
      %2912 = vperm.xlu0 %2911, %v2909
      %v2913 = vpop.permute.xlu0 %2912
      %v2915 = vadd.f32 %v2907, %v2913
      %v2916 = vadd.f32 %v2908, %v2913
      %vm2917 = vcmp.ge.f32.partialorder %v2915, 0.0
      %vm2918 = vcmp.ge.f32.partialorder %v2916, 0.0
      %v2919 = vmul.f32 %v2915, 0.1
      %v2920 = vmul.f32 %v2916, 0.1
      %v2921 = vsel %vm2917, %v2915, %v2919
      %v2922 = vsel %vm2918, %v2916, %v2920
      %2923 = vrot.lane.b32.xlu0 %v2921, 73
      %v2924 = vpop.permute.xlu0 %2923
      %2925 = vrot.lane.b32.xlu0 %v2922, 73
      %v2926 = vpop.permute.xlu0 %2925
      %v2927 = vsel %vm314, %v2924, %v2926
      %v2928 = vsel %vm314, %v2926, %v2924
      %v2929 = vmul.f32 %v2928, %v322
      %v2930 = vmul.f32 %v2927, %v326
      %2931 = vrot.lane.b32.xlu0 %v2921, 72
      %v2932 = vpop.permute.xlu0 %2931
      %2933 = vrot.lane.b32.xlu0 %v2922, 72
      %v2934 = vpop.permute.xlu0 %2933
      %v2935 = vsel %vm335, %v2932, %v2934
      %v2936 = vsel %vm335, %v2934, %v2932
      %v2937 = vmul.f32 %v2936, %v344
      %v2938 = vmul.f32 %v2935, %v348
      %2939 = vrot.lane.b32.xlu0 %v2921, 71
      %v2940 = vpop.permute.xlu0 %2939
      %2941 = vrot.lane.b32.xlu0 %v2922, 71
      %v2942 = vpop.permute.xlu0 %2941
      %v2943 = vsel %vm357, %v2940, %v2942
      %v2944 = vsel %vm357, %v2942, %v2940
      %v2945 = vmul.f32 %v2944, %v366
      %v2946 = vmul.f32 %v2943, %v370
      %2947 = vrot.lane.b32.xlu0 %v2921, 65
      %v2948 = vpop.permute.xlu0 %2947
      %2949 = vrot.lane.b32.xlu0 %v2922, 65
      %v2950 = vpop.permute.xlu0 %2949
      %v2951 = vsel %vm379, %v2948, %v2950
      %v2952 = vsel %vm379, %v2950, %v2948
      %v2953 = vmul.f32 %v2952, %v388
      %v2954 = vmul.f32 %v2951, %v392
      %2955 = vrot.lane.b32.xlu0 %v2921, 64
      %v2956 = vpop.permute.xlu0 %2955
      %2957 = vrot.lane.b32.xlu0 %v2922, 64
      %v2958 = vpop.permute.xlu0 %2957
      %v2959 = vsel %vm401, %v2956, %v2958
      %v2960 = vsel %vm401, %v2958, %v2956
      %v2961 = vmul.f32 %v2960, %v410
      %v2962 = vmul.f32 %v2959, %v414
      %2963 = vrot.lane.b32.xlu0 %v2921, 63
      %v2964 = vpop.permute.xlu0 %2963
      %2965 = vrot.lane.b32.xlu0 %v2922, 63
      %v2966 = vpop.permute.xlu0 %2965
      %v2967 = vsel %vm423, %v2964, %v2966
      %v2968 = vsel %vm423, %v2966, %v2964
      %v2969 = vmul.f32 %v2968, %v432
      %v2970 = vmul.f32 %v2967, %v436
      %2971 = vrot.lane.b32.xlu0 %v2921, 57
      %v2972 = vpop.permute.xlu0 %2971
      %2973 = vrot.lane.b32.xlu0 %v2922, 57
      %v2974 = vpop.permute.xlu0 %2973
      %v2975 = vsel %vm445, %v2972, %v2974
      %v2976 = vsel %vm445, %v2974, %v2972
      %v2977 = vmul.f32 %v2976, %v454
      %v2978 = vmul.f32 %v2975, %v458
      %2979 = vrot.lane.b32.xlu0 %v2921, 56
      %v2980 = vpop.permute.xlu0 %2979
      %2981 = vrot.lane.b32.xlu0 %v2922, 56
      %v2982 = vpop.permute.xlu0 %2981
      %v2983 = vsel %vm467, %v2980, %v2982
      %v2984 = vsel %vm467, %v2982, %v2980
      %v2985 = vmul.f32 %v2984, %v476
      %v2986 = vmul.f32 %v2983, %v480
      %2987 = vrot.lane.b32.xlu0 %v2921, 55
      %v2988 = vpop.permute.xlu0 %2987
      %2989 = vrot.lane.b32.xlu0 %v2922, 55
      %v2990 = vpop.permute.xlu0 %2989
      %v2991 = vsel %vm489, %v2988, %v2990
      %v2992 = vsel %vm489, %v2990, %v2988
      %v2993 = vmul.f32 %v2992, %v498
      %v2994 = vmul.f32 %v2991, %v502
      %2995 = vrot.lane.b32.xlu0 %v2921, 9
      %v2996 = vpop.permute.xlu0 %2995
      %2997 = vrot.lane.b32.xlu0 %v2922, 9
      %v2998 = vpop.permute.xlu0 %2997
      %v2999 = vsel %vm511, %v2996, %v2998
      %v3000 = vsel %vm511, %v2998, %v2996
      %v3001 = vmul.f32 %v3000, %v520
      %v3002 = vmul.f32 %v2999, %v524
      %3003 = vrot.lane.b32.xlu0 %v2921, 8
      %v3004 = vpop.permute.xlu0 %3003
      %3005 = vrot.lane.b32.xlu0 %v2922, 8
      %v3006 = vpop.permute.xlu0 %3005
      %v3007 = vsel %vm533, %v3004, %v3006
      %v3008 = vsel %vm533, %v3006, %v3004
      %v3009 = vmul.f32 %v3008, %v542
      %v3010 = vmul.f32 %v3007, %v546
      %3011 = vrot.lane.b32.xlu0 %v2921, 7
      %v3012 = vpop.permute.xlu0 %3011
      %3013 = vrot.lane.b32.xlu0 %v2922, 7
      %v3014 = vpop.permute.xlu0 %3013
      %v3015 = vsel %vm555, %v3012, %v3014
      %v3016 = vsel %vm555, %v3014, %v3012
      %v3017 = vmul.f32 %v3016, %v564
      %v3018 = vmul.f32 %v3015, %v568
      %3019 = vrot.lane.b32.xlu0 %v2921, 1
      %v3020 = vpop.permute.xlu0 %3019
      %3021 = vrot.lane.b32.xlu0 %v2922, 1
      %v3022 = vpop.permute.xlu0 %3021
      %v3023 = vsel %vm577, %v3020, %v3022
      %v3024 = vsel %vm577, %v3022, %v3020
      %v3025 = vmul.f32 %v3024, %v586
      %v3026 = vmul.f32 %v3023, %v590
      %v3027 = vmul.f32 %v2921, %v601
      %v3028 = vmul.f32 %v2922, %v605
      %3029 = vrot.lane.b32.xlu0 %v2921, 127
      %v3030 = vpop.permute.xlu0 %3029
      %3031 = vrot.lane.b32.xlu0 %v2922, 127
      %v3032 = vpop.permute.xlu0 %3031
      %v3033 = vsel %vm614, %v3030, %v3032
      %v3034 = vsel %vm614, %v3032, %v3030
      %v3035 = vmul.f32 %v3033, %v623
      %v3036 = vmul.f32 %v3034, %v627
      %3037 = vrot.lane.b32.xlu0 %v2921, 121
      %v3038 = vpop.permute.xlu0 %3037
      %3039 = vrot.lane.b32.xlu0 %v2922, 121
      %v3040 = vpop.permute.xlu0 %3039
      %v3041 = vsel %vm636, %v3038, %v3040
      %v3042 = vsel %vm636, %v3040, %v3038
      %v3043 = vmul.f32 %v3041, %v645
      %v3044 = vmul.f32 %v3042, %v649
      %3045 = vrot.lane.b32.xlu0 %v2921, 120
      %v3046 = vpop.permute.xlu0 %3045
      %3047 = vrot.lane.b32.xlu0 %v2922, 120
      %v3048 = vpop.permute.xlu0 %3047
      %v3049 = vsel %vm658, %v3046, %v3048
      %v3050 = vsel %vm658, %v3048, %v3046
      %v3051 = vmul.f32 %v3049, %v667
      %v3052 = vmul.f32 %v3050, %v671
      %3053 = vrot.lane.b32.xlu0 %v2921, 119
      %v3054 = vpop.permute.xlu0 %3053
      %3055 = vrot.lane.b32.xlu0 %v2922, 119
      %v3056 = vpop.permute.xlu0 %3055
      %v3057 = vsel %vm680, %v3054, %v3056
      %v3058 = vsel %vm680, %v3056, %v3054
      %v3059 = vmul.f32 %v3057, %v689
      %v3060 = vmul.f32 %v3058, %v693
      %v3061 = vmul.f32 %v2927, %v704
      %v3062 = vmul.f32 %v2928, %v708
      %v3063 = vmul.f32 %v2935, %v719
      %v3064 = vmul.f32 %v2936, %v723
      %v3065 = vmul.f32 %v2943, %v734
      %v3066 = vmul.f32 %v2944, %v738
      %v3067 = vmul.f32 %v2951, %v749
      %v3068 = vmul.f32 %v2952, %v753
      %v3069 = vmul.f32 %v2959, %v764
      %v3070 = vmul.f32 %v2960, %v768
      %v3071 = vmul.f32 %v2967, %v779
      %v3072 = vmul.f32 %v2968, %v783
      %v3073 = vmul.f32 %v2975, %v794
      %v3074 = vmul.f32 %v2976, %v798
      %v3075 = vmul.f32 %v2983, %v809
      %v3076 = vmul.f32 %v2984, %v813
      %v3077 = vmul.f32 %v2991, %v824
      %v3078 = vmul.f32 %v2992, %v828
      %v3079 = vld [vmem:[%s4] sm:$0xff]
      %3081 = vrot.lane.b32.xlu0 %v3079, 120
      %v3082 = vpop.permute.xlu0 %3081
      %v3083 = vsel %vm837, %v3082, 0
      %3085 = vmatprep.subr.mxu0 %v2938
      %3086 = vmatpush1.msra.mxu0 %v2937
      %3087 = vmatprep.subr.mxu0 0.0
      %3088 = vmatpush1.msra.mxu0 0.0
      %3089 = vmatprep.subr.mxu0 0.0
      %3090 = vmatpush1.msra.mxu0 0.0
      %3091 = vmatprep.subr.mxu0 0.0
      %3092 = vmatpush1.msra.mxu0 0.0
      %3093 = vmatprep.subr.mxu0 0.0
      %3094 = vmatpush1.msra.mxu0 0.0
      %3095 = vmatprep.subr.mxu0 0.0
      %3096 = vmatpush1.msra.mxu0 0.0
      %3097 = vmatprep.subr.mxu0 0.0
      %3098 = vmatpush1.msra.mxu0 0.0
      %3099 = vmatprep.subr.mxu0 0.0
      %3100 = vmatpush1.msra.mxu0 0.0
      %3101 = vmatprep.subr.mxu0 0.0
      %3102 = vmatpush1.msra.mxu0 0.0
      %3103 = vmatprep.subr.mxu0 0.0
      %3104 = vmatpush1.msra.mxu0 0.0
      %3105 = vmatprep.subr.mxu0 0.0
      %3106 = vmatpush1.msra.mxu0 0.0
      %3107 = vmatprep.subr.mxu0 0.0
      %3108 = vmatpush1.msra.mxu0 0.0
      %3109 = vmatprep.subr.mxu0 0.0
      %3110 = vmatpush1.msra.mxu0 0.0
      %3111 = vmatprep.subr.mxu0 0.0
      %3112 = vmatpush1.msra.mxu0 0.0
      %3113 = vmatprep.subr.mxu0 0.0
      %3114 = vmatpush1.msra.mxu0 0.0
      %3115 = vmatprep.subr.mxu0 0.0
      %3116 = vmatpush1.msra.mxu0 0.0
      %3117 = vmatprep.subr.mxu0 0.0
      %3118 = vmatpush1.msra.mxu0 0.0
      %3119 = vmatprep.subr.mxu0 0.0
      %3120 = vmatpush1.msra.mxu0 0.0
      %3121 = vmatprep.subr.mxu0 0.0
      %3122 = vmatpush1.msra.mxu0 0.0
      %3123 = vmatprep.subr.mxu0 0.0
      %3124 = vmatpush1.msra.mxu0 0.0
      %3125 = vmatprep.subr.mxu0 0.0
      %3126 = vmatpush1.msra.mxu0 0.0
      %3127 = vmatprep.subr.mxu0 0.0
      %3128 = vmatpush1.msra.mxu0 0.0
      %3129 = vmatprep.subr.mxu0 0.0
      %3130 = vmatpush1.msra.mxu0 0.0
      %3131 = vmatprep.subr.mxu0 0.0
      %3132 = vmatpush1.msra.mxu0 0.0
      %3133 = vmatprep.subr.mxu0 0.0
      %3134 = vmatpush1.msra.mxu0 0.0
      %3135 = vmatprep.subr.mxu0 0.0
      %3136 = vmatpush1.msra.mxu0 0.0
      %3137 = vmatprep.subr.mxu0 0.0
      %3138 = vmatpush1.msra.mxu0 0.0
      %3139 = vmatprep.subr.mxu0 0.0
      %3140 = vmatpush1.msra.mxu0 0.0
      %3141 = vmatprep.subr.mxu0 0.0
      %3142 = vmatpush1.msra.mxu0 0.0
      %3143 = vmatprep.subr.mxu0 0.0
      %3144 = vmatpush1.msra.mxu0 0.0
      %3145 = vmatprep.subr.mxu0 0.0
      %3146 = vmatpush1.msra.mxu0 0.0
      %3147 = vmatprep.subr.mxu0 0.0
      %3148 = vmatpush1.msra.mxu0 0.0
      %3149 = vmatprep.mubr.f32.mxu0 0.0
      %3150 = vmatmul.mubr.f32.gmra.mrb[0].mxu0 %v3083
      %v3151 = vpop.f32.mrb[0].mxu0
      %v3152 = vadd.f32 0.0, %v3151
      %v3153 = vpop.f32.mrb[0].mxu0
      %v3154 = vadd.f32 0.0, %v3153
      %3155 = vdwg.mxu0
      %v3156 = vsel %vm837, %v3079, 0
      %3158 = vmatprep.subr.mxu0 %v2930
      %3159 = vmatpush1.msra.mxu0 %v2929
      %3160 = vmatprep.subr.mxu0 0.0
      %3161 = vmatpush1.msra.mxu0 0.0
      %3162 = vmatprep.subr.mxu0 0.0
      %3163 = vmatpush1.msra.mxu0 0.0
      %3164 = vmatprep.subr.mxu0 0.0
      %3165 = vmatpush1.msra.mxu0 0.0
      %3166 = vmatprep.subr.mxu0 0.0
      %3167 = vmatpush1.msra.mxu0 0.0
      %3168 = vmatprep.subr.mxu0 0.0
      %3169 = vmatpush1.msra.mxu0 0.0
      %3170 = vmatprep.subr.mxu0 0.0
      %3171 = vmatpush1.msra.mxu0 0.0
      %3172 = vmatprep.subr.mxu0 0.0
      %3173 = vmatpush1.msra.mxu0 0.0
      %3174 = vmatprep.subr.mxu0 0.0
      %3175 = vmatpush1.msra.mxu0 0.0
      %3176 = vmatprep.subr.mxu0 0.0
      %3177 = vmatpush1.msra.mxu0 0.0
      %3178 = vmatprep.subr.mxu0 0.0
      %3179 = vmatpush1.msra.mxu0 0.0
      %3180 = vmatprep.subr.mxu0 0.0
      %3181 = vmatpush1.msra.mxu0 0.0
      %3182 = vmatprep.subr.mxu0 0.0
      %3183 = vmatpush1.msra.mxu0 0.0
      %3184 = vmatprep.subr.mxu0 0.0
      %3185 = vmatpush1.msra.mxu0 0.0
      %3186 = vmatprep.subr.mxu0 0.0
      %3187 = vmatpush1.msra.mxu0 0.0
      %3188 = vmatprep.subr.mxu0 0.0
      %3189 = vmatpush1.msra.mxu0 0.0
      %3190 = vmatprep.subr.mxu0 0.0
      %3191 = vmatpush1.msra.mxu0 0.0
      %3192 = vmatprep.subr.mxu0 0.0
      %3193 = vmatpush1.msra.mxu0 0.0
      %3194 = vmatprep.subr.mxu0 0.0
      %3195 = vmatpush1.msra.mxu0 0.0
      %3196 = vmatprep.subr.mxu0 0.0
      %3197 = vmatpush1.msra.mxu0 0.0
      %3198 = vmatprep.subr.mxu0 0.0
      %3199 = vmatpush1.msra.mxu0 0.0
      %3200 = vmatprep.subr.mxu0 0.0
      %3201 = vmatpush1.msra.mxu0 0.0
      %3202 = vmatprep.subr.mxu0 0.0
      %3203 = vmatpush1.msra.mxu0 0.0
      %3204 = vmatprep.subr.mxu0 0.0
      %3205 = vmatpush1.msra.mxu0 0.0
      %3206 = vmatprep.subr.mxu0 0.0
      %3207 = vmatpush1.msra.mxu0 0.0
      %3208 = vmatprep.subr.mxu0 0.0
      %3209 = vmatpush1.msra.mxu0 0.0
      %3210 = vmatprep.subr.mxu0 0.0
      %3211 = vmatpush1.msra.mxu0 0.0
      %3212 = vmatprep.subr.mxu0 0.0
      %3213 = vmatpush1.msra.mxu0 0.0
      %3214 = vmatprep.subr.mxu0 0.0
      %3215 = vmatpush1.msra.mxu0 0.0
      %3216 = vmatprep.subr.mxu0 0.0
      %3217 = vmatpush1.msra.mxu0 0.0
      %3218 = vmatprep.subr.mxu0 0.0
      %3219 = vmatpush1.msra.mxu0 0.0
      %3220 = vmatprep.subr.mxu0 0.0
      %3221 = vmatpush1.msra.mxu0 0.0
      %3222 = vmatprep.mubr.f32.mxu0 0.0
      %3223 = vmatmul.mubr.f32.gmra.mrb[0].mxu0 %v3156
      %v3224 = vpop.f32.mrb[0].mxu0
      %v3225 = vadd.f32 %v3152, %v3224
      %v3226 = vpop.f32.mrb[0].mxu0
      %v3227 = vadd.f32 %v3154, %v3226
      %3228 = vdwg.mxu0
      %3229 = vrot.lane.b32.xlu0 %v3079, 112
      %v3230 = vpop.permute.xlu0 %3229
      %v3231 = vsel %vm837, %v3230, 0
      %3233 = vmatprep.subr.mxu0 %v2946
      %3234 = vmatpush1.msra.mxu0 %v2945
      %3235 = vmatprep.subr.mxu0 0.0
      %3236 = vmatpush1.msra.mxu0 0.0
      %3237 = vmatprep.subr.mxu0 0.0
      %3238 = vmatpush1.msra.mxu0 0.0
      %3239 = vmatprep.subr.mxu0 0.0
      %3240 = vmatpush1.msra.mxu0 0.0
      %3241 = vmatprep.subr.mxu0 0.0
      %3242 = vmatpush1.msra.mxu0 0.0
      %3243 = vmatprep.subr.mxu0 0.0
      %3244 = vmatpush1.msra.mxu0 0.0
      %3245 = vmatprep.subr.mxu0 0.0
      %3246 = vmatpush1.msra.mxu0 0.0
      %3247 = vmatprep.subr.mxu0 0.0
      %3248 = vmatpush1.msra.mxu0 0.0
      %3249 = vmatprep.subr.mxu0 0.0
      %3250 = vmatpush1.msra.mxu0 0.0
      %3251 = vmatprep.subr.mxu0 0.0
      %3252 = vmatpush1.msra.mxu0 0.0
      %3253 = vmatprep.subr.mxu0 0.0
      %3254 = vmatpush1.msra.mxu0 0.0
      %3255 = vmatprep.subr.mxu0 0.0
      %3256 = vmatpush1.msra.mxu0 0.0
      %3257 = vmatprep.subr.mxu0 0.0
      %3258 = vmatpush1.msra.mxu0 0.0
      %3259 = vmatprep.subr.mxu0 0.0
      %3260 = vmatpush1.msra.mxu0 0.0
      %3261 = vmatprep.subr.mxu0 0.0
      %3262 = vmatpush1.msra.mxu0 0.0
      %3263 = vmatprep.subr.mxu0 0.0
      %3264 = vmatpush1.msra.mxu0 0.0
      %3265 = vmatprep.subr.mxu0 0.0
      %3266 = vmatpush1.msra.mxu0 0.0
      %3267 = vmatprep.subr.mxu0 0.0
      %3268 = vmatpush1.msra.mxu0 0.0
      %3269 = vmatprep.subr.mxu0 0.0
      %3270 = vmatpush1.msra.mxu0 0.0
      %3271 = vmatprep.subr.mxu0 0.0
      %3272 = vmatpush1.msra.mxu0 0.0
      %3273 = vmatprep.subr.mxu0 0.0
      %3274 = vmatpush1.msra.mxu0 0.0
      %3275 = vmatprep.subr.mxu0 0.0
      %3276 = vmatpush1.msra.mxu0 0.0
      %3277 = vmatprep.subr.mxu0 0.0
      %3278 = vmatpush1.msra.mxu0 0.0
      %3279 = vmatprep.subr.mxu0 0.0
      %3280 = vmatpush1.msra.mxu0 0.0
      %3281 = vmatprep.subr.mxu0 0.0
      %3282 = vmatpush1.msra.mxu0 0.0
      %3283 = vmatprep.subr.mxu0 0.0
      %3284 = vmatpush1.msra.mxu0 0.0
      %3285 = vmatprep.subr.mxu0 0.0
      %3286 = vmatpush1.msra.mxu0 0.0
      %3287 = vmatprep.subr.mxu0 0.0
      %3288 = vmatpush1.msra.mxu0 0.0
      %3289 = vmatprep.subr.mxu0 0.0
      %3290 = vmatpush1.msra.mxu0 0.0
      %3291 = vmatprep.subr.mxu0 0.0
      %3292 = vmatpush1.msra.mxu0 0.0
      %3293 = vmatprep.subr.mxu0 0.0
      %3294 = vmatpush1.msra.mxu0 0.0
      %3295 = vmatprep.subr.mxu0 0.0
      %3296 = vmatpush1.msra.mxu0 0.0
      %3297 = vmatprep.mubr.f32.mxu0 0.0
      %3298 = vmatmul.mubr.f32.gmra.mrb[0].mxu0 %v3231
      %v3299 = vpop.f32.mrb[0].mxu0
      %v3300 = vadd.f32 0.0, %v3299
      %v3301 = vpop.f32.mrb[0].mxu0
      %v3302 = vadd.f32 0.0, %v3301
      %3303 = vdwg.mxu0
      %v3304 = vadd.f32 %v3225, %v3300
      %v3305 = vadd.f32 %v3227, %v3302
      %3306 = vrot.lane.b32.xlu0 %v3079, 104
      %v3307 = vpop.permute.xlu0 %3306
      %v3308 = vsel %vm837, %v3307, 0
      %3310 = vmatprep.subr.mxu0 %v2954
      %3311 = vmatpush1.msra.mxu0 %v2953
      %3312 = vmatprep.subr.mxu0 0.0
      %3313 = vmatpush1.msra.mxu0 0.0
      %3314 = vmatprep.subr.mxu0 0.0
      %3315 = vmatpush1.msra.mxu0 0.0
      %3316 = vmatprep.subr.mxu0 0.0
      %3317 = vmatpush1.msra.mxu0 0.0
      %3318 = vmatprep.subr.mxu0 0.0
      %3319 = vmatpush1.msra.mxu0 0.0
      %3320 = vmatprep.subr.mxu0 0.0
      %3321 = vmatpush1.msra.mxu0 0.0
      %3322 = vmatprep.subr.mxu0 0.0
      %3323 = vmatpush1.msra.mxu0 0.0
      %3324 = vmatprep.subr.mxu0 0.0
      %3325 = vmatpush1.msra.mxu0 0.0
      %3326 = vmatprep.subr.mxu0 0.0
      %3327 = vmatpush1.msra.mxu0 0.0
      %3328 = vmatprep.subr.mxu0 0.0
      %3329 = vmatpush1.msra.mxu0 0.0
      %3330 = vmatprep.subr.mxu0 0.0
      %3331 = vmatpush1.msra.mxu0 0.0
      %3332 = vmatprep.subr.mxu0 0.0
      %3333 = vmatpush1.msra.mxu0 0.0
      %3334 = vmatprep.subr.mxu0 0.0
      %3335 = vmatpush1.msra.mxu0 0.0
      %3336 = vmatprep.subr.mxu0 0.0
      %3337 = vmatpush1.msra.mxu0 0.0
      %3338 = vmatprep.subr.mxu0 0.0
      %3339 = vmatpush1.msra.mxu0 0.0
      %3340 = vmatprep.subr.mxu0 0.0
      %3341 = vmatpush1.msra.mxu0 0.0
      %3342 = vmatprep.subr.mxu0 0.0
      %3343 = vmatpush1.msra.mxu0 0.0
      %3344 = vmatprep.subr.mxu0 0.0
      %3345 = vmatpush1.msra.mxu0 0.0
      %3346 = vmatprep.subr.mxu0 0.0
      %3347 = vmatpush1.msra.mxu0 0.0
      %3348 = vmatprep.subr.mxu0 0.0
      %3349 = vmatpush1.msra.mxu0 0.0
      %3350 = vmatprep.subr.mxu0 0.0
      %3351 = vmatpush1.msra.mxu0 0.0
      %3352 = vmatprep.subr.mxu0 0.0
      %3353 = vmatpush1.msra.mxu0 0.0
      %3354 = vmatprep.subr.mxu0 0.0
      %3355 = vmatpush1.msra.mxu0 0.0
      %3356 = vmatprep.subr.mxu0 0.0
      %3357 = vmatpush1.msra.mxu0 0.0
      %3358 = vmatprep.subr.mxu0 0.0
      %3359 = vmatpush1.msra.mxu0 0.0
      %3360 = vmatprep.subr.mxu0 0.0
      %3361 = vmatpush1.msra.mxu0 0.0
      %3362 = vmatprep.subr.mxu0 0.0
      %3363 = vmatpush1.msra.mxu0 0.0
      %3364 = vmatprep.subr.mxu0 0.0
      %3365 = vmatpush1.msra.mxu0 0.0
      %3366 = vmatprep.subr.mxu0 0.0
      %3367 = vmatpush1.msra.mxu0 0.0
      %3368 = vmatprep.subr.mxu0 0.0
      %3369 = vmatpush1.msra.mxu0 0.0
      %3370 = vmatprep.subr.mxu0 0.0
      %3371 = vmatpush1.msra.mxu0 0.0
      %3372 = vmatprep.subr.mxu0 0.0
      %3373 = vmatpush1.msra.mxu0 0.0
      %3374 = vmatprep.mubr.f32.mxu0 0.0
      %3375 = vmatmul.mubr.f32.gmra.mrb[0].mxu0 %v3308
      %v3376 = vpop.f32.mrb[0].mxu0
      %v3377 = vadd.f32 0.0, %v3376
      %v3378 = vpop.f32.mrb[0].mxu0
      %v3379 = vadd.f32 0.0, %v3378
      %3380 = vdwg.mxu0
      %v3381 = vadd.f32 %v3304, %v3377
      %v3382 = vadd.f32 %v3305, %v3379
      %3383 = vrot.lane.b32.xlu0 %v3079, 96
      %v3384 = vpop.permute.xlu0 %3383
      %v3385 = vsel %vm837, %v3384, 0
      %3387 = vmatprep.subr.mxu0 %v2962
      %3388 = vmatpush1.msra.mxu0 %v2961
      %3389 = vmatprep.subr.mxu0 0.0
      %3390 = vmatpush1.msra.mxu0 0.0
      %3391 = vmatprep.subr.mxu0 0.0
      %3392 = vmatpush1.msra.mxu0 0.0
      %3393 = vmatprep.subr.mxu0 0.0
      %3394 = vmatpush1.msra.mxu0 0.0
      %3395 = vmatprep.subr.mxu0 0.0
      %3396 = vmatpush1.msra.mxu0 0.0
      %3397 = vmatprep.subr.mxu0 0.0
      %3398 = vmatpush1.msra.mxu0 0.0
      %3399 = vmatprep.subr.mxu0 0.0
      %3400 = vmatpush1.msra.mxu0 0.0
      %3401 = vmatprep.subr.mxu0 0.0
      %3402 = vmatpush1.msra.mxu0 0.0
      %3403 = vmatprep.subr.mxu0 0.0
      %3404 = vmatpush1.msra.mxu0 0.0
      %3405 = vmatprep.subr.mxu0 0.0
      %3406 = vmatpush1.msra.mxu0 0.0
      %3407 = vmatprep.subr.mxu0 0.0
      %3408 = vmatpush1.msra.mxu0 0.0
      %3409 = vmatprep.subr.mxu0 0.0
      %3410 = vmatpush1.msra.mxu0 0.0
      %3411 = vmatprep.subr.mxu0 0.0
      %3412 = vmatpush1.msra.mxu0 0.0
      %3413 = vmatprep.subr.mxu0 0.0
      %3414 = vmatpush1.msra.mxu0 0.0
      %3415 = vmatprep.subr.mxu0 0.0
      %3416 = vmatpush1.msra.mxu0 0.0
      %3417 = vmatprep.subr.mxu0 0.0
      %3418 = vmatpush1.msra.mxu0 0.0
      %3419 = vmatprep.subr.mxu0 0.0
      %3420 = vmatpush1.msra.mxu0 0.0
      %3421 = vmatprep.subr.mxu0 0.0
      %3422 = vmatpush1.msra.mxu0 0.0
      %3423 = vmatprep.subr.mxu0 0.0
      %3424 = vmatpush1.msra.mxu0 0.0
      %3425 = vmatprep.subr.mxu0 0.0
      %3426 = vmatpush1.msra.mxu0 0.0
      %3427 = vmatprep.subr.mxu0 0.0
      %3428 = vmatpush1.msra.mxu0 0.0
      %3429 = vmatprep.subr.mxu0 0.0
      %3430 = vmatpush1.msra.mxu0 0.0
      %3431 = vmatprep.subr.mxu0 0.0
      %3432 = vmatpush1.msra.mxu0 0.0
      %3433 = vmatprep.subr.mxu0 0.0
      %3434 = vmatpush1.msra.mxu0 0.0
      %3435 = vmatprep.subr.mxu0 0.0
      %3436 = vmatpush1.msra.mxu0 0.0
      %3437 = vmatprep.subr.mxu0 0.0
      %3438 = vmatpush1.msra.mxu0 0.0
      %3439 = vmatprep.subr.mxu0 0.0
      %3440 = vmatpush1.msra.mxu0 0.0
      %3441 = vmatprep.subr.mxu0 0.0
      %3442 = vmatpush1.msra.mxu0 0.0
      %3443 = vmatprep.subr.mxu0 0.0
      %3444 = vmatpush1.msra.mxu0 0.0
      %3445 = vmatprep.subr.mxu0 0.0
      %3446 = vmatpush1.msra.mxu0 0.0
      %3447 = vmatprep.subr.mxu0 0.0
      %3448 = vmatpush1.msra.mxu0 0.0
      %3449 = vmatprep.subr.mxu0 0.0
      %3450 = vmatpush1.msra.mxu0 0.0
      %3451 = vmatprep.mubr.f32.mxu0 0.0
      %3452 = vmatmul.mubr.f32.gmra.mrb[0].mxu0 %v3385
      %v3453 = vpop.f32.mrb[0].mxu0
      %v3454 = vadd.f32 0.0, %v3453
      %v3455 = vpop.f32.mrb[0].mxu0
      %v3456 = vadd.f32 0.0, %v3455
      %3457 = vdwg.mxu0
      %v3458 = vadd.f32 %v3381, %v3454
      %v3459 = vadd.f32 %v3382, %v3456
      %3460 = vrot.lane.b32.xlu0 %v3079, 88
      %v3461 = vpop.permute.xlu0 %3460
      %v3462 = vsel %vm837, %v3461, 0
      %3464 = vmatprep.subr.mxu0 %v2970
      %3465 = vmatpush1.msra.mxu0 %v2969
      %3466 = vmatprep.subr.mxu0 0.0
      %3467 = vmatpush1.msra.mxu0 0.0
      %3468 = vmatprep.subr.mxu0 0.0
      %3469 = vmatpush1.msra.mxu0 0.0
      %3470 = vmatprep.subr.mxu0 0.0
      %3471 = vmatpush1.msra.mxu0 0.0
      %3472 = vmatprep.subr.mxu0 0.0
      %3473 = vmatpush1.msra.mxu0 0.0
      %3474 = vmatprep.subr.mxu0 0.0
      %3475 = vmatpush1.msra.mxu0 0.0
      %3476 = vmatprep.subr.mxu0 0.0
      %3477 = vmatpush1.msra.mxu0 0.0
      %3478 = vmatprep.subr.mxu0 0.0
      %3479 = vmatpush1.msra.mxu0 0.0
      %3480 = vmatprep.subr.mxu0 0.0
      %3481 = vmatpush1.msra.mxu0 0.0
      %3482 = vmatprep.subr.mxu0 0.0
      %3483 = vmatpush1.msra.mxu0 0.0
      %3484 = vmatprep.subr.mxu0 0.0
      %3485 = vmatpush1.msra.mxu0 0.0
      %3486 = vmatprep.subr.mxu0 0.0
      %3487 = vmatpush1.msra.mxu0 0.0
      %3488 = vmatprep.subr.mxu0 0.0
      %3489 = vmatpush1.msra.mxu0 0.0
      %3490 = vmatprep.subr.mxu0 0.0
      %3491 = vmatpush1.msra.mxu0 0.0
      %3492 = vmatprep.subr.mxu0 0.0
      %3493 = vmatpush1.msra.mxu0 0.0
      %3494 = vmatprep.subr.mxu0 0.0
      %3495 = vmatpush1.msra.mxu0 0.0
      %3496 = vmatprep.subr.mxu0 0.0
      %3497 = vmatpush1.msra.mxu0 0.0
      %3498 = vmatprep.subr.mxu0 0.0
      %3499 = vmatpush1.msra.mxu0 0.0
      %3500 = vmatprep.subr.mxu0 0.0
      %3501 = vmatpush1.msra.mxu0 0.0
      %3502 = vmatprep.subr.mxu0 0.0
      %3503 = vmatpush1.msra.mxu0 0.0
      %3504 = vmatprep.subr.mxu0 0.0
      %3505 = vmatpush1.msra.mxu0 0.0
      %3506 = vmatprep.subr.mxu0 0.0
      %3507 = vmatpush1.msra.mxu0 0.0
      %3508 = vmatprep.subr.mxu0 0.0
      %3509 = vmatpush1.msra.mxu0 0.0
      %3510 = vmatprep.subr.mxu0 0.0
      %3511 = vmatpush1.msra.mxu0 0.0
      %3512 = vmatprep.subr.mxu0 0.0
      %3513 = vmatpush1.msra.mxu0 0.0
      %3514 = vmatprep.subr.mxu0 0.0
      %3515 = vmatpush1.msra.mxu0 0.0
      %3516 = vmatprep.subr.mxu0 0.0
      %3517 = vmatpush1.msra.mxu0 0.0
      %3518 = vmatprep.subr.mxu0 0.0
      %3519 = vmatpush1.msra.mxu0 0.0
      %3520 = vmatprep.subr.mxu0 0.0
      %3521 = vmatpush1.msra.mxu0 0.0
      %3522 = vmatprep.subr.mxu0 0.0
      %3523 = vmatpush1.msra.mxu0 0.0
      %3524 = vmatprep.subr.mxu0 0.0
      %3525 = vmatpush1.msra.mxu0 0.0
      %3526 = vmatprep.subr.mxu0 0.0
      %3527 = vmatpush1.msra.mxu0 0.0
      %3528 = vmatprep.mubr.f32.mxu0 0.0
      %3529 = vmatmul.mubr.f32.gmra.mrb[0].mxu0 %v3462
      %v3530 = vpop.f32.mrb[0].mxu0
      %v3531 = vadd.f32 0.0, %v3530
      %v3532 = vpop.f32.mrb[0].mxu0
      %v3533 = vadd.f32 0.0, %v3532
      %3534 = vdwg.mxu0
      %v3535 = vadd.f32 %v3458, %v3531
      %v3536 = vadd.f32 %v3459, %v3533
      %3537 = vrot.lane.b32.xlu0 %v3079, 80
      %v3538 = vpop.permute.xlu0 %3537
      %v3539 = vsel %vm837, %v3538, 0
      %3541 = vmatprep.subr.mxu0 %v2978
      %3542 = vmatpush1.msra.mxu0 %v2977
      %3543 = vmatprep.subr.mxu0 0.0
      %3544 = vmatpush1.msra.mxu0 0.0
      %3545 = vmatprep.subr.mxu0 0.0
      %3546 = vmatpush1.msra.mxu0 0.0
      %3547 = vmatprep.subr.mxu0 0.0
      %3548 = vmatpush1.msra.mxu0 0.0
      %3549 = vmatprep.subr.mxu0 0.0
      %3550 = vmatpush1.msra.mxu0 0.0
      %3551 = vmatprep.subr.mxu0 0.0
      %3552 = vmatpush1.msra.mxu0 0.0
      %3553 = vmatprep.subr.mxu0 0.0
      %3554 = vmatpush1.msra.mxu0 0.0
      %3555 = vmatprep.subr.mxu0 0.0
      %3556 = vmatpush1.msra.mxu0 0.0
      %3557 = vmatprep.subr.mxu0 0.0
      %3558 = vmatpush1.msra.mxu0 0.0
      %3559 = vmatprep.subr.mxu0 0.0
      %3560 = vmatpush1.msra.mxu0 0.0
      %3561 = vmatprep.subr.mxu0 0.0
      %3562 = vmatpush1.msra.mxu0 0.0
      %3563 = vmatprep.subr.mxu0 0.0
      %3564 = vmatpush1.msra.mxu0 0.0
      %3565 = vmatprep.subr.mxu0 0.0
      %3566 = vmatpush1.msra.mxu0 0.0
      %3567 = vmatprep.subr.mxu0 0.0
      %3568 = vmatpush1.msra.mxu0 0.0
      %3569 = vmatprep.subr.mxu0 0.0
      %3570 = vmatpush1.msra.mxu0 0.0
      %3571 = vmatprep.subr.mxu0 0.0
      %3572 = vmatpush1.msra.mxu0 0.0
      %3573 = vmatprep.subr.mxu0 0.0
      %3574 = vmatpush1.msra.mxu0 0.0
      %3575 = vmatprep.subr.mxu0 0.0
      %3576 = vmatpush1.msra.mxu0 0.0
      %3577 = vmatprep.subr.mxu0 0.0
      %3578 = vmatpush1.msra.mxu0 0.0
      %3579 = vmatprep.subr.mxu0 0.0
      %3580 = vmatpush1.msra.mxu0 0.0
      %3581 = vmatprep.subr.mxu0 0.0
      %3582 = vmatpush1.msra.mxu0 0.0
      %3583 = vmatprep.subr.mxu0 0.0
      %3584 = vmatpush1.msra.mxu0 0.0
      %3585 = vmatprep.subr.mxu0 0.0
      %3586 = vmatpush1.msra.mxu0 0.0
      %3587 = vmatprep.subr.mxu0 0.0
      %3588 = vmatpush1.msra.mxu0 0.0
      %3589 = vmatprep.subr.mxu0 0.0
      %3590 = vmatpush1.msra.mxu0 0.0
      %3591 = vmatprep.subr.mxu0 0.0
      %3592 = vmatpush1.msra.mxu0 0.0
      %3593 = vmatprep.subr.mxu0 0.0
      %3594 = vmatpush1.msra.mxu0 0.0
      %3595 = vmatprep.subr.mxu0 0.0
      %3596 = vmatpush1.msra.mxu0 0.0
      %3597 = vmatprep.subr.mxu0 0.0
      %3598 = vmatpush1.msra.mxu0 0.0
      %3599 = vmatprep.subr.mxu0 0.0
      %3600 = vmatpush1.msra.mxu0 0.0
      %3601 = vmatprep.subr.mxu0 0.0
      %3602 = vmatpush1.msra.mxu0 0.0
      %3603 = vmatprep.subr.mxu0 0.0
      %3604 = vmatpush1.msra.mxu0 0.0
      %3605 = vmatprep.mubr.f32.mxu0 0.0
      %3606 = vmatmul.mubr.f32.gmra.mrb[0].mxu0 %v3539
      %v3607 = vpop.f32.mrb[0].mxu0
      %v3608 = vadd.f32 0.0, %v3607
      %v3609 = vpop.f32.mrb[0].mxu0
      %v3610 = vadd.f32 0.0, %v3609
      %3611 = vdwg.mxu0
      %v3612 = vadd.f32 %v3535, %v3608
      %v3613 = vadd.f32 %v3536, %v3610
      %3614 = vrot.lane.b32.xlu0 %v3079, 72
      %v3615 = vpop.permute.xlu0 %3614
      %v3616 = vsel %vm837, %v3615, 0
      %3618 = vmatprep.subr.mxu0 %v2986
      %3619 = vmatpush1.msra.mxu0 %v2985
      %3620 = vmatprep.subr.mxu0 0.0
      %3621 = vmatpush1.msra.mxu0 0.0
      %3622 = vmatprep.subr.mxu0 0.0
      %3623 = vmatpush1.msra.mxu0 0.0
      %3624 = vmatprep.subr.mxu0 0.0
      %3625 = vmatpush1.msra.mxu0 0.0
      %3626 = vmatprep.subr.mxu0 0.0
      %3627 = vmatpush1.msra.mxu0 0.0
      %3628 = vmatprep.subr.mxu0 0.0
      %3629 = vmatpush1.msra.mxu0 0.0
      %3630 = vmatprep.subr.mxu0 0.0
      %3631 = vmatpush1.msra.mxu0 0.0
      %3632 = vmatprep.subr.mxu0 0.0
      %3633 = vmatpush1.msra.mxu0 0.0
      %3634 = vmatprep.subr.mxu0 0.0
      %3635 = vmatpush1.msra.mxu0 0.0
      %3636 = vmatprep.subr.mxu0 0.0
      %3637 = vmatpush1.msra.mxu0 0.0
      %3638 = vmatprep.subr.mxu0 0.0
      %3639 = vmatpush1.msra.mxu0 0.0
      %3640 = vmatprep.subr.mxu0 0.0
      %3641 = vmatpush1.msra.mxu0 0.0
      %3642 = vmatprep.subr.mxu0 0.0
      %3643 = vmatpush1.msra.mxu0 0.0
      %3644 = vmatprep.subr.mxu0 0.0
      %3645 = vmatpush1.msra.mxu0 0.0
      %3646 = vmatprep.subr.mxu0 0.0
      %3647 = vmatpush1.msra.mxu0 0.0
      %3648 = vmatprep.subr.mxu0 0.0
      %3649 = vmatpush1.msra.mxu0 0.0
      %3650 = vmatprep.subr.mxu0 0.0
      %3651 = vmatpush1.msra.mxu0 0.0
      %3652 = vmatprep.subr.mxu0 0.0
      %3653 = vmatpush1.msra.mxu0 0.0
      %3654 = vmatprep.subr.mxu0 0.0
      %3655 = vmatpush1.msra.mxu0 0.0
      %3656 = vmatprep.subr.mxu0 0.0
      %3657 = vmatpush1.msra.mxu0 0.0
      %3658 = vmatprep.subr.mxu0 0.0
      %3659 = vmatpush1.msra.mxu0 0.0
      %3660 = vmatprep.subr.mxu0 0.0
      %3661 = vmatpush1.msra.mxu0 0.0
      %3662 = vmatprep.subr.mxu0 0.0
      %3663 = vmatpush1.msra.mxu0 0.0
      %3664 = vmatprep.subr.mxu0 0.0
      %3665 = vmatpush1.msra.mxu0 0.0
      %3666 = vmatprep.subr.mxu0 0.0
      %3667 = vmatpush1.msra.mxu0 0.0
      %3668 = vmatprep.subr.mxu0 0.0
      %3669 = vmatpush1.msra.mxu0 0.0
      %3670 = vmatprep.subr.mxu0 0.0
      %3671 = vmatpush1.msra.mxu0 0.0
      %3672 = vmatprep.subr.mxu0 0.0
      %3673 = vmatpush1.msra.mxu0 0.0
      %3674 = vmatprep.subr.mxu0 0.0
      %3675 = vmatpush1.msra.mxu0 0.0
      %3676 = vmatprep.subr.mxu0 0.0
      %3677 = vmatpush1.msra.mxu0 0.0
      %3678 = vmatprep.subr.mxu0 0.0
      %3679 = vmatpush1.msra.mxu0 0.0
      %3680 = vmatprep.subr.mxu0 0.0
      %3681 = vmatpush1.msra.mxu0 0.0
      %3682 = vmatprep.mubr.f32.mxu0 0.0
      %3683 = vmatmul.mubr.f32.gmra.mrb[0].mxu0 %v3616
      %v3684 = vpop.f32.mrb[0].mxu0
      %v3685 = vadd.f32 0.0, %v3684
      %v3686 = vpop.f32.mrb[0].mxu0
      %v3687 = vadd.f32 0.0, %v3686
      %3688 = vdwg.mxu0
      %v3689 = vadd.f32 %v3612, %v3685
      %v3690 = vadd.f32 %v3613, %v3687
      %3691 = vrot.lane.b32.xlu0 %v3079, 64
      %v3692 = vpop.permute.xlu0 %3691
      %v3693 = vsel %vm837, %v3692, 0
      %3695 = vmatprep.subr.mxu0 %v2994
      %3696 = vmatpush1.msra.mxu0 %v2993
      %3697 = vmatprep.subr.mxu0 0.0
      %3698 = vmatpush1.msra.mxu0 0.0
      %3699 = vmatprep.subr.mxu0 0.0
      %3700 = vmatpush1.msra.mxu0 0.0
      %3701 = vmatprep.subr.mxu0 0.0
      %3702 = vmatpush1.msra.mxu0 0.0
      %3703 = vmatprep.subr.mxu0 0.0
      %3704 = vmatpush1.msra.mxu0 0.0
      %3705 = vmatprep.subr.mxu0 0.0
      %3706 = vmatpush1.msra.mxu0 0.0
      %3707 = vmatprep.subr.mxu0 0.0
      %3708 = vmatpush1.msra.mxu0 0.0
      %3709 = vmatprep.subr.mxu0 0.0
      %3710 = vmatpush1.msra.mxu0 0.0
      %3711 = vmatprep.subr.mxu0 0.0
      %3712 = vmatpush1.msra.mxu0 0.0
      %3713 = vmatprep.subr.mxu0 0.0
      %3714 = vmatpush1.msra.mxu0 0.0
      %3715 = vmatprep.subr.mxu0 0.0
      %3716 = vmatpush1.msra.mxu0 0.0
      %3717 = vmatprep.subr.mxu0 0.0
      %3718 = vmatpush1.msra.mxu0 0.0
      %3719 = vmatprep.subr.mxu0 0.0
      %3720 = vmatpush1.msra.mxu0 0.0
      %3721 = vmatprep.subr.mxu0 0.0
      %3722 = vmatpush1.msra.mxu0 0.0
      %3723 = vmatprep.subr.mxu0 0.0
      %3724 = vmatpush1.msra.mxu0 0.0
      %3725 = vmatprep.subr.mxu0 0.0
      %3726 = vmatpush1.msra.mxu0 0.0
      %3727 = vmatprep.subr.mxu0 0.0
      %3728 = vmatpush1.msra.mxu0 0.0
      %3729 = vmatprep.subr.mxu0 0.0
      %3730 = vmatpush1.msra.mxu0 0.0
      %3731 = vmatprep.subr.mxu0 0.0
      %3732 = vmatpush1.msra.mxu0 0.0
      %3733 = vmatprep.subr.mxu0 0.0
      %3734 = vmatpush1.msra.mxu0 0.0
      %3735 = vmatprep.subr.mxu0 0.0
      %3736 = vmatpush1.msra.mxu0 0.0
      %3737 = vmatprep.subr.mxu0 0.0
      %3738 = vmatpush1.msra.mxu0 0.0
      %3739 = vmatprep.subr.mxu0 0.0
      %3740 = vmatpush1.msra.mxu0 0.0
      %3741 = vmatprep.subr.mxu0 0.0
      %3742 = vmatpush1.msra.mxu0 0.0
      %3743 = vmatprep.subr.mxu0 0.0
      %3744 = vmatpush1.msra.mxu0 0.0
      %3745 = vmatprep.subr.mxu0 0.0
      %3746 = vmatpush1.msra.mxu0 0.0
      %3747 = vmatprep.subr.mxu0 0.0
      %3748 = vmatpush1.msra.mxu0 0.0
      %3749 = vmatprep.subr.mxu0 0.0
      %3750 = vmatpush1.msra.mxu0 0.0
      %3751 = vmatprep.subr.mxu0 0.0
      %3752 = vmatpush1.msra.mxu0 0.0
      %3753 = vmatprep.subr.mxu0 0.0
      %3754 = vmatpush1.msra.mxu0 0.0
      %3755 = vmatprep.subr.mxu0 0.0
      %3756 = vmatpush1.msra.mxu0 0.0
      %3757 = vmatprep.subr.mxu0 0.0
      %3758 = vmatpush1.msra.mxu0 0.0
      %3759 = vmatprep.mubr.f32.mxu0 0.0
      %3760 = vmatmul.mubr.f32.gmra.mrb[0].mxu0 %v3693
      %v3761 = vpop.f32.mrb[0].mxu0
      %v3762 = vadd.f32 0.0, %v3761
      %v3763 = vpop.f32.mrb[0].mxu0
      %v3764 = vadd.f32 0.0, %v3763
      %3765 = vdwg.mxu0
      %v3766 = vadd.f32 %v3689, %v3762
      %v3767 = vadd.f32 %v3690, %v3764
      %3768 = vrot.lane.b32.xlu0 %v3079, 56
      %v3769 = vpop.permute.xlu0 %3768
      %v3770 = vsel %vm837, %v3769, 0
      %3772 = vmatprep.subr.mxu0 %v3002
      %3773 = vmatpush1.msra.mxu0 %v3001
      %3774 = vmatprep.subr.mxu0 0.0
      %3775 = vmatpush1.msra.mxu0 0.0
      %3776 = vmatprep.subr.mxu0 0.0
      %3777 = vmatpush1.msra.mxu0 0.0
      %3778 = vmatprep.subr.mxu0 0.0
      %3779 = vmatpush1.msra.mxu0 0.0
      %3780 = vmatprep.subr.mxu0 0.0
      %3781 = vmatpush1.msra.mxu0 0.0
      %3782 = vmatprep.subr.mxu0 0.0
      %3783 = vmatpush1.msra.mxu0 0.0
      %3784 = vmatprep.subr.mxu0 0.0
      %3785 = vmatpush1.msra.mxu0 0.0
      %3786 = vmatprep.subr.mxu0 0.0
      %3787 = vmatpush1.msra.mxu0 0.0
      %3788 = vmatprep.subr.mxu0 0.0
      %3789 = vmatpush1.msra.mxu0 0.0
      %3790 = vmatprep.subr.mxu0 0.0
      %3791 = vmatpush1.msra.mxu0 0.0
      %3792 = vmatprep.subr.mxu0 0.0
      %3793 = vmatpush1.msra.mxu0 0.0
      %3794 = vmatprep.subr.mxu0 0.0
      %3795 = vmatpush1.msra.mxu0 0.0
      %3796 = vmatprep.subr.mxu0 0.0
      %3797 = vmatpush1.msra.mxu0 0.0
      %3798 = vmatprep.subr.mxu0 0.0
      %3799 = vmatpush1.msra.mxu0 0.0
      %3800 = vmatprep.subr.mxu0 0.0
      %3801 = vmatpush1.msra.mxu0 0.0
      %3802 = vmatprep.subr.mxu0 0.0
      %3803 = vmatpush1.msra.mxu0 0.0
      %3804 = vmatprep.subr.mxu0 0.0
      %3805 = vmatpush1.msra.mxu0 0.0
      %3806 = vmatprep.subr.mxu0 0.0
      %3807 = vmatpush1.msra.mxu0 0.0
      %3808 = vmatprep.subr.mxu0 0.0
      %3809 = vmatpush1.msra.mxu0 0.0
      %3810 = vmatprep.subr.mxu0 0.0
      %3811 = vmatpush1.msra.mxu0 0.0
      %3812 = vmatprep.subr.mxu0 0.0
      %3813 = vmatpush1.msra.mxu0 0.0
      %3814 = vmatprep.subr.mxu0 0.0
      %3815 = vmatpush1.msra.mxu0 0.0
      %3816 = vmatprep.subr.mxu0 0.0
      %3817 = vmatpush1.msra.mxu0 0.0
      %3818 = vmatprep.subr.mxu0 0.0
      %3819 = vmatpush1.msra.mxu0 0.0
      %3820 = vmatprep.subr.mxu0 0.0
      %3821 = vmatpush1.msra.mxu0 0.0
      %3822 = vmatprep.subr.mxu0 0.0
      %3823 = vmatpush1.msra.mxu0 0.0
      %3824 = vmatprep.subr.mxu0 0.0
      %3825 = vmatpush1.msra.mxu0 0.0
      %3826 = vmatprep.subr.mxu0 0.0
      %3827 = vmatpush1.msra.mxu0 0.0
      %3828 = vmatprep.subr.mxu0 0.0
      %3829 = vmatpush1.msra.mxu0 0.0
      %3830 = vmatprep.subr.mxu0 0.0
      %3831 = vmatpush1.msra.mxu0 0.0
      %3832 = vmatprep.subr.mxu0 0.0
      %3833 = vmatpush1.msra.mxu0 0.0
      %3834 = vmatprep.subr.mxu0 0.0
      %3835 = vmatpush1.msra.mxu0 0.0
      %3836 = vmatprep.mubr.f32.mxu0 0.0
      %3837 = vmatmul.mubr.f32.gmra.mrb[0].mxu0 %v3770
      %v3838 = vpop.f32.mrb[0].mxu0
      %v3839 = vadd.f32 0.0, %v3838
      %v3840 = vpop.f32.mrb[0].mxu0
      %v3841 = vadd.f32 0.0, %v3840
      %3842 = vdwg.mxu0
      %v3843 = vadd.f32 %v3766, %v3839
      %v3844 = vadd.f32 %v3767, %v3841
      %3845 = vrot.lane.b32.xlu0 %v3079, 48
      %v3846 = vpop.permute.xlu0 %3845
      %v3847 = vsel %vm837, %v3846, 0
      %3849 = vmatprep.subr.mxu0 %v3010
      %3850 = vmatpush1.msra.mxu0 %v3009
      %3851 = vmatprep.subr.mxu0 0.0
      %3852 = vmatpush1.msra.mxu0 0.0
      %3853 = vmatprep.subr.mxu0 0.0
      %3854 = vmatpush1.msra.mxu0 0.0
      %3855 = vmatprep.subr.mxu0 0.0
      %3856 = vmatpush1.msra.mxu0 0.0
      %3857 = vmatprep.subr.mxu0 0.0
      %3858 = vmatpush1.msra.mxu0 0.0
      %3859 = vmatprep.subr.mxu0 0.0
      %3860 = vmatpush1.msra.mxu0 0.0
      %3861 = vmatprep.subr.mxu0 0.0
      %3862 = vmatpush1.msra.mxu0 0.0
      %3863 = vmatprep.subr.mxu0 0.0
      %3864 = vmatpush1.msra.mxu0 0.0
      %3865 = vmatprep.subr.mxu0 0.0
      %3866 = vmatpush1.msra.mxu0 0.0
      %3867 = vmatprep.subr.mxu0 0.0
      %3868 = vmatpush1.msra.mxu0 0.0
      %3869 = vmatprep.subr.mxu0 0.0
      %3870 = vmatpush1.msra.mxu0 0.0
      %3871 = vmatprep.subr.mxu0 0.0
      %3872 = vmatpush1.msra.mxu0 0.0
      %3873 = vmatprep.subr.mxu0 0.0
      %3874 = vmatpush1.msra.mxu0 0.0
      %3875 = vmatprep.subr.mxu0 0.0
      %3876 = vmatpush1.msra.mxu0 0.0
      %3877 = vmatprep.subr.mxu0 0.0
      %3878 = vmatpush1.msra.mxu0 0.0
      %3879 = vmatprep.subr.mxu0 0.0
      %3880 = vmatpush1.msra.mxu0 0.0
      %3881 = vmatprep.subr.mxu0 0.0
      %3882 = vmatpush1.msra.mxu0 0.0
      %3883 = vmatprep.subr.mxu0 0.0
      %3884 = vmatpush1.msra.mxu0 0.0
      %3885 = vmatprep.subr.mxu0 0.0
      %3886 = vmatpush1.msra.mxu0 0.0
      %3887 = vmatprep.subr.mxu0 0.0
      %3888 = vmatpush1.msra.mxu0 0.0
      %3889 = vmatprep.subr.mxu0 0.0
      %3890 = vmatpush1.msra.mxu0 0.0
      %3891 = vmatprep.subr.mxu0 0.0
      %3892 = vmatpush1.msra.mxu0 0.0
      %3893 = vmatprep.subr.mxu0 0.0
      %3894 = vmatpush1.msra.mxu0 0.0
      %3895 = vmatprep.subr.mxu0 0.0
      %3896 = vmatpush1.msra.mxu0 0.0
      %3897 = vmatprep.subr.mxu0 0.0
      %3898 = vmatpush1.msra.mxu0 0.0
      %3899 = vmatprep.subr.mxu0 0.0
      %3900 = vmatpush1.msra.mxu0 0.0
      %3901 = vmatprep.subr.mxu0 0.0
      %3902 = vmatpush1.msra.mxu0 0.0
      %3903 = vmatprep.subr.mxu0 0.0
      %3904 = vmatpush1.msra.mxu0 0.0
      %3905 = vmatprep.subr.mxu0 0.0
      %3906 = vmatpush1.msra.mxu0 0.0
      %3907 = vmatprep.subr.mxu0 0.0
      %3908 = vmatpush1.msra.mxu0 0.0
      %3909 = vmatprep.subr.mxu0 0.0
      %3910 = vmatpush1.msra.mxu0 0.0
      %3911 = vmatprep.subr.mxu0 0.0
      %3912 = vmatpush1.msra.mxu0 0.0
      %3913 = vmatprep.mubr.f32.mxu0 0.0
      %3914 = vmatmul.mubr.f32.gmra.mrb[0].mxu0 %v3847
      %v3915 = vpop.f32.mrb[0].mxu0
      %v3916 = vadd.f32 0.0, %v3915
      %v3917 = vpop.f32.mrb[0].mxu0
      %v3918 = vadd.f32 0.0, %v3917
      %3919 = vdwg.mxu0
      %v3920 = vadd.f32 %v3843, %v3916
      %v3921 = vadd.f32 %v3844, %v3918
      %3922 = vrot.lane.b32.xlu0 %v3079, 40
      %v3923 = vpop.permute.xlu0 %3922
      %v3924 = vsel %vm837, %v3923, 0
      %3926 = vmatprep.subr.mxu0 %v3018
      %3927 = vmatpush1.msra.mxu0 %v3017
      %3928 = vmatprep.subr.mxu0 0.0
      %3929 = vmatpush1.msra.mxu0 0.0
      %3930 = vmatprep.subr.mxu0 0.0
      %3931 = vmatpush1.msra.mxu0 0.0
      %3932 = vmatprep.subr.mxu0 0.0
      %3933 = vmatpush1.msra.mxu0 0.0
      %3934 = vmatprep.subr.mxu0 0.0
      %3935 = vmatpush1.msra.mxu0 0.0
      %3936 = vmatprep.subr.mxu0 0.0
      %3937 = vmatpush1.msra.mxu0 0.0
      %3938 = vmatprep.subr.mxu0 0.0
      %3939 = vmatpush1.msra.mxu0 0.0
      %3940 = vmatprep.subr.mxu0 0.0
      %3941 = vmatpush1.msra.mxu0 0.0
      %3942 = vmatprep.subr.mxu0 0.0
      %3943 = vmatpush1.msra.mxu0 0.0
      %3944 = vmatprep.subr.mxu0 0.0
      %3945 = vmatpush1.msra.mxu0 0.0
      %3946 = vmatprep.subr.mxu0 0.0
      %3947 = vmatpush1.msra.mxu0 0.0
      %3948 = vmatprep.subr.mxu0 0.0
      %3949 = vmatpush1.msra.mxu0 0.0
      %3950 = vmatprep.subr.mxu0 0.0
      %3951 = vmatpush1.msra.mxu0 0.0
      %3952 = vmatprep.subr.mxu0 0.0
      %3953 = vmatpush1.msra.mxu0 0.0
      %3954 = vmatprep.subr.mxu0 0.0
      %3955 = vmatpush1.msra.mxu0 0.0
      %3956 = vmatprep.subr.mxu0 0.0
      %3957 = vmatpush1.msra.mxu0 0.0
      %3958 = vmatprep.subr.mxu0 0.0
      %3959 = vmatpush1.msra.mxu0 0.0
      %3960 = vmatprep.subr.mxu0 0.0
      %3961 = vmatpush1.msra.mxu0 0.0
      %3962 = vmatprep.subr.mxu0 0.0
      %3963 = vmatpush1.msra.mxu0 0.0
      %3964 = vmatprep.subr.mxu0 0.0
      %3965 = vmatpush1.msra.mxu0 0.0
      %3966 = vmatprep.subr.mxu0 0.0
      %3967 = vmatpush1.msra.mxu0 0.0
      %3968 = vmatprep.subr.mxu0 0.0
      %3969 = vmatpush1.msra.mxu0 0.0
      %3970 = vmatprep.subr.mxu0 0.0
      %3971 = vmatpush1.msra.mxu0 0.0
      %3972 = vmatprep.subr.mxu0 0.0
      %3973 = vmatpush1.msra.mxu0 0.0
      %3974 = vmatprep.subr.mxu0 0.0
      %3975 = vmatpush1.msra.mxu0 0.0
      %3976 = vmatprep.subr.mxu0 0.0
      %3977 = vmatpush1.msra.mxu0 0.0
      %3978 = vmatprep.subr.mxu0 0.0
      %3979 = vmatpush1.msra.mxu0 0.0
      %3980 = vmatprep.subr.mxu0 0.0
      %3981 = vmatpush1.msra.mxu0 0.0
      %3982 = vmatprep.subr.mxu0 0.0
      %3983 = vmatpush1.msra.mxu0 0.0
      %3984 = vmatprep.subr.mxu0 0.0
      %3985 = vmatpush1.msra.mxu0 0.0
      %3986 = vmatprep.subr.mxu0 0.0
      %3987 = vmatpush1.msra.mxu0 0.0
      %3988 = vmatprep.subr.mxu0 0.0
      %3989 = vmatpush1.msra.mxu0 0.0
      %3990 = vmatprep.mubr.f32.mxu0 0.0
      %3991 = vmatmul.mubr.f32.gmra.mrb[0].mxu0 %v3924
      %v3992 = vpop.f32.mrb[0].mxu0
      %v3993 = vadd.f32 0.0, %v3992
      %v3994 = vpop.f32.mrb[0].mxu0
      %v3995 = vadd.f32 0.0, %v3994
      %3996 = vdwg.mxu0
      %v3997 = vadd.f32 %v3920, %v3993
      %v3998 = vadd.f32 %v3921, %v3995
      %3999 = vrot.lane.b32.xlu0 %v3079, 32
      %v4000 = vpop.permute.xlu0 %3999
      %v4001 = vsel %vm837, %v4000, 0
      %4003 = vmatprep.subr.mxu0 %v3026
      %4004 = vmatpush1.msra.mxu0 %v3025
      %4005 = vmatprep.subr.mxu0 0.0
      %4006 = vmatpush1.msra.mxu0 0.0
      %4007 = vmatprep.subr.mxu0 0.0
      %4008 = vmatpush1.msra.mxu0 0.0
      %4009 = vmatprep.subr.mxu0 0.0
      %4010 = vmatpush1.msra.mxu0 0.0
      %4011 = vmatprep.subr.mxu0 0.0
      %4012 = vmatpush1.msra.mxu0 0.0
      %4013 = vmatprep.subr.mxu0 0.0
      %4014 = vmatpush1.msra.mxu0 0.0
      %4015 = vmatprep.subr.mxu0 0.0
      %4016 = vmatpush1.msra.mxu0 0.0
      %4017 = vmatprep.subr.mxu0 0.0
      %4018 = vmatpush1.msra.mxu0 0.0
      %4019 = vmatprep.subr.mxu0 0.0
      %4020 = vmatpush1.msra.mxu0 0.0
      %4021 = vmatprep.subr.mxu0 0.0
      %4022 = vmatpush1.msra.mxu0 0.0
      %4023 = vmatprep.subr.mxu0 0.0
      %4024 = vmatpush1.msra.mxu0 0.0
      %4025 = vmatprep.subr.mxu0 0.0
      %4026 = vmatpush1.msra.mxu0 0.0
      %4027 = vmatprep.subr.mxu0 0.0
      %4028 = vmatpush1.msra.mxu0 0.0
      %4029 = vmatprep.subr.mxu0 0.0
      %4030 = vmatpush1.msra.mxu0 0.0
      %4031 = vmatprep.subr.mxu0 0.0
      %4032 = vmatpush1.msra.mxu0 0.0
      %4033 = vmatprep.subr.mxu0 0.0
      %4034 = vmatpush1.msra.mxu0 0.0
      %4035 = vmatprep.subr.mxu0 0.0
      %4036 = vmatpush1.msra.mxu0 0.0
      %4037 = vmatprep.subr.mxu0 0.0
      %4038 = vmatpush1.msra.mxu0 0.0
      %4039 = vmatprep.subr.mxu0 0.0
      %4040 = vmatpush1.msra.mxu0 0.0
      %4041 = vmatprep.subr.mxu0 0.0
      %4042 = vmatpush1.msra.mxu0 0.0
      %4043 = vmatprep.subr.mxu0 0.0
      %4044 = vmatpush1.msra.mxu0 0.0
      %4045 = vmatprep.subr.mxu0 0.0
      %4046 = vmatpush1.msra.mxu0 0.0
      %4047 = vmatprep.subr.mxu0 0.0
      %4048 = vmatpush1.msra.mxu0 0.0
      %4049 = vmatprep.subr.mxu0 0.0
      %4050 = vmatpush1.msra.mxu0 0.0
      %4051 = vmatprep.subr.mxu0 0.0
      %4052 = vmatpush1.msra.mxu0 0.0
      %4053 = vmatprep.subr.mxu0 0.0
      %4054 = vmatpush1.msra.mxu0 0.0
      %4055 = vmatprep.subr.mxu0 0.0
      %4056 = vmatpush1.msra.mxu0 0.0
      %4057 = vmatprep.subr.mxu0 0.0
      %4058 = vmatpush1.msra.mxu0 0.0
      %4059 = vmatprep.subr.mxu0 0.0
      %4060 = vmatpush1.msra.mxu0 0.0
      %4061 = vmatprep.subr.mxu0 0.0
      %4062 = vmatpush1.msra.mxu0 0.0
      %4063 = vmatprep.subr.mxu0 0.0
      %4064 = vmatpush1.msra.mxu0 0.0
      %4065 = vmatprep.subr.mxu0 0.0
      %4066 = vmatpush1.msra.mxu0 0.0
      %4067 = vmatprep.mubr.f32.mxu0 0.0
      %4068 = vmatmul.mubr.f32.gmra.mrb[0].mxu0 %v4001
      %v4069 = vpop.f32.mrb[0].mxu0
      %v4070 = vadd.f32 0.0, %v4069
      %v4071 = vpop.f32.mrb[0].mxu0
      %v4072 = vadd.f32 0.0, %v4071
      %4073 = vdwg.mxu0
      %v4074 = vadd.f32 %v3997, %v4070
      %v4075 = vadd.f32 %v3998, %v4072
      %4076 = vrot.lane.b32.xlu0 %v3079, 24
      %v4077 = vpop.permute.xlu0 %4076
      %v4078 = vsel %vm837, %v4077, 0
      %4080 = vmatprep.subr.mxu0 %v3028
      %4081 = vmatpush1.msra.mxu0 %v3027
      %4082 = vmatprep.subr.mxu0 0.0
      %4083 = vmatpush1.msra.mxu0 0.0
      %4084 = vmatprep.subr.mxu0 0.0
      %4085 = vmatpush1.msra.mxu0 0.0
      %4086 = vmatprep.subr.mxu0 0.0
      %4087 = vmatpush1.msra.mxu0 0.0
      %4088 = vmatprep.subr.mxu0 0.0
      %4089 = vmatpush1.msra.mxu0 0.0
      %4090 = vmatprep.subr.mxu0 0.0
      %4091 = vmatpush1.msra.mxu0 0.0
      %4092 = vmatprep.subr.mxu0 0.0
      %4093 = vmatpush1.msra.mxu0 0.0
      %4094 = vmatprep.subr.mxu0 0.0
      %4095 = vmatpush1.msra.mxu0 0.0
      %4096 = vmatprep.subr.mxu0 0.0
      %4097 = vmatpush1.msra.mxu0 0.0
      %4098 = vmatprep.subr.mxu0 0.0
      %4099 = vmatpush1.msra.mxu0 0.0
      %4100 = vmatprep.subr.mxu0 0.0
      %4101 = vmatpush1.msra.mxu0 0.0
      %4102 = vmatprep.subr.mxu0 0.0
      %4103 = vmatpush1.msra.mxu0 0.0
      %4104 = vmatprep.subr.mxu0 0.0
      %4105 = vmatpush1.msra.mxu0 0.0
      %4106 = vmatprep.subr.mxu0 0.0
      %4107 = vmatpush1.msra.mxu0 0.0
      %4108 = vmatprep.subr.mxu0 0.0
      %4109 = vmatpush1.msra.mxu0 0.0
      %4110 = vmatprep.subr.mxu0 0.0
      %4111 = vmatpush1.msra.mxu0 0.0
      %4112 = vmatprep.subr.mxu0 0.0
      %4113 = vmatpush1.msra.mxu0 0.0
      %4114 = vmatprep.subr.mxu0 0.0
      %4115 = vmatpush1.msra.mxu0 0.0
      %4116 = vmatprep.subr.mxu0 0.0
      %4117 = vmatpush1.msra.mxu0 0.0
      %4118 = vmatprep.subr.mxu0 0.0
      %4119 = vmatpush1.msra.mxu0 0.0
      %4120 = vmatprep.subr.mxu0 0.0
      %4121 = vmatpush1.msra.mxu0 0.0
      %4122 = vmatprep.subr.mxu0 0.0
      %4123 = vmatpush1.msra.mxu0 0.0
      %4124 = vmatprep.subr.mxu0 0.0
      %4125 = vmatpush1.msra.mxu0 0.0
      %4126 = vmatprep.subr.mxu0 0.0
      %4127 = vmatpush1.msra.mxu0 0.0
      %4128 = vmatprep.subr.mxu0 0.0
      %4129 = vmatpush1.msra.mxu0 0.0
      %4130 = vmatprep.subr.mxu0 0.0
      %4131 = vmatpush1.msra.mxu0 0.0
      %4132 = vmatprep.subr.mxu0 0.0
      %4133 = vmatpush1.msra.mxu0 0.0
      %4134 = vmatprep.subr.mxu0 0.0
      %4135 = vmatpush1.msra.mxu0 0.0
      %4136 = vmatprep.subr.mxu0 0.0
      %4137 = vmatpush1.msra.mxu0 0.0
      %4138 = vmatprep.subr.mxu0 0.0
      %4139 = vmatpush1.msra.mxu0 0.0
      %4140 = vmatprep.subr.mxu0 0.0
      %4141 = vmatpush1.msra.mxu0 0.0
      %4142 = vmatprep.subr.mxu0 0.0
      %4143 = vmatpush1.msra.mxu0 0.0
      %4144 = vmatprep.mubr.f32.mxu0 0.0
      %4145 = vmatmul.mubr.f32.gmra.mrb[0].mxu0 %v4078
      %v4146 = vpop.f32.mrb[0].mxu0
      %v4147 = vadd.f32 0.0, %v4146
      %v4148 = vpop.f32.mrb[0].mxu0
      %v4149 = vadd.f32 0.0, %v4148
      %4150 = vdwg.mxu0
      %v4151 = vadd.f32 %v4074, %v4147
      %v4152 = vadd.f32 %v4075, %v4149
      %4153 = vrot.lane.b32.xlu0 %v3079, 16
      %v4154 = vpop.permute.xlu0 %4153
      %v4155 = vsel %vm837, %v4154, 0
      %4157 = vmatprep.subr.mxu0 %v3036
      %4158 = vmatpush1.msra.mxu0 %v3035
      %4159 = vmatprep.subr.mxu0 0.0
      %4160 = vmatpush1.msra.mxu0 0.0
      %4161 = vmatprep.subr.mxu0 0.0
      %4162 = vmatpush1.msra.mxu0 0.0
      %4163 = vmatprep.subr.mxu0 0.0
      %4164 = vmatpush1.msra.mxu0 0.0
      %4165 = vmatprep.subr.mxu0 0.0
      %4166 = vmatpush1.msra.mxu0 0.0
      %4167 = vmatprep.subr.mxu0 0.0
      %4168 = vmatpush1.msra.mxu0 0.0
      %4169 = vmatprep.subr.mxu0 0.0
      %4170 = vmatpush1.msra.mxu0 0.0
      %4171 = vmatprep.subr.mxu0 0.0
      %4172 = vmatpush1.msra.mxu0 0.0
      %4173 = vmatprep.subr.mxu0 0.0
      %4174 = vmatpush1.msra.mxu0 0.0
      %4175 = vmatprep.subr.mxu0 0.0
      %4176 = vmatpush1.msra.mxu0 0.0
      %4177 = vmatprep.subr.mxu0 0.0
      %4178 = vmatpush1.msra.mxu0 0.0
      %4179 = vmatprep.subr.mxu0 0.0
      %4180 = vmatpush1.msra.mxu0 0.0
      %4181 = vmatprep.subr.mxu0 0.0
      %4182 = vmatpush1.msra.mxu0 0.0
      %4183 = vmatprep.subr.mxu0 0.0
      %4184 = vmatpush1.msra.mxu0 0.0
      %4185 = vmatprep.subr.mxu0 0.0
      %4186 = vmatpush1.msra.mxu0 0.0
      %4187 = vmatprep.subr.mxu0 0.0
      %4188 = vmatpush1.msra.mxu0 0.0
      %4189 = vmatprep.subr.mxu0 0.0
      %4190 = vmatpush1.msra.mxu0 0.0
      %4191 = vmatprep.subr.mxu0 0.0
      %4192 = vmatpush1.msra.mxu0 0.0
      %4193 = vmatprep.subr.mxu0 0.0
      %4194 = vmatpush1.msra.mxu0 0.0
      %4195 = vmatprep.subr.mxu0 0.0
      %4196 = vmatpush1.msra.mxu0 0.0
      %4197 = vmatprep.subr.mxu0 0.0
      %4198 = vmatpush1.msra.mxu0 0.0
      %4199 = vmatprep.subr.mxu0 0.0
      %4200 = vmatpush1.msra.mxu0 0.0
      %4201 = vmatprep.subr.mxu0 0.0
      %4202 = vmatpush1.msra.mxu0 0.0
      %4203 = vmatprep.subr.mxu0 0.0
      %4204 = vmatpush1.msra.mxu0 0.0
      %4205 = vmatprep.subr.mxu0 0.0
      %4206 = vmatpush1.msra.mxu0 0.0
      %4207 = vmatprep.subr.mxu0 0.0
      %4208 = vmatpush1.msra.mxu0 0.0
      %4209 = vmatprep.subr.mxu0 0.0
      %4210 = vmatpush1.msra.mxu0 0.0
      %4211 = vmatprep.subr.mxu0 0.0
      %4212 = vmatpush1.msra.mxu0 0.0
      %4213 = vmatprep.subr.mxu0 0.0
      %4214 = vmatpush1.msra.mxu0 0.0
      %4215 = vmatprep.subr.mxu0 0.0
      %4216 = vmatpush1.msra.mxu0 0.0
      %4217 = vmatprep.subr.mxu0 0.0
      %4218 = vmatpush1.msra.mxu0 0.0
      %4219 = vmatprep.subr.mxu0 0.0
      %4220 = vmatpush1.msra.mxu0 0.0
      %4221 = vmatprep.mubr.f32.mxu0 0.0
      %4222 = vmatmul.mubr.f32.gmra.mrb[0].mxu0 %v4155
      %v4223 = vpop.f32.mrb[0].mxu0
      %v4224 = vadd.f32 0.0, %v4223
      %v4225 = vpop.f32.mrb[0].mxu0
      %v4226 = vadd.f32 0.0, %v4225
      %4227 = vdwg.mxu0
      %v4228 = vadd.f32 %v4151, %v4224
      %v4229 = vadd.f32 %v4152, %v4226
      %4230 = vrot.lane.b32.xlu0 %v3079, 8
      %v4231 = vpop.permute.xlu0 %4230
      %v4232 = vsel %vm837, %v4231, 0
      %4234 = vmatprep.subr.mxu0 %v3044
      %4235 = vmatpush1.msra.mxu0 %v3043
      %4236 = vmatprep.subr.mxu0 0.0
      %4237 = vmatpush1.msra.mxu0 0.0
      %4238 = vmatprep.subr.mxu0 0.0
      %4239 = vmatpush1.msra.mxu0 0.0
      %4240 = vmatprep.subr.mxu0 0.0
      %4241 = vmatpush1.msra.mxu0 0.0
      %4242 = vmatprep.subr.mxu0 0.0
      %4243 = vmatpush1.msra.mxu0 0.0
      %4244 = vmatprep.subr.mxu0 0.0
      %4245 = vmatpush1.msra.mxu0 0.0
      %4246 = vmatprep.subr.mxu0 0.0
      %4247 = vmatpush1.msra.mxu0 0.0
      %4248 = vmatprep.subr.mxu0 0.0
      %4249 = vmatpush1.msra.mxu0 0.0
      %4250 = vmatprep.subr.mxu0 0.0
      %4251 = vmatpush1.msra.mxu0 0.0
      %4252 = vmatprep.subr.mxu0 0.0
      %4253 = vmatpush1.msra.mxu0 0.0
      %4254 = vmatprep.subr.mxu0 0.0
      %4255 = vmatpush1.msra.mxu0 0.0
      %4256 = vmatprep.subr.mxu0 0.0
      %4257 = vmatpush1.msra.mxu0 0.0
      %4258 = vmatprep.subr.mxu0 0.0
      %4259 = vmatpush1.msra.mxu0 0.0
      %4260 = vmatprep.subr.mxu0 0.0
      %4261 = vmatpush1.msra.mxu0 0.0
      %4262 = vmatprep.subr.mxu0 0.0
      %4263 = vmatpush1.msra.mxu0 0.0
      %4264 = vmatprep.subr.mxu0 0.0
      %4265 = vmatpush1.msra.mxu0 0.0
      %4266 = vmatprep.subr.mxu0 0.0
      %4267 = vmatpush1.msra.mxu0 0.0
      %4268 = vmatprep.subr.mxu0 0.0
      %4269 = vmatpush1.msra.mxu0 0.0
      %4270 = vmatprep.subr.mxu0 0.0
      %4271 = vmatpush1.msra.mxu0 0.0
      %4272 = vmatprep.subr.mxu0 0.0
      %4273 = vmatpush1.msra.mxu0 0.0
      %4274 = vmatprep.subr.mxu0 0.0
      %4275 = vmatpush1.msra.mxu0 0.0
      %4276 = vmatprep.subr.mxu0 0.0
      %4277 = vmatpush1.msra.mxu0 0.0
      %4278 = vmatprep.subr.mxu0 0.0
      %4279 = vmatpush1.msra.mxu0 0.0
      %4280 = vmatprep.subr.mxu0 0.0
      %4281 = vmatpush1.msra.mxu0 0.0
      %4282 = vmatprep.subr.mxu0 0.0
      %4283 = vmatpush1.msra.mxu0 0.0
      %4284 = vmatprep.subr.mxu0 0.0
      %4285 = vmatpush1.msra.mxu0 0.0
      %4286 = vmatprep.subr.mxu0 0.0
      %4287 = vmatpush1.msra.mxu0 0.0
      %4288 = vmatprep.subr.mxu0 0.0
      %4289 = vmatpush1.msra.mxu0 0.0
      %4290 = vmatprep.subr.mxu0 0.0
      %4291 = vmatpush1.msra.mxu0 0.0
      %4292 = vmatprep.subr.mxu0 0.0
      %4293 = vmatpush1.msra.mxu0 0.0
      %4294 = vmatprep.subr.mxu0 0.0
      %4295 = vmatpush1.msra.mxu0 0.0
      %4296 = vmatprep.subr.mxu0 0.0
      %4297 = vmatpush1.msra.mxu0 0.0
      %4298 = vmatprep.mubr.f32.mxu0 0.0
      %4299 = vmatmul.mubr.f32.gmra.mrb[0].mxu0 %v4232
      %v4300 = vpop.f32.mrb[0].mxu0
      %v4301 = vadd.f32 0.0, %v4300
      %v4302 = vpop.f32.mrb[0].mxu0
      %v4303 = vadd.f32 0.0, %v4302
      %4304 = vdwg.mxu0
      %v4305 = vadd.f32 %v4228, %v4301
      %v4306 = vadd.f32 %v4229, %v4303
      %v4307 = vld [vmem:[%s4 + $0x8] sm:$0xff]
      %v4309 = vsel %vm837, %v4307, 0
      %4311 = vmatprep.subr.mxu0 %v3052
      %4312 = vmatpush1.msra.mxu0 %v3051
      %4313 = vmatprep.subr.mxu0 0.0
      %4314 = vmatpush1.msra.mxu0 0.0
      %4315 = vmatprep.subr.mxu0 0.0
      %4316 = vmatpush1.msra.mxu0 0.0
      %4317 = vmatprep.subr.mxu0 0.0
      %4318 = vmatpush1.msra.mxu0 0.0
      %4319 = vmatprep.subr.mxu0 0.0
      %4320 = vmatpush1.msra.mxu0 0.0
      %4321 = vmatprep.subr.mxu0 0.0
      %4322 = vmatpush1.msra.mxu0 0.0
      %4323 = vmatprep.subr.mxu0 0.0
      %4324 = vmatpush1.msra.mxu0 0.0
      %4325 = vmatprep.subr.mxu0 0.0
      %4326 = vmatpush1.msra.mxu0 0.0
      %4327 = vmatprep.subr.mxu0 0.0
      %4328 = vmatpush1.msra.mxu0 0.0
      %4329 = vmatprep.subr.mxu0 0.0
      %4330 = vmatpush1.msra.mxu0 0.0
      %4331 = vmatprep.subr.mxu0 0.0
      %4332 = vmatpush1.msra.mxu0 0.0
      %4333 = vmatprep.subr.mxu0 0.0
      %4334 = vmatpush1.msra.mxu0 0.0
      %4335 = vmatprep.subr.mxu0 0.0
      %4336 = vmatpush1.msra.mxu0 0.0
      %4337 = vmatprep.subr.mxu0 0.0
      %4338 = vmatpush1.msra.mxu0 0.0
      %4339 = vmatprep.subr.mxu0 0.0
      %4340 = vmatpush1.msra.mxu0 0.0
      %4341 = vmatprep.subr.mxu0 0.0
      %4342 = vmatpush1.msra.mxu0 0.0
      %4343 = vmatprep.subr.mxu0 0.0
      %4344 = vmatpush1.msra.mxu0 0.0
      %4345 = vmatprep.subr.mxu0 0.0
      %4346 = vmatpush1.msra.mxu0 0.0
      %4347 = vmatprep.subr.mxu0 0.0
      %4348 = vmatpush1.msra.mxu0 0.0
      %4349 = vmatprep.subr.mxu0 0.0
      %4350 = vmatpush1.msra.mxu0 0.0
      %4351 = vmatprep.subr.mxu0 0.0
      %4352 = vmatpush1.msra.mxu0 0.0
      %4353 = vmatprep.subr.mxu0 0.0
      %4354 = vmatpush1.msra.mxu0 0.0
      %4355 = vmatprep.subr.mxu0 0.0
      %4356 = vmatpush1.msra.mxu0 0.0
      %4357 = vmatprep.subr.mxu0 0.0
      %4358 = vmatpush1.msra.mxu0 0.0
      %4359 = vmatprep.subr.mxu0 0.0
      %4360 = vmatpush1.msra.mxu0 0.0
      %4361 = vmatprep.subr.mxu0 0.0
      %4362 = vmatpush1.msra.mxu0 0.0
      %4363 = vmatprep.subr.mxu0 0.0
      %4364 = vmatpush1.msra.mxu0 0.0
      %4365 = vmatprep.subr.mxu0 0.0
      %4366 = vmatpush1.msra.mxu0 0.0
      %4367 = vmatprep.subr.mxu0 0.0
      %4368 = vmatpush1.msra.mxu0 0.0
      %4369 = vmatprep.subr.mxu0 0.0
      %4370 = vmatpush1.msra.mxu0 0.0
      %4371 = vmatprep.subr.mxu0 0.0
      %4372 = vmatpush1.msra.mxu0 0.0
      %4373 = vmatprep.subr.mxu0 0.0
      %4374 = vmatpush1.msra.mxu0 0.0
      %4375 = vmatprep.mubr.f32.mxu0 0.0
      %4376 = vmatmul.mubr.f32.gmra.mrb[0].mxu0 %v4309
      %v4377 = vpop.f32.mrb[0].mxu0
      %v4378 = vadd.f32 0.0, %v4377
      %v4379 = vpop.f32.mrb[0].mxu0
      %v4380 = vadd.f32 0.0, %v4379
      %4381 = vdwg.mxu0
      %v4382 = vadd.f32 %v4305, %v4378
      %v4383 = vadd.f32 %v4306, %v4380
      %4384 = vrot.lane.b32.xlu0 %v4307, 120
      %v4385 = vpop.permute.xlu0 %4384
      %v4386 = vsel %vm837, %v4385, 0
      %4388 = vmatprep.subr.mxu0 %v3060
      %4389 = vmatpush1.msra.mxu0 %v3059
      %4390 = vmatprep.subr.mxu0 0.0
      %4391 = vmatpush1.msra.mxu0 0.0
      %4392 = vmatprep.subr.mxu0 0.0
      %4393 = vmatpush1.msra.mxu0 0.0
      %4394 = vmatprep.subr.mxu0 0.0
      %4395 = vmatpush1.msra.mxu0 0.0
      %4396 = vmatprep.subr.mxu0 0.0
      %4397 = vmatpush1.msra.mxu0 0.0
      %4398 = vmatprep.subr.mxu0 0.0
      %4399 = vmatpush1.msra.mxu0 0.0
      %4400 = vmatprep.subr.mxu0 0.0
      %4401 = vmatpush1.msra.mxu0 0.0
      %4402 = vmatprep.subr.mxu0 0.0
      %4403 = vmatpush1.msra.mxu0 0.0
      %4404 = vmatprep.subr.mxu0 0.0
      %4405 = vmatpush1.msra.mxu0 0.0
      %4406 = vmatprep.subr.mxu0 0.0
      %4407 = vmatpush1.msra.mxu0 0.0
      %4408 = vmatprep.subr.mxu0 0.0
      %4409 = vmatpush1.msra.mxu0 0.0
      %4410 = vmatprep.subr.mxu0 0.0
      %4411 = vmatpush1.msra.mxu0 0.0
      %4412 = vmatprep.subr.mxu0 0.0
      %4413 = vmatpush1.msra.mxu0 0.0
      %4414 = vmatprep.subr.mxu0 0.0
      %4415 = vmatpush1.msra.mxu0 0.0
      %4416 = vmatprep.subr.mxu0 0.0
      %4417 = vmatpush1.msra.mxu0 0.0
      %4418 = vmatprep.subr.mxu0 0.0
      %4419 = vmatpush1.msra.mxu0 0.0
      %4420 = vmatprep.subr.mxu0 0.0
      %4421 = vmatpush1.msra.mxu0 0.0
      %4422 = vmatprep.subr.mxu0 0.0
      %4423 = vmatpush1.msra.mxu0 0.0
      %4424 = vmatprep.subr.mxu0 0.0
      %4425 = vmatpush1.msra.mxu0 0.0
      %4426 = vmatprep.subr.mxu0 0.0
      %4427 = vmatpush1.msra.mxu0 0.0
      %4428 = vmatprep.subr.mxu0 0.0
      %4429 = vmatpush1.msra.mxu0 0.0
      %4430 = vmatprep.subr.mxu0 0.0
      %4431 = vmatpush1.msra.mxu0 0.0
      %4432 = vmatprep.subr.mxu0 0.0
      %4433 = vmatpush1.msra.mxu0 0.0
      %4434 = vmatprep.subr.mxu0 0.0
      %4435 = vmatpush1.msra.mxu0 0.0
      %4436 = vmatprep.subr.mxu0 0.0
      %4437 = vmatpush1.msra.mxu0 0.0
      %4438 = vmatprep.subr.mxu0 0.0
      %4439 = vmatpush1.msra.mxu0 0.0
      %4440 = vmatprep.subr.mxu0 0.0
      %4441 = vmatpush1.msra.mxu0 0.0
      %4442 = vmatprep.subr.mxu0 0.0
      %4443 = vmatpush1.msra.mxu0 0.0
      %4444 = vmatprep.subr.mxu0 0.0
      %4445 = vmatpush1.msra.mxu0 0.0
      %4446 = vmatprep.subr.mxu0 0.0
      %4447 = vmatpush1.msra.mxu0 0.0
      %4448 = vmatprep.subr.mxu0 0.0
      %4449 = vmatpush1.msra.mxu0 0.0
      %4450 = vmatprep.subr.mxu0 0.0
      %4451 = vmatpush1.msra.mxu0 0.0
      %4452 = vmatprep.mubr.f32.mxu0 0.0
      %4453 = vmatmul.mubr.f32.gmra.mrb[0].mxu0 %v4386
      %v4454 = vpop.f32.mrb[0].mxu0
      %v4455 = vadd.f32 0.0, %v4454
      %v4456 = vpop.f32.mrb[0].mxu0
      %v4457 = vadd.f32 0.0, %v4456
      %4458 = vdwg.mxu0
      %v4459 = vadd.f32 %v4382, %v4455
      %v4460 = vadd.f32 %v4383, %v4457
      %4461 = vrot.lane.b32.xlu0 %v4307, 112
      %v4462 = vpop.permute.xlu0 %4461
      %v4463 = vsel %vm837, %v4462, 0
      %4465 = vmatprep.subr.mxu0 %v3062
      %4466 = vmatpush1.msra.mxu0 %v3061
      %4467 = vmatprep.subr.mxu0 0.0
      %4468 = vmatpush1.msra.mxu0 0.0
      %4469 = vmatprep.subr.mxu0 0.0
      %4470 = vmatpush1.msra.mxu0 0.0
      %4471 = vmatprep.subr.mxu0 0.0
      %4472 = vmatpush1.msra.mxu0 0.0
      %4473 = vmatprep.subr.mxu0 0.0
      %4474 = vmatpush1.msra.mxu0 0.0
      %4475 = vmatprep.subr.mxu0 0.0
      %4476 = vmatpush1.msra.mxu0 0.0
      %4477 = vmatprep.subr.mxu0 0.0
      %4478 = vmatpush1.msra.mxu0 0.0
      %4479 = vmatprep.subr.mxu0 0.0
      %4480 = vmatpush1.msra.mxu0 0.0
      %4481 = vmatprep.subr.mxu0 0.0
      %4482 = vmatpush1.msra.mxu0 0.0
      %4483 = vmatprep.subr.mxu0 0.0
      %4484 = vmatpush1.msra.mxu0 0.0
      %4485 = vmatprep.subr.mxu0 0.0
      %4486 = vmatpush1.msra.mxu0 0.0
      %4487 = vmatprep.subr.mxu0 0.0
      %4488 = vmatpush1.msra.mxu0 0.0
      %4489 = vmatprep.subr.mxu0 0.0
      %4490 = vmatpush1.msra.mxu0 0.0
      %4491 = vmatprep.subr.mxu0 0.0
      %4492 = vmatpush1.msra.mxu0 0.0
      %4493 = vmatprep.subr.mxu0 0.0
      %4494 = vmatpush1.msra.mxu0 0.0
      %4495 = vmatprep.subr.mxu0 0.0
      %4496 = vmatpush1.msra.mxu0 0.0
      %4497 = vmatprep.subr.mxu0 0.0
      %4498 = vmatpush1.msra.mxu0 0.0
      %4499 = vmatprep.subr.mxu0 0.0
      %4500 = vmatpush1.msra.mxu0 0.0
      %4501 = vmatprep.subr.mxu0 0.0
      %4502 = vmatpush1.msra.mxu0 0.0
      %4503 = vmatprep.subr.mxu0 0.0
      %4504 = vmatpush1.msra.mxu0 0.0
      %4505 = vmatprep.subr.mxu0 0.0
      %4506 = vmatpush1.msra.mxu0 0.0
      %4507 = vmatprep.subr.mxu0 0.0
      %4508 = vmatpush1.msra.mxu0 0.0
      %4509 = vmatprep.subr.mxu0 0.0
      %4510 = vmatpush1.msra.mxu0 0.0
      %4511 = vmatprep.subr.mxu0 0.0
      %4512 = vmatpush1.msra.mxu0 0.0
      %4513 = vmatprep.subr.mxu0 0.0
      %4514 = vmatpush1.msra.mxu0 0.0
      %4515 = vmatprep.subr.mxu0 0.0
      %4516 = vmatpush1.msra.mxu0 0.0
      %4517 = vmatprep.subr.mxu0 0.0
      %4518 = vmatpush1.msra.mxu0 0.0
      %4519 = vmatprep.subr.mxu0 0.0
      %4520 = vmatpush1.msra.mxu0 0.0
      %4521 = vmatprep.subr.mxu0 0.0
      %4522 = vmatpush1.msra.mxu0 0.0
      %4523 = vmatprep.subr.mxu0 0.0
      %4524 = vmatpush1.msra.mxu0 0.0
      %4525 = vmatprep.subr.mxu0 0.0
      %4526 = vmatpush1.msra.mxu0 0.0
      %4527 = vmatprep.subr.mxu0 0.0
      %4528 = vmatpush1.msra.mxu0 0.0
      %4529 = vmatprep.mubr.f32.mxu0 0.0
      %4530 = vmatmul.mubr.f32.gmra.mrb[0].mxu0 %v4463
      %v4531 = vpop.f32.mrb[0].mxu0
      %v4532 = vadd.f32 0.0, %v4531
      %v4533 = vpop.f32.mrb[0].mxu0
      %v4534 = vadd.f32 0.0, %v4533
      %4535 = vdwg.mxu0
      %v4536 = vadd.f32 %v4459, %v4532
      %v4537 = vadd.f32 %v4460, %v4534
      %4538 = vrot.lane.b32.xlu0 %v4307, 104
      %v4539 = vpop.permute.xlu0 %4538
      %v4540 = vsel %vm837, %v4539, 0
      %4542 = vmatprep.subr.mxu0 %v3064
      %4543 = vmatpush1.msra.mxu0 %v3063
      %4544 = vmatprep.subr.mxu0 0.0
      %4545 = vmatpush1.msra.mxu0 0.0
      %4546 = vmatprep.subr.mxu0 0.0
      %4547 = vmatpush1.msra.mxu0 0.0
      %4548 = vmatprep.subr.mxu0 0.0
      %4549 = vmatpush1.msra.mxu0 0.0
      %4550 = vmatprep.subr.mxu0 0.0
      %4551 = vmatpush1.msra.mxu0 0.0
      %4552 = vmatprep.subr.mxu0 0.0
      %4553 = vmatpush1.msra.mxu0 0.0
      %4554 = vmatprep.subr.mxu0 0.0
      %4555 = vmatpush1.msra.mxu0 0.0
      %4556 = vmatprep.subr.mxu0 0.0
      %4557 = vmatpush1.msra.mxu0 0.0
      %4558 = vmatprep.subr.mxu0 0.0
      %4559 = vmatpush1.msra.mxu0 0.0
      %4560 = vmatprep.subr.mxu0 0.0
      %4561 = vmatpush1.msra.mxu0 0.0
      %4562 = vmatprep.subr.mxu0 0.0
      %4563 = vmatpush1.msra.mxu0 0.0
      %4564 = vmatprep.subr.mxu0 0.0
      %4565 = vmatpush1.msra.mxu0 0.0
      %4566 = vmatprep.subr.mxu0 0.0
      %4567 = vmatpush1.msra.mxu0 0.0
      %4568 = vmatprep.subr.mxu0 0.0
      %4569 = vmatpush1.msra.mxu0 0.0
      %4570 = vmatprep.subr.mxu0 0.0
      %4571 = vmatpush1.msra.mxu0 0.0
      %4572 = vmatprep.subr.mxu0 0.0
      %4573 = vmatpush1.msra.mxu0 0.0
      %4574 = vmatprep.subr.mxu0 0.0
      %4575 = vmatpush1.msra.mxu0 0.0
      %4576 = vmatprep.subr.mxu0 0.0
      %4577 = vmatpush1.msra.mxu0 0.0
      %4578 = vmatprep.subr.mxu0 0.0
      %4579 = vmatpush1.msra.mxu0 0.0
      %4580 = vmatprep.subr.mxu0 0.0
      %4581 = vmatpush1.msra.mxu0 0.0
      %4582 = vmatprep.subr.mxu0 0.0
      %4583 = vmatpush1.msra.mxu0 0.0
      %4584 = vmatprep.subr.mxu0 0.0
      %4585 = vmatpush1.msra.mxu0 0.0
      %4586 = vmatprep.subr.mxu0 0.0
      %4587 = vmatpush1.msra.mxu0 0.0
      %4588 = vmatprep.subr.mxu0 0.0
      %4589 = vmatpush1.msra.mxu0 0.0
      %4590 = vmatprep.subr.mxu0 0.0
      %4591 = vmatpush1.msra.mxu0 0.0
      %4592 = vmatprep.subr.mxu0 0.0
      %4593 = vmatpush1.msra.mxu0 0.0
      %4594 = vmatprep.subr.mxu0 0.0
      %4595 = vmatpush1.msra.mxu0 0.0
      %4596 = vmatprep.subr.mxu0 0.0
      %4597 = vmatpush1.msra.mxu0 0.0
      %4598 = vmatprep.subr.mxu0 0.0
      %4599 = vmatpush1.msra.mxu0 0.0
      %4600 = vmatprep.subr.mxu0 0.0
      %4601 = vmatpush1.msra.mxu0 0.0
      %4602 = vmatprep.subr.mxu0 0.0
      %4603 = vmatpush1.msra.mxu0 0.0
      %4604 = vmatprep.subr.mxu0 0.0
      %4605 = vmatpush1.msra.mxu0 0.0
      %4606 = vmatprep.mubr.f32.mxu0 0.0
      %4607 = vmatmul.mubr.f32.gmra.mrb[0].mxu0 %v4540
      %v4608 = vpop.f32.mrb[0].mxu0
      %v4609 = vadd.f32 0.0, %v4608
      %v4610 = vpop.f32.mrb[0].mxu0
      %v4611 = vadd.f32 0.0, %v4610
      %4612 = vdwg.mxu0
      %v4613 = vadd.f32 %v4536, %v4609
      %v4614 = vadd.f32 %v4537, %v4611
      %4615 = vrot.lane.b32.xlu0 %v4307, 96
      %v4616 = vpop.permute.xlu0 %4615
      %v4617 = vsel %vm837, %v4616, 0
      %4619 = vmatprep.subr.mxu0 %v3066
      %4620 = vmatpush1.msra.mxu0 %v3065
      %4621 = vmatprep.subr.mxu0 0.0
      %4622 = vmatpush1.msra.mxu0 0.0
      %4623 = vmatprep.subr.mxu0 0.0
      %4624 = vmatpush1.msra.mxu0 0.0
      %4625 = vmatprep.subr.mxu0 0.0
      %4626 = vmatpush1.msra.mxu0 0.0
      %4627 = vmatprep.subr.mxu0 0.0
      %4628 = vmatpush1.msra.mxu0 0.0
      %4629 = vmatprep.subr.mxu0 0.0
      %4630 = vmatpush1.msra.mxu0 0.0
      %4631 = vmatprep.subr.mxu0 0.0
      %4632 = vmatpush1.msra.mxu0 0.0
      %4633 = vmatprep.subr.mxu0 0.0
      %4634 = vmatpush1.msra.mxu0 0.0
      %4635 = vmatprep.subr.mxu0 0.0
      %4636 = vmatpush1.msra.mxu0 0.0
      %4637 = vmatprep.subr.mxu0 0.0
      %4638 = vmatpush1.msra.mxu0 0.0
      %4639 = vmatprep.subr.mxu0 0.0
      %4640 = vmatpush1.msra.mxu0 0.0
      %4641 = vmatprep.subr.mxu0 0.0
      %4642 = vmatpush1.msra.mxu0 0.0
      %4643 = vmatprep.subr.mxu0 0.0
      %4644 = vmatpush1.msra.mxu0 0.0
      %4645 = vmatprep.subr.mxu0 0.0
      %4646 = vmatpush1.msra.mxu0 0.0
      %4647 = vmatprep.subr.mxu0 0.0
      %4648 = vmatpush1.msra.mxu0 0.0
      %4649 = vmatprep.subr.mxu0 0.0
      %4650 = vmatpush1.msra.mxu0 0.0
      %4651 = vmatprep.subr.mxu0 0.0
      %4652 = vmatpush1.msra.mxu0 0.0
      %4653 = vmatprep.subr.mxu0 0.0
      %4654 = vmatpush1.msra.mxu0 0.0
      %4655 = vmatprep.subr.mxu0 0.0
      %4656 = vmatpush1.msra.mxu0 0.0
      %4657 = vmatprep.subr.mxu0 0.0
      %4658 = vmatpush1.msra.mxu0 0.0
      %4659 = vmatprep.subr.mxu0 0.0
      %4660 = vmatpush1.msra.mxu0 0.0
      %4661 = vmatprep.subr.mxu0 0.0
      %4662 = vmatpush1.msra.mxu0 0.0
      %4663 = vmatprep.subr.mxu0 0.0
      %4664 = vmatpush1.msra.mxu0 0.0
      %4665 = vmatprep.subr.mxu0 0.0
      %4666 = vmatpush1.msra.mxu0 0.0
      %4667 = vmatprep.subr.mxu0 0.0
      %4668 = vmatpush1.msra.mxu0 0.0
      %4669 = vmatprep.subr.mxu0 0.0
      %4670 = vmatpush1.msra.mxu0 0.0
      %4671 = vmatprep.subr.mxu0 0.0
      %4672 = vmatpush1.msra.mxu0 0.0
      %4673 = vmatprep.subr.mxu0 0.0
      %4674 = vmatpush1.msra.mxu0 0.0
      %4675 = vmatprep.subr.mxu0 0.0
      %4676 = vmatpush1.msra.mxu0 0.0
      %4677 = vmatprep.subr.mxu0 0.0
      %4678 = vmatpush1.msra.mxu0 0.0
      %4679 = vmatprep.subr.mxu0 0.0
      %4680 = vmatpush1.msra.mxu0 0.0
      %4681 = vmatprep.subr.mxu0 0.0
      %4682 = vmatpush1.msra.mxu0 0.0
      %4683 = vmatprep.mubr.f32.mxu0 0.0
      %4684 = vmatmul.mubr.f32.gmra.mrb[0].mxu0 %v4617
      %v4685 = vpop.f32.mrb[0].mxu0
      %v4686 = vadd.f32 0.0, %v4685
      %v4687 = vpop.f32.mrb[0].mxu0
      %v4688 = vadd.f32 0.0, %v4687
      %4689 = vdwg.mxu0
      %v4690 = vadd.f32 %v4613, %v4686
      %v4691 = vadd.f32 %v4614, %v4688
      %4692 = vrot.lane.b32.xlu0 %v4307, 88
      %v4693 = vpop.permute.xlu0 %4692
      %v4694 = vsel %vm837, %v4693, 0
      %4696 = vmatprep.subr.mxu0 %v3068
      %4697 = vmatpush1.msra.mxu0 %v3067
      %4698 = vmatprep.subr.mxu0 0.0
      %4699 = vmatpush1.msra.mxu0 0.0
      %4700 = vmatprep.subr.mxu0 0.0
      %4701 = vmatpush1.msra.mxu0 0.0
      %4702 = vmatprep.subr.mxu0 0.0
      %4703 = vmatpush1.msra.mxu0 0.0
      %4704 = vmatprep.subr.mxu0 0.0
      %4705 = vmatpush1.msra.mxu0 0.0
      %4706 = vmatprep.subr.mxu0 0.0
      %4707 = vmatpush1.msra.mxu0 0.0
      %4708 = vmatprep.subr.mxu0 0.0
      %4709 = vmatpush1.msra.mxu0 0.0
      %4710 = vmatprep.subr.mxu0 0.0
      %4711 = vmatpush1.msra.mxu0 0.0
      %4712 = vmatprep.subr.mxu0 0.0
      %4713 = vmatpush1.msra.mxu0 0.0
      %4714 = vmatprep.subr.mxu0 0.0
      %4715 = vmatpush1.msra.mxu0 0.0
      %4716 = vmatprep.subr.mxu0 0.0
      %4717 = vmatpush1.msra.mxu0 0.0
      %4718 = vmatprep.subr.mxu0 0.0
      %4719 = vmatpush1.msra.mxu0 0.0
      %4720 = vmatprep.subr.mxu0 0.0
      %4721 = vmatpush1.msra.mxu0 0.0
      %4722 = vmatprep.subr.mxu0 0.0
      %4723 = vmatpush1.msra.mxu0 0.0
      %4724 = vmatprep.subr.mxu0 0.0
      %4725 = vmatpush1.msra.mxu0 0.0
      %4726 = vmatprep.subr.mxu0 0.0
      %4727 = vmatpush1.msra.mxu0 0.0
      %4728 = vmatprep.subr.mxu0 0.0
      %4729 = vmatpush1.msra.mxu0 0.0
      %4730 = vmatprep.subr.mxu0 0.0
      %4731 = vmatpush1.msra.mxu0 0.0
      %4732 = vmatprep.subr.mxu0 0.0
      %4733 = vmatpush1.msra.mxu0 0.0
      %4734 = vmatprep.subr.mxu0 0.0
      %4735 = vmatpush1.msra.mxu0 0.0
      %4736 = vmatprep.subr.mxu0 0.0
      %4737 = vmatpush1.msra.mxu0 0.0
      %4738 = vmatprep.subr.mxu0 0.0
      %4739 = vmatpush1.msra.mxu0 0.0
      %4740 = vmatprep.subr.mxu0 0.0
      %4741 = vmatpush1.msra.mxu0 0.0
      %4742 = vmatprep.subr.mxu0 0.0
      %4743 = vmatpush1.msra.mxu0 0.0
      %4744 = vmatprep.subr.mxu0 0.0
      %4745 = vmatpush1.msra.mxu0 0.0
      %4746 = vmatprep.subr.mxu0 0.0
      %4747 = vmatpush1.msra.mxu0 0.0
      %4748 = vmatprep.subr.mxu0 0.0
      %4749 = vmatpush1.msra.mxu0 0.0
      %4750 = vmatprep.subr.mxu0 0.0
      %4751 = vmatpush1.msra.mxu0 0.0
      %4752 = vmatprep.subr.mxu0 0.0
      %4753 = vmatpush1.msra.mxu0 0.0
      %4754 = vmatprep.subr.mxu0 0.0
      %4755 = vmatpush1.msra.mxu0 0.0
      %4756 = vmatprep.subr.mxu0 0.0
      %4757 = vmatpush1.msra.mxu0 0.0
      %4758 = vmatprep.subr.mxu0 0.0
      %4759 = vmatpush1.msra.mxu0 0.0
      %4760 = vmatprep.mubr.f32.mxu0 0.0
      %4761 = vmatmul.mubr.f32.gmra.mrb[0].mxu0 %v4694
      %v4762 = vpop.f32.mrb[0].mxu0
      %v4763 = vadd.f32 0.0, %v4762
      %v4764 = vpop.f32.mrb[0].mxu0
      %v4765 = vadd.f32 0.0, %v4764
      %4766 = vdwg.mxu0
      %v4767 = vadd.f32 %v4690, %v4763
      %v4768 = vadd.f32 %v4691, %v4765
      %4769 = vrot.lane.b32.xlu0 %v4307, 80
      %v4770 = vpop.permute.xlu0 %4769
      %v4771 = vsel %vm837, %v4770, 0
      %4773 = vmatprep.subr.mxu0 %v3070
      %4774 = vmatpush1.msra.mxu0 %v3069
      %4775 = vmatprep.subr.mxu0 0.0
      %4776 = vmatpush1.msra.mxu0 0.0
      %4777 = vmatprep.subr.mxu0 0.0
      %4778 = vmatpush1.msra.mxu0 0.0
      %4779 = vmatprep.subr.mxu0 0.0
      %4780 = vmatpush1.msra.mxu0 0.0
      %4781 = vmatprep.subr.mxu0 0.0
      %4782 = vmatpush1.msra.mxu0 0.0
      %4783 = vmatprep.subr.mxu0 0.0
      %4784 = vmatpush1.msra.mxu0 0.0
      %4785 = vmatprep.subr.mxu0 0.0
      %4786 = vmatpush1.msra.mxu0 0.0
      %4787 = vmatprep.subr.mxu0 0.0
      %4788 = vmatpush1.msra.mxu0 0.0
      %4789 = vmatprep.subr.mxu0 0.0
      %4790 = vmatpush1.msra.mxu0 0.0
      %4791 = vmatprep.subr.mxu0 0.0
      %4792 = vmatpush1.msra.mxu0 0.0
      %4793 = vmatprep.subr.mxu0 0.0
      %4794 = vmatpush1.msra.mxu0 0.0
      %4795 = vmatprep.subr.mxu0 0.0
      %4796 = vmatpush1.msra.mxu0 0.0
      %4797 = vmatprep.subr.mxu0 0.0
      %4798 = vmatpush1.msra.mxu0 0.0
      %4799 = vmatprep.subr.mxu0 0.0
      %4800 = vmatpush1.msra.mxu0 0.0
      %4801 = vmatprep.subr.mxu0 0.0
      %4802 = vmatpush1.msra.mxu0 0.0
      %4803 = vmatprep.subr.mxu0 0.0
      %4804 = vmatpush1.msra.mxu0 0.0
      %4805 = vmatprep.subr.mxu0 0.0
      %4806 = vmatpush1.msra.mxu0 0.0
      %4807 = vmatprep.subr.mxu0 0.0
      %4808 = vmatpush1.msra.mxu0 0.0
      %4809 = vmatprep.subr.mxu0 0.0
      %4810 = vmatpush1.msra.mxu0 0.0
      %4811 = vmatprep.subr.mxu0 0.0
      %4812 = vmatpush1.msra.mxu0 0.0
      %4813 = vmatprep.subr.mxu0 0.0
      %4814 = vmatpush1.msra.mxu0 0.0
      %4815 = vmatprep.subr.mxu0 0.0
      %4816 = vmatpush1.msra.mxu0 0.0
      %4817 = vmatprep.subr.mxu0 0.0
      %4818 = vmatpush1.msra.mxu0 0.0
      %4819 = vmatprep.subr.mxu0 0.0
      %4820 = vmatpush1.msra.mxu0 0.0
      %4821 = vmatprep.subr.mxu0 0.0
      %4822 = vmatpush1.msra.mxu0 0.0
      %4823 = vmatprep.subr.mxu0 0.0
      %4824 = vmatpush1.msra.mxu0 0.0
      %4825 = vmatprep.subr.mxu0 0.0
      %4826 = vmatpush1.msra.mxu0 0.0
      %4827 = vmatprep.subr.mxu0 0.0
      %4828 = vmatpush1.msra.mxu0 0.0
      %4829 = vmatprep.subr.mxu0 0.0
      %4830 = vmatpush1.msra.mxu0 0.0
      %4831 = vmatprep.subr.mxu0 0.0
      %4832 = vmatpush1.msra.mxu0 0.0
      %4833 = vmatprep.subr.mxu0 0.0
      %4834 = vmatpush1.msra.mxu0 0.0
      %4835 = vmatprep.subr.mxu0 0.0
      %4836 = vmatpush1.msra.mxu0 0.0
      %4837 = vmatprep.mubr.f32.mxu0 0.0
      %4838 = vmatmul.mubr.f32.gmra.mrb[0].mxu0 %v4771
      %v4839 = vpop.f32.mrb[0].mxu0
      %v4840 = vadd.f32 0.0, %v4839
      %v4841 = vpop.f32.mrb[0].mxu0
      %v4842 = vadd.f32 0.0, %v4841
      %4843 = vdwg.mxu0
      %v4844 = vadd.f32 %v4767, %v4840
      %v4845 = vadd.f32 %v4768, %v4842
      %4846 = vrot.lane.b32.xlu0 %v4307, 72
      %v4847 = vpop.permute.xlu0 %4846
      %v4848 = vsel %vm837, %v4847, 0
      %4850 = vmatprep.subr.mxu0 %v3072
      %4851 = vmatpush1.msra.mxu0 %v3071
      %4852 = vmatprep.subr.mxu0 0.0
      %4853 = vmatpush1.msra.mxu0 0.0
      %4854 = vmatprep.subr.mxu0 0.0
      %4855 = vmatpush1.msra.mxu0 0.0
      %4856 = vmatprep.subr.mxu0 0.0
      %4857 = vmatpush1.msra.mxu0 0.0
      %4858 = vmatprep.subr.mxu0 0.0
      %4859 = vmatpush1.msra.mxu0 0.0
      %4860 = vmatprep.subr.mxu0 0.0
      %4861 = vmatpush1.msra.mxu0 0.0
      %4862 = vmatprep.subr.mxu0 0.0
      %4863 = vmatpush1.msra.mxu0 0.0
      %4864 = vmatprep.subr.mxu0 0.0
      %4865 = vmatpush1.msra.mxu0 0.0
      %4866 = vmatprep.subr.mxu0 0.0
      %4867 = vmatpush1.msra.mxu0 0.0
      %4868 = vmatprep.subr.mxu0 0.0
      %4869 = vmatpush1.msra.mxu0 0.0
      %4870 = vmatprep.subr.mxu0 0.0
      %4871 = vmatpush1.msra.mxu0 0.0
      %4872 = vmatprep.subr.mxu0 0.0
      %4873 = vmatpush1.msra.mxu0 0.0
      %4874 = vmatprep.subr.mxu0 0.0
      %4875 = vmatpush1.msra.mxu0 0.0
      %4876 = vmatprep.subr.mxu0 0.0
      %4877 = vmatpush1.msra.mxu0 0.0
      %4878 = vmatprep.subr.mxu0 0.0
      %4879 = vmatpush1.msra.mxu0 0.0
      %4880 = vmatprep.subr.mxu0 0.0
      %4881 = vmatpush1.msra.mxu0 0.0
      %4882 = vmatprep.subr.mxu0 0.0
      %4883 = vmatpush1.msra.mxu0 0.0
      %4884 = vmatprep.subr.mxu0 0.0
      %4885 = vmatpush1.msra.mxu0 0.0
      %4886 = vmatprep.subr.mxu0 0.0
      %4887 = vmatpush1.msra.mxu0 0.0
      %4888 = vmatprep.subr.mxu0 0.0
      %4889 = vmatpush1.msra.mxu0 0.0
      %4890 = vmatprep.subr.mxu0 0.0
      %4891 = vmatpush1.msra.mxu0 0.0
      %4892 = vmatprep.subr.mxu0 0.0
      %4893 = vmatpush1.msra.mxu0 0.0
      %4894 = vmatprep.subr.mxu0 0.0
      %4895 = vmatpush1.msra.mxu0 0.0
      %4896 = vmatprep.subr.mxu0 0.0
      %4897 = vmatpush1.msra.mxu0 0.0
      %4898 = vmatprep.subr.mxu0 0.0
      %4899 = vmatpush1.msra.mxu0 0.0
      %4900 = vmatprep.subr.mxu0 0.0
      %4901 = vmatpush1.msra.mxu0 0.0
      %4902 = vmatprep.subr.mxu0 0.0
      %4903 = vmatpush1.msra.mxu0 0.0
      %4904 = vmatprep.subr.mxu0 0.0
      %4905 = vmatpush1.msra.mxu0 0.0
      %4906 = vmatprep.subr.mxu0 0.0
      %4907 = vmatpush1.msra.mxu0 0.0
      %4908 = vmatprep.subr.mxu0 0.0
      %4909 = vmatpush1.msra.mxu0 0.0
      %4910 = vmatprep.subr.mxu0 0.0
      %4911 = vmatpush1.msra.mxu0 0.0
      %4912 = vmatprep.subr.mxu0 0.0
      %4913 = vmatpush1.msra.mxu0 0.0
      %4914 = vmatprep.mubr.f32.mxu0 0.0
      %4915 = vmatmul.mubr.f32.gmra.mrb[0].mxu0 %v4848
      %v4916 = vpop.f32.mrb[0].mxu0
      %v4917 = vadd.f32 0.0, %v4916
      %v4918 = vpop.f32.mrb[0].mxu0
      %v4919 = vadd.f32 0.0, %v4918
      %4920 = vdwg.mxu0
      %v4921 = vadd.f32 %v4844, %v4917
      %v4922 = vadd.f32 %v4845, %v4919
      %4923 = vrot.lane.b32.xlu0 %v4307, 64
      %v4924 = vpop.permute.xlu0 %4923
      %v4925 = vsel %vm837, %v4924, 0
      %4927 = vmatprep.subr.mxu0 %v3074
      %4928 = vmatpush1.msra.mxu0 %v3073
      %4929 = vmatprep.subr.mxu0 0.0
      %4930 = vmatpush1.msra.mxu0 0.0
      %4931 = vmatprep.subr.mxu0 0.0
      %4932 = vmatpush1.msra.mxu0 0.0
      %4933 = vmatprep.subr.mxu0 0.0
      %4934 = vmatpush1.msra.mxu0 0.0
      %4935 = vmatprep.subr.mxu0 0.0
      %4936 = vmatpush1.msra.mxu0 0.0
      %4937 = vmatprep.subr.mxu0 0.0
      %4938 = vmatpush1.msra.mxu0 0.0
      %4939 = vmatprep.subr.mxu0 0.0
      %4940 = vmatpush1.msra.mxu0 0.0
      %4941 = vmatprep.subr.mxu0 0.0
      %4942 = vmatpush1.msra.mxu0 0.0
      %4943 = vmatprep.subr.mxu0 0.0
      %4944 = vmatpush1.msra.mxu0 0.0
      %4945 = vmatprep.subr.mxu0 0.0
      %4946 = vmatpush1.msra.mxu0 0.0
      %4947 = vmatprep.subr.mxu0 0.0
      %4948 = vmatpush1.msra.mxu0 0.0
      %4949 = vmatprep.subr.mxu0 0.0
      %4950 = vmatpush1.msra.mxu0 0.0
      %4951 = vmatprep.subr.mxu0 0.0
      %4952 = vmatpush1.msra.mxu0 0.0
      %4953 = vmatprep.subr.mxu0 0.0
      %4954 = vmatpush1.msra.mxu0 0.0
      %4955 = vmatprep.subr.mxu0 0.0
      %4956 = vmatpush1.msra.mxu0 0.0
      %4957 = vmatprep.subr.mxu0 0.0
      %4958 = vmatpush1.msra.mxu0 0.0
      %4959 = vmatprep.subr.mxu0 0.0
      %4960 = vmatpush1.msra.mxu0 0.0
      %4961 = vmatprep.subr.mxu0 0.0
      %4962 = vmatpush1.msra.mxu0 0.0
      %4963 = vmatprep.subr.mxu0 0.0
      %4964 = vmatpush1.msra.mxu0 0.0
      %4965 = vmatprep.subr.mxu0 0.0
      %4966 = vmatpush1.msra.mxu0 0.0
      %4967 = vmatprep.subr.mxu0 0.0
      %4968 = vmatpush1.msra.mxu0 0.0
      %4969 = vmatprep.subr.mxu0 0.0
      %4970 = vmatpush1.msra.mxu0 0.0
      %4971 = vmatprep.subr.mxu0 0.0
      %4972 = vmatpush1.msra.mxu0 0.0
      %4973 = vmatprep.subr.mxu0 0.0
      %4974 = vmatpush1.msra.mxu0 0.0
      %4975 = vmatprep.subr.mxu0 0.0
      %4976 = vmatpush1.msra.mxu0 0.0
      %4977 = vmatprep.subr.mxu0 0.0
      %4978 = vmatpush1.msra.mxu0 0.0
      %4979 = vmatprep.subr.mxu0 0.0
      %4980 = vmatpush1.msra.mxu0 0.0
      %4981 = vmatprep.subr.mxu0 0.0
      %4982 = vmatpush1.msra.mxu0 0.0
      %4983 = vmatprep.subr.mxu0 0.0
      %4984 = vmatpush1.msra.mxu0 0.0
      %4985 = vmatprep.subr.mxu0 0.0
      %4986 = vmatpush1.msra.mxu0 0.0
      %4987 = vmatprep.subr.mxu0 0.0
      %4988 = vmatpush1.msra.mxu0 0.0
      %4989 = vmatprep.subr.mxu0 0.0
      %4990 = vmatpush1.msra.mxu0 0.0
      %4991 = vmatprep.mubr.f32.mxu0 0.0
      %4992 = vmatmul.mubr.f32.gmra.mrb[0].mxu0 %v4925
      %v4993 = vpop.f32.mrb[0].mxu0
      %v4994 = vadd.f32 0.0, %v4993
      %v4995 = vpop.f32.mrb[0].mxu0
      %v4996 = vadd.f32 0.0, %v4995
      %4997 = vdwg.mxu0
      %v4998 = vadd.f32 %v4921, %v4994
      %v4999 = vadd.f32 %v4922, %v4996
      %5000 = vrot.lane.b32.xlu0 %v4307, 56
      %v5001 = vpop.permute.xlu0 %5000
      %v5002 = vsel %vm837, %v5001, 0
      %5004 = vmatprep.subr.mxu0 %v3076
      %5005 = vmatpush1.msra.mxu0 %v3075
      %5006 = vmatprep.subr.mxu0 0.0
      %5007 = vmatpush1.msra.mxu0 0.0
      %5008 = vmatprep.subr.mxu0 0.0
      %5009 = vmatpush1.msra.mxu0 0.0
      %5010 = vmatprep.subr.mxu0 0.0
      %5011 = vmatpush1.msra.mxu0 0.0
      %5012 = vmatprep.subr.mxu0 0.0
      %5013 = vmatpush1.msra.mxu0 0.0
      %5014 = vmatprep.subr.mxu0 0.0
      %5015 = vmatpush1.msra.mxu0 0.0
      %5016 = vmatprep.subr.mxu0 0.0
      %5017 = vmatpush1.msra.mxu0 0.0
      %5018 = vmatprep.subr.mxu0 0.0
      %5019 = vmatpush1.msra.mxu0 0.0
      %5020 = vmatprep.subr.mxu0 0.0
      %5021 = vmatpush1.msra.mxu0 0.0
      %5022 = vmatprep.subr.mxu0 0.0
      %5023 = vmatpush1.msra.mxu0 0.0
      %5024 = vmatprep.subr.mxu0 0.0
      %5025 = vmatpush1.msra.mxu0 0.0
      %5026 = vmatprep.subr.mxu0 0.0
      %5027 = vmatpush1.msra.mxu0 0.0
      %5028 = vmatprep.subr.mxu0 0.0
      %5029 = vmatpush1.msra.mxu0 0.0
      %5030 = vmatprep.subr.mxu0 0.0
      %5031 = vmatpush1.msra.mxu0 0.0
      %5032 = vmatprep.subr.mxu0 0.0
      %5033 = vmatpush1.msra.mxu0 0.0
      %5034 = vmatprep.subr.mxu0 0.0
      %5035 = vmatpush1.msra.mxu0 0.0
      %5036 = vmatprep.subr.mxu0 0.0
      %5037 = vmatpush1.msra.mxu0 0.0
      %5038 = vmatprep.subr.mxu0 0.0
      %5039 = vmatpush1.msra.mxu0 0.0
      %5040 = vmatprep.subr.mxu0 0.0
      %5041 = vmatpush1.msra.mxu0 0.0
      %5042 = vmatprep.subr.mxu0 0.0
      %5043 = vmatpush1.msra.mxu0 0.0
      %5044 = vmatprep.subr.mxu0 0.0
      %5045 = vmatpush1.msra.mxu0 0.0
      %5046 = vmatprep.subr.mxu0 0.0
      %5047 = vmatpush1.msra.mxu0 0.0
      %5048 = vmatprep.subr.mxu0 0.0
      %5049 = vmatpush1.msra.mxu0 0.0
      %5050 = vmatprep.subr.mxu0 0.0
      %5051 = vmatpush1.msra.mxu0 0.0
      %5052 = vmatprep.subr.mxu0 0.0
      %5053 = vmatpush1.msra.mxu0 0.0
      %5054 = vmatprep.subr.mxu0 0.0
      %5055 = vmatpush1.msra.mxu0 0.0
      %5056 = vmatprep.subr.mxu0 0.0
      %5057 = vmatpush1.msra.mxu0 0.0
      %5058 = vmatprep.subr.mxu0 0.0
      %5059 = vmatpush1.msra.mxu0 0.0
      %5060 = vmatprep.subr.mxu0 0.0
      %5061 = vmatpush1.msra.mxu0 0.0
      %5062 = vmatprep.subr.mxu0 0.0
      %5063 = vmatpush1.msra.mxu0 0.0
      %5064 = vmatprep.subr.mxu0 0.0
      %5065 = vmatpush1.msra.mxu0 0.0
      %5066 = vmatprep.subr.mxu0 0.0
      %5067 = vmatpush1.msra.mxu0 0.0
      %5068 = vmatprep.mubr.f32.mxu0 0.0
      %5069 = vmatmul.mubr.f32.gmra.mrb[0].mxu0 %v5002
      %v5070 = vpop.f32.mrb[0].mxu0
      %v5071 = vadd.f32 0.0, %v5070
      %v5072 = vpop.f32.mrb[0].mxu0
      %v5073 = vadd.f32 0.0, %v5072
      %5074 = vdwg.mxu0
      %v5075 = vadd.f32 %v4998, %v5071
      %v5076 = vadd.f32 %v4999, %v5073
      %5077 = vrot.lane.b32.xlu0 %v4307, 48
      %v5078 = vpop.permute.xlu0 %5077
      %v5079 = vsel %vm837, %v5078, 0
      %5081 = vmatprep.subr.mxu0 %v3078
      %5082 = vmatpush1.msra.mxu0 %v3077
      %5083 = vmatprep.subr.mxu0 0.0
      %5084 = vmatpush1.msra.mxu0 0.0
      %5085 = vmatprep.subr.mxu0 0.0
      %5086 = vmatpush1.msra.mxu0 0.0
      %5087 = vmatprep.subr.mxu0 0.0
      %5088 = vmatpush1.msra.mxu0 0.0
      %5089 = vmatprep.subr.mxu0 0.0
      %5090 = vmatpush1.msra.mxu0 0.0
      %5091 = vmatprep.subr.mxu0 0.0
      %5092 = vmatpush1.msra.mxu0 0.0
      %5093 = vmatprep.subr.mxu0 0.0
      %5094 = vmatpush1.msra.mxu0 0.0
      %5095 = vmatprep.subr.mxu0 0.0
      %5096 = vmatpush1.msra.mxu0 0.0
      %5097 = vmatprep.subr.mxu0 0.0
      %5098 = vmatpush1.msra.mxu0 0.0
      %5099 = vmatprep.subr.mxu0 0.0
      %5100 = vmatpush1.msra.mxu0 0.0
      %5101 = vmatprep.subr.mxu0 0.0
      %5102 = vmatpush1.msra.mxu0 0.0
      %5103 = vmatprep.subr.mxu0 0.0
      %5104 = vmatpush1.msra.mxu0 0.0
      %5105 = vmatprep.subr.mxu0 0.0
      %5106 = vmatpush1.msra.mxu0 0.0
      %5107 = vmatprep.subr.mxu0 0.0
      %5108 = vmatpush1.msra.mxu0 0.0
      %5109 = vmatprep.subr.mxu0 0.0
      %5110 = vmatpush1.msra.mxu0 0.0
      %5111 = vmatprep.subr.mxu0 0.0
      %5112 = vmatpush1.msra.mxu0 0.0
      %5113 = vmatprep.subr.mxu0 0.0
      %5114 = vmatpush1.msra.mxu0 0.0
      %5115 = vmatprep.subr.mxu0 0.0
      %5116 = vmatpush1.msra.mxu0 0.0
      %5117 = vmatprep.subr.mxu0 0.0
      %5118 = vmatpush1.msra.mxu0 0.0
      %5119 = vmatprep.subr.mxu0 0.0
      %5120 = vmatpush1.msra.mxu0 0.0
      %5121 = vmatprep.subr.mxu0 0.0
      %5122 = vmatpush1.msra.mxu0 0.0
      %5123 = vmatprep.subr.mxu0 0.0
      %5124 = vmatpush1.msra.mxu0 0.0
      %5125 = vmatprep.subr.mxu0 0.0
      %5126 = vmatpush1.msra.mxu0 0.0
      %5127 = vmatprep.subr.mxu0 0.0
      %5128 = vmatpush1.msra.mxu0 0.0
      %5129 = vmatprep.subr.mxu0 0.0
      %5130 = vmatpush1.msra.mxu0 0.0
      %5131 = vmatprep.subr.mxu0 0.0
      %5132 = vmatpush1.msra.mxu0 0.0
      %5133 = vmatprep.subr.mxu0 0.0
      %5134 = vmatpush1.msra.mxu0 0.0
      %5135 = vmatprep.subr.mxu0 0.0
      %5136 = vmatpush1.msra.mxu0 0.0
      %5137 = vmatprep.subr.mxu0 0.0
      %5138 = vmatpush1.msra.mxu0 0.0
      %5139 = vmatprep.subr.mxu0 0.0
      %5140 = vmatpush1.msra.mxu0 0.0
      %5141 = vmatprep.subr.mxu0 0.0
      %5142 = vmatpush1.msra.mxu0 0.0
      %5143 = vmatprep.subr.mxu0 0.0
      %5144 = vmatpush1.msra.mxu0 0.0
      %5145 = vmatprep.mubr.f32.mxu0 0.0
      %5146 = vmatmul.mubr.f32.gmra.mrb[0].mxu0 %v5079
      %v5147 = vpop.f32.mrb[0].mxu0
      %v5148 = vadd.f32 0.0, %v5147
      %v5149 = vpop.f32.mrb[0].mxu0
      %v5150 = vadd.f32 0.0, %v5149
      %5151 = vdwg.mxu0
      %v5152 = vadd.f32 %v5075, %v5148
      %v5153 = vadd.f32 %v5076, %v5150
      %v5154 = vld [vmem:[%s5] sm:$0xff]
      %5156 = vset.pattern.permute.xlu0 0
      %5157 = vperm.xlu0 %5156, %v5154
      %v5158 = vpop.permute.xlu0 %5157
      %v5160 = vadd.f32 %v5152, %v5158
      %v5161 = vadd.f32 %v5153, %v5158
      %vm5162 = vcmp.ge.f32.partialorder %v5160, 0.0
      %vm5163 = vcmp.ge.f32.partialorder %v5161, 0.0
      %v5164 = vmul.f32 %v5160, 0.1
      %v5165 = vmul.f32 %v5161, 0.1
      %v5166 = vsel %vm5162, %v5160, %v5164
      %v5167 = vsel %vm5163, %v5161, %v5165
      %5168 = vrot.lane.b32.xlu0 %v5166, 73
      %v5169 = vpop.permute.xlu0 %5168
      %5170 = vrot.lane.b32.xlu0 %v5167, 73
      %v5171 = vpop.permute.xlu0 %5170
      %v5172 = vsel %vm314, %v5169, %v5171
      %v5173 = vsel %vm314, %v5171, %v5169
      %v5174 = vmul.f32 %v5173, %v322
      %v5175 = vmul.f32 %v5172, %v326
      %5176 = vrot.lane.b32.xlu0 %v5166, 72
      %v5177 = vpop.permute.xlu0 %5176
      %5178 = vrot.lane.b32.xlu0 %v5167, 72
      %v5179 = vpop.permute.xlu0 %5178
      %v5180 = vsel %vm335, %v5177, %v5179
      %v5181 = vsel %vm335, %v5179, %v5177
      %v5182 = vmul.f32 %v5181, %v344
      %v5183 = vmul.f32 %v5180, %v348
      %5184 = vrot.lane.b32.xlu0 %v5166, 71
      %v5185 = vpop.permute.xlu0 %5184
      %5186 = vrot.lane.b32.xlu0 %v5167, 71
      %v5187 = vpop.permute.xlu0 %5186
      %v5188 = vsel %vm357, %v5185, %v5187
      %v5189 = vsel %vm357, %v5187, %v5185
      %v5190 = vmul.f32 %v5189, %v366
      %v5191 = vmul.f32 %v5188, %v370
      %5192 = vrot.lane.b32.xlu0 %v5166, 65
      %v5193 = vpop.permute.xlu0 %5192
      %5194 = vrot.lane.b32.xlu0 %v5167, 65
      %v5195 = vpop.permute.xlu0 %5194
      %v5196 = vsel %vm379, %v5193, %v5195
      %v5197 = vsel %vm379, %v5195, %v5193
      %v5198 = vmul.f32 %v5197, %v388
      %v5199 = vmul.f32 %v5196, %v392
      %5200 = vrot.lane.b32.xlu0 %v5166, 64
      %v5201 = vpop.permute.xlu0 %5200
      %5202 = vrot.lane.b32.xlu0 %v5167, 64
      %v5203 = vpop.permute.xlu0 %5202
      %v5204 = vsel %vm401, %v5201, %v5203
      %v5205 = vsel %vm401, %v5203, %v5201
      %v5206 = vmul.f32 %v5205, %v410
      %v5207 = vmul.f32 %v5204, %v414
      %5208 = vrot.lane.b32.xlu0 %v5166, 63
      %v5209 = vpop.permute.xlu0 %5208
      %5210 = vrot.lane.b32.xlu0 %v5167, 63
      %v5211 = vpop.permute.xlu0 %5210
      %v5212 = vsel %vm423, %v5209, %v5211
      %v5213 = vsel %vm423, %v5211, %v5209
      %v5214 = vmul.f32 %v5213, %v432
      %v5215 = vmul.f32 %v5212, %v436
      %5216 = vrot.lane.b32.xlu0 %v5166, 57
      %v5217 = vpop.permute.xlu0 %5216
      %5218 = vrot.lane.b32.xlu0 %v5167, 57
      %v5219 = vpop.permute.xlu0 %5218
      %v5220 = vsel %vm445, %v5217, %v5219
      %v5221 = vsel %vm445, %v5219, %v5217
      %v5222 = vmul.f32 %v5221, %v454
      %v5223 = vmul.f32 %v5220, %v458
      %5224 = vrot.lane.b32.xlu0 %v5166, 56
      %v5225 = vpop.permute.xlu0 %5224
      %5226 = vrot.lane.b32.xlu0 %v5167, 56
      %v5227 = vpop.permute.xlu0 %5226
      %v5228 = vsel %vm467, %v5225, %v5227
      %v5229 = vsel %vm467, %v5227, %v5225
      %v5230 = vmul.f32 %v5229, %v476
      %v5231 = vmul.f32 %v5228, %v480
      %5232 = vrot.lane.b32.xlu0 %v5166, 55
      %v5233 = vpop.permute.xlu0 %5232
      %5234 = vrot.lane.b32.xlu0 %v5167, 55
      %v5235 = vpop.permute.xlu0 %5234
      %v5236 = vsel %vm489, %v5233, %v5235
      %v5237 = vsel %vm489, %v5235, %v5233
      %v5238 = vmul.f32 %v5237, %v498
      %v5239 = vmul.f32 %v5236, %v502
      %5240 = vrot.lane.b32.xlu0 %v5166, 9
      %v5241 = vpop.permute.xlu0 %5240
      %5242 = vrot.lane.b32.xlu0 %v5167, 9
      %v5243 = vpop.permute.xlu0 %5242
      %v5244 = vsel %vm511, %v5241, %v5243
      %v5245 = vsel %vm511, %v5243, %v5241
      %v5246 = vmul.f32 %v5245, %v520
      %v5247 = vmul.f32 %v5244, %v524
      %5248 = vrot.lane.b32.xlu0 %v5166, 8
      %v5249 = vpop.permute.xlu0 %5248
      %5250 = vrot.lane.b32.xlu0 %v5167, 8
      %v5251 = vpop.permute.xlu0 %5250
      %v5252 = vsel %vm533, %v5249, %v5251
      %v5253 = vsel %vm533, %v5251, %v5249
      %v5254 = vmul.f32 %v5253, %v542
      %v5255 = vmul.f32 %v5252, %v546
      %5256 = vrot.lane.b32.xlu0 %v5166, 7
      %v5257 = vpop.permute.xlu0 %5256
      %5258 = vrot.lane.b32.xlu0 %v5167, 7
      %v5259 = vpop.permute.xlu0 %5258
      %v5260 = vsel %vm555, %v5257, %v5259
      %v5261 = vsel %vm555, %v5259, %v5257
      %v5262 = vmul.f32 %v5261, %v564
      %v5263 = vmul.f32 %v5260, %v568
      %5264 = vrot.lane.b32.xlu0 %v5166, 1
      %v5265 = vpop.permute.xlu0 %5264
      %5266 = vrot.lane.b32.xlu0 %v5167, 1
      %v5267 = vpop.permute.xlu0 %5266
      %v5268 = vsel %vm577, %v5265, %v5267
      %v5269 = vsel %vm577, %v5267, %v5265
      %v5270 = vmul.f32 %v5269, %v586
      %v5271 = vmul.f32 %v5268, %v590
      %v5272 = vmul.f32 %v5166, %v601
      %v5273 = vmul.f32 %v5167, %v605
      %5274 = vrot.lane.b32.xlu0 %v5166, 127
      %v5275 = vpop.permute.xlu0 %5274
      %5276 = vrot.lane.b32.xlu0 %v5167, 127
      %v5277 = vpop.permute.xlu0 %5276
      %v5278 = vsel %vm614, %v5275, %v5277
      %v5279 = vsel %vm614, %v5277, %v5275
      %v5280 = vmul.f32 %v5278, %v623
      %v5281 = vmul.f32 %v5279, %v627
      %5282 = vrot.lane.b32.xlu0 %v5166, 121
      %v5283 = vpop.permute.xlu0 %5282
      %5284 = vrot.lane.b32.xlu0 %v5167, 121
      %v5285 = vpop.permute.xlu0 %5284
      %v5286 = vsel %vm636, %v5283, %v5285
      %v5287 = vsel %vm636, %v5285, %v5283
      %v5288 = vmul.f32 %v5286, %v645
      %v5289 = vmul.f32 %v5287, %v649
      %5290 = vrot.lane.b32.xlu0 %v5166, 120
      %v5291 = vpop.permute.xlu0 %5290
      %5292 = vrot.lane.b32.xlu0 %v5167, 120
      %v5293 = vpop.permute.xlu0 %5292
      %v5294 = vsel %vm658, %v5291, %v5293
      %v5295 = vsel %vm658, %v5293, %v5291
      %v5296 = vmul.f32 %v5294, %v667
      %v5297 = vmul.f32 %v5295, %v671
      %5298 = vrot.lane.b32.xlu0 %v5166, 119
      %v5299 = vpop.permute.xlu0 %5298
      %5300 = vrot.lane.b32.xlu0 %v5167, 119
      %v5301 = vpop.permute.xlu0 %5300
      %v5302 = vsel %vm680, %v5299, %v5301
      %v5303 = vsel %vm680, %v5301, %v5299
      %v5304 = vmul.f32 %v5302, %v689
      %v5305 = vmul.f32 %v5303, %v693
      %v5306 = vmul.f32 %v5172, %v704
      %v5307 = vmul.f32 %v5173, %v708
      %v5308 = vmul.f32 %v5180, %v719
      %v5309 = vmul.f32 %v5181, %v723
      %v5310 = vmul.f32 %v5188, %v734
      %v5311 = vmul.f32 %v5189, %v738
      %v5312 = vmul.f32 %v5196, %v749
      %v5313 = vmul.f32 %v5197, %v753
      %v5314 = vmul.f32 %v5204, %v764
      %v5315 = vmul.f32 %v5205, %v768
      %v5316 = vmul.f32 %v5212, %v779
      %v5317 = vmul.f32 %v5213, %v783
      %v5318 = vmul.f32 %v5220, %v794
      %v5319 = vmul.f32 %v5221, %v798
      %v5320 = vmul.f32 %v5228, %v809
      %v5321 = vmul.f32 %v5229, %v813
      %v5322 = vmul.f32 %v5236, %v824
      %v5323 = vmul.f32 %v5237, %v828
      %v5324 = vld [vmem:[%s6] sm:$0xff]
      %5326 = vrot.lane.b32.xlu0 %v5324, 120
      %v5327 = vpop.permute.xlu0 %5326
      %v5328 = vsel %vm837, %v5327, 0
      %5330 = vmatprep.subr.mxu0 %v5183
      %5331 = vmatpush1.msra.mxu0 %v5182
      %5332 = vmatprep.subr.mxu0 0.0
      %5333 = vmatpush1.msra.mxu0 0.0
      %5334 = vmatprep.subr.mxu0 0.0
      %5335 = vmatpush1.msra.mxu0 0.0
      %5336 = vmatprep.subr.mxu0 0.0
      %5337 = vmatpush1.msra.mxu0 0.0
      %5338 = vmatprep.subr.mxu0 0.0
      %5339 = vmatpush1.msra.mxu0 0.0
      %5340 = vmatprep.subr.mxu0 0.0
      %5341 = vmatpush1.msra.mxu0 0.0
      %5342 = vmatprep.subr.mxu0 0.0
      %5343 = vmatpush1.msra.mxu0 0.0
      %5344 = vmatprep.subr.mxu0 0.0
      %5345 = vmatpush1.msra.mxu0 0.0
      %5346 = vmatprep.subr.mxu0 0.0
      %5347 = vmatpush1.msra.mxu0 0.0
      %5348 = vmatprep.subr.mxu0 0.0
      %5349 = vmatpush1.msra.mxu0 0.0
      %5350 = vmatprep.subr.mxu0 0.0
      %5351 = vmatpush1.msra.mxu0 0.0
      %5352 = vmatprep.subr.mxu0 0.0
      %5353 = vmatpush1.msra.mxu0 0.0
      %5354 = vmatprep.subr.mxu0 0.0
      %5355 = vmatpush1.msra.mxu0 0.0
      %5356 = vmatprep.subr.mxu0 0.0
      %5357 = vmatpush1.msra.mxu0 0.0
      %5358 = vmatprep.subr.mxu0 0.0
      %5359 = vmatpush1.msra.mxu0 0.0
      %5360 = vmatprep.subr.mxu0 0.0
      %5361 = vmatpush1.msra.mxu0 0.0
      %5362 = vmatprep.subr.mxu0 0.0
      %5363 = vmatpush1.msra.mxu0 0.0
      %5364 = vmatprep.subr.mxu0 0.0
      %5365 = vmatpush1.msra.mxu0 0.0
      %5366 = vmatprep.subr.mxu0 0.0
      %5367 = vmatpush1.msra.mxu0 0.0
      %5368 = vmatprep.subr.mxu0 0.0
      %5369 = vmatpush1.msra.mxu0 0.0
      %5370 = vmatprep.subr.mxu0 0.0
      %5371 = vmatpush1.msra.mxu0 0.0
      %5372 = vmatprep.subr.mxu0 0.0
      %5373 = vmatpush1.msra.mxu0 0.0
      %5374 = vmatprep.subr.mxu0 0.0
      %5375 = vmatpush1.msra.mxu0 0.0
      %5376 = vmatprep.subr.mxu0 0.0
      %5377 = vmatpush1.msra.mxu0 0.0
      %5378 = vmatprep.subr.mxu0 0.0
      %5379 = vmatpush1.msra.mxu0 0.0
      %5380 = vmatprep.subr.mxu0 0.0
      %5381 = vmatpush1.msra.mxu0 0.0
      %5382 = vmatprep.subr.mxu0 0.0
      %5383 = vmatpush1.msra.mxu0 0.0
      %5384 = vmatprep.subr.mxu0 0.0
      %5385 = vmatpush1.msra.mxu0 0.0
      %5386 = vmatprep.subr.mxu0 0.0
      %5387 = vmatpush1.msra.mxu0 0.0
      %5388 = vmatprep.subr.mxu0 0.0
      %5389 = vmatpush1.msra.mxu0 0.0
      %5390 = vmatprep.subr.mxu0 0.0
      %5391 = vmatpush1.msra.mxu0 0.0
      %5392 = vmatprep.subr.mxu0 0.0
      %5393 = vmatpush1.msra.mxu0 0.0
      %5394 = vmatprep.mubr.f32.mxu0 0.0
      %5395 = vmatmul.mubr.f32.gmra.mrb[0].mxu0 %v5328
      %v5396 = vpop.f32.mrb[0].mxu0
      %v5397 = vadd.f32 0.0, %v5396
      %v5398 = vpop.f32.mrb[0].mxu0
      %v5399 = vadd.f32 0.0, %v5398
      %5400 = vdwg.mxu0
      %v5401 = vsel %vm837, %v5324, 0
      %5403 = vmatprep.subr.mxu0 %v5175
      %5404 = vmatpush1.msra.mxu0 %v5174
      %5405 = vmatprep.subr.mxu0 0.0
      %5406 = vmatpush1.msra.mxu0 0.0
      %5407 = vmatprep.subr.mxu0 0.0
      %5408 = vmatpush1.msra.mxu0 0.0
      %5409 = vmatprep.subr.mxu0 0.0
      %5410 = vmatpush1.msra.mxu0 0.0
      %5411 = vmatprep.subr.mxu0 0.0
      %5412 = vmatpush1.msra.mxu0 0.0
      %5413 = vmatprep.subr.mxu0 0.0
      %5414 = vmatpush1.msra.mxu0 0.0
      %5415 = vmatprep.subr.mxu0 0.0
      %5416 = vmatpush1.msra.mxu0 0.0
      %5417 = vmatprep.subr.mxu0 0.0
      %5418 = vmatpush1.msra.mxu0 0.0
      %5419 = vmatprep.subr.mxu0 0.0
      %5420 = vmatpush1.msra.mxu0 0.0
      %5421 = vmatprep.subr.mxu0 0.0
      %5422 = vmatpush1.msra.mxu0 0.0
      %5423 = vmatprep.subr.mxu0 0.0
      %5424 = vmatpush1.msra.mxu0 0.0
      %5425 = vmatprep.subr.mxu0 0.0
      %5426 = vmatpush1.msra.mxu0 0.0
      %5427 = vmatprep.subr.mxu0 0.0
      %5428 = vmatpush1.msra.mxu0 0.0
      %5429 = vmatprep.subr.mxu0 0.0
      %5430 = vmatpush1.msra.mxu0 0.0
      %5431 = vmatprep.subr.mxu0 0.0
      %5432 = vmatpush1.msra.mxu0 0.0
      %5433 = vmatprep.subr.mxu0 0.0
      %5434 = vmatpush1.msra.mxu0 0.0
      %5435 = vmatprep.subr.mxu0 0.0
      %5436 = vmatpush1.msra.mxu0 0.0
      %5437 = vmatprep.subr.mxu0 0.0
      %5438 = vmatpush1.msra.mxu0 0.0
      %5439 = vmatprep.subr.mxu0 0.0
      %5440 = vmatpush1.msra.mxu0 0.0
      %5441 = vmatprep.subr.mxu0 0.0
      %5442 = vmatpush1.msra.mxu0 0.0
      %5443 = vmatprep.subr.mxu0 0.0
      %5444 = vmatpush1.msra.mxu0 0.0
      %5445 = vmatprep.subr.mxu0 0.0
      %5446 = vmatpush1.msra.mxu0 0.0
      %5447 = vmatprep.subr.mxu0 0.0
      %5448 = vmatpush1.msra.mxu0 0.0
      %5449 = vmatprep.subr.mxu0 0.0
      %5450 = vmatpush1.msra.mxu0 0.0
      %5451 = vmatprep.subr.mxu0 0.0
      %5452 = vmatpush1.msra.mxu0 0.0
      %5453 = vmatprep.subr.mxu0 0.0
      %5454 = vmatpush1.msra.mxu0 0.0
      %5455 = vmatprep.subr.mxu0 0.0
      %5456 = vmatpush1.msra.mxu0 0.0
      %5457 = vmatprep.subr.mxu0 0.0
      %5458 = vmatpush1.msra.mxu0 0.0
      %5459 = vmatprep.subr.mxu0 0.0
      %5460 = vmatpush1.msra.mxu0 0.0
      %5461 = vmatprep.subr.mxu0 0.0
      %5462 = vmatpush1.msra.mxu0 0.0
      %5463 = vmatprep.subr.mxu0 0.0
      %5464 = vmatpush1.msra.mxu0 0.0
      %5465 = vmatprep.subr.mxu0 0.0
      %5466 = vmatpush1.msra.mxu0 0.0
      %5467 = vmatprep.mubr.f32.mxu0 0.0
      %5468 = vmatmul.mubr.f32.gmra.mrb[0].mxu0 %v5401
      %v5469 = vpop.f32.mrb[0].mxu0
      %v5470 = vadd.f32 %v5397, %v5469
      %v5471 = vpop.f32.mrb[0].mxu0
      %v5472 = vadd.f32 %v5399, %v5471
      %5473 = vdwg.mxu0
      %5474 = vrot.lane.b32.xlu0 %v5324, 112
      %v5475 = vpop.permute.xlu0 %5474
      %v5476 = vsel %vm837, %v5475, 0
      %5478 = vmatprep.subr.mxu0 %v5191
      %5479 = vmatpush1.msra.mxu0 %v5190
      %5480 = vmatprep.subr.mxu0 0.0
      %5481 = vmatpush1.msra.mxu0 0.0
      %5482 = vmatprep.subr.mxu0 0.0
      %5483 = vmatpush1.msra.mxu0 0.0
      %5484 = vmatprep.subr.mxu0 0.0
      %5485 = vmatpush1.msra.mxu0 0.0
      %5486 = vmatprep.subr.mxu0 0.0
      %5487 = vmatpush1.msra.mxu0 0.0
      %5488 = vmatprep.subr.mxu0 0.0
      %5489 = vmatpush1.msra.mxu0 0.0
      %5490 = vmatprep.subr.mxu0 0.0
      %5491 = vmatpush1.msra.mxu0 0.0
      %5492 = vmatprep.subr.mxu0 0.0
      %5493 = vmatpush1.msra.mxu0 0.0
      %5494 = vmatprep.subr.mxu0 0.0
      %5495 = vmatpush1.msra.mxu0 0.0
      %5496 = vmatprep.subr.mxu0 0.0
      %5497 = vmatpush1.msra.mxu0 0.0
      %5498 = vmatprep.subr.mxu0 0.0
      %5499 = vmatpush1.msra.mxu0 0.0
      %5500 = vmatprep.subr.mxu0 0.0
      %5501 = vmatpush1.msra.mxu0 0.0
      %5502 = vmatprep.subr.mxu0 0.0
      %5503 = vmatpush1.msra.mxu0 0.0
      %5504 = vmatprep.subr.mxu0 0.0
      %5505 = vmatpush1.msra.mxu0 0.0
      %5506 = vmatprep.subr.mxu0 0.0
      %5507 = vmatpush1.msra.mxu0 0.0
      %5508 = vmatprep.subr.mxu0 0.0
      %5509 = vmatpush1.msra.mxu0 0.0
      %5510 = vmatprep.subr.mxu0 0.0
      %5511 = vmatpush1.msra.mxu0 0.0
      %5512 = vmatprep.subr.mxu0 0.0
      %5513 = vmatpush1.msra.mxu0 0.0
      %5514 = vmatprep.subr.mxu0 0.0
      %5515 = vmatpush1.msra.mxu0 0.0
      %5516 = vmatprep.subr.mxu0 0.0
      %5517 = vmatpush1.msra.mxu0 0.0
      %5518 = vmatprep.subr.mxu0 0.0
      %5519 = vmatpush1.msra.mxu0 0.0
      %5520 = vmatprep.subr.mxu0 0.0
      %5521 = vmatpush1.msra.mxu0 0.0
      %5522 = vmatprep.subr.mxu0 0.0
      %5523 = vmatpush1.msra.mxu0 0.0
      %5524 = vmatprep.subr.mxu0 0.0
      %5525 = vmatpush1.msra.mxu0 0.0
      %5526 = vmatprep.subr.mxu0 0.0
      %5527 = vmatpush1.msra.mxu0 0.0
      %5528 = vmatprep.subr.mxu0 0.0
      %5529 = vmatpush1.msra.mxu0 0.0
      %5530 = vmatprep.subr.mxu0 0.0
      %5531 = vmatpush1.msra.mxu0 0.0
      %5532 = vmatprep.subr.mxu0 0.0
      %5533 = vmatpush1.msra.mxu0 0.0
      %5534 = vmatprep.subr.mxu0 0.0
      %5535 = vmatpush1.msra.mxu0 0.0
      %5536 = vmatprep.subr.mxu0 0.0
      %5537 = vmatpush1.msra.mxu0 0.0
      %5538 = vmatprep.subr.mxu0 0.0
      %5539 = vmatpush1.msra.mxu0 0.0
      %5540 = vmatprep.subr.mxu0 0.0
      %5541 = vmatpush1.msra.mxu0 0.0
      %5542 = vmatprep.mubr.f32.mxu0 0.0
      %5543 = vmatmul.mubr.f32.gmra.mrb[0].mxu0 %v5476
      %v5544 = vpop.f32.mrb[0].mxu0
      %v5545 = vadd.f32 0.0, %v5544
      %v5546 = vpop.f32.mrb[0].mxu0
      %v5547 = vadd.f32 0.0, %v5546
      %5548 = vdwg.mxu0
      %v5549 = vadd.f32 %v5470, %v5545
      %v5550 = vadd.f32 %v5472, %v5547
      %5551 = vrot.lane.b32.xlu0 %v5324, 104
      %v5552 = vpop.permute.xlu0 %5551
      %v5553 = vsel %vm837, %v5552, 0
      %5555 = vmatprep.subr.mxu0 %v5199
      %5556 = vmatpush1.msra.mxu0 %v5198
      %5557 = vmatprep.subr.mxu0 0.0
      %5558 = vmatpush1.msra.mxu0 0.0
      %5559 = vmatprep.subr.mxu0 0.0
      %5560 = vmatpush1.msra.mxu0 0.0
      %5561 = vmatprep.subr.mxu0 0.0
      %5562 = vmatpush1.msra.mxu0 0.0
      %5563 = vmatprep.subr.mxu0 0.0
      %5564 = vmatpush1.msra.mxu0 0.0
      %5565 = vmatprep.subr.mxu0 0.0
      %5566 = vmatpush1.msra.mxu0 0.0
      %5567 = vmatprep.subr.mxu0 0.0
      %5568 = vmatpush1.msra.mxu0 0.0
      %5569 = vmatprep.subr.mxu0 0.0
      %5570 = vmatpush1.msra.mxu0 0.0
      %5571 = vmatprep.subr.mxu0 0.0
      %5572 = vmatpush1.msra.mxu0 0.0
      %5573 = vmatprep.subr.mxu0 0.0
      %5574 = vmatpush1.msra.mxu0 0.0
      %5575 = vmatprep.subr.mxu0 0.0
      %5576 = vmatpush1.msra.mxu0 0.0
      %5577 = vmatprep.subr.mxu0 0.0
      %5578 = vmatpush1.msra.mxu0 0.0
      %5579 = vmatprep.subr.mxu0 0.0
      %5580 = vmatpush1.msra.mxu0 0.0
      %5581 = vmatprep.subr.mxu0 0.0
      %5582 = vmatpush1.msra.mxu0 0.0
      %5583 = vmatprep.subr.mxu0 0.0
      %5584 = vmatpush1.msra.mxu0 0.0
      %5585 = vmatprep.subr.mxu0 0.0
      %5586 = vmatpush1.msra.mxu0 0.0
      %5587 = vmatprep.subr.mxu0 0.0
      %5588 = vmatpush1.msra.mxu0 0.0
      %5589 = vmatprep.subr.mxu0 0.0
      %5590 = vmatpush1.msra.mxu0 0.0
      %5591 = vmatprep.subr.mxu0 0.0
      %5592 = vmatpush1.msra.mxu0 0.0
      %5593 = vmatprep.subr.mxu0 0.0
      %5594 = vmatpush1.msra.mxu0 0.0
      %5595 = vmatprep.subr.mxu0 0.0
      %5596 = vmatpush1.msra.mxu0 0.0
      %5597 = vmatprep.subr.mxu0 0.0
      %5598 = vmatpush1.msra.mxu0 0.0
      %5599 = vmatprep.subr.mxu0 0.0
      %5600 = vmatpush1.msra.mxu0 0.0
      %5601 = vmatprep.subr.mxu0 0.0
      %5602 = vmatpush1.msra.mxu0 0.0
      %5603 = vmatprep.subr.mxu0 0.0
      %5604 = vmatpush1.msra.mxu0 0.0
      %5605 = vmatprep.subr.mxu0 0.0
      %5606 = vmatpush1.msra.mxu0 0.0
      %5607 = vmatprep.subr.mxu0 0.0
      %5608 = vmatpush1.msra.mxu0 0.0
      %5609 = vmatprep.subr.mxu0 0.0
      %5610 = vmatpush1.msra.mxu0 0.0
      %5611 = vmatprep.subr.mxu0 0.0
      %5612 = vmatpush1.msra.mxu0 0.0
      %5613 = vmatprep.subr.mxu0 0.0
      %5614 = vmatpush1.msra.mxu0 0.0
      %5615 = vmatprep.subr.mxu0 0.0
      %5616 = vmatpush1.msra.mxu0 0.0
      %5617 = vmatprep.subr.mxu0 0.0
      %5618 = vmatpush1.msra.mxu0 0.0
      %5619 = vmatprep.mubr.f32.mxu0 0.0
      %5620 = vmatmul.mubr.f32.gmra.mrb[0].mxu0 %v5553
      %v5621 = vpop.f32.mrb[0].mxu0
      %v5622 = vadd.f32 0.0, %v5621
      %v5623 = vpop.f32.mrb[0].mxu0
      %v5624 = vadd.f32 0.0, %v5623
      %5625 = vdwg.mxu0
      %v5626 = vadd.f32 %v5549, %v5622
      %v5627 = vadd.f32 %v5550, %v5624
      %5628 = vrot.lane.b32.xlu0 %v5324, 96
      %v5629 = vpop.permute.xlu0 %5628
      %v5630 = vsel %vm837, %v5629, 0
      %5632 = vmatprep.subr.mxu0 %v5207
      %5633 = vmatpush1.msra.mxu0 %v5206
      %5634 = vmatprep.subr.mxu0 0.0
      %5635 = vmatpush1.msra.mxu0 0.0
      %5636 = vmatprep.subr.mxu0 0.0
      %5637 = vmatpush1.msra.mxu0 0.0
      %5638 = vmatprep.subr.mxu0 0.0
      %5639 = vmatpush1.msra.mxu0 0.0
      %5640 = vmatprep.subr.mxu0 0.0
      %5641 = vmatpush1.msra.mxu0 0.0
      %5642 = vmatprep.subr.mxu0 0.0
      %5643 = vmatpush1.msra.mxu0 0.0
      %5644 = vmatprep.subr.mxu0 0.0
      %5645 = vmatpush1.msra.mxu0 0.0
      %5646 = vmatprep.subr.mxu0 0.0
      %5647 = vmatpush1.msra.mxu0 0.0
      %5648 = vmatprep.subr.mxu0 0.0
      %5649 = vmatpush1.msra.mxu0 0.0
      %5650 = vmatprep.subr.mxu0 0.0
      %5651 = vmatpush1.msra.mxu0 0.0
      %5652 = vmatprep.subr.mxu0 0.0
      %5653 = vmatpush1.msra.mxu0 0.0
      %5654 = vmatprep.subr.mxu0 0.0
      %5655 = vmatpush1.msra.mxu0 0.0
      %5656 = vmatprep.subr.mxu0 0.0
      %5657 = vmatpush1.msra.mxu0 0.0
      %5658 = vmatprep.subr.mxu0 0.0
      %5659 = vmatpush1.msra.mxu0 0.0
      %5660 = vmatprep.subr.mxu0 0.0
      %5661 = vmatpush1.msra.mxu0 0.0
      %5662 = vmatprep.subr.mxu0 0.0
      %5663 = vmatpush1.msra.mxu0 0.0
      %5664 = vmatprep.subr.mxu0 0.0
      %5665 = vmatpush1.msra.mxu0 0.0
      %5666 = vmatprep.subr.mxu0 0.0
      %5667 = vmatpush1.msra.mxu0 0.0
      %5668 = vmatprep.subr.mxu0 0.0
      %5669 = vmatpush1.msra.mxu0 0.0
      %5670 = vmatprep.subr.mxu0 0.0
      %5671 = vmatpush1.msra.mxu0 0.0
      %5672 = vmatprep.subr.mxu0 0.0
      %5673 = vmatpush1.msra.mxu0 0.0
      %5674 = vmatprep.subr.mxu0 0.0
      %5675 = vmatpush1.msra.mxu0 0.0
      %5676 = vmatprep.subr.mxu0 0.0
      %5677 = vmatpush1.msra.mxu0 0.0
      %5678 = vmatprep.subr.mxu0 0.0
      %5679 = vmatpush1.msra.mxu0 0.0
      %5680 = vmatprep.subr.mxu0 0.0
      %5681 = vmatpush1.msra.mxu0 0.0
      %5682 = vmatprep.subr.mxu0 0.0
      %5683 = vmatpush1.msra.mxu0 0.0
      %5684 = vmatprep.subr.mxu0 0.0
      %5685 = vmatpush1.msra.mxu0 0.0
      %5686 = vmatprep.subr.mxu0 0.0
      %5687 = vmatpush1.msra.mxu0 0.0
      %5688 = vmatprep.subr.mxu0 0.0
      %5689 = vmatpush1.msra.mxu0 0.0
      %5690 = vmatprep.subr.mxu0 0.0
      %5691 = vmatpush1.msra.mxu0 0.0
      %5692 = vmatprep.subr.mxu0 0.0
      %5693 = vmatpush1.msra.mxu0 0.0
      %5694 = vmatprep.subr.mxu0 0.0
      %5695 = vmatpush1.msra.mxu0 0.0
      %5696 = vmatprep.mubr.f32.mxu0 0.0
      %5697 = vmatmul.mubr.f32.gmra.mrb[0].mxu0 %v5630
      %v5698 = vpop.f32.mrb[0].mxu0
      %v5699 = vadd.f32 0.0, %v5698
      %v5700 = vpop.f32.mrb[0].mxu0
      %v5701 = vadd.f32 0.0, %v5700
      %5702 = vdwg.mxu0
      %v5703 = vadd.f32 %v5626, %v5699
      %v5704 = vadd.f32 %v5627, %v5701
      %5705 = vrot.lane.b32.xlu0 %v5324, 88
      %v5706 = vpop.permute.xlu0 %5705
      %v5707 = vsel %vm837, %v5706, 0
      %5709 = vmatprep.subr.mxu0 %v5215
      %5710 = vmatpush1.msra.mxu0 %v5214
      %5711 = vmatprep.subr.mxu0 0.0
      %5712 = vmatpush1.msra.mxu0 0.0
      %5713 = vmatprep.subr.mxu0 0.0
      %5714 = vmatpush1.msra.mxu0 0.0
      %5715 = vmatprep.subr.mxu0 0.0
      %5716 = vmatpush1.msra.mxu0 0.0
      %5717 = vmatprep.subr.mxu0 0.0
      %5718 = vmatpush1.msra.mxu0 0.0
      %5719 = vmatprep.subr.mxu0 0.0
      %5720 = vmatpush1.msra.mxu0 0.0
      %5721 = vmatprep.subr.mxu0 0.0
      %5722 = vmatpush1.msra.mxu0 0.0
      %5723 = vmatprep.subr.mxu0 0.0
      %5724 = vmatpush1.msra.mxu0 0.0
      %5725 = vmatprep.subr.mxu0 0.0
      %5726 = vmatpush1.msra.mxu0 0.0
      %5727 = vmatprep.subr.mxu0 0.0
      %5728 = vmatpush1.msra.mxu0 0.0
      %5729 = vmatprep.subr.mxu0 0.0
      %5730 = vmatpush1.msra.mxu0 0.0
      %5731 = vmatprep.subr.mxu0 0.0
      %5732 = vmatpush1.msra.mxu0 0.0
      %5733 = vmatprep.subr.mxu0 0.0
      %5734 = vmatpush1.msra.mxu0 0.0
      %5735 = vmatprep.subr.mxu0 0.0
      %5736 = vmatpush1.msra.mxu0 0.0
      %5737 = vmatprep.subr.mxu0 0.0
      %5738 = vmatpush1.msra.mxu0 0.0
      %5739 = vmatprep.subr.mxu0 0.0
      %5740 = vmatpush1.msra.mxu0 0.0
      %5741 = vmatprep.subr.mxu0 0.0
      %5742 = vmatpush1.msra.mxu0 0.0
      %5743 = vmatprep.subr.mxu0 0.0
      %5744 = vmatpush1.msra.mxu0 0.0
      %5745 = vmatprep.subr.mxu0 0.0
      %5746 = vmatpush1.msra.mxu0 0.0
      %5747 = vmatprep.subr.mxu0 0.0
      %5748 = vmatpush1.msra.mxu0 0.0
      %5749 = vmatprep.subr.mxu0 0.0
      %5750 = vmatpush1.msra.mxu0 0.0
      %5751 = vmatprep.subr.mxu0 0.0
      %5752 = vmatpush1.msra.mxu0 0.0
      %5753 = vmatprep.subr.mxu0 0.0
      %5754 = vmatpush1.msra.mxu0 0.0
      %5755 = vmatprep.subr.mxu0 0.0
      %5756 = vmatpush1.msra.mxu0 0.0
      %5757 = vmatprep.subr.mxu0 0.0
      %5758 = vmatpush1.msra.mxu0 0.0
      %5759 = vmatprep.subr.mxu0 0.0
      %5760 = vmatpush1.msra.mxu0 0.0
      %5761 = vmatprep.subr.mxu0 0.0
      %5762 = vmatpush1.msra.mxu0 0.0
      %5763 = vmatprep.subr.mxu0 0.0
      %5764 = vmatpush1.msra.mxu0 0.0
      %5765 = vmatprep.subr.mxu0 0.0
      %5766 = vmatpush1.msra.mxu0 0.0
      %5767 = vmatprep.subr.mxu0 0.0
      %5768 = vmatpush1.msra.mxu0 0.0
      %5769 = vmatprep.subr.mxu0 0.0
      %5770 = vmatpush1.msra.mxu0 0.0
      %5771 = vmatprep.subr.mxu0 0.0
      %5772 = vmatpush1.msra.mxu0 0.0
      %5773 = vmatprep.mubr.f32.mxu0 0.0
      %5774 = vmatmul.mubr.f32.gmra.mrb[0].mxu0 %v5707
      %v5775 = vpop.f32.mrb[0].mxu0
      %v5776 = vadd.f32 0.0, %v5775
      %v5777 = vpop.f32.mrb[0].mxu0
      %v5778 = vadd.f32 0.0, %v5777
      %5779 = vdwg.mxu0
      %v5780 = vadd.f32 %v5703, %v5776
      %v5781 = vadd.f32 %v5704, %v5778
      %5782 = vrot.lane.b32.xlu0 %v5324, 80
      %v5783 = vpop.permute.xlu0 %5782
      %v5784 = vsel %vm837, %v5783, 0
      %5786 = vmatprep.subr.mxu0 %v5223
      %5787 = vmatpush1.msra.mxu0 %v5222
      %5788 = vmatprep.subr.mxu0 0.0
      %5789 = vmatpush1.msra.mxu0 0.0
      %5790 = vmatprep.subr.mxu0 0.0
      %5791 = vmatpush1.msra.mxu0 0.0
      %5792 = vmatprep.subr.mxu0 0.0
      %5793 = vmatpush1.msra.mxu0 0.0
      %5794 = vmatprep.subr.mxu0 0.0
      %5795 = vmatpush1.msra.mxu0 0.0
      %5796 = vmatprep.subr.mxu0 0.0
      %5797 = vmatpush1.msra.mxu0 0.0
      %5798 = vmatprep.subr.mxu0 0.0
      %5799 = vmatpush1.msra.mxu0 0.0
      %5800 = vmatprep.subr.mxu0 0.0
      %5801 = vmatpush1.msra.mxu0 0.0
      %5802 = vmatprep.subr.mxu0 0.0
      %5803 = vmatpush1.msra.mxu0 0.0
      %5804 = vmatprep.subr.mxu0 0.0
      %5805 = vmatpush1.msra.mxu0 0.0
      %5806 = vmatprep.subr.mxu0 0.0
      %5807 = vmatpush1.msra.mxu0 0.0
      %5808 = vmatprep.subr.mxu0 0.0
      %5809 = vmatpush1.msra.mxu0 0.0
      %5810 = vmatprep.subr.mxu0 0.0
      %5811 = vmatpush1.msra.mxu0 0.0
      %5812 = vmatprep.subr.mxu0 0.0
      %5813 = vmatpush1.msra.mxu0 0.0
      %5814 = vmatprep.subr.mxu0 0.0
      %5815 = vmatpush1.msra.mxu0 0.0
      %5816 = vmatprep.subr.mxu0 0.0
      %5817 = vmatpush1.msra.mxu0 0.0
      %5818 = vmatprep.subr.mxu0 0.0
      %5819 = vmatpush1.msra.mxu0 0.0
      %5820 = vmatprep.subr.mxu0 0.0
      %5821 = vmatpush1.msra.mxu0 0.0
      %5822 = vmatprep.subr.mxu0 0.0
      %5823 = vmatpush1.msra.mxu0 0.0
      %5824 = vmatprep.subr.mxu0 0.0
      %5825 = vmatpush1.msra.mxu0 0.0
      %5826 = vmatprep.subr.mxu0 0.0
      %5827 = vmatpush1.msra.mxu0 0.0
      %5828 = vmatprep.subr.mxu0 0.0
      %5829 = vmatpush1.msra.mxu0 0.0
      %5830 = vmatprep.subr.mxu0 0.0
      %5831 = vmatpush1.msra.mxu0 0.0
      %5832 = vmatprep.subr.mxu0 0.0
      %5833 = vmatpush1.msra.mxu0 0.0
      %5834 = vmatprep.subr.mxu0 0.0
      %5835 = vmatpush1.msra.mxu0 0.0
      %5836 = vmatprep.subr.mxu0 0.0
      %5837 = vmatpush1.msra.mxu0 0.0
      %5838 = vmatprep.subr.mxu0 0.0
      %5839 = vmatpush1.msra.mxu0 0.0
      %5840 = vmatprep.subr.mxu0 0.0
      %5841 = vmatpush1.msra.mxu0 0.0
      %5842 = vmatprep.subr.mxu0 0.0
      %5843 = vmatpush1.msra.mxu0 0.0
      %5844 = vmatprep.subr.mxu0 0.0
      %5845 = vmatpush1.msra.mxu0 0.0
      %5846 = vmatprep.subr.mxu0 0.0
      %5847 = vmatpush1.msra.mxu0 0.0
      %5848 = vmatprep.subr.mxu0 0.0
      %5849 = vmatpush1.msra.mxu0 0.0
      %5850 = vmatprep.mubr.f32.mxu0 0.0
      %5851 = vmatmul.mubr.f32.gmra.mrb[0].mxu0 %v5784
      %v5852 = vpop.f32.mrb[0].mxu0
      %v5853 = vadd.f32 0.0, %v5852
      %v5854 = vpop.f32.mrb[0].mxu0
      %v5855 = vadd.f32 0.0, %v5854
      %5856 = vdwg.mxu0
      %v5857 = vadd.f32 %v5780, %v5853
      %v5858 = vadd.f32 %v5781, %v5855
      %5859 = vrot.lane.b32.xlu0 %v5324, 72
      %v5860 = vpop.permute.xlu0 %5859
      %v5861 = vsel %vm837, %v5860, 0
      %5863 = vmatprep.subr.mxu0 %v5231
      %5864 = vmatpush1.msra.mxu0 %v5230
      %5865 = vmatprep.subr.mxu0 0.0
      %5866 = vmatpush1.msra.mxu0 0.0
      %5867 = vmatprep.subr.mxu0 0.0
      %5868 = vmatpush1.msra.mxu0 0.0
      %5869 = vmatprep.subr.mxu0 0.0
      %5870 = vmatpush1.msra.mxu0 0.0
      %5871 = vmatprep.subr.mxu0 0.0
      %5872 = vmatpush1.msra.mxu0 0.0
      %5873 = vmatprep.subr.mxu0 0.0
      %5874 = vmatpush1.msra.mxu0 0.0
      %5875 = vmatprep.subr.mxu0 0.0
      %5876 = vmatpush1.msra.mxu0 0.0
      %5877 = vmatprep.subr.mxu0 0.0
      %5878 = vmatpush1.msra.mxu0 0.0
      %5879 = vmatprep.subr.mxu0 0.0
      %5880 = vmatpush1.msra.mxu0 0.0
      %5881 = vmatprep.subr.mxu0 0.0
      %5882 = vmatpush1.msra.mxu0 0.0
      %5883 = vmatprep.subr.mxu0 0.0
      %5884 = vmatpush1.msra.mxu0 0.0
      %5885 = vmatprep.subr.mxu0 0.0
      %5886 = vmatpush1.msra.mxu0 0.0
      %5887 = vmatprep.subr.mxu0 0.0
      %5888 = vmatpush1.msra.mxu0 0.0
      %5889 = vmatprep.subr.mxu0 0.0
      %5890 = vmatpush1.msra.mxu0 0.0
      %5891 = vmatprep.subr.mxu0 0.0
      %5892 = vmatpush1.msra.mxu0 0.0
      %5893 = vmatprep.subr.mxu0 0.0
      %5894 = vmatpush1.msra.mxu0 0.0
      %5895 = vmatprep.subr.mxu0 0.0
      %5896 = vmatpush1.msra.mxu0 0.0
      %5897 = vmatprep.subr.mxu0 0.0
      %5898 = vmatpush1.msra.mxu0 0.0
      %5899 = vmatprep.subr.mxu0 0.0
      %5900 = vmatpush1.msra.mxu0 0.0
      %5901 = vmatprep.subr.mxu0 0.0
      %5902 = vmatpush1.msra.mxu0 0.0
      %5903 = vmatprep.subr.mxu0 0.0
      %5904 = vmatpush1.msra.mxu0 0.0
      %5905 = vmatprep.subr.mxu0 0.0
      %5906 = vmatpush1.msra.mxu0 0.0
      %5907 = vmatprep.subr.mxu0 0.0
      %5908 = vmatpush1.msra.mxu0 0.0
      %5909 = vmatprep.subr.mxu0 0.0
      %5910 = vmatpush1.msra.mxu0 0.0
      %5911 = vmatprep.subr.mxu0 0.0
      %5912 = vmatpush1.msra.mxu0 0.0
      %5913 = vmatprep.subr.mxu0 0.0
      %5914 = vmatpush1.msra.mxu0 0.0
      %5915 = vmatprep.subr.mxu0 0.0
      %5916 = vmatpush1.msra.mxu0 0.0
      %5917 = vmatprep.subr.mxu0 0.0
      %5918 = vmatpush1.msra.mxu0 0.0
      %5919 = vmatprep.subr.mxu0 0.0
      %5920 = vmatpush1.msra.mxu0 0.0
      %5921 = vmatprep.subr.mxu0 0.0
      %5922 = vmatpush1.msra.mxu0 0.0
      %5923 = vmatprep.subr.mxu0 0.0
      %5924 = vmatpush1.msra.mxu0 0.0
      %5925 = vmatprep.subr.mxu0 0.0
      %5926 = vmatpush1.msra.mxu0 0.0
      %5927 = vmatprep.mubr.f32.mxu0 0.0
      %5928 = vmatmul.mubr.f32.gmra.mrb[0].mxu0 %v5861
      %v5929 = vpop.f32.mrb[0].mxu0
      %v5930 = vadd.f32 0.0, %v5929
      %v5931 = vpop.f32.mrb[0].mxu0
      %v5932 = vadd.f32 0.0, %v5931
      %5933 = vdwg.mxu0
      %v5934 = vadd.f32 %v5857, %v5930
      %v5935 = vadd.f32 %v5858, %v5932
      %5936 = vrot.lane.b32.xlu0 %v5324, 64
      %v5937 = vpop.permute.xlu0 %5936
      %v5938 = vsel %vm837, %v5937, 0
      %5940 = vmatprep.subr.mxu0 %v5239
      %5941 = vmatpush1.msra.mxu0 %v5238
      %5942 = vmatprep.subr.mxu0 0.0
      %5943 = vmatpush1.msra.mxu0 0.0
      %5944 = vmatprep.subr.mxu0 0.0
      %5945 = vmatpush1.msra.mxu0 0.0
      %5946 = vmatprep.subr.mxu0 0.0
      %5947 = vmatpush1.msra.mxu0 0.0
      %5948 = vmatprep.subr.mxu0 0.0
      %5949 = vmatpush1.msra.mxu0 0.0
      %5950 = vmatprep.subr.mxu0 0.0
      %5951 = vmatpush1.msra.mxu0 0.0
      %5952 = vmatprep.subr.mxu0 0.0
      %5953 = vmatpush1.msra.mxu0 0.0
      %5954 = vmatprep.subr.mxu0 0.0
      %5955 = vmatpush1.msra.mxu0 0.0
      %5956 = vmatprep.subr.mxu0 0.0
      %5957 = vmatpush1.msra.mxu0 0.0
      %5958 = vmatprep.subr.mxu0 0.0
      %5959 = vmatpush1.msra.mxu0 0.0
      %5960 = vmatprep.subr.mxu0 0.0
      %5961 = vmatpush1.msra.mxu0 0.0
      %5962 = vmatprep.subr.mxu0 0.0
      %5963 = vmatpush1.msra.mxu0 0.0
      %5964 = vmatprep.subr.mxu0 0.0
      %5965 = vmatpush1.msra.mxu0 0.0
      %5966 = vmatprep.subr.mxu0 0.0
      %5967 = vmatpush1.msra.mxu0 0.0
      %5968 = vmatprep.subr.mxu0 0.0
      %5969 = vmatpush1.msra.mxu0 0.0
      %5970 = vmatprep.subr.mxu0 0.0
      %5971 = vmatpush1.msra.mxu0 0.0
      %5972 = vmatprep.subr.mxu0 0.0
      %5973 = vmatpush1.msra.mxu0 0.0
      %5974 = vmatprep.subr.mxu0 0.0
      %5975 = vmatpush1.msra.mxu0 0.0
      %5976 = vmatprep.subr.mxu0 0.0
      %5977 = vmatpush1.msra.mxu0 0.0
      %5978 = vmatprep.subr.mxu0 0.0
      %5979 = vmatpush1.msra.mxu0 0.0
      %5980 = vmatprep.subr.mxu0 0.0
      %5981 = vmatpush1.msra.mxu0 0.0
      %5982 = vmatprep.subr.mxu0 0.0
      %5983 = vmatpush1.msra.mxu0 0.0
      %5984 = vmatprep.subr.mxu0 0.0
      %5985 = vmatpush1.msra.mxu0 0.0
      %5986 = vmatprep.subr.mxu0 0.0
      %5987 = vmatpush1.msra.mxu0 0.0
      %5988 = vmatprep.subr.mxu0 0.0
      %5989 = vmatpush1.msra.mxu0 0.0
      %5990 = vmatprep.subr.mxu0 0.0
      %5991 = vmatpush1.msra.mxu0 0.0
      %5992 = vmatprep.subr.mxu0 0.0
      %5993 = vmatpush1.msra.mxu0 0.0
      %5994 = vmatprep.subr.mxu0 0.0
      %5995 = vmatpush1.msra.mxu0 0.0
      %5996 = vmatprep.subr.mxu0 0.0
      %5997 = vmatpush1.msra.mxu0 0.0
      %5998 = vmatprep.subr.mxu0 0.0
      %5999 = vmatpush1.msra.mxu0 0.0
      %6000 = vmatprep.subr.mxu0 0.0
      %6001 = vmatpush1.msra.mxu0 0.0
      %6002 = vmatprep.subr.mxu0 0.0
      %6003 = vmatpush1.msra.mxu0 0.0
      %6004 = vmatprep.mubr.f32.mxu0 0.0
      %6005 = vmatmul.mubr.f32.gmra.mrb[0].mxu0 %v5938
      %v6006 = vpop.f32.mrb[0].mxu0
      %v6007 = vadd.f32 0.0, %v6006
      %v6008 = vpop.f32.mrb[0].mxu0
      %v6009 = vadd.f32 0.0, %v6008
      %6010 = vdwg.mxu0
      %v6011 = vadd.f32 %v5934, %v6007
      %v6012 = vadd.f32 %v5935, %v6009
      %6013 = vrot.lane.b32.xlu0 %v5324, 56
      %v6014 = vpop.permute.xlu0 %6013
      %v6015 = vsel %vm837, %v6014, 0
      %6017 = vmatprep.subr.mxu0 %v5247
      %6018 = vmatpush1.msra.mxu0 %v5246
      %6019 = vmatprep.subr.mxu0 0.0
      %6020 = vmatpush1.msra.mxu0 0.0
      %6021 = vmatprep.subr.mxu0 0.0
      %6022 = vmatpush1.msra.mxu0 0.0
      %6023 = vmatprep.subr.mxu0 0.0
      %6024 = vmatpush1.msra.mxu0 0.0
      %6025 = vmatprep.subr.mxu0 0.0
      %6026 = vmatpush1.msra.mxu0 0.0
      %6027 = vmatprep.subr.mxu0 0.0
      %6028 = vmatpush1.msra.mxu0 0.0
      %6029 = vmatprep.subr.mxu0 0.0
      %6030 = vmatpush1.msra.mxu0 0.0
      %6031 = vmatprep.subr.mxu0 0.0
      %6032 = vmatpush1.msra.mxu0 0.0
      %6033 = vmatprep.subr.mxu0 0.0
      %6034 = vmatpush1.msra.mxu0 0.0
      %6035 = vmatprep.subr.mxu0 0.0
      %6036 = vmatpush1.msra.mxu0 0.0
      %6037 = vmatprep.subr.mxu0 0.0
      %6038 = vmatpush1.msra.mxu0 0.0
      %6039 = vmatprep.subr.mxu0 0.0
      %6040 = vmatpush1.msra.mxu0 0.0
      %6041 = vmatprep.subr.mxu0 0.0
      %6042 = vmatpush1.msra.mxu0 0.0
      %6043 = vmatprep.subr.mxu0 0.0
      %6044 = vmatpush1.msra.mxu0 0.0
      %6045 = vmatprep.subr.mxu0 0.0
      %6046 = vmatpush1.msra.mxu0 0.0
      %6047 = vmatprep.subr.mxu0 0.0
      %6048 = vmatpush1.msra.mxu0 0.0
      %6049 = vmatprep.subr.mxu0 0.0
      %6050 = vmatpush1.msra.mxu0 0.0
      %6051 = vmatprep.subr.mxu0 0.0
      %6052 = vmatpush1.msra.mxu0 0.0
      %6053 = vmatprep.subr.mxu0 0.0
      %6054 = vmatpush1.msra.mxu0 0.0
      %6055 = vmatprep.subr.mxu0 0.0
      %6056 = vmatpush1.msra.mxu0 0.0
      %6057 = vmatprep.subr.mxu0 0.0
      %6058 = vmatpush1.msra.mxu0 0.0
      %6059 = vmatprep.subr.mxu0 0.0
      %6060 = vmatpush1.msra.mxu0 0.0
      %6061 = vmatprep.subr.mxu0 0.0
      %6062 = vmatpush1.msra.mxu0 0.0
      %6063 = vmatprep.subr.mxu0 0.0
      %6064 = vmatpush1.msra.mxu0 0.0
      %6065 = vmatprep.subr.mxu0 0.0
      %6066 = vmatpush1.msra.mxu0 0.0
      %6067 = vmatprep.subr.mxu0 0.0
      %6068 = vmatpush1.msra.mxu0 0.0
      %6069 = vmatprep.subr.mxu0 0.0
      %6070 = vmatpush1.msra.mxu0 0.0
      %6071 = vmatprep.subr.mxu0 0.0
      %6072 = vmatpush1.msra.mxu0 0.0
      %6073 = vmatprep.subr.mxu0 0.0
      %6074 = vmatpush1.msra.mxu0 0.0
      %6075 = vmatprep.subr.mxu0 0.0
      %6076 = vmatpush1.msra.mxu0 0.0
      %6077 = vmatprep.subr.mxu0 0.0
      %6078 = vmatpush1.msra.mxu0 0.0
      %6079 = vmatprep.subr.mxu0 0.0
      %6080 = vmatpush1.msra.mxu0 0.0
      %6081 = vmatprep.mubr.f32.mxu0 0.0
      %6082 = vmatmul.mubr.f32.gmra.mrb[0].mxu0 %v6015
      %v6083 = vpop.f32.mrb[0].mxu0
      %v6084 = vadd.f32 0.0, %v6083
      %v6085 = vpop.f32.mrb[0].mxu0
      %v6086 = vadd.f32 0.0, %v6085
      %6087 = vdwg.mxu0
      %v6088 = vadd.f32 %v6011, %v6084
      %v6089 = vadd.f32 %v6012, %v6086
      %6090 = vrot.lane.b32.xlu0 %v5324, 48
      %v6091 = vpop.permute.xlu0 %6090
      %v6092 = vsel %vm837, %v6091, 0
      %6094 = vmatprep.subr.mxu0 %v5255
      %6095 = vmatpush1.msra.mxu0 %v5254
      %6096 = vmatprep.subr.mxu0 0.0
      %6097 = vmatpush1.msra.mxu0 0.0
      %6098 = vmatprep.subr.mxu0 0.0
      %6099 = vmatpush1.msra.mxu0 0.0
      %6100 = vmatprep.subr.mxu0 0.0
      %6101 = vmatpush1.msra.mxu0 0.0
      %6102 = vmatprep.subr.mxu0 0.0
      %6103 = vmatpush1.msra.mxu0 0.0
      %6104 = vmatprep.subr.mxu0 0.0
      %6105 = vmatpush1.msra.mxu0 0.0
      %6106 = vmatprep.subr.mxu0 0.0
      %6107 = vmatpush1.msra.mxu0 0.0
      %6108 = vmatprep.subr.mxu0 0.0
      %6109 = vmatpush1.msra.mxu0 0.0
      %6110 = vmatprep.subr.mxu0 0.0
      %6111 = vmatpush1.msra.mxu0 0.0
      %6112 = vmatprep.subr.mxu0 0.0
      %6113 = vmatpush1.msra.mxu0 0.0
      %6114 = vmatprep.subr.mxu0 0.0
      %6115 = vmatpush1.msra.mxu0 0.0
      %6116 = vmatprep.subr.mxu0 0.0
      %6117 = vmatpush1.msra.mxu0 0.0
      %6118 = vmatprep.subr.mxu0 0.0
      %6119 = vmatpush1.msra.mxu0 0.0
      %6120 = vmatprep.subr.mxu0 0.0
      %6121 = vmatpush1.msra.mxu0 0.0
      %6122 = vmatprep.subr.mxu0 0.0
      %6123 = vmatpush1.msra.mxu0 0.0
      %6124 = vmatprep.subr.mxu0 0.0
      %6125 = vmatpush1.msra.mxu0 0.0
      %6126 = vmatprep.subr.mxu0 0.0
      %6127 = vmatpush1.msra.mxu0 0.0
      %6128 = vmatprep.subr.mxu0 0.0
      %6129 = vmatpush1.msra.mxu0 0.0
      %6130 = vmatprep.subr.mxu0 0.0
      %6131 = vmatpush1.msra.mxu0 0.0
      %6132 = vmatprep.subr.mxu0 0.0
      %6133 = vmatpush1.msra.mxu0 0.0
      %6134 = vmatprep.subr.mxu0 0.0
      %6135 = vmatpush1.msra.mxu0 0.0
      %6136 = vmatprep.subr.mxu0 0.0
      %6137 = vmatpush1.msra.mxu0 0.0
      %6138 = vmatprep.subr.mxu0 0.0
      %6139 = vmatpush1.msra.mxu0 0.0
      %6140 = vmatprep.subr.mxu0 0.0
      %6141 = vmatpush1.msra.mxu0 0.0
      %6142 = vmatprep.subr.mxu0 0.0
      %6143 = vmatpush1.msra.mxu0 0.0
      %6144 = vmatprep.subr.mxu0 0.0
      %6145 = vmatpush1.msra.mxu0 0.0
      %6146 = vmatprep.subr.mxu0 0.0
      %6147 = vmatpush1.msra.mxu0 0.0
      %6148 = vmatprep.subr.mxu0 0.0
      %6149 = vmatpush1.msra.mxu0 0.0
      %6150 = vmatprep.subr.mxu0 0.0
      %6151 = vmatpush1.msra.mxu0 0.0
      %6152 = vmatprep.subr.mxu0 0.0
      %6153 = vmatpush1.msra.mxu0 0.0
      %6154 = vmatprep.subr.mxu0 0.0
      %6155 = vmatpush1.msra.mxu0 0.0
      %6156 = vmatprep.subr.mxu0 0.0
      %6157 = vmatpush1.msra.mxu0 0.0
      %6158 = vmatprep.mubr.f32.mxu0 0.0
      %6159 = vmatmul.mubr.f32.gmra.mrb[0].mxu0 %v6092
      %v6160 = vpop.f32.mrb[0].mxu0
      %v6161 = vadd.f32 0.0, %v6160
      %v6162 = vpop.f32.mrb[0].mxu0
      %v6163 = vadd.f32 0.0, %v6162
      %6164 = vdwg.mxu0
      %v6165 = vadd.f32 %v6088, %v6161
      %v6166 = vadd.f32 %v6089, %v6163
      %6167 = vrot.lane.b32.xlu0 %v5324, 40
      %v6168 = vpop.permute.xlu0 %6167
      %v6169 = vsel %vm837, %v6168, 0
      %6171 = vmatprep.subr.mxu0 %v5263
      %6172 = vmatpush1.msra.mxu0 %v5262
      %6173 = vmatprep.subr.mxu0 0.0
      %6174 = vmatpush1.msra.mxu0 0.0
      %6175 = vmatprep.subr.mxu0 0.0
      %6176 = vmatpush1.msra.mxu0 0.0
      %6177 = vmatprep.subr.mxu0 0.0
      %6178 = vmatpush1.msra.mxu0 0.0
      %6179 = vmatprep.subr.mxu0 0.0
      %6180 = vmatpush1.msra.mxu0 0.0
      %6181 = vmatprep.subr.mxu0 0.0
      %6182 = vmatpush1.msra.mxu0 0.0
      %6183 = vmatprep.subr.mxu0 0.0
      %6184 = vmatpush1.msra.mxu0 0.0
      %6185 = vmatprep.subr.mxu0 0.0
      %6186 = vmatpush1.msra.mxu0 0.0
      %6187 = vmatprep.subr.mxu0 0.0
      %6188 = vmatpush1.msra.mxu0 0.0
      %6189 = vmatprep.subr.mxu0 0.0
      %6190 = vmatpush1.msra.mxu0 0.0
      %6191 = vmatprep.subr.mxu0 0.0
      %6192 = vmatpush1.msra.mxu0 0.0
      %6193 = vmatprep.subr.mxu0 0.0
      %6194 = vmatpush1.msra.mxu0 0.0
      %6195 = vmatprep.subr.mxu0 0.0
      %6196 = vmatpush1.msra.mxu0 0.0
      %6197 = vmatprep.subr.mxu0 0.0
      %6198 = vmatpush1.msra.mxu0 0.0
      %6199 = vmatprep.subr.mxu0 0.0
      %6200 = vmatpush1.msra.mxu0 0.0
      %6201 = vmatprep.subr.mxu0 0.0
      %6202 = vmatpush1.msra.mxu0 0.0
      %6203 = vmatprep.subr.mxu0 0.0
      %6204 = vmatpush1.msra.mxu0 0.0
      %6205 = vmatprep.subr.mxu0 0.0
      %6206 = vmatpush1.msra.mxu0 0.0
      %6207 = vmatprep.subr.mxu0 0.0
      %6208 = vmatpush1.msra.mxu0 0.0
      %6209 = vmatprep.subr.mxu0 0.0
      %6210 = vmatpush1.msra.mxu0 0.0
      %6211 = vmatprep.subr.mxu0 0.0
      %6212 = vmatpush1.msra.mxu0 0.0
      %6213 = vmatprep.subr.mxu0 0.0
      %6214 = vmatpush1.msra.mxu0 0.0
      %6215 = vmatprep.subr.mxu0 0.0
      %6216 = vmatpush1.msra.mxu0 0.0
      %6217 = vmatprep.subr.mxu0 0.0
      %6218 = vmatpush1.msra.mxu0 0.0
      %6219 = vmatprep.subr.mxu0 0.0
      %6220 = vmatpush1.msra.mxu0 0.0
      %6221 = vmatprep.subr.mxu0 0.0
      %6222 = vmatpush1.msra.mxu0 0.0
      %6223 = vmatprep.subr.mxu0 0.0
      %6224 = vmatpush1.msra.mxu0 0.0
      %6225 = vmatprep.subr.mxu0 0.0
      %6226 = vmatpush1.msra.mxu0 0.0
      %6227 = vmatprep.subr.mxu0 0.0
      %6228 = vmatpush1.msra.mxu0 0.0
      %6229 = vmatprep.subr.mxu0 0.0
      %6230 = vmatpush1.msra.mxu0 0.0
      %6231 = vmatprep.subr.mxu0 0.0
      %6232 = vmatpush1.msra.mxu0 0.0
      %6233 = vmatprep.subr.mxu0 0.0
      %6234 = vmatpush1.msra.mxu0 0.0
      %6235 = vmatprep.mubr.f32.mxu0 0.0
      %6236 = vmatmul.mubr.f32.gmra.mrb[0].mxu0 %v6169
      %v6237 = vpop.f32.mrb[0].mxu0
      %v6238 = vadd.f32 0.0, %v6237
      %v6239 = vpop.f32.mrb[0].mxu0
      %v6240 = vadd.f32 0.0, %v6239
      %6241 = vdwg.mxu0
      %v6242 = vadd.f32 %v6165, %v6238
      %v6243 = vadd.f32 %v6166, %v6240
      %6244 = vrot.lane.b32.xlu0 %v5324, 32
      %v6245 = vpop.permute.xlu0 %6244
      %v6246 = vsel %vm837, %v6245, 0
      %6248 = vmatprep.subr.mxu0 %v5271
      %6249 = vmatpush1.msra.mxu0 %v5270
      %6250 = vmatprep.subr.mxu0 0.0
      %6251 = vmatpush1.msra.mxu0 0.0
      %6252 = vmatprep.subr.mxu0 0.0
      %6253 = vmatpush1.msra.mxu0 0.0
      %6254 = vmatprep.subr.mxu0 0.0
      %6255 = vmatpush1.msra.mxu0 0.0
      %6256 = vmatprep.subr.mxu0 0.0
      %6257 = vmatpush1.msra.mxu0 0.0
      %6258 = vmatprep.subr.mxu0 0.0
      %6259 = vmatpush1.msra.mxu0 0.0
      %6260 = vmatprep.subr.mxu0 0.0
      %6261 = vmatpush1.msra.mxu0 0.0
      %6262 = vmatprep.subr.mxu0 0.0
      %6263 = vmatpush1.msra.mxu0 0.0
      %6264 = vmatprep.subr.mxu0 0.0
      %6265 = vmatpush1.msra.mxu0 0.0
      %6266 = vmatprep.subr.mxu0 0.0
      %6267 = vmatpush1.msra.mxu0 0.0
      %6268 = vmatprep.subr.mxu0 0.0
      %6269 = vmatpush1.msra.mxu0 0.0
      %6270 = vmatprep.subr.mxu0 0.0
      %6271 = vmatpush1.msra.mxu0 0.0
      %6272 = vmatprep.subr.mxu0 0.0
      %6273 = vmatpush1.msra.mxu0 0.0
      %6274 = vmatprep.subr.mxu0 0.0
      %6275 = vmatpush1.msra.mxu0 0.0
      %6276 = vmatprep.subr.mxu0 0.0
      %6277 = vmatpush1.msra.mxu0 0.0
      %6278 = vmatprep.subr.mxu0 0.0
      %6279 = vmatpush1.msra.mxu0 0.0
      %6280 = vmatprep.subr.mxu0 0.0
      %6281 = vmatpush1.msra.mxu0 0.0
      %6282 = vmatprep.subr.mxu0 0.0
      %6283 = vmatpush1.msra.mxu0 0.0
      %6284 = vmatprep.subr.mxu0 0.0
      %6285 = vmatpush1.msra.mxu0 0.0
      %6286 = vmatprep.subr.mxu0 0.0
      %6287 = vmatpush1.msra.mxu0 0.0
      %6288 = vmatprep.subr.mxu0 0.0
      %6289 = vmatpush1.msra.mxu0 0.0
      %6290 = vmatprep.subr.mxu0 0.0
      %6291 = vmatpush1.msra.mxu0 0.0
      %6292 = vmatprep.subr.mxu0 0.0
      %6293 = vmatpush1.msra.mxu0 0.0
      %6294 = vmatprep.subr.mxu0 0.0
      %6295 = vmatpush1.msra.mxu0 0.0
      %6296 = vmatprep.subr.mxu0 0.0
      %6297 = vmatpush1.msra.mxu0 0.0
      %6298 = vmatprep.subr.mxu0 0.0
      %6299 = vmatpush1.msra.mxu0 0.0
      %6300 = vmatprep.subr.mxu0 0.0
      %6301 = vmatpush1.msra.mxu0 0.0
      %6302 = vmatprep.subr.mxu0 0.0
      %6303 = vmatpush1.msra.mxu0 0.0
      %6304 = vmatprep.subr.mxu0 0.0
      %6305 = vmatpush1.msra.mxu0 0.0
      %6306 = vmatprep.subr.mxu0 0.0
      %6307 = vmatpush1.msra.mxu0 0.0
      %6308 = vmatprep.subr.mxu0 0.0
      %6309 = vmatpush1.msra.mxu0 0.0
      %6310 = vmatprep.subr.mxu0 0.0
      %6311 = vmatpush1.msra.mxu0 0.0
      %6312 = vmatprep.mubr.f32.mxu0 0.0
      %6313 = vmatmul.mubr.f32.gmra.mrb[0].mxu0 %v6246
      %v6314 = vpop.f32.mrb[0].mxu0
      %v6315 = vadd.f32 0.0, %v6314
      %v6316 = vpop.f32.mrb[0].mxu0
      %v6317 = vadd.f32 0.0, %v6316
      %6318 = vdwg.mxu0
      %v6319 = vadd.f32 %v6242, %v6315
      %v6320 = vadd.f32 %v6243, %v6317
      %6321 = vrot.lane.b32.xlu0 %v5324, 24
      %v6322 = vpop.permute.xlu0 %6321
      %v6323 = vsel %vm837, %v6322, 0
      %6325 = vmatprep.subr.mxu0 %v5273
      %6326 = vmatpush1.msra.mxu0 %v5272
      %6327 = vmatprep.subr.mxu0 0.0
      %6328 = vmatpush1.msra.mxu0 0.0
      %6329 = vmatprep.subr.mxu0 0.0
      %6330 = vmatpush1.msra.mxu0 0.0
      %6331 = vmatprep.subr.mxu0 0.0
      %6332 = vmatpush1.msra.mxu0 0.0
      %6333 = vmatprep.subr.mxu0 0.0
      %6334 = vmatpush1.msra.mxu0 0.0
      %6335 = vmatprep.subr.mxu0 0.0
      %6336 = vmatpush1.msra.mxu0 0.0
      %6337 = vmatprep.subr.mxu0 0.0
      %6338 = vmatpush1.msra.mxu0 0.0
      %6339 = vmatprep.subr.mxu0 0.0
      %6340 = vmatpush1.msra.mxu0 0.0
      %6341 = vmatprep.subr.mxu0 0.0
      %6342 = vmatpush1.msra.mxu0 0.0
      %6343 = vmatprep.subr.mxu0 0.0
      %6344 = vmatpush1.msra.mxu0 0.0
      %6345 = vmatprep.subr.mxu0 0.0
      %6346 = vmatpush1.msra.mxu0 0.0
      %6347 = vmatprep.subr.mxu0 0.0
      %6348 = vmatpush1.msra.mxu0 0.0
      %6349 = vmatprep.subr.mxu0 0.0
      %6350 = vmatpush1.msra.mxu0 0.0
      %6351 = vmatprep.subr.mxu0 0.0
      %6352 = vmatpush1.msra.mxu0 0.0
      %6353 = vmatprep.subr.mxu0 0.0
      %6354 = vmatpush1.msra.mxu0 0.0
      %6355 = vmatprep.subr.mxu0 0.0
      %6356 = vmatpush1.msra.mxu0 0.0
      %6357 = vmatprep.subr.mxu0 0.0
      %6358 = vmatpush1.msra.mxu0 0.0
      %6359 = vmatprep.subr.mxu0 0.0
      %6360 = vmatpush1.msra.mxu0 0.0
      %6361 = vmatprep.subr.mxu0 0.0
      %6362 = vmatpush1.msra.mxu0 0.0
      %6363 = vmatprep.subr.mxu0 0.0
      %6364 = vmatpush1.msra.mxu0 0.0
      %6365 = vmatprep.subr.mxu0 0.0
      %6366 = vmatpush1.msra.mxu0 0.0
      %6367 = vmatprep.subr.mxu0 0.0
      %6368 = vmatpush1.msra.mxu0 0.0
      %6369 = vmatprep.subr.mxu0 0.0
      %6370 = vmatpush1.msra.mxu0 0.0
      %6371 = vmatprep.subr.mxu0 0.0
      %6372 = vmatpush1.msra.mxu0 0.0
      %6373 = vmatprep.subr.mxu0 0.0
      %6374 = vmatpush1.msra.mxu0 0.0
      %6375 = vmatprep.subr.mxu0 0.0
      %6376 = vmatpush1.msra.mxu0 0.0
      %6377 = vmatprep.subr.mxu0 0.0
      %6378 = vmatpush1.msra.mxu0 0.0
      %6379 = vmatprep.subr.mxu0 0.0
      %6380 = vmatpush1.msra.mxu0 0.0
      %6381 = vmatprep.subr.mxu0 0.0
      %6382 = vmatpush1.msra.mxu0 0.0
      %6383 = vmatprep.subr.mxu0 0.0
      %6384 = vmatpush1.msra.mxu0 0.0
      %6385 = vmatprep.subr.mxu0 0.0
      %6386 = vmatpush1.msra.mxu0 0.0
      %6387 = vmatprep.subr.mxu0 0.0
      %6388 = vmatpush1.msra.mxu0 0.0
      %6389 = vmatprep.mubr.f32.mxu0 0.0
      %6390 = vmatmul.mubr.f32.gmra.mrb[0].mxu0 %v6323
      %v6391 = vpop.f32.mrb[0].mxu0
      %v6392 = vadd.f32 0.0, %v6391
      %v6393 = vpop.f32.mrb[0].mxu0
      %v6394 = vadd.f32 0.0, %v6393
      %6395 = vdwg.mxu0
      %v6396 = vadd.f32 %v6319, %v6392
      %v6397 = vadd.f32 %v6320, %v6394
      %6398 = vrot.lane.b32.xlu0 %v5324, 16
      %v6399 = vpop.permute.xlu0 %6398
      %v6400 = vsel %vm837, %v6399, 0
      %6402 = vmatprep.subr.mxu0 %v5281
      %6403 = vmatpush1.msra.mxu0 %v5280
      %6404 = vmatprep.subr.mxu0 0.0
      %6405 = vmatpush1.msra.mxu0 0.0
      %6406 = vmatprep.subr.mxu0 0.0
      %6407 = vmatpush1.msra.mxu0 0.0
      %6408 = vmatprep.subr.mxu0 0.0
      %6409 = vmatpush1.msra.mxu0 0.0
      %6410 = vmatprep.subr.mxu0 0.0
      %6411 = vmatpush1.msra.mxu0 0.0
      %6412 = vmatprep.subr.mxu0 0.0
      %6413 = vmatpush1.msra.mxu0 0.0
      %6414 = vmatprep.subr.mxu0 0.0
      %6415 = vmatpush1.msra.mxu0 0.0
      %6416 = vmatprep.subr.mxu0 0.0
      %6417 = vmatpush1.msra.mxu0 0.0
      %6418 = vmatprep.subr.mxu0 0.0
      %6419 = vmatpush1.msra.mxu0 0.0
      %6420 = vmatprep.subr.mxu0 0.0
      %6421 = vmatpush1.msra.mxu0 0.0
      %6422 = vmatprep.subr.mxu0 0.0
      %6423 = vmatpush1.msra.mxu0 0.0
      %6424 = vmatprep.subr.mxu0 0.0
      %6425 = vmatpush1.msra.mxu0 0.0
      %6426 = vmatprep.subr.mxu0 0.0
      %6427 = vmatpush1.msra.mxu0 0.0
      %6428 = vmatprep.subr.mxu0 0.0
      %6429 = vmatpush1.msra.mxu0 0.0
      %6430 = vmatprep.subr.mxu0 0.0
      %6431 = vmatpush1.msra.mxu0 0.0
      %6432 = vmatprep.subr.mxu0 0.0
      %6433 = vmatpush1.msra.mxu0 0.0
      %6434 = vmatprep.subr.mxu0 0.0
      %6435 = vmatpush1.msra.mxu0 0.0
      %6436 = vmatprep.subr.mxu0 0.0
      %6437 = vmatpush1.msra.mxu0 0.0
      %6438 = vmatprep.subr.mxu0 0.0
      %6439 = vmatpush1.msra.mxu0 0.0
      %6440 = vmatprep.subr.mxu0 0.0
      %6441 = vmatpush1.msra.mxu0 0.0
      %6442 = vmatprep.subr.mxu0 0.0
      %6443 = vmatpush1.msra.mxu0 0.0
      %6444 = vmatprep.subr.mxu0 0.0
      %6445 = vmatpush1.msra.mxu0 0.0
      %6446 = vmatprep.subr.mxu0 0.0
      %6447 = vmatpush1.msra.mxu0 0.0
      %6448 = vmatprep.subr.mxu0 0.0
      %6449 = vmatpush1.msra.mxu0 0.0
      %6450 = vmatprep.subr.mxu0 0.0
      %6451 = vmatpush1.msra.mxu0 0.0
      %6452 = vmatprep.subr.mxu0 0.0
      %6453 = vmatpush1.msra.mxu0 0.0
      %6454 = vmatprep.subr.mxu0 0.0
      %6455 = vmatpush1.msra.mxu0 0.0
      %6456 = vmatprep.subr.mxu0 0.0
      %6457 = vmatpush1.msra.mxu0 0.0
      %6458 = vmatprep.subr.mxu0 0.0
      %6459 = vmatpush1.msra.mxu0 0.0
      %6460 = vmatprep.subr.mxu0 0.0
      %6461 = vmatpush1.msra.mxu0 0.0
      %6462 = vmatprep.subr.mxu0 0.0
      %6463 = vmatpush1.msra.mxu0 0.0
      %6464 = vmatprep.subr.mxu0 0.0
      %6465 = vmatpush1.msra.mxu0 0.0
      %6466 = vmatprep.mubr.f32.mxu0 0.0
      %6467 = vmatmul.mubr.f32.gmra.mrb[0].mxu0 %v6400
      %v6468 = vpop.f32.mrb[0].mxu0
      %v6469 = vadd.f32 0.0, %v6468
      %v6470 = vpop.f32.mrb[0].mxu0
      %v6471 = vadd.f32 0.0, %v6470
      %6472 = vdwg.mxu0
      %v6473 = vadd.f32 %v6396, %v6469
      %v6474 = vadd.f32 %v6397, %v6471
      %6475 = vrot.lane.b32.xlu0 %v5324, 8
      %v6476 = vpop.permute.xlu0 %6475
      %v6477 = vsel %vm837, %v6476, 0
      %6479 = vmatprep.subr.mxu0 %v5289
      %6480 = vmatpush1.msra.mxu0 %v5288
      %6481 = vmatprep.subr.mxu0 0.0
      %6482 = vmatpush1.msra.mxu0 0.0
      %6483 = vmatprep.subr.mxu0 0.0
      %6484 = vmatpush1.msra.mxu0 0.0
      %6485 = vmatprep.subr.mxu0 0.0
      %6486 = vmatpush1.msra.mxu0 0.0
      %6487 = vmatprep.subr.mxu0 0.0
      %6488 = vmatpush1.msra.mxu0 0.0
      %6489 = vmatprep.subr.mxu0 0.0
      %6490 = vmatpush1.msra.mxu0 0.0
      %6491 = vmatprep.subr.mxu0 0.0
      %6492 = vmatpush1.msra.mxu0 0.0
      %6493 = vmatprep.subr.mxu0 0.0
      %6494 = vmatpush1.msra.mxu0 0.0
      %6495 = vmatprep.subr.mxu0 0.0
      %6496 = vmatpush1.msra.mxu0 0.0
      %6497 = vmatprep.subr.mxu0 0.0
      %6498 = vmatpush1.msra.mxu0 0.0
      %6499 = vmatprep.subr.mxu0 0.0
      %6500 = vmatpush1.msra.mxu0 0.0
      %6501 = vmatprep.subr.mxu0 0.0
      %6502 = vmatpush1.msra.mxu0 0.0
      %6503 = vmatprep.subr.mxu0 0.0
      %6504 = vmatpush1.msra.mxu0 0.0
      %6505 = vmatprep.subr.mxu0 0.0
      %6506 = vmatpush1.msra.mxu0 0.0
      %6507 = vmatprep.subr.mxu0 0.0
      %6508 = vmatpush1.msra.mxu0 0.0
      %6509 = vmatprep.subr.mxu0 0.0
      %6510 = vmatpush1.msra.mxu0 0.0
      %6511 = vmatprep.subr.mxu0 0.0
      %6512 = vmatpush1.msra.mxu0 0.0
      %6513 = vmatprep.subr.mxu0 0.0
      %6514 = vmatpush1.msra.mxu0 0.0
      %6515 = vmatprep.subr.mxu0 0.0
      %6516 = vmatpush1.msra.mxu0 0.0
      %6517 = vmatprep.subr.mxu0 0.0
      %6518 = vmatpush1.msra.mxu0 0.0
      %6519 = vmatprep.subr.mxu0 0.0
      %6520 = vmatpush1.msra.mxu0 0.0
      %6521 = vmatprep.subr.mxu0 0.0
      %6522 = vmatpush1.msra.mxu0 0.0
      %6523 = vmatprep.subr.mxu0 0.0
      %6524 = vmatpush1.msra.mxu0 0.0
      %6525 = vmatprep.subr.mxu0 0.0
      %6526 = vmatpush1.msra.mxu0 0.0
      %6527 = vmatprep.subr.mxu0 0.0
      %6528 = vmatpush1.msra.mxu0 0.0
      %6529 = vmatprep.subr.mxu0 0.0
      %6530 = vmatpush1.msra.mxu0 0.0
      %6531 = vmatprep.subr.mxu0 0.0
      %6532 = vmatpush1.msra.mxu0 0.0
      %6533 = vmatprep.subr.mxu0 0.0
      %6534 = vmatpush1.msra.mxu0 0.0
      %6535 = vmatprep.subr.mxu0 0.0
      %6536 = vmatpush1.msra.mxu0 0.0
      %6537 = vmatprep.subr.mxu0 0.0
      %6538 = vmatpush1.msra.mxu0 0.0
      %6539 = vmatprep.subr.mxu0 0.0
      %6540 = vmatpush1.msra.mxu0 0.0
      %6541 = vmatprep.subr.mxu0 0.0
      %6542 = vmatpush1.msra.mxu0 0.0
      %6543 = vmatprep.mubr.f32.mxu0 0.0
      %6544 = vmatmul.mubr.f32.gmra.mrb[0].mxu0 %v6477
      %v6545 = vpop.f32.mrb[0].mxu0
      %v6546 = vadd.f32 0.0, %v6545
      %v6547 = vpop.f32.mrb[0].mxu0
      %v6548 = vadd.f32 0.0, %v6547
      %6549 = vdwg.mxu0
      %v6550 = vadd.f32 %v6473, %v6546
      %v6551 = vadd.f32 %v6474, %v6548
      %v6552 = vld [vmem:[%s6 + $0x8] sm:$0xff]
      %v6554 = vsel %vm837, %v6552, 0
      %6556 = vmatprep.subr.mxu0 %v5297
      %6557 = vmatpush1.msra.mxu0 %v5296
      %6558 = vmatprep.subr.mxu0 0.0
      %6559 = vmatpush1.msra.mxu0 0.0
      %6560 = vmatprep.subr.mxu0 0.0
      %6561 = vmatpush1.msra.mxu0 0.0
      %6562 = vmatprep.subr.mxu0 0.0
      %6563 = vmatpush1.msra.mxu0 0.0
      %6564 = vmatprep.subr.mxu0 0.0
      %6565 = vmatpush1.msra.mxu0 0.0
      %6566 = vmatprep.subr.mxu0 0.0
      %6567 = vmatpush1.msra.mxu0 0.0
      %6568 = vmatprep.subr.mxu0 0.0
      %6569 = vmatpush1.msra.mxu0 0.0
      %6570 = vmatprep.subr.mxu0 0.0
      %6571 = vmatpush1.msra.mxu0 0.0
      %6572 = vmatprep.subr.mxu0 0.0
      %6573 = vmatpush1.msra.mxu0 0.0
      %6574 = vmatprep.subr.mxu0 0.0
      %6575 = vmatpush1.msra.mxu0 0.0
      %6576 = vmatprep.subr.mxu0 0.0
      %6577 = vmatpush1.msra.mxu0 0.0
      %6578 = vmatprep.subr.mxu0 0.0
      %6579 = vmatpush1.msra.mxu0 0.0
      %6580 = vmatprep.subr.mxu0 0.0
      %6581 = vmatpush1.msra.mxu0 0.0
      %6582 = vmatprep.subr.mxu0 0.0
      %6583 = vmatpush1.msra.mxu0 0.0
      %6584 = vmatprep.subr.mxu0 0.0
      %6585 = vmatpush1.msra.mxu0 0.0
      %6586 = vmatprep.subr.mxu0 0.0
      %6587 = vmatpush1.msra.mxu0 0.0
      %6588 = vmatprep.subr.mxu0 0.0
      %6589 = vmatpush1.msra.mxu0 0.0
      %6590 = vmatprep.subr.mxu0 0.0
      %6591 = vmatpush1.msra.mxu0 0.0
      %6592 = vmatprep.subr.mxu0 0.0
      %6593 = vmatpush1.msra.mxu0 0.0
      %6594 = vmatprep.subr.mxu0 0.0
      %6595 = vmatpush1.msra.mxu0 0.0
      %6596 = vmatprep.subr.mxu0 0.0
      %6597 = vmatpush1.msra.mxu0 0.0
      %6598 = vmatprep.subr.mxu0 0.0
      %6599 = vmatpush1.msra.mxu0 0.0
      %6600 = vmatprep.subr.mxu0 0.0
      %6601 = vmatpush1.msra.mxu0 0.0
      %6602 = vmatprep.subr.mxu0 0.0
      %6603 = vmatpush1.msra.mxu0 0.0
      %6604 = vmatprep.subr.mxu0 0.0
      %6605 = vmatpush1.msra.mxu0 0.0
      %6606 = vmatprep.subr.mxu0 0.0
      %6607 = vmatpush1.msra.mxu0 0.0
      %6608 = vmatprep.subr.mxu0 0.0
      %6609 = vmatpush1.msra.mxu0 0.0
      %6610 = vmatprep.subr.mxu0 0.0
      %6611 = vmatpush1.msra.mxu0 0.0
      %6612 = vmatprep.subr.mxu0 0.0
      %6613 = vmatpush1.msra.mxu0 0.0
      %6614 = vmatprep.subr.mxu0 0.0
      %6615 = vmatpush1.msra.mxu0 0.0
      %6616 = vmatprep.subr.mxu0 0.0
      %6617 = vmatpush1.msra.mxu0 0.0
      %6618 = vmatprep.subr.mxu0 0.0
      %6619 = vmatpush1.msra.mxu0 0.0
      %6620 = vmatprep.mubr.f32.mxu0 0.0
      %6621 = vmatmul.mubr.f32.gmra.mrb[0].mxu0 %v6554
      %v6622 = vpop.f32.mrb[0].mxu0
      %v6623 = vadd.f32 0.0, %v6622
      %v6624 = vpop.f32.mrb[0].mxu0
      %v6625 = vadd.f32 0.0, %v6624
      %6626 = vdwg.mxu0
      %v6627 = vadd.f32 %v6550, %v6623
      %v6628 = vadd.f32 %v6551, %v6625
      %6629 = vrot.lane.b32.xlu0 %v6552, 120
      %v6630 = vpop.permute.xlu0 %6629
      %v6631 = vsel %vm837, %v6630, 0
      %6633 = vmatprep.subr.mxu0 %v5305
      %6634 = vmatpush1.msra.mxu0 %v5304
      %6635 = vmatprep.subr.mxu0 0.0
      %6636 = vmatpush1.msra.mxu0 0.0
      %6637 = vmatprep.subr.mxu0 0.0
      %6638 = vmatpush1.msra.mxu0 0.0
      %6639 = vmatprep.subr.mxu0 0.0
      %6640 = vmatpush1.msra.mxu0 0.0
      %6641 = vmatprep.subr.mxu0 0.0
      %6642 = vmatpush1.msra.mxu0 0.0
      %6643 = vmatprep.subr.mxu0 0.0
      %6644 = vmatpush1.msra.mxu0 0.0
      %6645 = vmatprep.subr.mxu0 0.0
      %6646 = vmatpush1.msra.mxu0 0.0
      %6647 = vmatprep.subr.mxu0 0.0
      %6648 = vmatpush1.msra.mxu0 0.0
      %6649 = vmatprep.subr.mxu0 0.0
      %6650 = vmatpush1.msra.mxu0 0.0
      %6651 = vmatprep.subr.mxu0 0.0
      %6652 = vmatpush1.msra.mxu0 0.0
      %6653 = vmatprep.subr.mxu0 0.0
      %6654 = vmatpush1.msra.mxu0 0.0
      %6655 = vmatprep.subr.mxu0 0.0
      %6656 = vmatpush1.msra.mxu0 0.0
      %6657 = vmatprep.subr.mxu0 0.0
      %6658 = vmatpush1.msra.mxu0 0.0
      %6659 = vmatprep.subr.mxu0 0.0
      %6660 = vmatpush1.msra.mxu0 0.0
      %6661 = vmatprep.subr.mxu0 0.0
      %6662 = vmatpush1.msra.mxu0 0.0
      %6663 = vmatprep.subr.mxu0 0.0
      %6664 = vmatpush1.msra.mxu0 0.0
      %6665 = vmatprep.subr.mxu0 0.0
      %6666 = vmatpush1.msra.mxu0 0.0
      %6667 = vmatprep.subr.mxu0 0.0
      %6668 = vmatpush1.msra.mxu0 0.0
      %6669 = vmatprep.subr.mxu0 0.0
      %6670 = vmatpush1.msra.mxu0 0.0
      %6671 = vmatprep.subr.mxu0 0.0
      %6672 = vmatpush1.msra.mxu0 0.0
      %6673 = vmatprep.subr.mxu0 0.0
      %6674 = vmatpush1.msra.mxu0 0.0
      %6675 = vmatprep.subr.mxu0 0.0
      %6676 = vmatpush1.msra.mxu0 0.0
      %6677 = vmatprep.subr.mxu0 0.0
      %6678 = vmatpush1.msra.mxu0 0.0
      %6679 = vmatprep.subr.mxu0 0.0
      %6680 = vmatpush1.msra.mxu0 0.0
      %6681 = vmatprep.subr.mxu0 0.0
      %6682 = vmatpush1.msra.mxu0 0.0
      %6683 = vmatprep.subr.mxu0 0.0
      %6684 = vmatpush1.msra.mxu0 0.0
      %6685 = vmatprep.subr.mxu0 0.0
      %6686 = vmatpush1.msra.mxu0 0.0
      %6687 = vmatprep.subr.mxu0 0.0
      %6688 = vmatpush1.msra.mxu0 0.0
      %6689 = vmatprep.subr.mxu0 0.0
      %6690 = vmatpush1.msra.mxu0 0.0
      %6691 = vmatprep.subr.mxu0 0.0
      %6692 = vmatpush1.msra.mxu0 0.0
      %6693 = vmatprep.subr.mxu0 0.0
      %6694 = vmatpush1.msra.mxu0 0.0
      %6695 = vmatprep.subr.mxu0 0.0
      %6696 = vmatpush1.msra.mxu0 0.0
      %6697 = vmatprep.mubr.f32.mxu0 0.0
      %6698 = vmatmul.mubr.f32.gmra.mrb[0].mxu0 %v6631
      %v6699 = vpop.f32.mrb[0].mxu0
      %v6700 = vadd.f32 0.0, %v6699
      %v6701 = vpop.f32.mrb[0].mxu0
      %v6702 = vadd.f32 0.0, %v6701
      %6703 = vdwg.mxu0
      %v6704 = vadd.f32 %v6627, %v6700
      %v6705 = vadd.f32 %v6628, %v6702
      %6706 = vrot.lane.b32.xlu0 %v6552, 112
      %v6707 = vpop.permute.xlu0 %6706
      %v6708 = vsel %vm837, %v6707, 0
      %6710 = vmatprep.subr.mxu0 %v5307
      %6711 = vmatpush1.msra.mxu0 %v5306
      %6712 = vmatprep.subr.mxu0 0.0
      %6713 = vmatpush1.msra.mxu0 0.0
      %6714 = vmatprep.subr.mxu0 0.0
      %6715 = vmatpush1.msra.mxu0 0.0
      %6716 = vmatprep.subr.mxu0 0.0
      %6717 = vmatpush1.msra.mxu0 0.0
      %6718 = vmatprep.subr.mxu0 0.0
      %6719 = vmatpush1.msra.mxu0 0.0
      %6720 = vmatprep.subr.mxu0 0.0
      %6721 = vmatpush1.msra.mxu0 0.0
      %6722 = vmatprep.subr.mxu0 0.0
      %6723 = vmatpush1.msra.mxu0 0.0
      %6724 = vmatprep.subr.mxu0 0.0
      %6725 = vmatpush1.msra.mxu0 0.0
      %6726 = vmatprep.subr.mxu0 0.0
      %6727 = vmatpush1.msra.mxu0 0.0
      %6728 = vmatprep.subr.mxu0 0.0
      %6729 = vmatpush1.msra.mxu0 0.0
      %6730 = vmatprep.subr.mxu0 0.0
      %6731 = vmatpush1.msra.mxu0 0.0
      %6732 = vmatprep.subr.mxu0 0.0
      %6733 = vmatpush1.msra.mxu0 0.0
      %6734 = vmatprep.subr.mxu0 0.0
      %6735 = vmatpush1.msra.mxu0 0.0
      %6736 = vmatprep.subr.mxu0 0.0
      %6737 = vmatpush1.msra.mxu0 0.0
      %6738 = vmatprep.subr.mxu0 0.0
      %6739 = vmatpush1.msra.mxu0 0.0
      %6740 = vmatprep.subr.mxu0 0.0
      %6741 = vmatpush1.msra.mxu0 0.0
      %6742 = vmatprep.subr.mxu0 0.0
      %6743 = vmatpush1.msra.mxu0 0.0
      %6744 = vmatprep.subr.mxu0 0.0
      %6745 = vmatpush1.msra.mxu0 0.0
      %6746 = vmatprep.subr.mxu0 0.0
      %6747 = vmatpush1.msra.mxu0 0.0
      %6748 = vmatprep.subr.mxu0 0.0
      %6749 = vmatpush1.msra.mxu0 0.0
      %6750 = vmatprep.subr.mxu0 0.0
      %6751 = vmatpush1.msra.mxu0 0.0
      %6752 = vmatprep.subr.mxu0 0.0
      %6753 = vmatpush1.msra.mxu0 0.0
      %6754 = vmatprep.subr.mxu0 0.0
      %6755 = vmatpush1.msra.mxu0 0.0
      %6756 = vmatprep.subr.mxu0 0.0
      %6757 = vmatpush1.msra.mxu0 0.0
      %6758 = vmatprep.subr.mxu0 0.0
      %6759 = vmatpush1.msra.mxu0 0.0
      %6760 = vmatprep.subr.mxu0 0.0
      %6761 = vmatpush1.msra.mxu0 0.0
      %6762 = vmatprep.subr.mxu0 0.0
      %6763 = vmatpush1.msra.mxu0 0.0
      %6764 = vmatprep.subr.mxu0 0.0
      %6765 = vmatpush1.msra.mxu0 0.0
      %6766 = vmatprep.subr.mxu0 0.0
      %6767 = vmatpush1.msra.mxu0 0.0
      %6768 = vmatprep.subr.mxu0 0.0
      %6769 = vmatpush1.msra.mxu0 0.0
      %6770 = vmatprep.subr.mxu0 0.0
      %6771 = vmatpush1.msra.mxu0 0.0
      %6772 = vmatprep.subr.mxu0 0.0
      %6773 = vmatpush1.msra.mxu0 0.0
      %6774 = vmatprep.mubr.f32.mxu0 0.0
      %6775 = vmatmul.mubr.f32.gmra.mrb[0].mxu0 %v6708
      %v6776 = vpop.f32.mrb[0].mxu0
      %v6777 = vadd.f32 0.0, %v6776
      %v6778 = vpop.f32.mrb[0].mxu0
      %v6779 = vadd.f32 0.0, %v6778
      %6780 = vdwg.mxu0
      %v6781 = vadd.f32 %v6704, %v6777
      %v6782 = vadd.f32 %v6705, %v6779
      %6783 = vrot.lane.b32.xlu0 %v6552, 104
      %v6784 = vpop.permute.xlu0 %6783
      %v6785 = vsel %vm837, %v6784, 0
      %6787 = vmatprep.subr.mxu0 %v5309
      %6788 = vmatpush1.msra.mxu0 %v5308
      %6789 = vmatprep.subr.mxu0 0.0
      %6790 = vmatpush1.msra.mxu0 0.0
      %6791 = vmatprep.subr.mxu0 0.0
      %6792 = vmatpush1.msra.mxu0 0.0
      %6793 = vmatprep.subr.mxu0 0.0
      %6794 = vmatpush1.msra.mxu0 0.0
      %6795 = vmatprep.subr.mxu0 0.0
      %6796 = vmatpush1.msra.mxu0 0.0
      %6797 = vmatprep.subr.mxu0 0.0
      %6798 = vmatpush1.msra.mxu0 0.0
      %6799 = vmatprep.subr.mxu0 0.0
      %6800 = vmatpush1.msra.mxu0 0.0
      %6801 = vmatprep.subr.mxu0 0.0
      %6802 = vmatpush1.msra.mxu0 0.0
      %6803 = vmatprep.subr.mxu0 0.0
      %6804 = vmatpush1.msra.mxu0 0.0
      %6805 = vmatprep.subr.mxu0 0.0
      %6806 = vmatpush1.msra.mxu0 0.0
      %6807 = vmatprep.subr.mxu0 0.0
      %6808 = vmatpush1.msra.mxu0 0.0
      %6809 = vmatprep.subr.mxu0 0.0
      %6810 = vmatpush1.msra.mxu0 0.0
      %6811 = vmatprep.subr.mxu0 0.0
      %6812 = vmatpush1.msra.mxu0 0.0
      %6813 = vmatprep.subr.mxu0 0.0
      %6814 = vmatpush1.msra.mxu0 0.0
      %6815 = vmatprep.subr.mxu0 0.0
      %6816 = vmatpush1.msra.mxu0 0.0
      %6817 = vmatprep.subr.mxu0 0.0
      %6818 = vmatpush1.msra.mxu0 0.0
      %6819 = vmatprep.subr.mxu0 0.0
      %6820 = vmatpush1.msra.mxu0 0.0
      %6821 = vmatprep.subr.mxu0 0.0
      %6822 = vmatpush1.msra.mxu0 0.0
      %6823 = vmatprep.subr.mxu0 0.0
      %6824 = vmatpush1.msra.mxu0 0.0
      %6825 = vmatprep.subr.mxu0 0.0
      %6826 = vmatpush1.msra.mxu0 0.0
      %6827 = vmatprep.subr.mxu0 0.0
      %6828 = vmatpush1.msra.mxu0 0.0
      %6829 = vmatprep.subr.mxu0 0.0
      %6830 = vmatpush1.msra.mxu0 0.0
      %6831 = vmatprep.subr.mxu0 0.0
      %6832 = vmatpush1.msra.mxu0 0.0
      %6833 = vmatprep.subr.mxu0 0.0
      %6834 = vmatpush1.msra.mxu0 0.0
      %6835 = vmatprep.subr.mxu0 0.0
      %6836 = vmatpush1.msra.mxu0 0.0
      %6837 = vmatprep.subr.mxu0 0.0
      %6838 = vmatpush1.msra.mxu0 0.0
      %6839 = vmatprep.subr.mxu0 0.0
      %6840 = vmatpush1.msra.mxu0 0.0
      %6841 = vmatprep.subr.mxu0 0.0
      %6842 = vmatpush1.msra.mxu0 0.0
      %6843 = vmatprep.subr.mxu0 0.0
      %6844 = vmatpush1.msra.mxu0 0.0
      %6845 = vmatprep.subr.mxu0 0.0
      %6846 = vmatpush1.msra.mxu0 0.0
      %6847 = vmatprep.subr.mxu0 0.0
      %6848 = vmatpush1.msra.mxu0 0.0
      %6849 = vmatprep.subr.mxu0 0.0
      %6850 = vmatpush1.msra.mxu0 0.0
      %6851 = vmatprep.mubr.f32.mxu0 0.0
      %6852 = vmatmul.mubr.f32.gmra.mrb[0].mxu0 %v6785
      %v6853 = vpop.f32.mrb[0].mxu0
      %v6854 = vadd.f32 0.0, %v6853
      %v6855 = vpop.f32.mrb[0].mxu0
      %v6856 = vadd.f32 0.0, %v6855
      %6857 = vdwg.mxu0
      %v6858 = vadd.f32 %v6781, %v6854
      %v6859 = vadd.f32 %v6782, %v6856
      %6860 = vrot.lane.b32.xlu0 %v6552, 96
      %v6861 = vpop.permute.xlu0 %6860
      %v6862 = vsel %vm837, %v6861, 0
      %6864 = vmatprep.subr.mxu0 %v5311
      %6865 = vmatpush1.msra.mxu0 %v5310
      %6866 = vmatprep.subr.mxu0 0.0
      %6867 = vmatpush1.msra.mxu0 0.0
      %6868 = vmatprep.subr.mxu0 0.0
      %6869 = vmatpush1.msra.mxu0 0.0
      %6870 = vmatprep.subr.mxu0 0.0
      %6871 = vmatpush1.msra.mxu0 0.0
      %6872 = vmatprep.subr.mxu0 0.0
      %6873 = vmatpush1.msra.mxu0 0.0
      %6874 = vmatprep.subr.mxu0 0.0
      %6875 = vmatpush1.msra.mxu0 0.0
      %6876 = vmatprep.subr.mxu0 0.0
      %6877 = vmatpush1.msra.mxu0 0.0
      %6878 = vmatprep.subr.mxu0 0.0
      %6879 = vmatpush1.msra.mxu0 0.0
      %6880 = vmatprep.subr.mxu0 0.0
      %6881 = vmatpush1.msra.mxu0 0.0
      %6882 = vmatprep.subr.mxu0 0.0
      %6883 = vmatpush1.msra.mxu0 0.0
      %6884 = vmatprep.subr.mxu0 0.0
      %6885 = vmatpush1.msra.mxu0 0.0
      %6886 = vmatprep.subr.mxu0 0.0
      %6887 = vmatpush1.msra.mxu0 0.0
      %6888 = vmatprep.subr.mxu0 0.0
      %6889 = vmatpush1.msra.mxu0 0.0
      %6890 = vmatprep.subr.mxu0 0.0
      %6891 = vmatpush1.msra.mxu0 0.0
      %6892 = vmatprep.subr.mxu0 0.0
      %6893 = vmatpush1.msra.mxu0 0.0
      %6894 = vmatprep.subr.mxu0 0.0
      %6895 = vmatpush1.msra.mxu0 0.0
      %6896 = vmatprep.subr.mxu0 0.0
      %6897 = vmatpush1.msra.mxu0 0.0
      %6898 = vmatprep.subr.mxu0 0.0
      %6899 = vmatpush1.msra.mxu0 0.0
      %6900 = vmatprep.subr.mxu0 0.0
      %6901 = vmatpush1.msra.mxu0 0.0
      %6902 = vmatprep.subr.mxu0 0.0
      %6903 = vmatpush1.msra.mxu0 0.0
      %6904 = vmatprep.subr.mxu0 0.0
      %6905 = vmatpush1.msra.mxu0 0.0
      %6906 = vmatprep.subr.mxu0 0.0
      %6907 = vmatpush1.msra.mxu0 0.0
      %6908 = vmatprep.subr.mxu0 0.0
      %6909 = vmatpush1.msra.mxu0 0.0
      %6910 = vmatprep.subr.mxu0 0.0
      %6911 = vmatpush1.msra.mxu0 0.0
      %6912 = vmatprep.subr.mxu0 0.0
      %6913 = vmatpush1.msra.mxu0 0.0
      %6914 = vmatprep.subr.mxu0 0.0
      %6915 = vmatpush1.msra.mxu0 0.0
      %6916 = vmatprep.subr.mxu0 0.0
      %6917 = vmatpush1.msra.mxu0 0.0
      %6918 = vmatprep.subr.mxu0 0.0
      %6919 = vmatpush1.msra.mxu0 0.0
      %6920 = vmatprep.subr.mxu0 0.0
      %6921 = vmatpush1.msra.mxu0 0.0
      %6922 = vmatprep.subr.mxu0 0.0
      %6923 = vmatpush1.msra.mxu0 0.0
      %6924 = vmatprep.subr.mxu0 0.0
      %6925 = vmatpush1.msra.mxu0 0.0
      %6926 = vmatprep.subr.mxu0 0.0
      %6927 = vmatpush1.msra.mxu0 0.0
      %6928 = vmatprep.mubr.f32.mxu0 0.0
      %6929 = vmatmul.mubr.f32.gmra.mrb[0].mxu0 %v6862
      %v6930 = vpop.f32.mrb[0].mxu0
      %v6931 = vadd.f32 0.0, %v6930
      %v6932 = vpop.f32.mrb[0].mxu0
      %v6933 = vadd.f32 0.0, %v6932
      %6934 = vdwg.mxu0
      %v6935 = vadd.f32 %v6858, %v6931
      %v6936 = vadd.f32 %v6859, %v6933
      %6937 = vrot.lane.b32.xlu0 %v6552, 88
      %v6938 = vpop.permute.xlu0 %6937
      %v6939 = vsel %vm837, %v6938, 0
      %6941 = vmatprep.subr.mxu0 %v5313
      %6942 = vmatpush1.msra.mxu0 %v5312
      %6943 = vmatprep.subr.mxu0 0.0
      %6944 = vmatpush1.msra.mxu0 0.0
      %6945 = vmatprep.subr.mxu0 0.0
      %6946 = vmatpush1.msra.mxu0 0.0
      %6947 = vmatprep.subr.mxu0 0.0
      %6948 = vmatpush1.msra.mxu0 0.0
      %6949 = vmatprep.subr.mxu0 0.0
      %6950 = vmatpush1.msra.mxu0 0.0
      %6951 = vmatprep.subr.mxu0 0.0
      %6952 = vmatpush1.msra.mxu0 0.0
      %6953 = vmatprep.subr.mxu0 0.0
      %6954 = vmatpush1.msra.mxu0 0.0
      %6955 = vmatprep.subr.mxu0 0.0
      %6956 = vmatpush1.msra.mxu0 0.0
      %6957 = vmatprep.subr.mxu0 0.0
      %6958 = vmatpush1.msra.mxu0 0.0
      %6959 = vmatprep.subr.mxu0 0.0
      %6960 = vmatpush1.msra.mxu0 0.0
      %6961 = vmatprep.subr.mxu0 0.0
      %6962 = vmatpush1.msra.mxu0 0.0
      %6963 = vmatprep.subr.mxu0 0.0
      %6964 = vmatpush1.msra.mxu0 0.0
      %6965 = vmatprep.subr.mxu0 0.0
      %6966 = vmatpush1.msra.mxu0 0.0
      %6967 = vmatprep.subr.mxu0 0.0
      %6968 = vmatpush1.msra.mxu0 0.0
      %6969 = vmatprep.subr.mxu0 0.0
      %6970 = vmatpush1.msra.mxu0 0.0
      %6971 = vmatprep.subr.mxu0 0.0
      %6972 = vmatpush1.msra.mxu0 0.0
      %6973 = vmatprep.subr.mxu0 0.0
      %6974 = vmatpush1.msra.mxu0 0.0
      %6975 = vmatprep.subr.mxu0 0.0
      %6976 = vmatpush1.msra.mxu0 0.0
      %6977 = vmatprep.subr.mxu0 0.0
      %6978 = vmatpush1.msra.mxu0 0.0
      %6979 = vmatprep.subr.mxu0 0.0
      %6980 = vmatpush1.msra.mxu0 0.0
      %6981 = vmatprep.subr.mxu0 0.0
      %6982 = vmatpush1.msra.mxu0 0.0
      %6983 = vmatprep.subr.mxu0 0.0
      %6984 = vmatpush1.msra.mxu0 0.0
      %6985 = vmatprep.subr.mxu0 0.0
      %6986 = vmatpush1.msra.mxu0 0.0
      %6987 = vmatprep.subr.mxu0 0.0
      %6988 = vmatpush1.msra.mxu0 0.0
      %6989 = vmatprep.subr.mxu0 0.0
      %6990 = vmatpush1.msra.mxu0 0.0
      %6991 = vmatprep.subr.mxu0 0.0
      %6992 = vmatpush1.msra.mxu0 0.0
      %6993 = vmatprep.subr.mxu0 0.0
      %6994 = vmatpush1.msra.mxu0 0.0
      %6995 = vmatprep.subr.mxu0 0.0
      %6996 = vmatpush1.msra.mxu0 0.0
      %6997 = vmatprep.subr.mxu0 0.0
      %6998 = vmatpush1.msra.mxu0 0.0
      %6999 = vmatprep.subr.mxu0 0.0
      %7000 = vmatpush1.msra.mxu0 0.0
      %7001 = vmatprep.subr.mxu0 0.0
      %7002 = vmatpush1.msra.mxu0 0.0
      %7003 = vmatprep.subr.mxu0 0.0
      %7004 = vmatpush1.msra.mxu0 0.0
      %7005 = vmatprep.mubr.f32.mxu0 0.0
      %7006 = vmatmul.mubr.f32.gmra.mrb[0].mxu0 %v6939
      %v7007 = vpop.f32.mrb[0].mxu0
      %v7008 = vadd.f32 0.0, %v7007
      %v7009 = vpop.f32.mrb[0].mxu0
      %v7010 = vadd.f32 0.0, %v7009
      %7011 = vdwg.mxu0
      %v7012 = vadd.f32 %v6935, %v7008
      %v7013 = vadd.f32 %v6936, %v7010
      %7014 = vrot.lane.b32.xlu0 %v6552, 80
      %v7015 = vpop.permute.xlu0 %7014
      %v7016 = vsel %vm837, %v7015, 0
      %7018 = vmatprep.subr.mxu0 %v5315
      %7019 = vmatpush1.msra.mxu0 %v5314
      %7020 = vmatprep.subr.mxu0 0.0
      %7021 = vmatpush1.msra.mxu0 0.0
      %7022 = vmatprep.subr.mxu0 0.0
      %7023 = vmatpush1.msra.mxu0 0.0
      %7024 = vmatprep.subr.mxu0 0.0
      %7025 = vmatpush1.msra.mxu0 0.0
      %7026 = vmatprep.subr.mxu0 0.0
      %7027 = vmatpush1.msra.mxu0 0.0
      %7028 = vmatprep.subr.mxu0 0.0
      %7029 = vmatpush1.msra.mxu0 0.0
      %7030 = vmatprep.subr.mxu0 0.0
      %7031 = vmatpush1.msra.mxu0 0.0
      %7032 = vmatprep.subr.mxu0 0.0
      %7033 = vmatpush1.msra.mxu0 0.0
      %7034 = vmatprep.subr.mxu0 0.0
      %7035 = vmatpush1.msra.mxu0 0.0
      %7036 = vmatprep.subr.mxu0 0.0
      %7037 = vmatpush1.msra.mxu0 0.0
      %7038 = vmatprep.subr.mxu0 0.0
      %7039 = vmatpush1.msra.mxu0 0.0
      %7040 = vmatprep.subr.mxu0 0.0
      %7041 = vmatpush1.msra.mxu0 0.0
      %7042 = vmatprep.subr.mxu0 0.0
      %7043 = vmatpush1.msra.mxu0 0.0
      %7044 = vmatprep.subr.mxu0 0.0
      %7045 = vmatpush1.msra.mxu0 0.0
      %7046 = vmatprep.subr.mxu0 0.0
      %7047 = vmatpush1.msra.mxu0 0.0
      %7048 = vmatprep.subr.mxu0 0.0
      %7049 = vmatpush1.msra.mxu0 0.0
      %7050 = vmatprep.subr.mxu0 0.0
      %7051 = vmatpush1.msra.mxu0 0.0
      %7052 = vmatprep.subr.mxu0 0.0
      %7053 = vmatpush1.msra.mxu0 0.0
      %7054 = vmatprep.subr.mxu0 0.0
      %7055 = vmatpush1.msra.mxu0 0.0
      %7056 = vmatprep.subr.mxu0 0.0
      %7057 = vmatpush1.msra.mxu0 0.0
      %7058 = vmatprep.subr.mxu0 0.0
      %7059 = vmatpush1.msra.mxu0 0.0
      %7060 = vmatprep.subr.mxu0 0.0
      %7061 = vmatpush1.msra.mxu0 0.0
      %7062 = vmatprep.subr.mxu0 0.0
      %7063 = vmatpush1.msra.mxu0 0.0
      %7064 = vmatprep.subr.mxu0 0.0
      %7065 = vmatpush1.msra.mxu0 0.0
      %7066 = vmatprep.subr.mxu0 0.0
      %7067 = vmatpush1.msra.mxu0 0.0
      %7068 = vmatprep.subr.mxu0 0.0
      %7069 = vmatpush1.msra.mxu0 0.0
      %7070 = vmatprep.subr.mxu0 0.0
      %7071 = vmatpush1.msra.mxu0 0.0
      %7072 = vmatprep.subr.mxu0 0.0
      %7073 = vmatpush1.msra.mxu0 0.0
      %7074 = vmatprep.subr.mxu0 0.0
      %7075 = vmatpush1.msra.mxu0 0.0
      %7076 = vmatprep.subr.mxu0 0.0
      %7077 = vmatpush1.msra.mxu0 0.0
      %7078 = vmatprep.subr.mxu0 0.0
      %7079 = vmatpush1.msra.mxu0 0.0
      %7080 = vmatprep.subr.mxu0 0.0
      %7081 = vmatpush1.msra.mxu0 0.0
      %7082 = vmatprep.mubr.f32.mxu0 0.0
      %7083 = vmatmul.mubr.f32.gmra.mrb[0].mxu0 %v7016
      %v7084 = vpop.f32.mrb[0].mxu0
      %v7085 = vadd.f32 0.0, %v7084
      %v7086 = vpop.f32.mrb[0].mxu0
      %v7087 = vadd.f32 0.0, %v7086
      %7088 = vdwg.mxu0
      %v7089 = vadd.f32 %v7012, %v7085
      %v7090 = vadd.f32 %v7013, %v7087
      %7091 = vrot.lane.b32.xlu0 %v6552, 72
      %v7092 = vpop.permute.xlu0 %7091
      %v7093 = vsel %vm837, %v7092, 0
      %7095 = vmatprep.subr.mxu0 %v5317
      %7096 = vmatpush1.msra.mxu0 %v5316
      %7097 = vmatprep.subr.mxu0 0.0
      %7098 = vmatpush1.msra.mxu0 0.0
      %7099 = vmatprep.subr.mxu0 0.0
      %7100 = vmatpush1.msra.mxu0 0.0
      %7101 = vmatprep.subr.mxu0 0.0
      %7102 = vmatpush1.msra.mxu0 0.0
      %7103 = vmatprep.subr.mxu0 0.0
      %7104 = vmatpush1.msra.mxu0 0.0
      %7105 = vmatprep.subr.mxu0 0.0
      %7106 = vmatpush1.msra.mxu0 0.0
      %7107 = vmatprep.subr.mxu0 0.0
      %7108 = vmatpush1.msra.mxu0 0.0
      %7109 = vmatprep.subr.mxu0 0.0
      %7110 = vmatpush1.msra.mxu0 0.0
      %7111 = vmatprep.subr.mxu0 0.0
      %7112 = vmatpush1.msra.mxu0 0.0
      %7113 = vmatprep.subr.mxu0 0.0
      %7114 = vmatpush1.msra.mxu0 0.0
      %7115 = vmatprep.subr.mxu0 0.0
      %7116 = vmatpush1.msra.mxu0 0.0
      %7117 = vmatprep.subr.mxu0 0.0
      %7118 = vmatpush1.msra.mxu0 0.0
      %7119 = vmatprep.subr.mxu0 0.0
      %7120 = vmatpush1.msra.mxu0 0.0
      %7121 = vmatprep.subr.mxu0 0.0
      %7122 = vmatpush1.msra.mxu0 0.0
      %7123 = vmatprep.subr.mxu0 0.0
      %7124 = vmatpush1.msra.mxu0 0.0
      %7125 = vmatprep.subr.mxu0 0.0
      %7126 = vmatpush1.msra.mxu0 0.0
      %7127 = vmatprep.subr.mxu0 0.0
      %7128 = vmatpush1.msra.mxu0 0.0
      %7129 = vmatprep.subr.mxu0 0.0
      %7130 = vmatpush1.msra.mxu0 0.0
      %7131 = vmatprep.subr.mxu0 0.0
      %7132 = vmatpush1.msra.mxu0 0.0
      %7133 = vmatprep.subr.mxu0 0.0
      %7134 = vmatpush1.msra.mxu0 0.0
      %7135 = vmatprep.subr.mxu0 0.0
      %7136 = vmatpush1.msra.mxu0 0.0
      %7137 = vmatprep.subr.mxu0 0.0
      %7138 = vmatpush1.msra.mxu0 0.0
      %7139 = vmatprep.subr.mxu0 0.0
      %7140 = vmatpush1.msra.mxu0 0.0
      %7141 = vmatprep.subr.mxu0 0.0
      %7142 = vmatpush1.msra.mxu0 0.0
      %7143 = vmatprep.subr.mxu0 0.0
      %7144 = vmatpush1.msra.mxu0 0.0
      %7145 = vmatprep.subr.mxu0 0.0
      %7146 = vmatpush1.msra.mxu0 0.0
      %7147 = vmatprep.subr.mxu0 0.0
      %7148 = vmatpush1.msra.mxu0 0.0
      %7149 = vmatprep.subr.mxu0 0.0
      %7150 = vmatpush1.msra.mxu0 0.0
      %7151 = vmatprep.subr.mxu0 0.0
      %7152 = vmatpush1.msra.mxu0 0.0
      %7153 = vmatprep.subr.mxu0 0.0
      %7154 = vmatpush1.msra.mxu0 0.0
      %7155 = vmatprep.subr.mxu0 0.0
      %7156 = vmatpush1.msra.mxu0 0.0
      %7157 = vmatprep.subr.mxu0 0.0
      %7158 = vmatpush1.msra.mxu0 0.0
      %7159 = vmatprep.mubr.f32.mxu0 0.0
      %7160 = vmatmul.mubr.f32.gmra.mrb[0].mxu0 %v7093
      %v7161 = vpop.f32.mrb[0].mxu0
      %v7162 = vadd.f32 0.0, %v7161
      %v7163 = vpop.f32.mrb[0].mxu0
      %v7164 = vadd.f32 0.0, %v7163
      %7165 = vdwg.mxu0
      %v7166 = vadd.f32 %v7089, %v7162
      %v7167 = vadd.f32 %v7090, %v7164
      %7168 = vrot.lane.b32.xlu0 %v6552, 64
      %v7169 = vpop.permute.xlu0 %7168
      %v7170 = vsel %vm837, %v7169, 0
      %7172 = vmatprep.subr.mxu0 %v5319
      %7173 = vmatpush1.msra.mxu0 %v5318
      %7174 = vmatprep.subr.mxu0 0.0
      %7175 = vmatpush1.msra.mxu0 0.0
      %7176 = vmatprep.subr.mxu0 0.0
      %7177 = vmatpush1.msra.mxu0 0.0
      %7178 = vmatprep.subr.mxu0 0.0
      %7179 = vmatpush1.msra.mxu0 0.0
      %7180 = vmatprep.subr.mxu0 0.0
      %7181 = vmatpush1.msra.mxu0 0.0
      %7182 = vmatprep.subr.mxu0 0.0
      %7183 = vmatpush1.msra.mxu0 0.0
      %7184 = vmatprep.subr.mxu0 0.0
      %7185 = vmatpush1.msra.mxu0 0.0
      %7186 = vmatprep.subr.mxu0 0.0
      %7187 = vmatpush1.msra.mxu0 0.0
      %7188 = vmatprep.subr.mxu0 0.0
      %7189 = vmatpush1.msra.mxu0 0.0
      %7190 = vmatprep.subr.mxu0 0.0
      %7191 = vmatpush1.msra.mxu0 0.0
      %7192 = vmatprep.subr.mxu0 0.0
      %7193 = vmatpush1.msra.mxu0 0.0
      %7194 = vmatprep.subr.mxu0 0.0
      %7195 = vmatpush1.msra.mxu0 0.0
      %7196 = vmatprep.subr.mxu0 0.0
      %7197 = vmatpush1.msra.mxu0 0.0
      %7198 = vmatprep.subr.mxu0 0.0
      %7199 = vmatpush1.msra.mxu0 0.0
      %7200 = vmatprep.subr.mxu0 0.0
      %7201 = vmatpush1.msra.mxu0 0.0
      %7202 = vmatprep.subr.mxu0 0.0
      %7203 = vmatpush1.msra.mxu0 0.0
      %7204 = vmatprep.subr.mxu0 0.0
      %7205 = vmatpush1.msra.mxu0 0.0
      %7206 = vmatprep.subr.mxu0 0.0
      %7207 = vmatpush1.msra.mxu0 0.0
      %7208 = vmatprep.subr.mxu0 0.0
      %7209 = vmatpush1.msra.mxu0 0.0
      %7210 = vmatprep.subr.mxu0 0.0
      %7211 = vmatpush1.msra.mxu0 0.0
      %7212 = vmatprep.subr.mxu0 0.0
      %7213 = vmatpush1.msra.mxu0 0.0
      %7214 = vmatprep.subr.mxu0 0.0
      %7215 = vmatpush1.msra.mxu0 0.0
      %7216 = vmatprep.subr.mxu0 0.0
      %7217 = vmatpush1.msra.mxu0 0.0
      %7218 = vmatprep.subr.mxu0 0.0
      %7219 = vmatpush1.msra.mxu0 0.0
      %7220 = vmatprep.subr.mxu0 0.0
      %7221 = vmatpush1.msra.mxu0 0.0
      %7222 = vmatprep.subr.mxu0 0.0
      %7223 = vmatpush1.msra.mxu0 0.0
      %7224 = vmatprep.subr.mxu0 0.0
      %7225 = vmatpush1.msra.mxu0 0.0
      %7226 = vmatprep.subr.mxu0 0.0
      %7227 = vmatpush1.msra.mxu0 0.0
      %7228 = vmatprep.subr.mxu0 0.0
      %7229 = vmatpush1.msra.mxu0 0.0
      %7230 = vmatprep.subr.mxu0 0.0
      %7231 = vmatpush1.msra.mxu0 0.0
      %7232 = vmatprep.subr.mxu0 0.0
      %7233 = vmatpush1.msra.mxu0 0.0
      %7234 = vmatprep.subr.mxu0 0.0
      %7235 = vmatpush1.msra.mxu0 0.0
      %7236 = vmatprep.mubr.f32.mxu0 0.0
      %7237 = vmatmul.mubr.f32.gmra.mrb[0].mxu0 %v7170
      %v7238 = vpop.f32.mrb[0].mxu0
      %v7239 = vadd.f32 0.0, %v7238
      %v7240 = vpop.f32.mrb[0].mxu0
      %v7241 = vadd.f32 0.0, %v7240
      %7242 = vdwg.mxu0
      %v7243 = vadd.f32 %v7166, %v7239
      %v7244 = vadd.f32 %v7167, %v7241
      %7245 = vrot.lane.b32.xlu0 %v6552, 56
      %v7246 = vpop.permute.xlu0 %7245
      %v7247 = vsel %vm837, %v7246, 0
      %7249 = vmatprep.subr.mxu0 %v5321
      %7250 = vmatpush1.msra.mxu0 %v5320
      %7251 = vmatprep.subr.mxu0 0.0
      %7252 = vmatpush1.msra.mxu0 0.0
      %7253 = vmatprep.subr.mxu0 0.0
      %7254 = vmatpush1.msra.mxu0 0.0
      %7255 = vmatprep.subr.mxu0 0.0
      %7256 = vmatpush1.msra.mxu0 0.0
      %7257 = vmatprep.subr.mxu0 0.0
      %7258 = vmatpush1.msra.mxu0 0.0
      %7259 = vmatprep.subr.mxu0 0.0
      %7260 = vmatpush1.msra.mxu0 0.0
      %7261 = vmatprep.subr.mxu0 0.0
      %7262 = vmatpush1.msra.mxu0 0.0
      %7263 = vmatprep.subr.mxu0 0.0
      %7264 = vmatpush1.msra.mxu0 0.0
      %7265 = vmatprep.subr.mxu0 0.0
      %7266 = vmatpush1.msra.mxu0 0.0
      %7267 = vmatprep.subr.mxu0 0.0
      %7268 = vmatpush1.msra.mxu0 0.0
      %7269 = vmatprep.subr.mxu0 0.0
      %7270 = vmatpush1.msra.mxu0 0.0
      %7271 = vmatprep.subr.mxu0 0.0
      %7272 = vmatpush1.msra.mxu0 0.0
      %7273 = vmatprep.subr.mxu0 0.0
      %7274 = vmatpush1.msra.mxu0 0.0
      %7275 = vmatprep.subr.mxu0 0.0
      %7276 = vmatpush1.msra.mxu0 0.0
      %7277 = vmatprep.subr.mxu0 0.0
      %7278 = vmatpush1.msra.mxu0 0.0
      %7279 = vmatprep.subr.mxu0 0.0
      %7280 = vmatpush1.msra.mxu0 0.0
      %7281 = vmatprep.subr.mxu0 0.0
      %7282 = vmatpush1.msra.mxu0 0.0
      %7283 = vmatprep.subr.mxu0 0.0
      %7284 = vmatpush1.msra.mxu0 0.0
      %7285 = vmatprep.subr.mxu0 0.0
      %7286 = vmatpush1.msra.mxu0 0.0
      %7287 = vmatprep.subr.mxu0 0.0
      %7288 = vmatpush1.msra.mxu0 0.0
      %7289 = vmatprep.subr.mxu0 0.0
      %7290 = vmatpush1.msra.mxu0 0.0
      %7291 = vmatprep.subr.mxu0 0.0
      %7292 = vmatpush1.msra.mxu0 0.0
      %7293 = vmatprep.subr.mxu0 0.0
      %7294 = vmatpush1.msra.mxu0 0.0
      %7295 = vmatprep.subr.mxu0 0.0
      %7296 = vmatpush1.msra.mxu0 0.0
      %7297 = vmatprep.subr.mxu0 0.0
      %7298 = vmatpush1.msra.mxu0 0.0
      %7299 = vmatprep.subr.mxu0 0.0
      %7300 = vmatpush1.msra.mxu0 0.0
      %7301 = vmatprep.subr.mxu0 0.0
      %7302 = vmatpush1.msra.mxu0 0.0
      %7303 = vmatprep.subr.mxu0 0.0
      %7304 = vmatpush1.msra.mxu0 0.0
      %7305 = vmatprep.subr.mxu0 0.0
      %7306 = vmatpush1.msra.mxu0 0.0
      %7307 = vmatprep.subr.mxu0 0.0
      %7308 = vmatpush1.msra.mxu0 0.0
      %7309 = vmatprep.subr.mxu0 0.0
      %7310 = vmatpush1.msra.mxu0 0.0
      %7311 = vmatprep.subr.mxu0 0.0
      %7312 = vmatpush1.msra.mxu0 0.0
      %7313 = vmatprep.mubr.f32.mxu0 0.0
      %7314 = vmatmul.mubr.f32.gmra.mrb[0].mxu0 %v7247
      %v7315 = vpop.f32.mrb[0].mxu0
      %v7316 = vadd.f32 0.0, %v7315
      %v7317 = vpop.f32.mrb[0].mxu0
      %v7318 = vadd.f32 0.0, %v7317
      %7319 = vdwg.mxu0
      %v7320 = vadd.f32 %v7243, %v7316
      %v7321 = vadd.f32 %v7244, %v7318
      %7322 = vrot.lane.b32.xlu0 %v6552, 48
      %v7323 = vpop.permute.xlu0 %7322
      %v7324 = vsel %vm837, %v7323, 0
      %7326 = vmatprep.subr.mxu0 %v5323
      %7327 = vmatpush1.msra.mxu0 %v5322
      %7328 = vmatprep.subr.mxu0 0.0
      %7329 = vmatpush1.msra.mxu0 0.0
      %7330 = vmatprep.subr.mxu0 0.0
      %7331 = vmatpush1.msra.mxu0 0.0
      %7332 = vmatprep.subr.mxu0 0.0
      %7333 = vmatpush1.msra.mxu0 0.0
      %7334 = vmatprep.subr.mxu0 0.0
      %7335 = vmatpush1.msra.mxu0 0.0
      %7336 = vmatprep.subr.mxu0 0.0
      %7337 = vmatpush1.msra.mxu0 0.0
      %7338 = vmatprep.subr.mxu0 0.0
      %7339 = vmatpush1.msra.mxu0 0.0
      %7340 = vmatprep.subr.mxu0 0.0
      %7341 = vmatpush1.msra.mxu0 0.0
      %7342 = vmatprep.subr.mxu0 0.0
      %7343 = vmatpush1.msra.mxu0 0.0
      %7344 = vmatprep.subr.mxu0 0.0
      %7345 = vmatpush1.msra.mxu0 0.0
      %7346 = vmatprep.subr.mxu0 0.0
      %7347 = vmatpush1.msra.mxu0 0.0
      %7348 = vmatprep.subr.mxu0 0.0
      %7349 = vmatpush1.msra.mxu0 0.0
      %7350 = vmatprep.subr.mxu0 0.0
      %7351 = vmatpush1.msra.mxu0 0.0
      %7352 = vmatprep.subr.mxu0 0.0
      %7353 = vmatpush1.msra.mxu0 0.0
      %7354 = vmatprep.subr.mxu0 0.0
      %7355 = vmatpush1.msra.mxu0 0.0
      %7356 = vmatprep.subr.mxu0 0.0
      %7357 = vmatpush1.msra.mxu0 0.0
      %7358 = vmatprep.subr.mxu0 0.0
      %7359 = vmatpush1.msra.mxu0 0.0
      %7360 = vmatprep.subr.mxu0 0.0
      %7361 = vmatpush1.msra.mxu0 0.0
      %7362 = vmatprep.subr.mxu0 0.0
      %7363 = vmatpush1.msra.mxu0 0.0
      %7364 = vmatprep.subr.mxu0 0.0
      %7365 = vmatpush1.msra.mxu0 0.0
      %7366 = vmatprep.subr.mxu0 0.0
      %7367 = vmatpush1.msra.mxu0 0.0
      %7368 = vmatprep.subr.mxu0 0.0
      %7369 = vmatpush1.msra.mxu0 0.0
      %7370 = vmatprep.subr.mxu0 0.0
      %7371 = vmatpush1.msra.mxu0 0.0
      %7372 = vmatprep.subr.mxu0 0.0
      %7373 = vmatpush1.msra.mxu0 0.0
      %7374 = vmatprep.subr.mxu0 0.0
      %7375 = vmatpush1.msra.mxu0 0.0
      %7376 = vmatprep.subr.mxu0 0.0
      %7377 = vmatpush1.msra.mxu0 0.0
      %7378 = vmatprep.subr.mxu0 0.0
      %7379 = vmatpush1.msra.mxu0 0.0
      %7380 = vmatprep.subr.mxu0 0.0
      %7381 = vmatpush1.msra.mxu0 0.0
      %7382 = vmatprep.subr.mxu0 0.0
      %7383 = vmatpush1.msra.mxu0 0.0
      %7384 = vmatprep.subr.mxu0 0.0
      %7385 = vmatpush1.msra.mxu0 0.0
      %7386 = vmatprep.subr.mxu0 0.0
      %7387 = vmatpush1.msra.mxu0 0.0
      %7388 = vmatprep.subr.mxu0 0.0
      %7389 = vmatpush1.msra.mxu0 0.0
      %7390 = vmatprep.mubr.f32.mxu0 0.0
      %7391 = vmatmul.mubr.f32.gmra.mrb[0].mxu0 %v7324
      %v7392 = vpop.f32.mrb[0].mxu0
      %v7393 = vadd.f32 0.0, %v7392
      %v7394 = vpop.f32.mrb[0].mxu0
      %v7395 = vadd.f32 0.0, %v7394
      %7396 = vdwg.mxu0
      %v7397 = vadd.f32 %v7320, %v7393
      %v7398 = vadd.f32 %v7321, %v7395
      %v7399 = vld [vmem:[%s7] sm:$0xff]
      %7401 = vset.pattern.permute.xlu0 0
      %7402 = vperm.xlu0 %7401, %v7399
      %v7403 = vpop.permute.xlu0 %7402
      %v7405 = vadd.f32 %v7397, %v7403
      %v7406 = vadd.f32 %v7398, %v7403
      %v7407 = vadd.f32 %v7405, %v306
      %v7408 = vadd.f32 %v7406, %v307
      %vm7409 = vcmp.ge.f32.partialorder %v7407, 0.0
      %vm7410 = vcmp.ge.f32.partialorder %v7408, 0.0
      %v7411 = vmul.f32 %v7407, 0.1
      %v7412 = vmul.f32 %v7408, 0.1
      %v7413 = vsel %vm7409, %v7407, %v7411
      %v7414 = vsel %vm7410, %v7408, %v7412
      %7415 = vst [vmem:[%s305] sm:$0xff] %v7413
      %7416 = vst [vmem:[%s305 + $0x8] sm:$0xff] %v7414
      %p7417 = scmp.lt.s32.totalorder %s19, 1
      %s7418 = scalar_select %p7417, %s19, 1
      %s7419 = smul.addr %s7418, 2
      %s7420 = smul.addr %s7419, 8
      %s7421 = scalar_lea.vmem %s8, %s7420
      // Predicated region
      $region53: #{resblock3d_forward.1} parent=51 // pred_check
        %p7422 = pneg %p210
      $region54: #{resblock3d_forward.1} parent=51 // pred_check_branch
        %7424 = sbr.rel (%p7422) target = $region56
      $region55: #{resblock3d_forward.1} parent=51 // pred_region
        _
      $region56: #{resblock3d_forward.1} parent=51 // pred_fallthru
        _
    $region52: #{resblock3d_forward.1} parent=5 // pred_fallthru
      _
    %p7425 = scmp.le.s32.totalorder 2, %s14
    // Predicated region
    $region57: #{resblock3d_forward.1} parent=5 // pred_check
      %p7426 = pneg %p7425
    $region58: #{resblock3d_forward.1} parent=5 // pred_check_branch
      %7428 = sbr.rel (%p7426) target = $region60
    $region59: #{resblock3d_forward.1} parent=5 // pred_region
      %s7429 = ssub.s32 %s14, 2
      // Predicated region
      $region61: #{resblock3d_forward.1} parent=59 // pred_check
        %p7430 = pneg %p216
      $region62: #{resblock3d_forward.1} parent=59 // pred_check_branch
        %7432 = sbr.rel (%p7430) target = $region64
      $region63: #{resblock3d_forward.1} parent=59 // pred_region
        %p7433 = scmp.lt.s32.totalorder %s20, 1
        %s7434 = scalar_select %p7433, %s20, 1
        %s7435 = smul.addr %s7434, 2
        %s7436 = smul.addr %s7435, 8
        %s7437 = scalar_lea.vmem %s8, %s7436
      $region64: #{resblock3d_forward.1} parent=59 // pred_fallthru
        _
    $region60: #{resblock3d_forward.1} parent=5 // pred_fallthru
      _
  $region6: #{resblock3d_forward.1} parent=0 // loop_footer
    %s18 = sadd.s32 1, %s14
  $region7: #{resblock3d_forward.1} parent=0 // loop_footer_branch
    %13 = sbr.rel target = $region3
  $region8: #{resblock3d_forward.1} parent=0 // loop_exit
    _

</llo_original>
